<compile_context>
chip_gen: v6e
topology: v6e:2x2x1
jax: 0.10.0
libtpu: 0.0.40
codegen_flags: <defaults>
</compile_context>

<pallas_src>
import functools

import jax
import jax.numpy as jnp
from jax.experimental import pallas as pl
from jax.experimental.pallas import tpu as pltpu

BN_EPS = 1e-3
ACT_DTYPE = jnp.bfloat16          # wrapper-level DMA/MXU dtype (f32 accum inside)
MAX_TM = 320                      # cap on rows per M tile
VMEM_LIMIT = 32 * 1024 * 1024


def _round_up(x, m):
    return ((x + m - 1) // m) * m


def _choose_m_tiling(M):
    """Even grid length >= 2 (feeds both v7x TensorCores and gives the BlockSpec
    pipeline something to overlap), tile rows a multiple of 16 (bf16 sublane
    packing), minimal tail padding under a MAX_TM cap."""
    g = 2
    while -(-M // g) > MAX_TM:
        g += 2
    tm = _round_up(-(-M // g), 16)
    return tm, tm * g, g


# ----------------------------- Pallas kernels ------------------------------

def _matmul_bias_relu_kernel(p_ref, w_ref, bias_ref, o_ref):
    # p_ref: (tm, K) bf16 im2col patches; w_ref: (K, OCp) bf16 with BN scale
    # folded; bias_ref: (1, OCp) f32; o_ref: (tm, OCp) bf16, OCp % 128 == 0
    # (lane-dense store).  f32 MXU accumulation + f32 epilogue, bf16 store.
    acc = jnp.dot(p_ref[...], w_ref[...], preferred_element_type=jnp.float32)
    o_ref[...] = jnp.maximum(acc + bias_ref[...], 0.0).astype(o_ref.dtype)


def _matmul_pool_concat_kernel(p_ref, w_ref, bias_ref, o_ref, *, c_in, taps):
    # Fused [MaxPool2d(3,2,0) | BasicConv2d(3x3,s2,p0)] — both use identical
    # windows, so the conv's im2col patches feed both branches.
    # p_ref: (tm, taps*c_in) bf16 shared patches; w_ref: (taps*c_in, oc) bf16;
    # bias_ref: (1, oc) f32; o_ref: (tm, c_in + oc) bf16 = [pool | conv].
    p = p_ref[...]
    acc = jnp.dot(p, w_ref[...], preferred_element_type=jnp.float32)
    conv = jnp.maximum(acc + bias_ref[...], 0.0)
    pool = p[:, 0:c_in].astype(jnp.float32)
    for t in range(1, taps):
        pool = jnp.maximum(pool, p[:, t * c_in:(t + 1) * c_in].astype(jnp.float32))
    oc = conv.shape[1]
    o_ref[:, 0:c_in] = pool.astype(o_ref.dtype)
    o_ref[:, c_in:c_in + oc] = conv.astype(o_ref.dtype)


# ----------------------------- Pallas wrappers ------------------------------

def _pallas_matmul_bias_relu(patches, w_mat, bias):
    """patches: (M, K) bf16; w_mat: (K, OC) bf16; bias: (1, OC) f32 -> (M, OC) bf16."""
    M, K = patches.shape
    OC = w_mat.shape[1]
    OCp = _round_up(OC, 128)
    tm, Mp, g = _choose_m_tiling(M)

    if Mp != M:
        patches = jnp.pad(patches, ((0, Mp - M), (0, 0)))
    if OCp != OC:
        w_mat = jnp.pad(w_mat, ((0, 0), (0, OCp - OC)))
        bias = jnp.pad(bias, ((0, 0), (0, OCp - OC)))

    out = pl.pallas_call(
        _matmul_bias_relu_kernel,
        out_shape=jax.ShapeDtypeStruct((Mp, OCp), ACT_DTYPE),
        grid=(g,),
        in_specs=[
            pl.BlockSpec((tm, K), lambda i: (i, 0)),
            # Constant index_map -> fetched once; VMEM headroom is ample so no
            # pipeline_mode override is needed.
            pl.BlockSpec((K, OCp), lambda i: (0, 0)),
            pl.BlockSpec((1, OCp), lambda i: (0, 0)),
        ],
        out_specs=pl.BlockSpec((tm, OCp), lambda i: (i, 0)),
        compiler_params=pltpu.CompilerParams(
            dimension_semantics=("parallel",),
            vmem_limit_bytes=VMEM_LIMIT,
        ),
    )(patches, w_mat, bias)
    return out[:M, :OC]


def _pallas_pool_conv_concat(pm, w_mat, bias, c_in, taps):
    """pm: (M, taps*c_in) bf16 shared patches; returns (M, c_in+oc) bf16 [pool|conv]."""
    M = pm.shape[0]
    oc = w_mat.shape[1]
    out_w = c_in + oc
    tm, Mp, g = _choose_m_tiling(M)
    if Mp != M:
        pm = jnp.pad(pm, ((0, Mp - M), (0, 0)))

    out = pl.pallas_call(
        functools.partial(_matmul_pool_concat_kernel, c_in=c_in, taps=taps),
        out_shape=jax.ShapeDtypeStruct((Mp, out_w), ACT_DTYPE),
        grid=(g,),
        in_specs=[
            pl.BlockSpec((tm, taps * c_in), lambda i: (i, 0)),
            pl.BlockSpec((taps * c_in, oc), lambda i: (0, 0)),
            pl.BlockSpec((1, oc), lambda i: (0, 0)),
        ],
        out_specs=pl.BlockSpec((tm, out_w), lambda i: (i, 0)),
        compiler_params=pltpu.CompilerParams(
            dimension_semantics=("parallel",),
            vmem_limit_bytes=VMEM_LIMIT,
        ),
    )(pm, w_mat, bias)
    return out[:M]


# ------------------------------- JAX glue -----------------------------------

def _extract_patches(x, kh, kw, sh, sw, ph, pw):
    """x: (N, H, W, C) -> (N, OH, OW, KH*KW, C) via static strided slices."""
    if ph or pw:
        x = jnp.pad(x, ((0, 0), (ph, ph), (pw, pw), (0, 0)))
    N, H, W, C = x.shape
    oh = (H - kh) // sh + 1
    ow = (W - kw) // sw + 1
    taps = []
    for i in range(kh):
        for j in range(kw):
            taps.append(x[:, i:i + sh * (oh - 1) + 1:sh,
                          j:j + sw * (ow - 1) + 1:sw, :])
    patches = jnp.stack(taps, axis=3)
    return patches, (N, oh, ow)


def _fold_weight(w, scale):
    """Fold BN scale into the conv weight and cast to the MXU dtype."""
    kh, kw, ic, oc = w.shape
    return (w * scale[None, None, None, :]).reshape(kh * kw * ic, oc).astype(ACT_DTYPE)


def conv_bn_relu(x, params, stride, padding):
    """x: (N,H,W,C) bf16; params = (w[kh,kw,ic,oc], bn_scale[oc], bn_bias[oc])."""
    w, scale, bias = params
    kh, kw, ic, oc = w.shape
    sh, sw = stride
    ph, pw = padding
    patches, (N, oh, ow) = _extract_patches(x, kh, kw, sh, sw, ph, pw)
    pm = patches.reshape(N * oh * ow, kh * kw * ic)
    out = _pallas_matmul_bias_relu(pm, _fold_weight(w, scale), bias.reshape(1, oc))
    return out.reshape(N, oh, ow, oc)


def fused_1x1_pair(x, params_a, params_b):
    """The two step-3 1x1 heads share the same 160-ch input -> one lane-dense matmul."""
    wa, sa, ba = params_a
    wb, sb, bb = params_b
    N, H, W, C = x.shape
    oc_a = wa.shape[-1]
    wm = jnp.concatenate([_fold_weight(wa, sa), _fold_weight(wb, sb)], axis=1)
    bias = jnp.concatenate([ba, bb]).reshape(1, -1)
    pm = x.reshape(N * H * W, C)
    out = _pallas_matmul_bias_relu(pm, wm, bias).reshape(N, H, W, -1)
    return out[..., :oc_a], out[..., oc_a:]


def fused_branch_tail_3x3(xa, xb, params_a, params_b):
    """Final 3x3 convs of both step-3 branches as ONE block-diagonal matmul that
    writes the channel-concatenated [branch_a | branch_b] output directly
    (256-wide MXU N tile, one fewer pallas_call, no jnp.concatenate)."""
    wa, sa, ba = params_a
    wb, sb, bb = params_b
    pa, (N, oh, ow) = _extract_patches(xa, 3, 3, 1, 1, 0, 0)
    pb, _ = _extract_patches(xb, 3, 3, 1, 1, 0, 0)
    M = N * oh * ow
    Ka = 9 * xa.shape[-1]
    Kb = 9 * xb.shape[-1]
    pm = jnp.concatenate([pa.reshape(M, Ka), pb.reshape(M, Kb)], axis=1)

    wma = _fold_weight(wa, sa)
    wmb = _fold_weight(wb, sb)
    oc_a, oc_b = wma.shape[1], wmb.shape[1]
    wm = jnp.zeros((Ka + Kb, oc_a + oc_b), ACT_DTYPE)
    wm = wm.at[:Ka, :oc_a].set(wma)
    wm = wm.at[Ka:, oc_a:].set(wmb)
    bias = jnp.concatenate([ba, bb]).reshape(1, -1)

    out = _pallas_matmul_bias_relu(pm, wm, bias)
    return out.reshape(N, oh, ow, oc_a + oc_b)


def fused_pool_conv_concat(x, conv_params):
    """MaxPool2d(3,2,0) and BasicConv2d(3x3,s2,p0) over the SAME input.  Both use
    identical windows, so one kernel reuses the conv's im2col taps for the max
    reduction and writes the concatenated [pool | conv] output directly."""
    w, scale, bias = conv_params
    kh, kw, ic, oc = w.shape
    C = x.shape[-1]
    patches, (N, oh, ow) = _extract_patches(x, 3, 3, 2, 2, 0, 0)
    pm = patches.reshape(N * oh * ow, kh * kw * C)
    out = _pallas_pool_conv_concat(pm, _fold_weight(w, scale),
                                   bias.reshape(1, oc), C, kh * kw)
    return out.reshape(N, oh, ow, C + oc)


# --------------------------- parameter construction -------------------------

def make_conv_params(key, ic, oc, kh, kw):
    fan_in = ic * kh * kw
    w = jax.random.normal(key, (kh, kw, ic, oc), jnp.float32) / jnp.sqrt(fan_in)
    gamma = jnp.ones((oc,), jnp.float32)
    beta = jnp.zeros((oc,), jnp.float32)
    running_mean = jnp.zeros((oc,), jnp.float32)
    running_var = jnp.ones((oc,), jnp.float32)
    scale = gamma / jnp.sqrt(running_var + BN_EPS)
    bias = beta - running_mean * scale
    return (w, scale, bias)


def make_stem_params(key):
    ks = jax.random.split(key, 10)
    return {
        "s1_0":    make_conv_params(ks[0],   3,  32, 3, 3),
        "s1_1":    make_conv_params(ks[1],  32,  32, 3, 3),
        "s1_2":    make_conv_params(ks[2],  32,  64, 3, 3),
        "s2_conv": make_conv_params(ks[3],  64,  96, 3, 3),
        "s3_1_0":  make_conv_params(ks[4], 160,  64, 1, 1),
        "s3_1_1":  make_conv_params(ks[5],  64,  96, 3, 3),
        "s3_2_0":  make_conv_params(ks[6], 160,  64, 1, 1),
        "s3_2_1":  make_conv_params(ks[7],  64,  64, 7, 1),
        "s3_2_2":  make_conv_params(ks[8],  64,  64, 1, 7),
        "s3_2_3":  make_conv_params(ks[9],  64,  96, 3, 3),
        "s4_conv": make_conv_params(jax.random.fold_in(key, 99), 192, 192, 3, 3),
    }


# ------------------------------- forward pass --------------------------------

def stem_v4_res2(x_nchw, params):
    x = jnp.transpose(x_nchw, (0, 2, 3, 1)).astype(ACT_DTYPE)   # NCHW -> NHWC, bf16

    # step1
    x = conv_bn_relu(x, params["s1_0"], (2, 2), (0, 0))
    x = conv_bn_relu(x, params["s1_1"], (1, 1), (0, 0))
    x = conv_bn_relu(x, params["s1_2"], (1, 1), (1, 1))

    # step2: maxpool(3,2,0) || conv(3,2,0), fused, writes [pool|conv] (160 ch)
    x = fused_pool_conv_concat(x, params["s2_conv"])

    # step3: shared-input 1x1 heads fused; branch tails fused block-diagonally
    a0, b0 = fused_1x1_pair(x, params["s3_1_0"], params["s3_2_0"])
    b = conv_bn_relu(b0, params["s3_2_1"], (1, 1), (3, 0))   # (7,1) conv
    b = conv_bn_relu(b,  params["s3_2_2"], (1, 1), (0, 3))   # (1,7) conv
    x = fused_branch_tail_3x3(a0, b, params["s3_1_1"], params["s3_2_3"])  # 192 ch

    # step4: maxpool(3,2,0) || conv(3,2,0), fused, writes [pool|conv] (384 ch)
    x = fused_pool_conv_concat(x, params["s4_conv"])

    return jnp.transpose(x, (0, 3, 1, 2)).astype(jnp.float32)   # NHWC -> NCHW


# ---------------------------------- main -------------------------------------

if __name__ == "__main__":
    key = jax.random.PRNGKey(0)
    k_in, k_par = jax.random.split(key)

    # Small input consistent with the module: 3 input channels, spatial size
    # chosen so every valid/strided conv stays >= 1 (47 -> final 3x3 spatial).
    x = jax.random.normal(k_in, (2, 3, 47, 47), jnp.float32)
    params = make_stem_params(k_par)

    fwd = jax.jit(stem_v4_res2)
    out = fwd(x, params)
    out = jax.block_until_ready(out)

    assert out.shape == (2, 384, 3, 3), out.shape
    assert out.dtype == jnp.float32
    assert bool(jnp.all(jnp.isfinite(out)))
    print("KERNEL_OK")
</pallas_src>

<mosaic_0001>
module attributes {stable_mosaic.version = 11 : i64} {
  func.func @_matmul_bias_relu_kernel(%arg0: i32, %arg1: memref<272x27xbf16, #tpu.memory_space<vmem>>, %arg2: memref<27x128xbf16, #tpu.memory_space<vmem>>, %arg3: memref<1x128xf32, #tpu.memory_space<vmem>>, %arg4: memref<272x128xbf16, #tpu.memory_space<vmem>>) attributes {dimension_semantics = [#tpu.dimension_semantics<parallel>], iteration_bounds = array<i64: 4>, scalar_prefetch = 0 : i64, scratch_operands = 0 : i64, tpu.core_type = #tpu.core_type<tc>, window_params = [{transform_indices = @transform_0, window_bounds = array<i64: 272, 27>}, {pipeline_mode = #tpu.pipeline_mode<synchronous>, transform_indices = @transform_1, window_bounds = array<i64: 27, 128>}, {pipeline_mode = #tpu.pipeline_mode<synchronous>, transform_indices = @transform_2, window_bounds = array<i64: 1, 128>}, {transform_indices = @transform_3, window_bounds = array<i64: 272, 128>}]} {
    %c0 = arith.constant 0 : index
    %c0_0 = arith.constant 0 : index
    %0 = vector.load %arg1[%c0, %c0_0] : memref<272x27xbf16, #tpu.memory_space<vmem>>, vector<272x27xbf16>
    %c0_1 = arith.constant 0 : index
    %c0_2 = arith.constant 0 : index
    %1 = vector.load %arg2[%c0_1, %c0_2] : memref<27x128xbf16, #tpu.memory_space<vmem>>, vector<27x128xbf16>
    %cst = arith.constant dense<0.000000e+00> : vector<272x128xf32>
    %2 = tpu.matmul %0, %1, %cst {dimension_numbers = #tpu.dot_dimension_numbers<[1], [0], [0], [1], [0, 0, 1, 1], [], []>} : vector<272x27xbf16>, vector<27x128xbf16>, vector<272x128xf32> -> vector<272x128xf32>
    %c0_3 = arith.constant 0 : index
    %c0_4 = arith.constant 0 : index
    %3 = vector.load %arg3[%c0_3, %c0_4] : memref<1x128xf32, #tpu.memory_space<vmem>>, vector<1x128xf32>
    %4 = vector.broadcast %3 : vector<1x128xf32> to vector<272x128xf32>
    %5 = arith.addf %2, %4 : vector<272x128xf32>
    %cst_5 = arith.constant 0.000000e+00 : f32
    %6 = vector.broadcast %cst_5 : f32 to vector<272x128xf32>
    %7 = arith.maximumf %5, %6 : vector<272x128xf32>
    %8 = arith.truncf %7 : vector<272x128xf32> to vector<272x128xbf16>
    %c0_6 = arith.constant 0 : index
    %c0_7 = arith.constant 0 : index
    %9 = vector.load %arg4[%c0_6, %c0_7] : memref<272x128xbf16, #tpu.memory_space<vmem>>, vector<272x128xbf16>
    tpu.vector_store %arg4[%c0_6, %c0_7], %8 {strides = array<i32>} : memref<272x128xbf16, #tpu.memory_space<vmem>>, vector<272x128xbf16>,
    return
  }
  func.func @transform_0(%arg0: i32) -> (i32, i32) {
    %c0_i32 = arith.constant 0 : i32
    %c0_i32_0 = arith.constant 0 : i32
    return %arg0, %c0_i32 : i32, i32
  }
  func.func @transform_1(%arg0: i32) -> (i32, i32) {
    %c0_i32 = arith.constant 0 : i32
    %c0_i32_0 = arith.constant 0 : i32
    %c0_i32_1 = arith.constant 0 : i32
    return %c0_i32, %c0_i32_0 : i32, i32
  }
  func.func @transform_2(%arg0: i32) -> (i32, i32) {
    %c0_i32 = arith.constant 0 : i32
    %c0_i32_0 = arith.constant 0 : i32
    %c0_i32_1 = arith.constant 0 : i32
    return %c0_i32, %c0_i32_0 : i32, i32
  }
  func.func @transform_3(%arg0: i32) -> (i32, i32) {
    %c0_i32 = arith.constant 0 : i32
    %c0_i32_0 = arith.constant 0 : i32
    return %arg0, %c0_i32 : i32, i32
  }
}

module attributes {stable_mosaic.version = 11 : i64} {
  func.func @_matmul_bias_relu_kernel(%arg0: i32, %arg1: memref<224x288xbf16, #tpu.memory_space<vmem>>, %arg2: memref<288x128xbf16, #tpu.memory_space<vmem>>, %arg3: memref<1x128xf32, #tpu.memory_space<vmem>>, %arg4: memref<224x128xbf16, #tpu.memory_space<vmem>>) attributes {dimension_semantics = [#tpu.dimension_semantics<parallel>], iteration_bounds = array<i64: 4>, scalar_prefetch = 0 : i64, scratch_operands = 0 : i64, tpu.core_type = #tpu.core_type<tc>, window_params = [{transform_indices = @transform_0, window_bounds = array<i64: 224, 288>}, {pipeline_mode = #tpu.pipeline_mode<synchronous>, transform_indices = @transform_1, window_bounds = array<i64: 288, 128>}, {pipeline_mode = #tpu.pipeline_mode<synchronous>, transform_indices = @transform_2, window_bounds = array<i64: 1, 128>}, {transform_indices = @transform_3, window_bounds = array<i64: 224, 128>}]} {
    %c0 = arith.constant 0 : index
    %c0_0 = arith.constant 0 : index
    %0 = vector.load %arg1[%c0, %c0_0] : memref<224x288xbf16, #tpu.memory_space<vmem>>, vector<224x288xbf16>
    %c0_1 = arith.constant 0 : index
    %c0_2 = arith.constant 0 : index
    %1 = vector.load %arg2[%c0_1, %c0_2] : memref<288x128xbf16, #tpu.memory_space<vmem>>, vector<288x128xbf16>
    %cst = arith.constant dense<0.000000e+00> : vector<224x128xf32>
    %2 = tpu.matmul %0, %1, %cst {dimension_numbers = #tpu.dot_dimension_numbers<[1], [0], [0], [1], [0, 0, 1, 1], [], []>} : vector<224x288xbf16>, vector<288x128xbf16>, vector<224x128xf32> -> vector<224x128xf32>
    %c0_3 = arith.constant 0 : index
    %c0_4 = arith.constant 0 : index
    %3 = vector.load %arg3[%c0_3, %c0_4] : memref<1x128xf32, #tpu.memory_space<vmem>>, vector<1x128xf32>
    %4 = vector.broadcast %3 : vector<1x128xf32> to vector<224x128xf32>
    %5 = arith.addf %2, %4 : vector<224x128xf32>
    %cst_5 = arith.constant 0.000000e+00 : f32
    %6 = vector.broadcast %cst_5 : f32 to vector<224x128xf32>
    %7 = arith.maximumf %5, %6 : vector<224x128xf32>
    %8 = arith.truncf %7 : vector<224x128xf32> to vector<224x128xbf16>
    %c0_6 = arith.constant 0 : index
    %c0_7 = arith.constant 0 : index
    %9 = vector.load %arg4[%c0_6, %c0_7] : memref<224x128xbf16, #tpu.memory_space<vmem>>, vector<224x128xbf16>
    tpu.vector_store %arg4[%c0_6, %c0_7], %8 {strides = array<i32>} : memref<224x128xbf16, #tpu.memory_space<vmem>>, vector<224x128xbf16>,
    return
  }
  func.func @transform_0(%arg0: i32) -> (i32, i32) {
    %c0_i32 = arith.constant 0 : i32
    %c0_i32_0 = arith.constant 0 : i32
    return %arg0, %c0_i32 : i32, i32
  }
  func.func @transform_1(%arg0: i32) -> (i32, i32) {
    %c0_i32 = arith.constant 0 : i32
    %c0_i32_0 = arith.constant 0 : i32
    %c0_i32_1 = arith.constant 0 : i32
    return %c0_i32, %c0_i32_0 : i32, i32
  }
  func.func @transform_2(%arg0: i32) -> (i32, i32) {
    %c0_i32 = arith.constant 0 : i32
    %c0_i32_0 = arith.constant 0 : i32
    %c0_i32_1 = arith.constant 0 : i32
    return %c0_i32, %c0_i32_0 : i32, i32
  }
  func.func @transform_3(%arg0: i32) -> (i32, i32) {
    %c0_i32 = arith.constant 0 : i32
    %c0_i32_0 = arith.constant 0 : i32
    return %arg0, %c0_i32 : i32, i32
  }
}

module attributes {stable_mosaic.version = 11 : i64} {
  func.func @_matmul_pool_concat_kernel(%arg0: i32, %arg1: memref<112x576xbf16, #tpu.memory_space<vmem>>, %arg2: memref<576x96xbf16, #tpu.memory_space<vmem>>, %arg3: memref<1x96xf32, #tpu.memory_space<vmem>>, %arg4: memref<112x160xbf16, #tpu.memory_space<vmem>>) attributes {dimension_semantics = [#tpu.dimension_semantics<parallel>], iteration_bounds = array<i64: 2>, scalar_prefetch = 0 : i64, scratch_operands = 0 : i64, tpu.core_type = #tpu.core_type<tc>, window_params = [{transform_indices = @transform_0, window_bounds = array<i64: 112, 576>}, {pipeline_mode = #tpu.pipeline_mode<synchronous>, transform_indices = @transform_1, window_bounds = array<i64: 576, 96>}, {pipeline_mode = #tpu.pipeline_mode<synchronous>, transform_indices = @transform_2, window_bounds = array<i64: 1, 96>}, {transform_indices = @transform_3, window_bounds = array<i64: 112, 160>}]} {
    %c0 = arith.constant 0 : index
    %c0_0 = arith.constant 0 : index
    %0 = vector.load %arg1[%c0, %c0_0] : memref<112x576xbf16, #tpu.memory_space<vmem>>, vector<112x576xbf16>
    %c0_1 = arith.constant 0 : index
    %c0_2 = arith.constant 0 : index
    %1 = vector.load %arg2[%c0_1, %c0_2] : memref<576x96xbf16, #tpu.memory_space<vmem>>, vector<576x96xbf16>
    %cst = arith.constant dense<0.000000e+00> : vector<112x96xf32>
    %2 = tpu.matmul %0, %1, %cst {dimension_numbers = #tpu.dot_dimension_numbers<[1], [0], [0], [1], [0, 0, 1, 1], [], []>} : vector<112x576xbf16>, vector<576x96xbf16>, vector<112x96xf32> -> vector<112x96xf32>
    %c0_3 = arith.constant 0 : index
    %c0_4 = arith.constant 0 : index
    %3 = vector.load %arg3[%c0_3, %c0_4] : memref<1x96xf32, #tpu.memory_space<vmem>>, vector<1x96xf32>
    %4 = vector.broadcast %3 : vector<1x96xf32> to vector<112x96xf32>
    %5 = arith.addf %2, %4 : vector<112x96xf32>
    %cst_5 = arith.constant 0.000000e+00 : f32
    %6 = vector.broadcast %cst_5 : f32 to vector<112x96xf32>
    %7 = arith.maximumf %5, %6 : vector<112x96xf32>
    %8 = vector.extract_strided_slice %0 {offsets = [0, 0], sizes = [112, 64], strides = [1, 1]} : vector<112x576xbf16> to vector<112x64xbf16>
    %9 = arith.extf %8 : vector<112x64xbf16> to vector<112x64xf32>
    %10 = vector.extract_strided_slice %0 {offsets = [0, 64], sizes = [112, 64], strides = [1, 1]} : vector<112x576xbf16> to vector<112x64xbf16>
    %11 = arith.extf %10 : vector<112x64xbf16> to vector<112x64xf32>
    %12 = arith.maximumf %9, %11 : vector<112x64xf32>
    %13 = vector.extract_strided_slice %0 {offsets = [0, 128], sizes = [112, 64], strides = [1, 1]} : vector<112x576xbf16> to vector<112x64xbf16>
    %14 = arith.extf %13 : vector<112x64xbf16> to vector<112x64xf32>
    %15 = arith.maximumf %12, %14 : vector<112x64xf32>
    %16 = vector.extract_strided_slice %0 {offsets = [0, 192], sizes = [112, 64], strides = [1, 1]} : vector<112x576xbf16> to vector<112x64xbf16>
    %17 = arith.extf %16 : vector<112x64xbf16> to vector<112x64xf32>
    %18 = arith.maximumf %15, %17 : vector<112x64xf32>
    %19 = vector.extract_strided_slice %0 {offsets = [0, 256], sizes = [112, 64], strides = [1, 1]} : vector<112x576xbf16> to vector<112x64xbf16>
    %20 = arith.extf %19 : vector<112x64xbf16> to vector<112x64xf32>
    %21 = arith.maximumf %18, %20 : vector<112x64xf32>
    %22 = vector.extract_strided_slice %0 {offsets = [0, 320], sizes = [112, 64], strides = [1, 1]} : vector<112x576xbf16> to vector<112x64xbf16>
    %23 = arith.extf %22 : vector<112x64xbf16> to vector<112x64xf32>
    %24 = arith.maximumf %21, %23 : vector<112x64xf32>
    %25 = vector.extract_strided_slice %0 {offsets = [0, 384], sizes = [112, 64], strides = [1, 1]} : vector<112x576xbf16> to vector<112x64xbf16>
    %26 = arith.extf %25 : vector<112x64xbf16> to vector<112x64xf32>
    %27 = arith.maximumf %24, %26 : vector<112x64xf32>
    %28 = vector.extract_strided_slice %0 {offsets = [0, 448], sizes = [112, 64], strides = [1, 1]} : vector<112x576xbf16> to vector<112x64xbf16>
    %29 = arith.extf %28 : vector<112x64xbf16> to vector<112x64xf32>
    %30 = arith.maximumf %27, %29 : vector<112x64xf32>
    %31 = vector.extract_strided_slice %0 {offsets = [0, 512], sizes = [112, 64], strides = [1, 1]} : vector<112x576xbf16> to vector<112x64xbf16>
    %32 = arith.extf %31 : vector<112x64xbf16> to vector<112x64xf32>
    %33 = arith.maximumf %30, %32 : vector<112x64xf32>
    %34 = arith.truncf %33 : vector<112x64xf32> to vector<112x64xbf16>
    %c0_6 = arith.constant 0 : index
    %c0_7 = arith.constant 0 : index
    %35 = vector.load %arg4[%c0_6, %c0_7] : memref<112x160xbf16, #tpu.memory_space<vmem>>, vector<112x64xbf16>
    tpu.vector_store %arg4[%c0_6, %c0_7], %34 {strides = array<i32>} : memref<112x160xbf16, #tpu.memory_space<vmem>>, vector<112x64xbf16>,
    %36 = arith.truncf %7 : vector<112x96xf32> to vector<112x96xbf16>
    %c0_8 = arith.constant 0 : index
    %c64 = arith.constant 64 : index
    %37 = vector.load %arg4[%c0_8, %c64] : memref<112x160xbf16, #tpu.memory_space<vmem>>, vector<112x96xbf16>
    tpu.vector_store %arg4[%c0_8, %c64], %36 {strides = array<i32>} : memref<112x160xbf16, #tpu.memory_space<vmem>>, vector<112x96xbf16>,
    return
  }
  func.func @transform_0(%arg0: i32) -> (i32, i32) {
    %c0_i32 = arith.constant 0 : i32
    %c0_i32_0 = arith.constant 0 : i32
    return %arg0, %c0_i32 : i32, i32
  }
  func.func @transform_1(%arg0: i32) -> (i32, i32) {
    %c0_i32 = arith.constant 0 : i32
    %c0_i32_0 = arith.constant 0 : i32
    %c0_i32_1 = arith.constant 0 : i32
    return %c0_i32, %c0_i32_0 : i32, i32
  }
  func.func @transform_2(%arg0: i32) -> (i32, i32) {
    %c0_i32 = arith.constant 0 : i32
    %c0_i32_0 = arith.constant 0 : i32
    %c0_i32_1 = arith.constant 0 : i32
    return %c0_i32, %c0_i32_0 : i32, i32
  }
  func.func @transform_3(%arg0: i32) -> (i32, i32) {
    %c0_i32 = arith.constant 0 : i32
    %c0_i32_0 = arith.constant 0 : i32
    return %arg0, %c0_i32 : i32, i32
  }
}

module attributes {stable_mosaic.version = 11 : i64} {
  func.func @_matmul_bias_relu_kernel(%arg0: i32, %arg1: memref<112x160xbf16, #tpu.memory_space<vmem>>, %arg2: memref<160x128xbf16, #tpu.memory_space<vmem>>, %arg3: memref<1x128xf32, #tpu.memory_space<vmem>>, %arg4: memref<112x128xbf16, #tpu.memory_space<vmem>>) attributes {dimension_semantics = [#tpu.dimension_semantics<parallel>], iteration_bounds = array<i64: 2>, scalar_prefetch = 0 : i64, scratch_operands = 0 : i64, tpu.core_type = #tpu.core_type<tc>, window_params = [{transform_indices = @transform_0, window_bounds = array<i64: 112, 160>}, {pipeline_mode = #tpu.pipeline_mode<synchronous>, transform_indices = @transform_1, window_bounds = array<i64: 160, 128>}, {pipeline_mode = #tpu.pipeline_mode<synchronous>, transform_indices = @transform_2, window_bounds = array<i64: 1, 128>}, {transform_indices = @transform_3, window_bounds = array<i64: 112, 128>}]} {
    %c0 = arith.constant 0 : index
    %c0_0 = arith.constant 0 : index
    %0 = vector.load %arg1[%c0, %c0_0] : memref<112x160xbf16, #tpu.memory_space<vmem>>, vector<112x160xbf16>
    %c0_1 = arith.constant 0 : index
    %c0_2 = arith.constant 0 : index
    %1 = vector.load %arg2[%c0_1, %c0_2] : memref<160x128xbf16, #tpu.memory_space<vmem>>, vector<160x128xbf16>
    %cst = arith.constant dense<0.000000e+00> : vector<112x128xf32>
    %2 = tpu.matmul %0, %1, %cst {dimension_numbers = #tpu.dot_dimension_numbers<[1], [0], [0], [1], [0, 0, 1, 1], [], []>} : vector<112x160xbf16>, vector<160x128xbf16>, vector<112x128xf32> -> vector<112x128xf32>
    %c0_3 = arith.constant 0 : index
    %c0_4 = arith.constant 0 : index
    %3 = vector.load %arg3[%c0_3, %c0_4] : memref<1x128xf32, #tpu.memory_space<vmem>>, vector<1x128xf32>
    %4 = vector.broadcast %3 : vector<1x128xf32> to vector<112x128xf32>
    %5 = arith.addf %2, %4 : vector<112x128xf32>
    %cst_5 = arith.constant 0.000000e+00 : f32
    %6 = vector.broadcast %cst_5 : f32 to vector<112x128xf32>
    %7 = arith.maximumf %5, %6 : vector<112x128xf32>
    %8 = arith.truncf %7 : vector<112x128xf32> to vector<112x128xbf16>
    %c0_6 = arith.constant 0 : index
    %c0_7 = arith.constant 0 : index
    %9 = vector.load %arg4[%c0_6, %c0_7] : memref<112x128xbf16, #tpu.memory_space<vmem>>, vector<112x128xbf16>
    tpu.vector_store %arg4[%c0_6, %c0_7], %8 {strides = array<i32>} : memref<112x128xbf16, #tpu.memory_space<vmem>>, vector<112x128xbf16>,
    return
  }
  func.func @transform_0(%arg0: i32) -> (i32, i32) {
    %c0_i32 = arith.constant 0 : i32
    %c0_i32_0 = arith.constant 0 : i32
    return %arg0, %c0_i32 : i32, i32
  }
  func.func @transform_1(%arg0: i32) -> (i32, i32) {
    %c0_i32 = arith.constant 0 : i32
    %c0_i32_0 = arith.constant 0 : i32
    %c0_i32_1 = arith.constant 0 : i32
    return %c0_i32, %c0_i32_0 : i32, i32
  }
  func.func @transform_2(%arg0: i32) -> (i32, i32) {
    %c0_i32 = arith.constant 0 : i32
    %c0_i32_0 = arith.constant 0 : i32
    %c0_i32_1 = arith.constant 0 : i32
    return %c0_i32, %c0_i32_0 : i32, i32
  }
  func.func @transform_3(%arg0: i32) -> (i32, i32) {
    %c0_i32 = arith.constant 0 : i32
    %c0_i32_0 = arith.constant 0 : i32
    return %arg0, %c0_i32 : i32, i32
  }
}

module attributes {stable_mosaic.version = 11 : i64} {
  func.func @_matmul_bias_relu_kernel(%arg0: i32, %arg1: memref<112x448xbf16, #tpu.memory_space<vmem>>, %arg2: memref<448x128xbf16, #tpu.memory_space<vmem>>, %arg3: memref<1x128xf32, #tpu.memory_space<vmem>>, %arg4: memref<112x128xbf16, #tpu.memory_space<vmem>>) attributes {dimension_semantics = [#tpu.dimension_semantics<parallel>], iteration_bounds = array<i64: 2>, scalar_prefetch = 0 : i64, scratch_operands = 0 : i64, tpu.core_type = #tpu.core_type<tc>, window_params = [{transform_indices = @transform_0, window_bounds = array<i64: 112, 448>}, {pipeline_mode = #tpu.pipeline_mode<synchronous>, transform_indices = @transform_1, window_bounds = array<i64: 448, 128>}, {pipeline_mode = #tpu.pipeline_mode<synchronous>, transform_indices = @transform_2, window_bounds = array<i64: 1, 128>}, {transform_indices = @transform_3, window_bounds = array<i64: 112, 128>}]} {
    %c0 = arith.constant 0 : index
    %c0_0 = arith.constant 0 : index
    %0 = vector.load %arg1[%c0, %c0_0] : memref<112x448xbf16, #tpu.memory_space<vmem>>, vector<112x448xbf16>
    %c0_1 = arith.constant 0 : index
    %c0_2 = arith.constant 0 : index
    %1 = vector.load %arg2[%c0_1, %c0_2] : memref<448x128xbf16, #tpu.memory_space<vmem>>, vector<448x128xbf16>
    %cst = arith.constant dense<0.000000e+00> : vector<112x128xf32>
    %2 = tpu.matmul %0, %1, %cst {dimension_numbers = #tpu.dot_dimension_numbers<[1], [0], [0], [1], [0, 0, 1, 1], [], []>} : vector<112x448xbf16>, vector<448x128xbf16>, vector<112x128xf32> -> vector<112x128xf32>
    %c0_3 = arith.constant 0 : index
    %c0_4 = arith.constant 0 : index
    %3 = vector.load %arg3[%c0_3, %c0_4] : memref<1x128xf32, #tpu.memory_space<vmem>>, vector<1x128xf32>
    %4 = vector.broadcast %3 : vector<1x128xf32> to vector<112x128xf32>
    %5 = arith.addf %2, %4 : vector<112x128xf32>
    %cst_5 = arith.constant 0.000000e+00 : f32
    %6 = vector.broadcast %cst_5 : f32 to vector<112x128xf32>
    %7 = arith.maximumf %5, %6 : vector<112x128xf32>
    %8 = arith.truncf %7 : vector<112x128xf32> to vector<112x128xbf16>
    %c0_6 = arith.constant 0 : index
    %c0_7 = arith.constant 0 : index
    %9 = vector.load %arg4[%c0_6, %c0_7] : memref<112x128xbf16, #tpu.memory_space<vmem>>, vector<112x128xbf16>
    tpu.vector_store %arg4[%c0_6, %c0_7], %8 {strides = array<i32>} : memref<112x128xbf16, #tpu.memory_space<vmem>>, vector<112x128xbf16>,
    return
  }
  func.func @transform_0(%arg0: i32) -> (i32, i32) {
    %c0_i32 = arith.constant 0 : i32
    %c0_i32_0 = arith.constant 0 : i32
    return %arg0, %c0_i32 : i32, i32
  }
  func.func @transform_1(%arg0: i32) -> (i32, i32) {
    %c0_i32 = arith.constant 0 : i32
    %c0_i32_0 = arith.constant 0 : i32
    %c0_i32_1 = arith.constant 0 : i32
    return %c0_i32, %c0_i32_0 : i32, i32
  }
  func.func @transform_2(%arg0: i32) -> (i32, i32) {
    %c0_i32 = arith.constant 0 : i32
    %c0_i32_0 = arith.constant 0 : i32
    %c0_i32_1 = arith.constant 0 : i32
    return %c0_i32, %c0_i32_0 : i32, i32
  }
  func.func @transform_3(%arg0: i32) -> (i32, i32) {
    %c0_i32 = arith.constant 0 : i32
    %c0_i32_0 = arith.constant 0 : i32
    return %arg0, %c0_i32 : i32, i32
  }
}

module attributes {stable_mosaic.version = 11 : i64} {
  func.func @_matmul_bias_relu_kernel(%arg0: i32, %arg1: memref<64x1152xbf16, #tpu.memory_space<vmem>>, %arg2: memref<1152x256xbf16, #tpu.memory_space<vmem>>, %arg3: memref<1x256xf32, #tpu.memory_space<vmem>>, %arg4: memref<64x256xbf16, #tpu.memory_space<vmem>>) attributes {dimension_semantics = [#tpu.dimension_semantics<parallel>], iteration_bounds = array<i64: 2>, scalar_prefetch = 0 : i64, scratch_operands = 0 : i64, tpu.core_type = #tpu.core_type<tc>, window_params = [{transform_indices = @transform_0, window_bounds = array<i64: 64, 1152>}, {pipeline_mode = #tpu.pipeline_mode<synchronous>, transform_indices = @transform_1, window_bounds = array<i64: 1152, 256>}, {pipeline_mode = #tpu.pipeline_mode<synchronous>, transform_indices = @transform_2, window_bounds = array<i64: 1, 256>}, {transform_indices = @transform_3, window_bounds = array<i64: 64, 256>}]} {
    %c0 = arith.constant 0 : index
    %c0_0 = arith.constant 0 : index
    %0 = vector.load %arg1[%c0, %c0_0] : memref<64x1152xbf16, #tpu.memory_space<vmem>>, vector<64x1152xbf16>
    %c0_1 = arith.constant 0 : index
    %c0_2 = arith.constant 0 : index
    %1 = vector.load %arg2[%c0_1, %c0_2] : memref<1152x256xbf16, #tpu.memory_space<vmem>>, vector<1152x256xbf16>
    %cst = arith.constant dense<0.000000e+00> : vector<64x256xf32>
    %2 = tpu.matmul %0, %1, %cst {dimension_numbers = #tpu.dot_dimension_numbers<[1], [0], [0], [1], [0, 0, 1, 1], [], []>} : vector<64x1152xbf16>, vector<1152x256xbf16>, vector<64x256xf32> -> vector<64x256xf32>
    %c0_3 = arith.constant 0 : index
    %c0_4 = arith.constant 0 : index
    %3 = vector.load %arg3[%c0_3, %c0_4] : memref<1x256xf32, #tpu.memory_space<vmem>>, vector<1x256xf32>
    %4 = vector.broadcast %3 : vector<1x256xf32> to vector<64x256xf32>
    %5 = arith.addf %2, %4 : vector<64x256xf32>
    %cst_5 = arith.constant 0.000000e+00 : f32
    %6 = vector.broadcast %cst_5 : f32 to vector<64x256xf32>
    %7 = arith.maximumf %5, %6 : vector<64x256xf32>
    %8 = arith.truncf %7 : vector<64x256xf32> to vector<64x256xbf16>
    %c0_6 = arith.constant 0 : index
    %c0_7 = arith.constant 0 : index
    %9 = vector.load %arg4[%c0_6, %c0_7] : memref<64x256xbf16, #tpu.memory_space<vmem>>, vector<64x256xbf16>
    tpu.vector_store %arg4[%c0_6, %c0_7], %8 {strides = array<i32>} : memref<64x256xbf16, #tpu.memory_space<vmem>>, vector<64x256xbf16>,
    return
  }
  func.func @transform_0(%arg0: i32) -> (i32, i32) {
    %c0_i32 = arith.constant 0 : i32
    %c0_i32_0 = arith.constant 0 : i32
    return %arg0, %c0_i32 : i32, i32
  }
  func.func @transform_1(%arg0: i32) -> (i32, i32) {
    %c0_i32 = arith.constant 0 : i32
    %c0_i32_0 = arith.constant 0 : i32
    %c0_i32_1 = arith.constant 0 : i32
    return %c0_i32, %c0_i32_0 : i32, i32
  }
  func.func @transform_2(%arg0: i32) -> (i32, i32) {
    %c0_i32 = arith.constant 0 : i32
    %c0_i32_0 = arith.constant 0 : i32
    %c0_i32_1 = arith.constant 0 : i32
    return %c0_i32, %c0_i32_0 : i32, i32
  }
  func.func @transform_3(%arg0: i32) -> (i32, i32) {
    %c0_i32 = arith.constant 0 : i32
    %c0_i32_0 = arith.constant 0 : i32
    return %arg0, %c0_i32 : i32, i32
  }
}

module attributes {stable_mosaic.version = 11 : i64} {
  func.func @_matmul_pool_concat_kernel(%arg0: i32, %arg1: memref<16x1728xbf16, #tpu.memory_space<vmem>>, %arg2: memref<1728x192xbf16, #tpu.memory_space<vmem>>, %arg3: memref<1x192xf32, #tpu.memory_space<vmem>>, %arg4: memref<16x384xbf16, #tpu.memory_space<vmem>>) attributes {dimension_semantics = [#tpu.dimension_semantics<parallel>], iteration_bounds = array<i64: 2>, scalar_prefetch = 0 : i64, scratch_operands = 0 : i64, tpu.core_type = #tpu.core_type<tc>, window_params = [{transform_indices = @transform_0, window_bounds = array<i64: 16, 1728>}, {pipeline_mode = #tpu.pipeline_mode<synchronous>, transform_indices = @transform_1, window_bounds = array<i64: 1728, 192>}, {pipeline_mode = #tpu.pipeline_mode<synchronous>, transform_indices = @transform_2, window_bounds = array<i64: 1, 192>}, {transform_indices = @transform_3, window_bounds = array<i64: 16, 384>}]} {
    %c0 = arith.constant 0 : index
    %c0_0 = arith.constant 0 : index
    %0 = vector.load %arg1[%c0, %c0_0] : memref<16x1728xbf16, #tpu.memory_space<vmem>>, vector<16x1728xbf16>
    %c0_1 = arith.constant 0 : index
    %c0_2 = arith.constant 0 : index
    %1 = vector.load %arg2[%c0_1, %c0_2] : memref<1728x192xbf16, #tpu.memory_space<vmem>>, vector<1728x192xbf16>
    %cst = arith.constant dense<0.000000e+00> : vector<16x192xf32>
    %2 = tpu.matmul %0, %1, %cst {dimension_numbers = #tpu.dot_dimension_numbers<[1], [0], [0], [1], [0, 0, 1, 1], [], []>} : vector<16x1728xbf16>, vector<1728x192xbf16>, vector<16x192xf32> -> vector<16x192xf32>
    %c0_3 = arith.constant 0 : index
    %c0_4 = arith.constant 0 : index
    %3 = vector.load %arg3[%c0_3, %c0_4] : memref<1x192xf32, #tpu.memory_space<vmem>>, vector<1x192xf32>
    %4 = vector.broadcast %3 : vector<1x192xf32> to vector<16x192xf32>
    %5 = arith.addf %2, %4 : vector<16x192xf32>
    %cst_5 = arith.constant 0.000000e+00 : f32
    %6 = vector.broadcast %cst_5 : f32 to vector<16x192xf32>
    %7 = arith.maximumf %5, %6 : vector<16x192xf32>
    %8 = vector.extract_strided_slice %0 {offsets = [0, 0], sizes = [16, 192], strides = [1, 1]} : vector<16x1728xbf16> to vector<16x192xbf16>
    %9 = arith.extf %8 : vector<16x192xbf16> to vector<16x192xf32>
    %10 = vector.extract_strided_slice %0 {offsets = [0, 192], sizes = [16, 192], strides = [1, 1]} : vector<16x1728xbf16> to vector<16x192xbf16>
    %11 = arith.extf %10 : vector<16x192xbf16> to vector<16x192xf32>
    %12 = arith.maximumf %9, %11 : vector<16x192xf32>
    %13 = vector.extract_strided_slice %0 {offsets = [0, 384], sizes = [16, 192], strides = [1, 1]} : vector<16x1728xbf16> to vector<16x192xbf16>
    %14 = arith.extf %13 : vector<16x192xbf16> to vector<16x192xf32>
    %15 = arith.maximumf %12, %14 : vector<16x192xf32>
    %16 = vector.extract_strided_slice %0 {offsets = [0, 576], sizes = [16, 192], strides = [1, 1]} : vector<16x1728xbf16> to vector<16x192xbf16>
    %17 = arith.extf %16 : vector<16x192xbf16> to vector<16x192xf32>
    %18 = arith.maximumf %15, %17 : vector<16x192xf32>
    %19 = vector.extract_strided_slice %0 {offsets = [0, 768], sizes = [16, 192], strides = [1, 1]} : vector<16x1728xbf16> to vector<16x192xbf16>
    %20 = arith.extf %19 : vector<16x192xbf16> to vector<16x192xf32>
    %21 = arith.maximumf %18, %20 : vector<16x192xf32>
    %22 = vector.extract_strided_slice %0 {offsets = [0, 960], sizes = [16, 192], strides = [1, 1]} : vector<16x1728xbf16> to vector<16x192xbf16>
    %23 = arith.extf %22 : vector<16x192xbf16> to vector<16x192xf32>
    %24 = arith.maximumf %21, %23 : vector<16x192xf32>
    %25 = vector.extract_strided_slice %0 {offsets = [0, 1152], sizes = [16, 192], strides = [1, 1]} : vector<16x1728xbf16> to vector<16x192xbf16>
    %26 = arith.extf %25 : vector<16x192xbf16> to vector<16x192xf32>
    %27 = arith.maximumf %24, %26 : vector<16x192xf32>
    %28 = vector.extract_strided_slice %0 {offsets = [0, 1344], sizes = [16, 192], strides = [1, 1]} : vector<16x1728xbf16> to vector<16x192xbf16>
    %29 = arith.extf %28 : vector<16x192xbf16> to vector<16x192xf32>
    %30 = arith.maximumf %27, %29 : vector<16x192xf32>
    %31 = vector.extract_strided_slice %0 {offsets = [0, 1536], sizes = [16, 192], strides = [1, 1]} : vector<16x1728xbf16> to vector<16x192xbf16>
    %32 = arith.extf %31 : vector<16x192xbf16> to vector<16x192xf32>
    %33 = arith.maximumf %30, %32 : vector<16x192xf32>
    %34 = arith.truncf %33 : vector<16x192xf32> to vector<16x192xbf16>
    %c0_6 = arith.constant 0 : index
    %c0_7 = arith.constant 0 : index
    %35 = vector.load %arg4[%c0_6, %c0_7] : memref<16x384xbf16, #tpu.memory_space<vmem>>, vector<16x192xbf16>
    tpu.vector_store %arg4[%c0_6, %c0_7], %34 {strides = array<i32>} : memref<16x384xbf16, #tpu.memory_space<vmem>>, vector<16x192xbf16>,
    %36 = arith.truncf %7 : vector<16x192xf32> to vector<16x192xbf16>
    %c0_8 = arith.constant 0 : index
    %c192 = arith.constant 192 : index
    %37 = vector.load %arg4[%c0_8, %c192] : memref<16x384xbf16, #tpu.memory_space<vmem>>, vector<16x192xbf16>
    tpu.vector_store %arg4[%c0_8, %c192], %36 {strides = array<i32>} : memref<16x384xbf16, #tpu.memory_space<vmem>>, vector<16x192xbf16>,
    return
  }
  func.func @transform_0(%arg0: i32) -> (i32, i32) {
    %c0_i32 = arith.constant 0 : i32
    %c0_i32_0 = arith.constant 0 : i32
    return %arg0, %c0_i32 : i32, i32
  }
  func.func @transform_1(%arg0: i32) -> (i32, i32) {
    %c0_i32 = arith.constant 0 : i32
    %c0_i32_0 = arith.constant 0 : i32
    %c0_i32_1 = arith.constant 0 : i32
    return %c0_i32, %c0_i32_0 : i32, i32
  }
  func.func @transform_2(%arg0: i32) -> (i32, i32) {
    %c0_i32 = arith.constant 0 : i32
    %c0_i32_0 = arith.constant 0 : i32
    %c0_i32_1 = arith.constant 0 : i32
    return %c0_i32, %c0_i32_0 : i32, i32
  }
  func.func @transform_3(%arg0: i32) -> (i32, i32) {
    %c0_i32 = arith.constant 0 : i32
    %c0_i32_0 = arith.constant 0 : i32
    return %arg0, %c0_i32 : i32, i32
  }
}

</mosaic_0001>

<llo_original>
// kernel: stem_v4_res2.9
$region0: #{stem_v4_res2.9}
  #allocation0 [shape = 'u32[]', space=smem, size = 0x4, offset = 0x4, fixed_abs, tag = 'smem constant byte address 0x4 - core index']
  #allocation1 [shape = 'u32[144,128]{1,0:T(1,128)}', space=vmem, size = 0x12000, scoped, tag = 'internal scratch']
  %s0 = inlined_call_operand.vmem [shape: bf16[1088,27], index: 0, kind: input, shape index: {}]
  %s1 = inlined_call_operand.vmem [shape: bf16[27,128], index: 1, kind: input, shape index: {}]
  %s2 = inlined_call_operand.vmem [shape: f32[1,128], index: 2, kind: input, shape index: {}]
  %s3 = inlined_call_operand.vmem [shape: bf16[1088,128], index: 3, kind: output, shape index: {}]
  %s4 = sld [smem:[#allocation0]]
  $region45: #{stem_v4_res2.9} parent=0
    _
  %s6 = ssub.s32 1, %s4
  %s7 = scalar_select 0, %s6, %s4
  loop: start=0, step=1, limit=6
  $region2: #{stem_v4_res2.9} parent=0 // loop_pre_header
    _
  $region3: #{stem_v4_res2.9} parent=0 // loop_header
    %s9 = sphi 0, %s13
    %p10 = scmp.ge.s32.totalorder %s9, 6
    %s19 = sphi 0, %s21
    %s22 = sphi 0, %s19
    %s23 = sphi 0, %s22
    %s39 = sphi 0, %s23
    %s43 = sphi 0, %s43
    %s45 = sphi 0, %s43
    %s46 = sphi 0, %s45
    %s60 = sphi 0, %s46
    %s64 = sphi 0, %s64
    %s66 = sphi 0, %s64
    %s67 = sphi 0, %s66
    %s81 = sphi 0, %s67
    %s87 = sphi 0, %s89
    %s90 = sphi 0, %s87
    %s91 = sphi 0, %s90
    %s107 = sphi 0, %s91
  $region4: #{stem_v4_res2.9} parent=0 // loop_header_branch
    %12 = sbr.rel (%p10) target = $region8
  $region5: #{stem_v4_res2.9} parent=0 // loop_body
    %s14 = ssub.s32 %s9, 1
    %s15 = ssub.s32 %s9, 2
    %s16 = sadd.s32 %s9, 1
    %s17 = ssub.s32 %s9, %s16
    %p18 = scmp.eq.s32.totalorder %s17, 0
    %s20 = sadd.s32 %s19, 1
    %s21 = scalar_select %p18, %s19, %s20
    %p24 = pneg %p18
    %p25 = scmp.eq.s32.totalorder %s9, 3
    %p26 = por %p24, %p25
    %p27 = scmp.ne.s32.totalorder %s19, %s22
    %p28 = scmp.eq.s32.totalorder %s9, 0
    %p29 = por %p27, %p28
    %p30 = scmp.ne.s32.totalorder %s19, %s22
    %p31 = scmp.eq.s32.totalorder %s14, 3
    %p32 = por %p30, %p31
    %p33 = scmp.ne.s32.totalorder %s22, %s23
    %p34 = scmp.eq.s32.totalorder %s14, 0
    %p35 = por %p33, %p34
    %p36 = scmp.ne.s32.totalorder %s22, %s23
    %p37 = scmp.eq.s32.totalorder %s15, 3
    %p38 = por %p36, %p37
    %p40 = scmp.ne.s32.totalorder %s23, %s39
    %p41 = scmp.eq.s32.totalorder %s15, 0
    %p42 = por %p40, %p41
    %s44 = sadd.s32 %s43, 1
    %p47 = scmp.eq.s32.totalorder %s9, 3
    %p48 = scmp.ne.s32.totalorder %s43, %s45
    %p49 = scmp.eq.s32.totalorder %s9, 0
    %p50 = por %p48, %p49
    %p51 = scmp.ne.s32.totalorder %s43, %s45
    %p52 = scmp.eq.s32.totalorder %s14, 3
    %p53 = por %p51, %p52
    %p54 = scmp.ne.s32.totalorder %s45, %s46
    %p55 = scmp.eq.s32.totalorder %s14, 0
    %p56 = por %p54, %p55
    %p57 = scmp.ne.s32.totalorder %s45, %s46
    %p58 = scmp.eq.s32.totalorder %s15, 3
    %p59 = por %p57, %p58
    %p61 = scmp.ne.s32.totalorder %s46, %s60
    %p62 = scmp.eq.s32.totalorder %s15, 0
    %p63 = por %p61, %p62
    %s65 = sadd.s32 %s64, 1
    %p68 = scmp.eq.s32.totalorder %s9, 3
    %p69 = scmp.ne.s32.totalorder %s64, %s66
    %p70 = scmp.eq.s32.totalorder %s9, 0
    %p71 = por %p69, %p70
    %p72 = scmp.ne.s32.totalorder %s64, %s66
    %p73 = scmp.eq.s32.totalorder %s14, 3
    %p74 = por %p72, %p73
    %p75 = scmp.ne.s32.totalorder %s66, %s67
    %p76 = scmp.eq.s32.totalorder %s14, 0
    %p77 = por %p75, %p76
    %p78 = scmp.ne.s32.totalorder %s66, %s67
    %p79 = scmp.eq.s32.totalorder %s15, 3
    %p80 = por %p78, %p79
    %p82 = scmp.ne.s32.totalorder %s67, %s81
    %p83 = scmp.eq.s32.totalorder %s15, 0
    %p84 = por %p82, %p83
    %s85 = ssub.s32 %s9, %s16
    %p86 = scmp.eq.s32.totalorder %s85, 0
    %s88 = sadd.s32 %s87, 1
    %s89 = scalar_select %p86, %s87, %s88
    %p92 = pneg %p86
    %p93 = scmp.eq.s32.totalorder %s9, 3
    %p94 = por %p92, %p93
    %p95 = scmp.ne.s32.totalorder %s87, %s90
    %p96 = scmp.eq.s32.totalorder %s9, 0
    %p97 = por %p95, %p96
    %p98 = scmp.ne.s32.totalorder %s87, %s90
    %p99 = scmp.eq.s32.totalorder %s14, 3
    %p100 = por %p98, %p99
    %p101 = scmp.ne.s32.totalorder %s90, %s91
    %p102 = scmp.eq.s32.totalorder %s14, 0
    %p103 = por %p101, %p102
    %p104 = scmp.ne.s32.totalorder %s90, %s91
    %p105 = scmp.eq.s32.totalorder %s15, 3
    %p106 = por %p104, %p105
    %p108 = scmp.ne.s32.totalorder %s91, %s107
    %p109 = scmp.eq.s32.totalorder %s15, 0
    %p110 = por %p108, %p109
    %p111 = scmp.le.s32.totalorder 1, %s9
    %p112 = scmp.lt.s32.totalorder %s9, 5
    %p113 = pnand %p111, %p112
    %p114 = pneg %p113
    // Predicated region
    $region9: #{stem_v4_res2.9} parent=5 // pred_check
      _
    $region10: #{stem_v4_res2.9} parent=5 // pred_check_branch
      %116 = sbr.rel (%p113) target = $region12
    $region11: #{stem_v4_res2.9} parent=5 // pred_region
      %s117 = ssub.s32 %s9, 1
      // Predicated region
      $region13: #{stem_v4_res2.9} parent=11 // pred_check
        %p118 = pneg %p56
      $region14: #{stem_v4_res2.9} parent=11 // pred_check_branch
        %120 = sbr.rel (%p118) target = $region16
      $region15: #{stem_v4_res2.9} parent=11 // pred_region
        _
      $region16: #{stem_v4_res2.9} parent=11 // pred_fallthru
        _
      // Predicated region
      $region17: #{stem_v4_res2.9} parent=11 // pred_check
        %p121 = pneg %p77
      $region18: #{stem_v4_res2.9} parent=11 // pred_check_branch
        %123 = sbr.rel (%p121) target = $region20
      $region19: #{stem_v4_res2.9} parent=11 // pred_region
        _
      $region20: #{stem_v4_res2.9} parent=11 // pred_fallthru
        _
    $region12: #{stem_v4_res2.9} parent=5 // pred_fallthru
      _
    %p124 = scmp.lt.s32.totalorder %s9, 4
    // Predicated region
    $region21: #{stem_v4_res2.9} parent=5 // pred_check
      %p125 = pneg %p124
    $region22: #{stem_v4_res2.9} parent=5 // pred_check_branch
      %127 = sbr.rel (%p125) target = $region24
    $region23: #{stem_v4_res2.9} parent=5 // pred_region
      // Predicated region
      $region25: #{stem_v4_res2.9} parent=23 // pred_check
        %p128 = pneg %p29
      $region26: #{stem_v4_res2.9} parent=23 // pred_check_branch
        %130 = sbr.rel (%p128) target = $region28
      $region27: #{stem_v4_res2.9} parent=23 // pred_region
        %s131 = smul.u32 34, %s9
        %p132 = scmp.lt.s32.totalorder %s131, 135
        %s133 = scalar_select %p132, %s131, 135
        %s134 = smul.addr %s133, 4
        %s135 = scalar_lea.vmem %s0, %s134
        %s136 = smul.u32 34, %s9
      $region28: #{stem_v4_res2.9} parent=23 // pred_fallthru
        _
    $region24: #{stem_v4_res2.9} parent=5 // pred_fallthru
      _
    %p137 = scmp.le.s32.totalorder 1, %s9
    %p138 = scmp.lt.s32.totalorder %s9, 5
    %p139 = pnand %p137, %p138
    %p140 = pneg %p139
    // Predicated region
    $region29: #{stem_v4_res2.9} parent=5 // pred_check
      _
    $region30: #{stem_v4_res2.9} parent=5 // pred_check_branch
      %142 = sbr.rel (%p139) target = $region32
    $region31: #{stem_v4_res2.9} parent=5 // pred_region
      %s143 = ssub.s32 %s9, 1
      %s144 = smul.u32 34, %s14
      %p145 = scmp.lt.s32.totalorder %s144, 135
      %s146 = scalar_select %p145, %s144, 135
      %s147 = smul.addr %s146, 4
      %s148 = scalar_lea.vmem %s0, %s147
      %p149 = pneg %p35
      %p150 = pneg %p32
      %p151 = pneg %p56
      %p152 = pneg %p53
      %p153 = pneg %p77
      %p154 = pneg %p74
      %p155 = pneg %p103
      %p156 = pneg %p100
      %s157 = smul.u32 34, %s14
      %p158 = scmp.lt.s32.totalorder %s157, 135
      %s159 = scalar_select %p158, %s157, 135
      %s160 = smul.addr %s159, 4
      %s161 = scalar_lea.vmem %s3, %s160
      %s162 = smul.u32 34, %s14
      %p163 = scmp.lt.s32.totalorder %s162, 135
      %s164 = scalar_select %p163, %s162, 135
      %s165 = smul.addr %s164, 4
      %s166 = scalar_lea.vmem %s0, %s165
      %s167 = smul.u32 34, %s14
      %s168 = smul.u32 34, %s14
      %p169 = scmp.lt.s32.totalorder %s168, 135
      %s170 = scalar_select %p169, %s168, 135
      %s171 = smul.addr %s170, 4
      %s172 = scalar_lea.vmem %s3, %s171
      %s173 = smul.u32 34, %s14
      %v175 = vld [vmem:[%s166] sm:$0xf]
      %v176 = vld [vmem:[%s166 + $0x4] sm:$0xf]
      %v177 = vld [vmem:[%s166 + $0x8] sm:$0xf]
      %v178 = vld [vmem:[%s166 + $0xc] sm:$0xf]
      %v179 = vld [vmem:[%s166 + $0x10] sm:$0xf]
      %v180 = vld [vmem:[%s166 + $0x14] sm:$0xf]
      %v181 = vld [vmem:[%s166 + $0x18] sm:$0xf]
      %v182 = vld [vmem:[%s166 + $0x1c] sm:$0xf]
      %v183 = vld [vmem:[%s166 + $0x20] sm:$0xf]
      %v184 = vld [vmem:[%s166 + $0x24] sm:$0xf]
      %v185 = vld [vmem:[%s166 + $0x28] sm:$0xf]
      %v186 = vld [vmem:[%s166 + $0x2c] sm:$0xf]
      %v187 = vld [vmem:[%s166 + $0x30] sm:$0xf]
      %v188 = vld [vmem:[%s166 + $0x34] sm:$0xf]
      %v189 = vld [vmem:[%s166 + $0x38] sm:$0xf]
      %v190 = vld [vmem:[%s166 + $0x3c] sm:$0xf]
      %v191 = vld [vmem:[%s166 + $0x40] sm:$0xf]
      %v192 = vld [vmem:[%s166 + $0x44] sm:$0xf]
      %v193 = vld [vmem:[%s166 + $0x48] sm:$0xf]
      %v194 = vld [vmem:[%s166 + $0x4c] sm:$0xf]
      %v195 = vld [vmem:[%s166 + $0x50] sm:$0xf]
      %v196 = vld [vmem:[%s166 + $0x54] sm:$0xf]
      %v197 = vld [vmem:[%s166 + $0x58] sm:$0xf]
      %v198 = vld [vmem:[%s166 + $0x5c] sm:$0xf]
      %v199 = vld [vmem:[%s166 + $0x60] sm:$0xf]
      %v200 = vld [vmem:[%s166 + $0x64] sm:$0xf]
      %v201 = vld [vmem:[%s166 + $0x68] sm:$0xf]
      %v202 = vld [vmem:[%s166 + $0x6c] sm:$0xf]
      %v203 = vld [vmem:[%s166 + $0x70] sm:$0xf]
      %v204 = vld [vmem:[%s166 + $0x74] sm:$0xf]
      %v205 = vld [vmem:[%s166 + $0x78] sm:$0xf]
      %v206 = vld [vmem:[%s166 + $0x7c] sm:$0xf]
      %v207 = vld [vmem:[%s166 + $0x80] sm:$0xf]
      %v208 = vld [vmem:[%s166 + $0x84] sm:$0xf]
      %v209 = vld [vmem:[%s1] sm:$0xf]
      %v210 = vld [vmem:[%s1 + $0x4] sm:$0xf]
      %v211 = vld [vmem:[%s1 + $0x8] sm:$0xf]
      %v212 = vld [vmem:[%s1 + $0xc] sm:$0x3]
      %v213 = vld [vmem:[%s2] sm:$0x1]
      %v215 = vlaneseq
      %v216 = vshrl.u32 %v215, 7
      %v217 = vsub.s32 0, %v216
      %v218 = vrot.slane %v213, %v217
      %v254 = vunpack.c.l.b16 %v175
      %v255 = vunpack.c.l.b16 %v176
      %v256 = vunpack.c.l.b16 %v177
      %v257 = vunpack.c.l.b16 %v178
      %v258 = vunpack.c.l.b16 %v179
      %v259 = vunpack.c.l.b16 %v180
      %v260 = vunpack.c.l.b16 %v181
      %v261 = vunpack.c.l.b16 %v182
      %v262 = vunpack.c.l.b16 %v183
      %v263 = vunpack.c.l.b16 %v184
      %v264 = vunpack.c.l.b16 %v185
      %v265 = vunpack.c.l.b16 %v186
      %v266 = vunpack.c.l.b16 %v187
      %v267 = vunpack.c.l.b16 %v188
      %v268 = vunpack.c.l.b16 %v189
      %v269 = vunpack.c.l.b16 %v190
      %v270 = vunpack.c.l.b16 %v191
      %v271 = vunpack.c.l.b16 %v192
      %v272 = vunpack.c.l.b16 %v193
      %v273 = vunpack.c.l.b16 %v194
      %v274 = vunpack.c.l.b16 %v195
      %v275 = vunpack.c.l.b16 %v196
      %v276 = vunpack.c.l.b16 %v197
      %v277 = vunpack.c.l.b16 %v198
      %v278 = vunpack.c.l.b16 %v199
      %v279 = vunpack.c.l.b16 %v200
      %v280 = vunpack.c.l.b16 %v201
      %v281 = vunpack.c.l.b16 %v202
      %v282 = vunpack.c.l.b16 %v203
      %v283 = vunpack.c.l.b16 %v204
      %v284 = vunpack.c.l.b16 %v205
      %v285 = vunpack.c.l.b16 %v206
      %v286 = vunpack.c.l.b16 %v207
      %v287 = vunpack.c.l.b16 %v208
      %v288 = vpack.c.b16 %v255, %v254
      %v289 = vpack.c.b16 %v257, %v256
      %v290 = vpack.c.b16 %v259, %v258
      %v291 = vpack.c.b16 %v261, %v260
      %v292 = vpack.c.b16 %v263, %v262
      %v293 = vpack.c.b16 %v265, %v264
      %v294 = vpack.c.b16 %v267, %v266
      %v295 = vpack.c.b16 %v269, %v268
      %v296 = vpack.c.b16 %v271, %v270
      %v297 = vpack.c.b16 %v273, %v272
      %v298 = vpack.c.b16 %v275, %v274
      %v299 = vpack.c.b16 %v277, %v276
      %v300 = vpack.c.b16 %v279, %v278
      %v301 = vpack.c.b16 %v281, %v280
      %v302 = vpack.c.b16 %v283, %v282
      %v303 = vpack.c.b16 %v285, %v284
      %v304 = vpack.c.b16 %v287, %v286
      %v309 = vunpack.c.l.b16 %v209
      %v310 = vunpack.c.l.b16 %v210
      %v311 = vunpack.c.l.b16 %v211
      %v312 = vunpack.c.l.b16 %v212
      %v313 = vpack.c.b16 %v310, %v309
      %v314 = vpack.c.b16 %v312, %v311
      %vm316 = vcmask 220160
      %v318 = vsel %vm316, %v288, 0
      %v321 = vsel %vm316, %v289, 0
      %v324 = vsel %vm316, %v290, 0
      %v327 = vsel %vm316, %v291, 0
      %v330 = vsel %vm316, %v292, 0
      %v333 = vsel %vm316, %v293, 0
      %v336 = vsel %vm316, %v294, 0
      %v339 = vsel %vm316, %v295, 0
      %v342 = vsel %vm316, %v296, 0
      %v345 = vsel %vm316, %v297, 0
      %v348 = vsel %vm316, %v298, 0
      %v351 = vsel %vm316, %v299, 0
      %v354 = vsel %vm316, %v300, 0
      %v357 = vsel %vm316, %v301, 0
      %v360 = vsel %vm316, %v302, 0
      %v363 = vsel %vm316, %v303, 0
      %v366 = vsel %vm316, %v304, 0
      %vm368 = vcmask 1044480
      %vm369 = vcmask 1045504
      %v370 = vsel %vm368, 4294967295, 65535
      %v371 = vsel %vm369, %v370, 0
      %v373 = vand.u32 %v314, %v371
      %375 = vmatprep.subr.bf16.mxu0 0
      %376 = vmatpush1.bf16.msra.mxu0 0
      %377 = vmatprep.subr.bf16.mxu0 0
      %378 = vmatpush1.bf16.msra.mxu0 0
      %379 = vmatprep.subr.bf16.mxu0 0
      %380 = vmatpush1.bf16.msra.mxu0 0
      %381 = vmatprep.subr.bf16.mxu0 0
      %382 = vmatpush1.bf16.msra.mxu0 0
      %383 = vmatprep.subr.bf16.mxu0 0
      %384 = vmatpush1.bf16.msra.mxu0 0
      %385 = vmatprep.subr.bf16.mxu0 0
      %386 = vmatpush1.bf16.msra.mxu0 0
      %387 = vmatprep.subr.bf16.mxu0 0
      %388 = vmatpush1.bf16.msra.mxu0 %v373
      %389 = vmatprep.subr.bf16.mxu0 0
      %390 = vmatpush1.bf16.msra.mxu0 %v313
      %391 = vmatprep.subr.bf16.mxu0 0
      %392 = vmatpush2.bf16.msra.mxu0 0
      %393 = vmatprep.subr.bf16.mxu0 0
      %394 = vmatpush2.bf16.msra.mxu0 0
      %395 = vmatprep.subr.bf16.mxu0 0
      %396 = vmatpush2.bf16.msra.mxu0 0
      %397 = vmatprep.subr.bf16.mxu0 0
      %398 = vmatpush2.bf16.msra.mxu0 0
      %399 = vmatprep.subr.bf16.mxu0 0
      %400 = vmatpush2.bf16.msra.mxu0 0
      %401 = vmatprep.subr.bf16.mxu0 0
      %402 = vmatpush2.bf16.msra.mxu0 0
      %403 = vmatprep.subr.bf16.mxu0 0
      %404 = vmatpush2.bf16.msra.mxu0 0
      %405 = vmatprep.subr.bf16.mxu0 0
      %406 = vmatpush2.bf16.msra.mxu0 0
      %407 = vmatprep.mubr.bf16.mxu0 0
      %408 = vmatmul.mubr.bf16.gmra.mxu0 %v318
      %v409 = vpop.f32.mrf.mxu0
      %v410 = vadd.f32 %v218, %v409
      %v411 = vpop.f32.mrf.mxu0
      %v412 = vpop.f32.mrf.mxu0
      %v413 = vadd.f32 %v218, %v412
      %v414 = vpop.f32.mrf.mxu0
      %415 = vmatprep.mubr.bf16.mxu0 0
      %416 = vmatmul.mubr.bf16.gmra.mxu0 %v321
      %v417 = vpop.f32.mrf.mxu0
      %v418 = vadd.f32 %v218, %v417
      %v419 = vpop.f32.mrf.mxu0
      %v420 = vpop.f32.mrf.mxu0
      %v421 = vadd.f32 %v218, %v420
      %v422 = vpop.f32.mrf.mxu0
      %423 = vmatprep.mubr.bf16.mxu0 0
      %424 = vmatmul.mubr.bf16.gmra.mxu0 %v324
      %v425 = vpop.f32.mrf.mxu0
      %v426 = vadd.f32 %v218, %v425
      %v427 = vpop.f32.mrf.mxu0
      %v428 = vpop.f32.mrf.mxu0
      %v429 = vadd.f32 %v218, %v428
      %v430 = vpop.f32.mrf.mxu0
      %431 = vmatprep.mubr.bf16.mxu0 0
      %432 = vmatmul.mubr.bf16.gmra.mxu0 %v327
      %v433 = vpop.f32.mrf.mxu0
      %v434 = vadd.f32 %v218, %v433
      %v435 = vpop.f32.mrf.mxu0
      %v436 = vpop.f32.mrf.mxu0
      %v437 = vadd.f32 %v218, %v436
      %v438 = vpop.f32.mrf.mxu0
      %439 = vmatprep.mubr.bf16.mxu0 0
      %440 = vmatmul.mubr.bf16.gmra.mxu0 %v330
      %v441 = vpop.f32.mrf.mxu0
      %v442 = vadd.f32 %v218, %v441
      %v443 = vpop.f32.mrf.mxu0
      %v444 = vpop.f32.mrf.mxu0
      %v445 = vadd.f32 %v218, %v444
      %v446 = vpop.f32.mrf.mxu0
      %447 = vmatprep.mubr.bf16.mxu0 0
      %448 = vmatmul.mubr.bf16.gmra.mxu0 %v333
      %v449 = vpop.f32.mrf.mxu0
      %v450 = vadd.f32 %v218, %v449
      %v451 = vpop.f32.mrf.mxu0
      %v452 = vpop.f32.mrf.mxu0
      %v453 = vadd.f32 %v218, %v452
      %v454 = vpop.f32.mrf.mxu0
      %455 = vmatprep.mubr.bf16.mxu0 0
      %456 = vmatmul.mubr.bf16.gmra.mxu0 %v336
      %v457 = vpop.f32.mrf.mxu0
      %v458 = vadd.f32 %v218, %v457
      %v459 = vpop.f32.mrf.mxu0
      %v460 = vpop.f32.mrf.mxu0
      %v461 = vadd.f32 %v218, %v460
      %v462 = vpop.f32.mrf.mxu0
      %463 = vmatprep.mubr.bf16.mxu0 0
      %464 = vmatmul.mubr.bf16.gmra.mxu0 %v339
      %v465 = vpop.f32.mrf.mxu0
      %v466 = vadd.f32 %v218, %v465
      %v467 = vpop.f32.mrf.mxu0
      %v468 = vpop.f32.mrf.mxu0
      %v469 = vadd.f32 %v218, %v468
      %v470 = vpop.f32.mrf.mxu0
      %471 = vmatprep.mubr.bf16.mxu0 0
      %472 = vmatmul.mubr.bf16.gmra.mxu0 %v342
      %v473 = vpop.f32.mrf.mxu0
      %v474 = vadd.f32 %v218, %v473
      %v475 = vpop.f32.mrf.mxu0
      %v476 = vpop.f32.mrf.mxu0
      %v477 = vadd.f32 %v218, %v476
      %v478 = vpop.f32.mrf.mxu0
      %479 = vmatprep.mubr.bf16.mxu0 0
      %480 = vmatmul.mubr.bf16.gmra.mxu0 %v345
      %v481 = vpop.f32.mrf.mxu0
      %v482 = vadd.f32 %v218, %v481
      %v483 = vpop.f32.mrf.mxu0
      %v484 = vpop.f32.mrf.mxu0
      %v485 = vadd.f32 %v218, %v484
      %v486 = vpop.f32.mrf.mxu0
      %487 = vmatprep.mubr.bf16.mxu0 0
      %488 = vmatmul.mubr.bf16.gmra.mxu0 %v348
      %v489 = vpop.f32.mrf.mxu0
      %v490 = vadd.f32 %v218, %v489
      %v491 = vpop.f32.mrf.mxu0
      %v492 = vpop.f32.mrf.mxu0
      %v493 = vadd.f32 %v218, %v492
      %v494 = vpop.f32.mrf.mxu0
      %495 = vmatprep.mubr.bf16.mxu0 0
      %496 = vmatmul.mubr.bf16.gmra.mxu0 %v351
      %v497 = vpop.f32.mrf.mxu0
      %v498 = vadd.f32 %v218, %v497
      %v499 = vpop.f32.mrf.mxu0
      %v500 = vpop.f32.mrf.mxu0
      %v501 = vadd.f32 %v218, %v500
      %v502 = vpop.f32.mrf.mxu0
      %503 = vmatprep.mubr.bf16.mxu0 0
      %504 = vmatmul.mubr.bf16.gmra.mxu0 %v354
      %v505 = vpop.f32.mrf.mxu0
      %v506 = vadd.f32 %v218, %v505
      %v507 = vpop.f32.mrf.mxu0
      %v508 = vpop.f32.mrf.mxu0
      %v509 = vadd.f32 %v218, %v508
      %v510 = vpop.f32.mrf.mxu0
      %511 = vmatprep.mubr.bf16.mxu0 0
      %512 = vmatmul.mubr.bf16.gmra.mxu0 %v357
      %v513 = vpop.f32.mrf.mxu0
      %v514 = vadd.f32 %v218, %v513
      %v515 = vpop.f32.mrf.mxu0
      %v516 = vpop.f32.mrf.mxu0
      %v517 = vadd.f32 %v218, %v516
      %v518 = vpop.f32.mrf.mxu0
      %519 = vmatprep.mubr.bf16.mxu0 0
      %520 = vmatmul.mubr.bf16.gmra.mxu0 %v360
      %v521 = vpop.f32.mrf.mxu0
      %v522 = vadd.f32 %v218, %v521
      %v523 = vpop.f32.mrf.mxu0
      %v524 = vpop.f32.mrf.mxu0
      %v525 = vadd.f32 %v218, %v524
      %v526 = vpop.f32.mrf.mxu0
      %527 = vmatprep.mubr.bf16.mxu0 0
      %528 = vmatmul.mubr.bf16.gmra.mxu0 %v363
      %v529 = vpop.f32.mrf.mxu0
      %v530 = vadd.f32 %v218, %v529
      %v531 = vpop.f32.mrf.mxu0
      %v532 = vpop.f32.mrf.mxu0
      %v533 = vadd.f32 %v218, %v532
      %v534 = vpop.f32.mrf.mxu0
      %535 = vmatprep.mubr.bf16.mxu0 0
      %536 = vmatmul.mubr.bf16.gmra.mxu0 %v366
      %v537 = vpop.f32.mrf.mxu0
      %v538 = vadd.f32 %v218, %v537
      %v539 = vpop.f32.mrf.mxu0
      %v540 = vpop.f32.mrf.mxu0
      %v541 = vadd.f32 %v218, %v540
      %v542 = vpop.f32.mrf.mxu0
      %543 = vdwg.mxu0
      %v544 = vmax.f32 %v410, 0.0
      %v545 = vmax.f32 %v413, 0.0
      %v546 = vmax.f32 %v418, 0.0
      %v547 = vmax.f32 %v421, 0.0
      %v548 = vmax.f32 %v426, 0.0
      %v549 = vmax.f32 %v429, 0.0
      %v550 = vmax.f32 %v434, 0.0
      %v551 = vmax.f32 %v437, 0.0
      %v552 = vmax.f32 %v442, 0.0
      %v553 = vmax.f32 %v445, 0.0
      %v554 = vmax.f32 %v450, 0.0
      %v555 = vmax.f32 %v453, 0.0
      %v556 = vmax.f32 %v458, 0.0
      %v557 = vmax.f32 %v461, 0.0
      %v558 = vmax.f32 %v466, 0.0
      %v559 = vmax.f32 %v469, 0.0
      %v560 = vmax.f32 %v474, 0.0
      %v561 = vmax.f32 %v477, 0.0
      %v562 = vmax.f32 %v482, 0.0
      %v563 = vmax.f32 %v485, 0.0
      %v564 = vmax.f32 %v490, 0.0
      %v565 = vmax.f32 %v493, 0.0
      %v566 = vmax.f32 %v498, 0.0
      %v567 = vmax.f32 %v501, 0.0
      %v568 = vmax.f32 %v506, 0.0
      %v569 = vmax.f32 %v509, 0.0
      %v570 = vmax.f32 %v514, 0.0
      %v571 = vmax.f32 %v517, 0.0
      %v572 = vmax.f32 %v522, 0.0
      %v573 = vmax.f32 %v525, 0.0
      %v574 = vmax.f32 %v530, 0.0
      %v575 = vmax.f32 %v533, 0.0
      %v576 = vmax.f32 %v538, 0.0
      %v577 = vmax.f32 %v541, 0.0
      %v578 = vpack.c.bf16 %v545, %v544
      %v579 = vpack.c.bf16 %v547, %v546
      %v580 = vpack.c.bf16 %v549, %v548
      %v581 = vpack.c.bf16 %v551, %v550
      %v582 = vpack.c.bf16 %v553, %v552
      %v583 = vpack.c.bf16 %v555, %v554
      %v584 = vpack.c.bf16 %v557, %v556
      %v585 = vpack.c.bf16 %v559, %v558
      %v586 = vpack.c.bf16 %v561, %v560
      %v587 = vpack.c.bf16 %v563, %v562
      %v588 = vpack.c.bf16 %v565, %v564
      %v589 = vpack.c.bf16 %v567, %v566
      %v590 = vpack.c.bf16 %v569, %v568
      %v591 = vpack.c.bf16 %v571, %v570
      %v592 = vpack.c.bf16 %v573, %v572
      %v593 = vpack.c.bf16 %v575, %v574
      %v594 = vpack.c.bf16 %v577, %v576
      %v612 = vunpack.c.l.b16 %v578
      %v613 = vunpack.c.h.b16 %v578
      %v614 = vunpack.c.l.b16 %v579
      %v615 = vunpack.c.h.b16 %v579
      %v616 = vunpack.c.l.b16 %v580
      %v617 = vunpack.c.h.b16 %v580
      %v618 = vunpack.c.l.b16 %v581
      %v619 = vunpack.c.h.b16 %v581
      %v620 = vunpack.c.l.b16 %v582
      %v621 = vunpack.c.h.b16 %v582
      %v622 = vunpack.c.l.b16 %v583
      %v623 = vunpack.c.h.b16 %v583
      %v624 = vunpack.c.l.b16 %v584
      %v625 = vunpack.c.h.b16 %v584
      %v626 = vunpack.c.l.b16 %v585
      %v627 = vunpack.c.h.b16 %v585
      %v628 = vunpack.c.l.b16 %v586
      %v629 = vunpack.c.h.b16 %v586
      %v630 = vunpack.c.l.b16 %v587
      %v631 = vunpack.c.h.b16 %v587
      %v632 = vunpack.c.l.b16 %v588
      %v633 = vunpack.c.h.b16 %v588
      %v634 = vunpack.c.l.b16 %v589
      %v635 = vunpack.c.h.b16 %v589
      %v636 = vunpack.c.l.b16 %v590
      %v637 = vunpack.c.h.b16 %v590
      %v638 = vunpack.c.l.b16 %v591
      %v639 = vunpack.c.h.b16 %v591
      %v640 = vunpack.c.l.b16 %v592
      %v641 = vunpack.c.h.b16 %v592
      %v642 = vunpack.c.l.b16 %v593
      %v643 = vunpack.c.h.b16 %v593
      %v644 = vunpack.c.l.b16 %v594
      %v645 = vunpack.c.h.b16 %v594
      %v646 = vpack.c.b16 %v612, %v612
      %v647 = vpack.c.b16 %v613, %v613
      %v648 = vpack.c.b16 %v614, %v614
      %v649 = vpack.c.b16 %v615, %v615
      %v650 = vpack.c.b16 %v616, %v616
      %v651 = vpack.c.b16 %v617, %v617
      %v652 = vpack.c.b16 %v618, %v618
      %v653 = vpack.c.b16 %v619, %v619
      %v654 = vpack.c.b16 %v620, %v620
      %v655 = vpack.c.b16 %v621, %v621
      %v656 = vpack.c.b16 %v622, %v622
      %v657 = vpack.c.b16 %v623, %v623
      %v658 = vpack.c.b16 %v624, %v624
      %v659 = vpack.c.b16 %v625, %v625
      %v660 = vpack.c.b16 %v626, %v626
      %v661 = vpack.c.b16 %v627, %v627
      %v662 = vpack.c.b16 %v628, %v628
      %v663 = vpack.c.b16 %v629, %v629
      %v664 = vpack.c.b16 %v630, %v630
      %v665 = vpack.c.b16 %v631, %v631
      %v666 = vpack.c.b16 %v632, %v632
      %v667 = vpack.c.b16 %v633, %v633
      %v668 = vpack.c.b16 %v634, %v634
      %v669 = vpack.c.b16 %v635, %v635
      %v670 = vpack.c.b16 %v636, %v636
      %v671 = vpack.c.b16 %v637, %v637
      %v672 = vpack.c.b16 %v638, %v638
      %v673 = vpack.c.b16 %v639, %v639
      %v674 = vpack.c.b16 %v640, %v640
      %v675 = vpack.c.b16 %v641, %v641
      %v676 = vpack.c.b16 %v642, %v642
      %v677 = vpack.c.b16 %v643, %v643
      %v678 = vpack.c.b16 %v644, %v644
      %v679 = vpack.c.b16 %v645, %v645
      %714 = vst [vmem:[%s172] sm:$0xf] %v646
      %715 = vst [vmem:[%s172 + $0x4] sm:$0xf] %v647
      %716 = vst [vmem:[%s172 + $0x8] sm:$0xf] %v648
      %717 = vst [vmem:[%s172 + $0xc] sm:$0xf] %v649
      %718 = vst [vmem:[%s172 + $0x10] sm:$0xf] %v650
      %719 = vst [vmem:[%s172 + $0x14] sm:$0xf] %v651
      %720 = vst [vmem:[%s172 + $0x18] sm:$0xf] %v652
      %721 = vst [vmem:[%s172 + $0x1c] sm:$0xf] %v653
      %722 = vst [vmem:[%s172 + $0x20] sm:$0xf] %v654
      %723 = vst [vmem:[%s172 + $0x24] sm:$0xf] %v655
      %724 = vst [vmem:[%s172 + $0x28] sm:$0xf] %v656
      %725 = vst [vmem:[%s172 + $0x2c] sm:$0xf] %v657
      %726 = vst [vmem:[%s172 + $0x30] sm:$0xf] %v658
      %727 = vst [vmem:[%s172 + $0x34] sm:$0xf] %v659
      %728 = vst [vmem:[%s172 + $0x38] sm:$0xf] %v660
      %729 = vst [vmem:[%s172 + $0x3c] sm:$0xf] %v661
      %730 = vst [vmem:[%s172 + $0x40] sm:$0xf] %v662
      %731 = vst [vmem:[%s172 + $0x44] sm:$0xf] %v663
      %732 = vst [vmem:[%s172 + $0x48] sm:$0xf] %v664
      %733 = vst [vmem:[%s172 + $0x4c] sm:$0xf] %v665
      %734 = vst [vmem:[%s172 + $0x50] sm:$0xf] %v666
      %735 = vst [vmem:[%s172 + $0x54] sm:$0xf] %v667
      %736 = vst [vmem:[%s172 + $0x58] sm:$0xf] %v668
      %737 = vst [vmem:[%s172 + $0x5c] sm:$0xf] %v669
      %738 = vst [vmem:[%s172 + $0x60] sm:$0xf] %v670
      %739 = vst [vmem:[%s172 + $0x64] sm:$0xf] %v671
      %740 = vst [vmem:[%s172 + $0x68] sm:$0xf] %v672
      %741 = vst [vmem:[%s172 + $0x6c] sm:$0xf] %v673
      %742 = vst [vmem:[%s172 + $0x70] sm:$0xf] %v674
      %743 = vst [vmem:[%s172 + $0x74] sm:$0xf] %v675
      %744 = vst [vmem:[%s172 + $0x78] sm:$0xf] %v676
      %745 = vst [vmem:[%s172 + $0x7c] sm:$0xf] %v677
      %746 = vst [vmem:[%s172 + $0x80] sm:$0xf] %v678
      %747 = vst [vmem:[%s172 + $0x84] sm:$0xf] %v679
      %s748 = smul.u32 34, %s14
      %p749 = scmp.lt.s32.totalorder %s748, 135
      %s750 = scalar_select %p749, %s748, 135
      %s751 = smul.addr %s750, 4
      %s752 = scalar_lea.vmem %s3, %s751
      // Predicated region
      $region33: #{stem_v4_res2.9} parent=31 // pred_check
        %p753 = pneg %p100
      $region34: #{stem_v4_res2.9} parent=31 // pred_check_branch
        %755 = sbr.rel (%p753) target = $region36
      $region35: #{stem_v4_res2.9} parent=31 // pred_region
        %s756 = smul.u32 34, %s14
      $region36: #{stem_v4_res2.9} parent=31 // pred_fallthru
        _
    $region32: #{stem_v4_res2.9} parent=5 // pred_fallthru
      _
    %p757 = scmp.le.s32.totalorder 2, %s9
    // Predicated region
    $region37: #{stem_v4_res2.9} parent=5 // pred_check
      %p758 = pneg %p757
    $region38: #{stem_v4_res2.9} parent=5 // pred_check_branch
      %760 = sbr.rel (%p758) target = $region40
    $region39: #{stem_v4_res2.9} parent=5 // pred_region
      %s761 = ssub.s32 %s9, 2
      // Predicated region
      $region41: #{stem_v4_res2.9} parent=39 // pred_check
        %p762 = pneg %p106
      $region42: #{stem_v4_res2.9} parent=39 // pred_check_branch
        %764 = sbr.rel (%p762) target = $region44
      $region43: #{stem_v4_res2.9} parent=39 // pred_region
        %s765 = smul.u32 34, %s15
        %p766 = scmp.lt.s32.totalorder %s765, 135
        %s767 = scalar_select %p766, %s765, 135
        %s768 = smul.addr %s767, 4
        %s769 = scalar_lea.vmem %s3, %s768
      $region44: #{stem_v4_res2.9} parent=39 // pred_fallthru
        _
    $region40: #{stem_v4_res2.9} parent=5 // pred_fallthru
      _
  $region6: #{stem_v4_res2.9} parent=0 // loop_footer
    %s13 = sadd.s32 1, %s9
  $region7: #{stem_v4_res2.9} parent=0 // loop_footer_branch
    %8 = sbr.rel target = $region3
  $region8: #{stem_v4_res2.9} parent=0 // loop_exit
    _

// kernel: stem_v4_res2.10
$region0: #{stem_v4_res2.10}
  #allocation0 [shape = 'u32[]', space=smem, size = 0x4, offset = 0x4, fixed_abs, tag = 'smem constant byte address 0x4 - core index']
  #allocation1 [shape = 'u32[144,128]{1,0:T(1,128)}', space=vmem, size = 0x12000, scoped, tag = 'internal scratch']
  %s0 = inlined_call_operand.vmem [shape: bf16[896,288], index: 0, kind: input, shape index: {}]
  %s1 = inlined_call_operand.vmem [shape: bf16[288,128], index: 1, kind: input, shape index: {}]
  %s2 = inlined_call_operand.vmem [shape: f32[1,128], index: 2, kind: input, shape index: {}]
  %s3 = inlined_call_operand.vmem [shape: bf16[896,128], index: 3, kind: output, shape index: {}]
  %s4 = sld [smem:[#allocation0]]
  $region45: #{stem_v4_res2.10} parent=0
    _
  %s6 = ssub.s32 1, %s4
  %s7 = scalar_select 0, %s6, %s4
  loop: start=0, step=1, limit=6
  $region2: #{stem_v4_res2.10} parent=0 // loop_pre_header
    _
  $region3: #{stem_v4_res2.10} parent=0 // loop_header
    %s9 = sphi 0, %s13
    %p10 = scmp.ge.s32.totalorder %s9, 6
    %s19 = sphi 0, %s21
    %s22 = sphi 0, %s19
    %s23 = sphi 0, %s22
    %s39 = sphi 0, %s23
    %s43 = sphi 0, %s43
    %s45 = sphi 0, %s43
    %s46 = sphi 0, %s45
    %s60 = sphi 0, %s46
    %s64 = sphi 0, %s64
    %s66 = sphi 0, %s64
    %s67 = sphi 0, %s66
    %s81 = sphi 0, %s67
    %s87 = sphi 0, %s89
    %s90 = sphi 0, %s87
    %s91 = sphi 0, %s90
    %s107 = sphi 0, %s91
  $region4: #{stem_v4_res2.10} parent=0 // loop_header_branch
    %12 = sbr.rel (%p10) target = $region8
  $region5: #{stem_v4_res2.10} parent=0 // loop_body
    %s14 = ssub.s32 %s9, 1
    %s15 = ssub.s32 %s9, 2
    %s16 = sadd.s32 %s9, 1
    %s17 = ssub.s32 %s9, %s16
    %p18 = scmp.eq.s32.totalorder %s17, 0
    %s20 = sadd.s32 %s19, 1
    %s21 = scalar_select %p18, %s19, %s20
    %p24 = pneg %p18
    %p25 = scmp.eq.s32.totalorder %s9, 3
    %p26 = por %p24, %p25
    %p27 = scmp.ne.s32.totalorder %s19, %s22
    %p28 = scmp.eq.s32.totalorder %s9, 0
    %p29 = por %p27, %p28
    %p30 = scmp.ne.s32.totalorder %s19, %s22
    %p31 = scmp.eq.s32.totalorder %s14, 3
    %p32 = por %p30, %p31
    %p33 = scmp.ne.s32.totalorder %s22, %s23
    %p34 = scmp.eq.s32.totalorder %s14, 0
    %p35 = por %p33, %p34
    %p36 = scmp.ne.s32.totalorder %s22, %s23
    %p37 = scmp.eq.s32.totalorder %s15, 3
    %p38 = por %p36, %p37
    %p40 = scmp.ne.s32.totalorder %s23, %s39
    %p41 = scmp.eq.s32.totalorder %s15, 0
    %p42 = por %p40, %p41
    %s44 = sadd.s32 %s43, 1
    %p47 = scmp.eq.s32.totalorder %s9, 3
    %p48 = scmp.ne.s32.totalorder %s43, %s45
    %p49 = scmp.eq.s32.totalorder %s9, 0
    %p50 = por %p48, %p49
    %p51 = scmp.ne.s32.totalorder %s43, %s45
    %p52 = scmp.eq.s32.totalorder %s14, 3
    %p53 = por %p51, %p52
    %p54 = scmp.ne.s32.totalorder %s45, %s46
    %p55 = scmp.eq.s32.totalorder %s14, 0
    %p56 = por %p54, %p55
    %p57 = scmp.ne.s32.totalorder %s45, %s46
    %p58 = scmp.eq.s32.totalorder %s15, 3
    %p59 = por %p57, %p58
    %p61 = scmp.ne.s32.totalorder %s46, %s60
    %p62 = scmp.eq.s32.totalorder %s15, 0
    %p63 = por %p61, %p62
    %s65 = sadd.s32 %s64, 1
    %p68 = scmp.eq.s32.totalorder %s9, 3
    %p69 = scmp.ne.s32.totalorder %s64, %s66
    %p70 = scmp.eq.s32.totalorder %s9, 0
    %p71 = por %p69, %p70
    %p72 = scmp.ne.s32.totalorder %s64, %s66
    %p73 = scmp.eq.s32.totalorder %s14, 3
    %p74 = por %p72, %p73
    %p75 = scmp.ne.s32.totalorder %s66, %s67
    %p76 = scmp.eq.s32.totalorder %s14, 0
    %p77 = por %p75, %p76
    %p78 = scmp.ne.s32.totalorder %s66, %s67
    %p79 = scmp.eq.s32.totalorder %s15, 3
    %p80 = por %p78, %p79
    %p82 = scmp.ne.s32.totalorder %s67, %s81
    %p83 = scmp.eq.s32.totalorder %s15, 0
    %p84 = por %p82, %p83
    %s85 = ssub.s32 %s9, %s16
    %p86 = scmp.eq.s32.totalorder %s85, 0
    %s88 = sadd.s32 %s87, 1
    %s89 = scalar_select %p86, %s87, %s88
    %p92 = pneg %p86
    %p93 = scmp.eq.s32.totalorder %s9, 3
    %p94 = por %p92, %p93
    %p95 = scmp.ne.s32.totalorder %s87, %s90
    %p96 = scmp.eq.s32.totalorder %s9, 0
    %p97 = por %p95, %p96
    %p98 = scmp.ne.s32.totalorder %s87, %s90
    %p99 = scmp.eq.s32.totalorder %s14, 3
    %p100 = por %p98, %p99
    %p101 = scmp.ne.s32.totalorder %s90, %s91
    %p102 = scmp.eq.s32.totalorder %s14, 0
    %p103 = por %p101, %p102
    %p104 = scmp.ne.s32.totalorder %s90, %s91
    %p105 = scmp.eq.s32.totalorder %s15, 3
    %p106 = por %p104, %p105
    %p108 = scmp.ne.s32.totalorder %s91, %s107
    %p109 = scmp.eq.s32.totalorder %s15, 0
    %p110 = por %p108, %p109
    %p111 = scmp.le.s32.totalorder 1, %s9
    %p112 = scmp.lt.s32.totalorder %s9, 5
    %p113 = pnand %p111, %p112
    %p114 = pneg %p113
    // Predicated region
    $region9: #{stem_v4_res2.10} parent=5 // pred_check
      _
    $region10: #{stem_v4_res2.10} parent=5 // pred_check_branch
      %116 = sbr.rel (%p113) target = $region12
    $region11: #{stem_v4_res2.10} parent=5 // pred_region
      %s117 = ssub.s32 %s9, 1
      // Predicated region
      $region13: #{stem_v4_res2.10} parent=11 // pred_check
        %p118 = pneg %p56
      $region14: #{stem_v4_res2.10} parent=11 // pred_check_branch
        %120 = sbr.rel (%p118) target = $region16
      $region15: #{stem_v4_res2.10} parent=11 // pred_region
        _
      $region16: #{stem_v4_res2.10} parent=11 // pred_fallthru
        _
      // Predicated region
      $region17: #{stem_v4_res2.10} parent=11 // pred_check
        %p121 = pneg %p77
      $region18: #{stem_v4_res2.10} parent=11 // pred_check_branch
        %123 = sbr.rel (%p121) target = $region20
      $region19: #{stem_v4_res2.10} parent=11 // pred_region
        _
      $region20: #{stem_v4_res2.10} parent=11 // pred_fallthru
        _
    $region12: #{stem_v4_res2.10} parent=5 // pred_fallthru
      _
    %p124 = scmp.lt.s32.totalorder %s9, 4
    // Predicated region
    $region21: #{stem_v4_res2.10} parent=5 // pred_check
      %p125 = pneg %p124
    $region22: #{stem_v4_res2.10} parent=5 // pred_check_branch
      %127 = sbr.rel (%p125) target = $region24
    $region23: #{stem_v4_res2.10} parent=5 // pred_region
      // Predicated region
      $region25: #{stem_v4_res2.10} parent=23 // pred_check
        %p128 = pneg %p29
      $region26: #{stem_v4_res2.10} parent=23 // pred_check_branch
        %130 = sbr.rel (%p128) target = $region28
      $region27: #{stem_v4_res2.10} parent=23 // pred_region
        %s131 = smul.u32 28, %s9
        %p132 = scmp.lt.s32.totalorder %s131, 111
        %s133 = scalar_select %p132, %s131, 111
        %s134 = smul.addr %s133, 3
        %s135 = smul.addr %s134, 4
        %s136 = scalar_lea.vmem %s0, %s135
        %s137 = smul.u32 28, %s9
      $region28: #{stem_v4_res2.10} parent=23 // pred_fallthru
        _
    $region24: #{stem_v4_res2.10} parent=5 // pred_fallthru
      _
    %p138 = scmp.le.s32.totalorder 1, %s9
    %p139 = scmp.lt.s32.totalorder %s9, 5
    %p140 = pnand %p138, %p139
    %p141 = pneg %p140
    // Predicated region
    $region29: #{stem_v4_res2.10} parent=5 // pred_check
      _
    $region30: #{stem_v4_res2.10} parent=5 // pred_check_branch
      %143 = sbr.rel (%p140) target = $region32
    $region31: #{stem_v4_res2.10} parent=5 // pred_region
      %s144 = ssub.s32 %s9, 1
      %s145 = smul.u32 28, %s14
      %p146 = scmp.lt.s32.totalorder %s145, 111
      %s147 = scalar_select %p146, %s145, 111
      %s148 = smul.addr %s147, 3
      %s149 = smul.addr %s148, 4
      %s150 = scalar_lea.vmem %s0, %s149
      %p151 = pneg %p35
      %p152 = pneg %p32
      %p153 = pneg %p56
      %p154 = pneg %p53
      %p155 = pneg %p77
      %p156 = pneg %p74
      %p157 = pneg %p103
      %p158 = pneg %p100
      %s159 = smul.u32 28, %s14
      %p160 = scmp.lt.s32.totalorder %s159, 111
      %s161 = scalar_select %p160, %s159, 111
      %s162 = smul.addr %s161, 4
      %s163 = scalar_lea.vmem %s3, %s162
      %s164 = smul.u32 28, %s14
      %p165 = scmp.lt.s32.totalorder %s164, 111
      %s166 = scalar_select %p165, %s164, 111
      %s167 = smul.addr %s166, 3
      %s168 = smul.addr %s167, 4
      %s169 = scalar_lea.vmem %s0, %s168
      %s170 = smul.u32 28, %s14
      %s171 = smul.u32 28, %s14
      %p172 = scmp.lt.s32.totalorder %s171, 111
      %s173 = scalar_select %p172, %s171, 111
      %s174 = smul.addr %s173, 4
      %s175 = scalar_lea.vmem %s3, %s174
      %s176 = smul.u32 28, %s14
      %v178 = vld [vmem:[%s169] sm:$0xff]
      %v179 = vld [vmem:[%s169 + $0x8] sm:$0xf]
      %v180 = vld [vmem:[%s169 + $0xc] sm:$0xff]
      %v181 = vld [vmem:[%s169 + $0x14] sm:$0xf]
      %v182 = vld [vmem:[%s169 + $0x18] sm:$0xff]
      %v183 = vld [vmem:[%s169 + $0x20] sm:$0xf]
      %v184 = vld [vmem:[%s169 + $0x24] sm:$0xff]
      %v185 = vld [vmem:[%s169 + $0x2c] sm:$0xf]
      %v186 = vld [vmem:[%s169 + $0x30] sm:$0xff]
      %v187 = vld [vmem:[%s169 + $0x38] sm:$0xf]
      %v188 = vld [vmem:[%s169 + $0x3c] sm:$0xff]
      %v189 = vld [vmem:[%s169 + $0x44] sm:$0xf]
      %v190 = vld [vmem:[%s169 + $0x48] sm:$0xff]
      %v191 = vld [vmem:[%s169 + $0x50] sm:$0xf]
      %v192 = vld [vmem:[%s169 + $0x54] sm:$0xff]
      %v193 = vld [vmem:[%s169 + $0x5c] sm:$0xf]
      %v194 = vld [vmem:[%s169 + $0x60] sm:$0xff]
      %v195 = vld [vmem:[%s169 + $0x68] sm:$0xf]
      %v196 = vld [vmem:[%s169 + $0x6c] sm:$0xff]
      %v197 = vld [vmem:[%s169 + $0x74] sm:$0xf]
      %v198 = vld [vmem:[%s169 + $0x78] sm:$0xff]
      %v199 = vld [vmem:[%s169 + $0x80] sm:$0xf]
      %v200 = vld [vmem:[%s169 + $0x84] sm:$0xff]
      %v201 = vld [vmem:[%s169 + $0x8c] sm:$0xf]
      %v202 = vld [vmem:[%s169 + $0x90] sm:$0xff]
      %v203 = vld [vmem:[%s169 + $0x98] sm:$0xf]
      %v204 = vld [vmem:[%s169 + $0x9c] sm:$0xff]
      %v205 = vld [vmem:[%s169 + $0xa4] sm:$0xf]
      %v206 = vld [vmem:[%s169 + $0xa8] sm:$0xff]
      %v207 = vld [vmem:[%s169 + $0xb0] sm:$0xf]
      %v208 = vld [vmem:[%s169 + $0xb4] sm:$0xff]
      %v209 = vld [vmem:[%s169 + $0xbc] sm:$0xf]
      %v210 = vld [vmem:[%s169 + $0xc0] sm:$0xff]
      %v211 = vld [vmem:[%s169 + $0xc8] sm:$0xf]
      %v212 = vld [vmem:[%s169 + $0xcc] sm:$0xff]
      %v213 = vld [vmem:[%s169 + $0xd4] sm:$0xf]
      %v214 = vld [vmem:[%s169 + $0xd8] sm:$0xff]
      %v215 = vld [vmem:[%s169 + $0xe0] sm:$0xf]
      %v216 = vld [vmem:[%s169 + $0xe4] sm:$0xff]
      %v217 = vld [vmem:[%s169 + $0xec] sm:$0xf]
      %v218 = vld [vmem:[%s169 + $0xf0] sm:$0xff]
      %v219 = vld [vmem:[%s169 + $0xf8] sm:$0xf]
      %v220 = vld [vmem:[%s169 + $0xfc] sm:$0xff]
      %v221 = vld [vmem:[%s169 + $0x104] sm:$0xf]
      %v222 = vld [vmem:[%s169 + $0x108] sm:$0xff]
      %v223 = vld [vmem:[%s169 + $0x110] sm:$0xf]
      %v224 = vld [vmem:[%s169 + $0x114] sm:$0xff]
      %v225 = vld [vmem:[%s169 + $0x11c] sm:$0xf]
      %v226 = vld [vmem:[%s169 + $0x120] sm:$0xff]
      %v227 = vld [vmem:[%s169 + $0x128] sm:$0xf]
      %v228 = vld [vmem:[%s169 + $0x12c] sm:$0xff]
      %v229 = vld [vmem:[%s169 + $0x134] sm:$0xf]
      %v230 = vld [vmem:[%s169 + $0x138] sm:$0xff]
      %v231 = vld [vmem:[%s169 + $0x140] sm:$0xf]
      %v232 = vld [vmem:[%s169 + $0x144] sm:$0xff]
      %v233 = vld [vmem:[%s169 + $0x14c] sm:$0xf]
      %v234 = vld [vmem:[%s1] sm:$0xf]
      %v235 = vld [vmem:[%s1 + $0x4] sm:$0xf]
      %v236 = vld [vmem:[%s1 + $0x8] sm:$0xf]
      %v237 = vld [vmem:[%s1 + $0xc] sm:$0xf]
      %v238 = vld [vmem:[%s1 + $0x10] sm:$0xf]
      %v239 = vld [vmem:[%s1 + $0x14] sm:$0xf]
      %v240 = vld [vmem:[%s1 + $0x18] sm:$0xf]
      %v241 = vld [vmem:[%s1 + $0x1c] sm:$0xf]
      %v242 = vld [vmem:[%s1 + $0x20] sm:$0xf]
      %v243 = vld [vmem:[%s1 + $0x24] sm:$0xf]
      %v244 = vld [vmem:[%s1 + $0x28] sm:$0xf]
      %v245 = vld [vmem:[%s1 + $0x2c] sm:$0xf]
      %v246 = vld [vmem:[%s1 + $0x30] sm:$0xf]
      %v247 = vld [vmem:[%s1 + $0x34] sm:$0xf]
      %v248 = vld [vmem:[%s1 + $0x38] sm:$0xf]
      %v249 = vld [vmem:[%s1 + $0x3c] sm:$0xf]
      %v250 = vld [vmem:[%s1 + $0x40] sm:$0xf]
      %v251 = vld [vmem:[%s1 + $0x44] sm:$0xf]
      %v252 = vld [vmem:[%s1 + $0x48] sm:$0xf]
      %v253 = vld [vmem:[%s1 + $0x4c] sm:$0xf]
      %v254 = vld [vmem:[%s1 + $0x50] sm:$0xf]
      %v255 = vld [vmem:[%s1 + $0x54] sm:$0xf]
      %v256 = vld [vmem:[%s1 + $0x58] sm:$0xf]
      %v257 = vld [vmem:[%s1 + $0x5c] sm:$0xf]
      %v258 = vld [vmem:[%s1 + $0x60] sm:$0xf]
      %v259 = vld [vmem:[%s1 + $0x64] sm:$0xf]
      %v260 = vld [vmem:[%s1 + $0x68] sm:$0xf]
      %v261 = vld [vmem:[%s1 + $0x6c] sm:$0xf]
      %v262 = vld [vmem:[%s1 + $0x70] sm:$0xf]
      %v263 = vld [vmem:[%s1 + $0x74] sm:$0xf]
      %v264 = vld [vmem:[%s1 + $0x78] sm:$0xf]
      %v265 = vld [vmem:[%s1 + $0x7c] sm:$0xf]
      %v266 = vld [vmem:[%s1 + $0x80] sm:$0xf]
      %v267 = vld [vmem:[%s1 + $0x84] sm:$0xf]
      %v268 = vld [vmem:[%s1 + $0x88] sm:$0xf]
      %v269 = vld [vmem:[%s1 + $0x8c] sm:$0xf]
      %v270 = vld [vmem:[%s2] sm:$0x1]
      %v272 = vlaneseq
      %v273 = vshrl.u32 %v272, 7
      %v274 = vsub.s32 0, %v273
      %v275 = vrot.slane %v270, %v274
      %v333 = vunpack.c.l.b16 %v178
      %v334 = vunpack.c.h.b16 %v178
      %v335 = vunpack.c.l.b16 %v179
      %v336 = vunpack.c.l.b16 %v180
      %v337 = vunpack.c.h.b16 %v180
      %v338 = vunpack.c.l.b16 %v181
      %v339 = vunpack.c.l.b16 %v182
      %v340 = vunpack.c.h.b16 %v182
      %v341 = vunpack.c.l.b16 %v183
      %v342 = vunpack.c.l.b16 %v184
      %v343 = vunpack.c.h.b16 %v184
      %v344 = vunpack.c.l.b16 %v185
      %v345 = vunpack.c.l.b16 %v186
      %v346 = vunpack.c.h.b16 %v186
      %v347 = vunpack.c.l.b16 %v187
      %v348 = vunpack.c.l.b16 %v188
      %v349 = vunpack.c.h.b16 %v188
      %v350 = vunpack.c.l.b16 %v189
      %v351 = vunpack.c.l.b16 %v190
      %v352 = vunpack.c.h.b16 %v190
      %v353 = vunpack.c.l.b16 %v191
      %v354 = vunpack.c.l.b16 %v192
      %v355 = vunpack.c.h.b16 %v192
      %v356 = vunpack.c.l.b16 %v193
      %v357 = vunpack.c.l.b16 %v194
      %v358 = vunpack.c.h.b16 %v194
      %v359 = vunpack.c.l.b16 %v195
      %v360 = vunpack.c.l.b16 %v196
      %v361 = vunpack.c.h.b16 %v196
      %v362 = vunpack.c.l.b16 %v197
      %v363 = vunpack.c.l.b16 %v198
      %v364 = vunpack.c.h.b16 %v198
      %v365 = vunpack.c.l.b16 %v199
      %v366 = vunpack.c.l.b16 %v200
      %v367 = vunpack.c.h.b16 %v200
      %v368 = vunpack.c.l.b16 %v201
      %v369 = vunpack.c.l.b16 %v202
      %v370 = vunpack.c.h.b16 %v202
      %v371 = vunpack.c.l.b16 %v203
      %v372 = vunpack.c.l.b16 %v204
      %v373 = vunpack.c.h.b16 %v204
      %v374 = vunpack.c.l.b16 %v205
      %v375 = vunpack.c.l.b16 %v206
      %v376 = vunpack.c.h.b16 %v206
      %v377 = vunpack.c.l.b16 %v207
      %v378 = vunpack.c.l.b16 %v208
      %v379 = vunpack.c.h.b16 %v208
      %v380 = vunpack.c.l.b16 %v209
      %v381 = vunpack.c.l.b16 %v210
      %v382 = vunpack.c.h.b16 %v210
      %v383 = vunpack.c.l.b16 %v211
      %v384 = vunpack.c.l.b16 %v212
      %v385 = vunpack.c.h.b16 %v212
      %v386 = vunpack.c.l.b16 %v213
      %v387 = vunpack.c.l.b16 %v214
      %v388 = vunpack.c.h.b16 %v214
      %v389 = vunpack.c.l.b16 %v215
      %v390 = vunpack.c.l.b16 %v216
      %v391 = vunpack.c.h.b16 %v216
      %v392 = vunpack.c.l.b16 %v217
      %v393 = vunpack.c.l.b16 %v218
      %v394 = vunpack.c.h.b16 %v218
      %v395 = vunpack.c.l.b16 %v219
      %v396 = vunpack.c.l.b16 %v220
      %v397 = vunpack.c.h.b16 %v220
      %v398 = vunpack.c.l.b16 %v221
      %v399 = vunpack.c.l.b16 %v222
      %v400 = vunpack.c.h.b16 %v222
      %v401 = vunpack.c.l.b16 %v223
      %v402 = vunpack.c.l.b16 %v224
      %v403 = vunpack.c.h.b16 %v224
      %v404 = vunpack.c.l.b16 %v225
      %v405 = vunpack.c.l.b16 %v226
      %v406 = vunpack.c.h.b16 %v226
      %v407 = vunpack.c.l.b16 %v227
      %v408 = vunpack.c.l.b16 %v228
      %v409 = vunpack.c.h.b16 %v228
      %v410 = vunpack.c.l.b16 %v229
      %v411 = vunpack.c.l.b16 %v230
      %v412 = vunpack.c.h.b16 %v230
      %v413 = vunpack.c.l.b16 %v231
      %v414 = vunpack.c.l.b16 %v232
      %v415 = vunpack.c.h.b16 %v232
      %v416 = vunpack.c.l.b16 %v233
      %v417 = vpack.c.b16 %v336, %v333
      %v418 = vpack.c.b16 %v337, %v334
      %v419 = vpack.c.b16 %v338, %v335
      %v420 = vpack.c.b16 %v342, %v339
      %v421 = vpack.c.b16 %v343, %v340
      %v422 = vpack.c.b16 %v344, %v341
      %v423 = vpack.c.b16 %v348, %v345
      %v424 = vpack.c.b16 %v349, %v346
      %v425 = vpack.c.b16 %v350, %v347
      %v426 = vpack.c.b16 %v354, %v351
      %v427 = vpack.c.b16 %v355, %v352
      %v428 = vpack.c.b16 %v356, %v353
      %v429 = vpack.c.b16 %v360, %v357
      %v430 = vpack.c.b16 %v361, %v358
      %v431 = vpack.c.b16 %v362, %v359
      %v432 = vpack.c.b16 %v366, %v363
      %v433 = vpack.c.b16 %v367, %v364
      %v434 = vpack.c.b16 %v368, %v365
      %v435 = vpack.c.b16 %v372, %v369
      %v436 = vpack.c.b16 %v373, %v370
      %v437 = vpack.c.b16 %v374, %v371
      %v438 = vpack.c.b16 %v378, %v375
      %v439 = vpack.c.b16 %v379, %v376
      %v440 = vpack.c.b16 %v380, %v377
      %v441 = vpack.c.b16 %v384, %v381
      %v442 = vpack.c.b16 %v385, %v382
      %v443 = vpack.c.b16 %v386, %v383
      %v444 = vpack.c.b16 %v390, %v387
      %v445 = vpack.c.b16 %v391, %v388
      %v446 = vpack.c.b16 %v392, %v389
      %v447 = vpack.c.b16 %v396, %v393
      %v448 = vpack.c.b16 %v397, %v394
      %v449 = vpack.c.b16 %v398, %v395
      %v450 = vpack.c.b16 %v402, %v399
      %v451 = vpack.c.b16 %v403, %v400
      %v452 = vpack.c.b16 %v404, %v401
      %v453 = vpack.c.b16 %v408, %v405
      %v454 = vpack.c.b16 %v409, %v406
      %v455 = vpack.c.b16 %v410, %v407
      %v456 = vpack.c.b16 %v414, %v411
      %v457 = vpack.c.b16 %v415, %v412
      %v458 = vpack.c.b16 %v416, %v413
      %v523 = vunpack.c.l.b16 %v234
      %v524 = vunpack.c.l.b16 %v235
      %v525 = vunpack.c.l.b16 %v236
      %v526 = vunpack.c.l.b16 %v237
      %v527 = vunpack.c.l.b16 %v238
      %v528 = vunpack.c.l.b16 %v239
      %v529 = vunpack.c.l.b16 %v240
      %v530 = vunpack.c.l.b16 %v241
      %v531 = vunpack.c.l.b16 %v242
      %v532 = vunpack.c.l.b16 %v243
      %v533 = vunpack.c.l.b16 %v244
      %v534 = vunpack.c.l.b16 %v245
      %v535 = vunpack.c.l.b16 %v246
      %v536 = vunpack.c.l.b16 %v247
      %v537 = vunpack.c.l.b16 %v248
      %v538 = vunpack.c.l.b16 %v249
      %v539 = vunpack.c.l.b16 %v250
      %v540 = vunpack.c.l.b16 %v251
      %v541 = vunpack.c.l.b16 %v252
      %v542 = vunpack.c.l.b16 %v253
      %v543 = vunpack.c.l.b16 %v254
      %v544 = vunpack.c.l.b16 %v255
      %v545 = vunpack.c.l.b16 %v256
      %v546 = vunpack.c.l.b16 %v257
      %v547 = vunpack.c.l.b16 %v258
      %v548 = vunpack.c.l.b16 %v259
      %v549 = vunpack.c.l.b16 %v260
      %v550 = vunpack.c.l.b16 %v261
      %v551 = vunpack.c.l.b16 %v262
      %v552 = vunpack.c.l.b16 %v263
      %v553 = vunpack.c.l.b16 %v264
      %v554 = vunpack.c.l.b16 %v265
      %v555 = vunpack.c.l.b16 %v266
      %v556 = vunpack.c.l.b16 %v267
      %v557 = vunpack.c.l.b16 %v268
      %v558 = vunpack.c.l.b16 %v269
      %v559 = vpack.c.b16 %v524, %v523
      %v560 = vpack.c.b16 %v526, %v525
      %v561 = vpack.c.b16 %v528, %v527
      %v562 = vpack.c.b16 %v530, %v529
      %v563 = vpack.c.b16 %v532, %v531
      %v564 = vpack.c.b16 %v534, %v533
      %v565 = vpack.c.b16 %v536, %v535
      %v566 = vpack.c.b16 %v538, %v537
      %v567 = vpack.c.b16 %v540, %v539
      %v568 = vpack.c.b16 %v542, %v541
      %v569 = vpack.c.b16 %v544, %v543
      %v570 = vpack.c.b16 %v546, %v545
      %v571 = vpack.c.b16 %v548, %v547
      %v572 = vpack.c.b16 %v550, %v549
      %v573 = vpack.c.b16 %v552, %v551
      %v574 = vpack.c.b16 %v554, %v553
      %v575 = vpack.c.b16 %v556, %v555
      %v576 = vpack.c.b16 %v558, %v557
      %vm595 = vcmask 261120
      %v597 = vsel %vm595, %v419, 0
      %v600 = vsel %vm595, %v422, 0
      %v603 = vsel %vm595, %v425, 0
      %v606 = vsel %vm595, %v428, 0
      %v609 = vsel %vm595, %v431, 0
      %v612 = vsel %vm595, %v434, 0
      %v615 = vsel %vm595, %v437, 0
      %v618 = vsel %vm595, %v440, 0
      %v621 = vsel %vm595, %v443, 0
      %v624 = vsel %vm595, %v446, 0
      %v627 = vsel %vm595, %v449, 0
      %v630 = vsel %vm595, %v452, 0
      %v633 = vsel %vm595, %v455, 0
      %v636 = vsel %vm595, %v458, 0
      %638 = vmatprep.subr.bf16.mxu0 0
      %639 = vmatpush1.bf16.msra.mxu0 %v566
      %640 = vmatprep.subr.bf16.mxu0 0
      %641 = vmatpush1.bf16.msra.mxu0 %v565
      %642 = vmatprep.subr.bf16.mxu0 0
      %643 = vmatpush1.bf16.msra.mxu0 %v564
      %644 = vmatprep.subr.bf16.mxu0 0
      %645 = vmatpush1.bf16.msra.mxu0 %v563
      %646 = vmatprep.subr.bf16.mxu0 0
      %647 = vmatpush1.bf16.msra.mxu0 %v562
      %648 = vmatprep.subr.bf16.mxu0 0
      %649 = vmatpush1.bf16.msra.mxu0 %v561
      %650 = vmatprep.subr.bf16.mxu0 0
      %651 = vmatpush1.bf16.msra.mxu0 %v560
      %652 = vmatprep.subr.bf16.mxu0 0
      %653 = vmatpush1.bf16.msra.mxu0 %v559
      %654 = vmatprep.subr.bf16.mxu0 0
      %655 = vmatpush2.bf16.msra.mxu0 %v574
      %656 = vmatprep.subr.bf16.mxu0 0
      %657 = vmatpush2.bf16.msra.mxu0 %v573
      %658 = vmatprep.subr.bf16.mxu0 0
      %659 = vmatpush2.bf16.msra.mxu0 %v572
      %660 = vmatprep.subr.bf16.mxu0 0
      %661 = vmatpush2.bf16.msra.mxu0 %v571
      %662 = vmatprep.subr.bf16.mxu0 0
      %663 = vmatpush2.bf16.msra.mxu0 %v570
      %664 = vmatprep.subr.bf16.mxu0 0
      %665 = vmatpush2.bf16.msra.mxu0 %v569
      %666 = vmatprep.subr.bf16.mxu0 0
      %667 = vmatpush2.bf16.msra.mxu0 %v568
      %668 = vmatprep.subr.bf16.mxu0 0
      %669 = vmatpush2.bf16.msra.mxu0 %v567
      %670 = vmatprep.mubr.bf16.mxu0 %v418
      %671 = vmatmul.mubr.bf16.gmra.mxu0 %v417
      %v672 = vpop.f32.mrf.mxu0
      %v673 = vadd.f32 %v275, %v672
      %v674 = vpop.f32.mrf.mxu0
      %v675 = vpop.f32.mrf.mxu0
      %v676 = vadd.f32 %v275, %v675
      %v677 = vpop.f32.mrf.mxu0
      %678 = vmatprep.mubr.bf16.mxu0 %v421
      %679 = vmatmul.mubr.bf16.gmra.mxu0 %v420
      %v680 = vpop.f32.mrf.mxu0
      %v681 = vadd.f32 %v275, %v680
      %v682 = vpop.f32.mrf.mxu0
      %v683 = vpop.f32.mrf.mxu0
      %v684 = vadd.f32 %v275, %v683
      %v685 = vpop.f32.mrf.mxu0
      %686 = vmatprep.mubr.bf16.mxu0 %v424
      %687 = vmatmul.mubr.bf16.gmra.mxu0 %v423
      %v688 = vpop.f32.mrf.mxu0
      %v689 = vadd.f32 %v275, %v688
      %v690 = vpop.f32.mrf.mxu0
      %v691 = vpop.f32.mrf.mxu0
      %v692 = vadd.f32 %v275, %v691
      %v693 = vpop.f32.mrf.mxu0
      %694 = vmatprep.mubr.bf16.mxu0 %v427
      %695 = vmatmul.mubr.bf16.gmra.mxu0 %v426
      %v696 = vpop.f32.mrf.mxu0
      %v697 = vadd.f32 %v275, %v696
      %v698 = vpop.f32.mrf.mxu0
      %v699 = vpop.f32.mrf.mxu0
      %v700 = vadd.f32 %v275, %v699
      %v701 = vpop.f32.mrf.mxu0
      %702 = vmatprep.mubr.bf16.mxu0 %v430
      %703 = vmatmul.mubr.bf16.gmra.mxu0 %v429
      %v704 = vpop.f32.mrf.mxu0
      %v705 = vadd.f32 %v275, %v704
      %v706 = vpop.f32.mrf.mxu0
      %v707 = vpop.f32.mrf.mxu0
      %v708 = vadd.f32 %v275, %v707
      %v709 = vpop.f32.mrf.mxu0
      %710 = vmatprep.mubr.bf16.mxu0 %v433
      %711 = vmatmul.mubr.bf16.gmra.mxu0 %v432
      %v712 = vpop.f32.mrf.mxu0
      %v713 = vadd.f32 %v275, %v712
      %v714 = vpop.f32.mrf.mxu0
      %v715 = vpop.f32.mrf.mxu0
      %v716 = vadd.f32 %v275, %v715
      %v717 = vpop.f32.mrf.mxu0
      %718 = vmatprep.mubr.bf16.mxu0 %v436
      %719 = vmatmul.mubr.bf16.gmra.mxu0 %v435
      %v720 = vpop.f32.mrf.mxu0
      %v721 = vadd.f32 %v275, %v720
      %v722 = vpop.f32.mrf.mxu0
      %v723 = vpop.f32.mrf.mxu0
      %v724 = vadd.f32 %v275, %v723
      %v725 = vpop.f32.mrf.mxu0
      %726 = vmatprep.mubr.bf16.mxu0 %v439
      %727 = vmatmul.mubr.bf16.gmra.mxu0 %v438
      %v728 = vpop.f32.mrf.mxu0
      %v729 = vadd.f32 %v275, %v728
      %v730 = vpop.f32.mrf.mxu0
      %v731 = vpop.f32.mrf.mxu0
      %v732 = vadd.f32 %v275, %v731
      %v733 = vpop.f32.mrf.mxu0
      %734 = vmatprep.mubr.bf16.mxu0 %v442
      %735 = vmatmul.mubr.bf16.gmra.mxu0 %v441
      %v736 = vpop.f32.mrf.mxu0
      %v737 = vadd.f32 %v275, %v736
      %v738 = vpop.f32.mrf.mxu0
      %v739 = vpop.f32.mrf.mxu0
      %v740 = vadd.f32 %v275, %v739
      %v741 = vpop.f32.mrf.mxu0
      %742 = vmatprep.mubr.bf16.mxu0 %v445
      %743 = vmatmul.mubr.bf16.gmra.mxu0 %v444
      %v744 = vpop.f32.mrf.mxu0
      %v745 = vadd.f32 %v275, %v744
      %v746 = vpop.f32.mrf.mxu0
      %v747 = vpop.f32.mrf.mxu0
      %v748 = vadd.f32 %v275, %v747
      %v749 = vpop.f32.mrf.mxu0
      %750 = vmatprep.mubr.bf16.mxu0 %v448
      %751 = vmatmul.mubr.bf16.gmra.mxu0 %v447
      %v752 = vpop.f32.mrf.mxu0
      %v753 = vadd.f32 %v275, %v752
      %v754 = vpop.f32.mrf.mxu0
      %v755 = vpop.f32.mrf.mxu0
      %v756 = vadd.f32 %v275, %v755
      %v757 = vpop.f32.mrf.mxu0
      %758 = vmatprep.mubr.bf16.mxu0 %v451
      %759 = vmatmul.mubr.bf16.gmra.mxu0 %v450
      %v760 = vpop.f32.mrf.mxu0
      %v761 = vadd.f32 %v275, %v760
      %v762 = vpop.f32.mrf.mxu0
      %v763 = vpop.f32.mrf.mxu0
      %v764 = vadd.f32 %v275, %v763
      %v765 = vpop.f32.mrf.mxu0
      %766 = vmatprep.mubr.bf16.mxu0 %v454
      %767 = vmatmul.mubr.bf16.gmra.mxu0 %v453
      %v768 = vpop.f32.mrf.mxu0
      %v769 = vadd.f32 %v275, %v768
      %v770 = vpop.f32.mrf.mxu0
      %v771 = vpop.f32.mrf.mxu0
      %v772 = vadd.f32 %v275, %v771
      %v773 = vpop.f32.mrf.mxu0
      %774 = vmatprep.mubr.bf16.mxu0 %v457
      %775 = vmatmul.mubr.bf16.gmra.mxu0 %v456
      %v776 = vpop.f32.mrf.mxu0
      %v777 = vadd.f32 %v275, %v776
      %v778 = vpop.f32.mrf.mxu0
      %v779 = vpop.f32.mrf.mxu0
      %v780 = vadd.f32 %v275, %v779
      %v781 = vpop.f32.mrf.mxu0
      %782 = vdwg.mxu0
      %783 = vmatprep.subr.bf16.mxu0 0
      %784 = vmatpush1.bf16.msra.mxu0 0
      %785 = vmatprep.subr.bf16.mxu0 0
      %786 = vmatpush1.bf16.msra.mxu0 0
      %787 = vmatprep.subr.bf16.mxu0 0
      %788 = vmatpush1.bf16.msra.mxu0 0
      %789 = vmatprep.subr.bf16.mxu0 0
      %790 = vmatpush1.bf16.msra.mxu0 0
      %791 = vmatprep.subr.bf16.mxu0 0
      %792 = vmatpush1.bf16.msra.mxu0 0
      %793 = vmatprep.subr.bf16.mxu0 0
      %794 = vmatpush1.bf16.msra.mxu0 0
      %795 = vmatprep.subr.bf16.mxu0 0
      %796 = vmatpush1.bf16.msra.mxu0 %v576
      %797 = vmatprep.subr.bf16.mxu0 0
      %798 = vmatpush1.bf16.msra.mxu0 %v575
      %799 = vmatprep.subr.bf16.mxu0 0
      %800 = vmatpush2.bf16.msra.mxu0 0
      %801 = vmatprep.subr.bf16.mxu0 0
      %802 = vmatpush2.bf16.msra.mxu0 0
      %803 = vmatprep.subr.bf16.mxu0 0
      %804 = vmatpush2.bf16.msra.mxu0 0
      %805 = vmatprep.subr.bf16.mxu0 0
      %806 = vmatpush2.bf16.msra.mxu0 0
      %807 = vmatprep.subr.bf16.mxu0 0
      %808 = vmatpush2.bf16.msra.mxu0 0
      %809 = vmatprep.subr.bf16.mxu0 0
      %810 = vmatpush2.bf16.msra.mxu0 0
      %811 = vmatprep.subr.bf16.mxu0 0
      %812 = vmatpush2.bf16.msra.mxu0 0
      %813 = vmatprep.subr.bf16.mxu0 0
      %814 = vmatpush2.bf16.msra.mxu0 0
      %815 = vmatprep.mubr.bf16.mxu0 0
      %816 = vmatmul.mubr.bf16.gmra.mxu0 %v597
      %v817 = vpop.f32.mrf.mxu0
      %v818 = vadd.f32 %v673, %v817
      %v819 = vpop.f32.mrf.mxu0
      %v820 = vpop.f32.mrf.mxu0
      %v821 = vadd.f32 %v676, %v820
      %v822 = vpop.f32.mrf.mxu0
      %823 = vmatprep.mubr.bf16.mxu0 0
      %824 = vmatmul.mubr.bf16.gmra.mxu0 %v600
      %v825 = vpop.f32.mrf.mxu0
      %v826 = vadd.f32 %v681, %v825
      %v827 = vpop.f32.mrf.mxu0
      %v828 = vpop.f32.mrf.mxu0
      %v829 = vadd.f32 %v684, %v828
      %v830 = vpop.f32.mrf.mxu0
      %831 = vmatprep.mubr.bf16.mxu0 0
      %832 = vmatmul.mubr.bf16.gmra.mxu0 %v603
      %v833 = vpop.f32.mrf.mxu0
      %v834 = vadd.f32 %v689, %v833
      %v835 = vpop.f32.mrf.mxu0
      %v836 = vpop.f32.mrf.mxu0
      %v837 = vadd.f32 %v692, %v836
      %v838 = vpop.f32.mrf.mxu0
      %839 = vmatprep.mubr.bf16.mxu0 0
      %840 = vmatmul.mubr.bf16.gmra.mxu0 %v606
      %v841 = vpop.f32.mrf.mxu0
      %v842 = vadd.f32 %v697, %v841
      %v843 = vpop.f32.mrf.mxu0
      %v844 = vpop.f32.mrf.mxu0
      %v845 = vadd.f32 %v700, %v844
      %v846 = vpop.f32.mrf.mxu0
      %847 = vmatprep.mubr.bf16.mxu0 0
      %848 = vmatmul.mubr.bf16.gmra.mxu0 %v609
      %v849 = vpop.f32.mrf.mxu0
      %v850 = vadd.f32 %v705, %v849
      %v851 = vpop.f32.mrf.mxu0
      %v852 = vpop.f32.mrf.mxu0
      %v853 = vadd.f32 %v708, %v852
      %v854 = vpop.f32.mrf.mxu0
      %855 = vmatprep.mubr.bf16.mxu0 0
      %856 = vmatmul.mubr.bf16.gmra.mxu0 %v612
      %v857 = vpop.f32.mrf.mxu0
      %v858 = vadd.f32 %v713, %v857
      %v859 = vpop.f32.mrf.mxu0
      %v860 = vpop.f32.mrf.mxu0
      %v861 = vadd.f32 %v716, %v860
      %v862 = vpop.f32.mrf.mxu0
      %863 = vmatprep.mubr.bf16.mxu0 0
      %864 = vmatmul.mubr.bf16.gmra.mxu0 %v615
      %v865 = vpop.f32.mrf.mxu0
      %v866 = vadd.f32 %v721, %v865
      %v867 = vpop.f32.mrf.mxu0
      %v868 = vpop.f32.mrf.mxu0
      %v869 = vadd.f32 %v724, %v868
      %v870 = vpop.f32.mrf.mxu0
      %871 = vmatprep.mubr.bf16.mxu0 0
      %872 = vmatmul.mubr.bf16.gmra.mxu0 %v618
      %v873 = vpop.f32.mrf.mxu0
      %v874 = vadd.f32 %v729, %v873
      %v875 = vpop.f32.mrf.mxu0
      %v876 = vpop.f32.mrf.mxu0
      %v877 = vadd.f32 %v732, %v876
      %v878 = vpop.f32.mrf.mxu0
      %879 = vmatprep.mubr.bf16.mxu0 0
      %880 = vmatmul.mubr.bf16.gmra.mxu0 %v621
      %v881 = vpop.f32.mrf.mxu0
      %v882 = vadd.f32 %v737, %v881
      %v883 = vpop.f32.mrf.mxu0
      %v884 = vpop.f32.mrf.mxu0
      %v885 = vadd.f32 %v740, %v884
      %v886 = vpop.f32.mrf.mxu0
      %887 = vmatprep.mubr.bf16.mxu0 0
      %888 = vmatmul.mubr.bf16.gmra.mxu0 %v624
      %v889 = vpop.f32.mrf.mxu0
      %v890 = vadd.f32 %v745, %v889
      %v891 = vpop.f32.mrf.mxu0
      %v892 = vpop.f32.mrf.mxu0
      %v893 = vadd.f32 %v748, %v892
      %v894 = vpop.f32.mrf.mxu0
      %895 = vmatprep.mubr.bf16.mxu0 0
      %896 = vmatmul.mubr.bf16.gmra.mxu0 %v627
      %v897 = vpop.f32.mrf.mxu0
      %v898 = vadd.f32 %v753, %v897
      %v899 = vpop.f32.mrf.mxu0
      %v900 = vpop.f32.mrf.mxu0
      %v901 = vadd.f32 %v756, %v900
      %v902 = vpop.f32.mrf.mxu0
      %903 = vmatprep.mubr.bf16.mxu0 0
      %904 = vmatmul.mubr.bf16.gmra.mxu0 %v630
      %v905 = vpop.f32.mrf.mxu0
      %v906 = vadd.f32 %v761, %v905
      %v907 = vpop.f32.mrf.mxu0
      %v908 = vpop.f32.mrf.mxu0
      %v909 = vadd.f32 %v764, %v908
      %v910 = vpop.f32.mrf.mxu0
      %911 = vmatprep.mubr.bf16.mxu0 0
      %912 = vmatmul.mubr.bf16.gmra.mxu0 %v633
      %v913 = vpop.f32.mrf.mxu0
      %v914 = vadd.f32 %v769, %v913
      %v915 = vpop.f32.mrf.mxu0
      %v916 = vpop.f32.mrf.mxu0
      %v917 = vadd.f32 %v772, %v916
      %v918 = vpop.f32.mrf.mxu0
      %919 = vmatprep.mubr.bf16.mxu0 0
      %920 = vmatmul.mubr.bf16.gmra.mxu0 %v636
      %v921 = vpop.f32.mrf.mxu0
      %v922 = vadd.f32 %v777, %v921
      %v923 = vpop.f32.mrf.mxu0
      %v924 = vpop.f32.mrf.mxu0
      %v925 = vadd.f32 %v780, %v924
      %v926 = vpop.f32.mrf.mxu0
      %927 = vdwg.mxu0
      %v928 = vmax.f32 %v818, 0.0
      %v929 = vmax.f32 %v821, 0.0
      %v930 = vmax.f32 %v826, 0.0
      %v931 = vmax.f32 %v829, 0.0
      %v932 = vmax.f32 %v834, 0.0
      %v933 = vmax.f32 %v837, 0.0
      %v934 = vmax.f32 %v842, 0.0
      %v935 = vmax.f32 %v845, 0.0
      %v936 = vmax.f32 %v850, 0.0
      %v937 = vmax.f32 %v853, 0.0
      %v938 = vmax.f32 %v858, 0.0
      %v939 = vmax.f32 %v861, 0.0
      %v940 = vmax.f32 %v866, 0.0
      %v941 = vmax.f32 %v869, 0.0
      %v942 = vmax.f32 %v874, 0.0
      %v943 = vmax.f32 %v877, 0.0
      %v944 = vmax.f32 %v882, 0.0
      %v945 = vmax.f32 %v885, 0.0
      %v946 = vmax.f32 %v890, 0.0
      %v947 = vmax.f32 %v893, 0.0
      %v948 = vmax.f32 %v898, 0.0
      %v949 = vmax.f32 %v901, 0.0
      %v950 = vmax.f32 %v906, 0.0
      %v951 = vmax.f32 %v909, 0.0
      %v952 = vmax.f32 %v914, 0.0
      %v953 = vmax.f32 %v917, 0.0
      %v954 = vmax.f32 %v922, 0.0
      %v955 = vmax.f32 %v925, 0.0
      %v956 = vpack.c.bf16 %v929, %v928
      %v957 = vpack.c.bf16 %v931, %v930
      %v958 = vpack.c.bf16 %v933, %v932
      %v959 = vpack.c.bf16 %v935, %v934
      %v960 = vpack.c.bf16 %v937, %v936
      %v961 = vpack.c.bf16 %v939, %v938
      %v962 = vpack.c.bf16 %v941, %v940
      %v963 = vpack.c.bf16 %v943, %v942
      %v964 = vpack.c.bf16 %v945, %v944
      %v965 = vpack.c.bf16 %v947, %v946
      %v966 = vpack.c.bf16 %v949, %v948
      %v967 = vpack.c.bf16 %v951, %v950
      %v968 = vpack.c.bf16 %v953, %v952
      %v969 = vpack.c.bf16 %v955, %v954
      %v984 = vunpack.c.l.b16 %v956
      %v985 = vunpack.c.h.b16 %v956
      %v986 = vunpack.c.l.b16 %v957
      %v987 = vunpack.c.h.b16 %v957
      %v988 = vunpack.c.l.b16 %v958
      %v989 = vunpack.c.h.b16 %v958
      %v990 = vunpack.c.l.b16 %v959
      %v991 = vunpack.c.h.b16 %v959
      %v992 = vunpack.c.l.b16 %v960
      %v993 = vunpack.c.h.b16 %v960
      %v994 = vunpack.c.l.b16 %v961
      %v995 = vunpack.c.h.b16 %v961
      %v996 = vunpack.c.l.b16 %v962
      %v997 = vunpack.c.h.b16 %v962
      %v998 = vunpack.c.l.b16 %v963
      %v999 = vunpack.c.h.b16 %v963
      %v1000 = vunpack.c.l.b16 %v964
      %v1001 = vunpack.c.h.b16 %v964
      %v1002 = vunpack.c.l.b16 %v965
      %v1003 = vunpack.c.h.b16 %v965
      %v1004 = vunpack.c.l.b16 %v966
      %v1005 = vunpack.c.h.b16 %v966
      %v1006 = vunpack.c.l.b16 %v967
      %v1007 = vunpack.c.h.b16 %v967
      %v1008 = vunpack.c.l.b16 %v968
      %v1009 = vunpack.c.h.b16 %v968
      %v1010 = vunpack.c.l.b16 %v969
      %v1011 = vunpack.c.h.b16 %v969
      %v1012 = vpack.c.b16 %v984, %v984
      %v1013 = vpack.c.b16 %v985, %v985
      %v1014 = vpack.c.b16 %v986, %v986
      %v1015 = vpack.c.b16 %v987, %v987
      %v1016 = vpack.c.b16 %v988, %v988
      %v1017 = vpack.c.b16 %v989, %v989
      %v1018 = vpack.c.b16 %v990, %v990
      %v1019 = vpack.c.b16 %v991, %v991
      %v1020 = vpack.c.b16 %v992, %v992
      %v1021 = vpack.c.b16 %v993, %v993
      %v1022 = vpack.c.b16 %v994, %v994
      %v1023 = vpack.c.b16 %v995, %v995
      %v1024 = vpack.c.b16 %v996, %v996
      %v1025 = vpack.c.b16 %v997, %v997
      %v1026 = vpack.c.b16 %v998, %v998
      %v1027 = vpack.c.b16 %v999, %v999
      %v1028 = vpack.c.b16 %v1000, %v1000
      %v1029 = vpack.c.b16 %v1001, %v1001
      %v1030 = vpack.c.b16 %v1002, %v1002
      %v1031 = vpack.c.b16 %v1003, %v1003
      %v1032 = vpack.c.b16 %v1004, %v1004
      %v1033 = vpack.c.b16 %v1005, %v1005
      %v1034 = vpack.c.b16 %v1006, %v1006
      %v1035 = vpack.c.b16 %v1007, %v1007
      %v1036 = vpack.c.b16 %v1008, %v1008
      %v1037 = vpack.c.b16 %v1009, %v1009
      %v1038 = vpack.c.b16 %v1010, %v1010
      %v1039 = vpack.c.b16 %v1011, %v1011
      %1068 = vst [vmem:[%s175] sm:$0xf] %v1012
      %1069 = vst [vmem:[%s175 + $0x4] sm:$0xf] %v1013
      %1070 = vst [vmem:[%s175 + $0x8] sm:$0xf] %v1014
      %1071 = vst [vmem:[%s175 + $0xc] sm:$0xf] %v1015
      %1072 = vst [vmem:[%s175 + $0x10] sm:$0xf] %v1016
      %1073 = vst [vmem:[%s175 + $0x14] sm:$0xf] %v1017
      %1074 = vst [vmem:[%s175 + $0x18] sm:$0xf] %v1018
      %1075 = vst [vmem:[%s175 + $0x1c] sm:$0xf] %v1019
      %1076 = vst [vmem:[%s175 + $0x20] sm:$0xf] %v1020
      %1077 = vst [vmem:[%s175 + $0x24] sm:$0xf] %v1021
      %1078 = vst [vmem:[%s175 + $0x28] sm:$0xf] %v1022
      %1079 = vst [vmem:[%s175 + $0x2c] sm:$0xf] %v1023
      %1080 = vst [vmem:[%s175 + $0x30] sm:$0xf] %v1024
      %1081 = vst [vmem:[%s175 + $0x34] sm:$0xf] %v1025
      %1082 = vst [vmem:[%s175 + $0x38] sm:$0xf] %v1026
      %1083 = vst [vmem:[%s175 + $0x3c] sm:$0xf] %v1027
      %1084 = vst [vmem:[%s175 + $0x40] sm:$0xf] %v1028
      %1085 = vst [vmem:[%s175 + $0x44] sm:$0xf] %v1029
      %1086 = vst [vmem:[%s175 + $0x48] sm:$0xf] %v1030
      %1087 = vst [vmem:[%s175 + $0x4c] sm:$0xf] %v1031
      %1088 = vst [vmem:[%s175 + $0x50] sm:$0xf] %v1032
      %1089 = vst [vmem:[%s175 + $0x54] sm:$0xf] %v1033
      %1090 = vst [vmem:[%s175 + $0x58] sm:$0xf] %v1034
      %1091 = vst [vmem:[%s175 + $0x5c] sm:$0xf] %v1035
      %1092 = vst [vmem:[%s175 + $0x60] sm:$0xf] %v1036
      %1093 = vst [vmem:[%s175 + $0x64] sm:$0xf] %v1037
      %1094 = vst [vmem:[%s175 + $0x68] sm:$0xf] %v1038
      %1095 = vst [vmem:[%s175 + $0x6c] sm:$0xf] %v1039
      %s1096 = smul.u32 28, %s14
      %p1097 = scmp.lt.s32.totalorder %s1096, 111
      %s1098 = scalar_select %p1097, %s1096, 111
      %s1099 = smul.addr %s1098, 4
      %s1100 = scalar_lea.vmem %s3, %s1099
      // Predicated region
      $region33: #{stem_v4_res2.10} parent=31 // pred_check
        %p1101 = pneg %p100
      $region34: #{stem_v4_res2.10} parent=31 // pred_check_branch
        %1103 = sbr.rel (%p1101) target = $region36
      $region35: #{stem_v4_res2.10} parent=31 // pred_region
        %s1104 = smul.u32 28, %s14
      $region36: #{stem_v4_res2.10} parent=31 // pred_fallthru
        _
    $region32: #{stem_v4_res2.10} parent=5 // pred_fallthru
      _
    %p1105 = scmp.le.s32.totalorder 2, %s9
    // Predicated region
    $region37: #{stem_v4_res2.10} parent=5 // pred_check
      %p1106 = pneg %p1105
    $region38: #{stem_v4_res2.10} parent=5 // pred_check_branch
      %1108 = sbr.rel (%p1106) target = $region40
    $region39: #{stem_v4_res2.10} parent=5 // pred_region
      %s1109 = ssub.s32 %s9, 2
      // Predicated region
      $region41: #{stem_v4_res2.10} parent=39 // pred_check
        %p1110 = pneg %p106
      $region42: #{stem_v4_res2.10} parent=39 // pred_check_branch
        %1112 = sbr.rel (%p1110) target = $region44
      $region43: #{stem_v4_res2.10} parent=39 // pred_region
        %s1113 = smul.u32 28, %s15
        %p1114 = scmp.lt.s32.totalorder %s1113, 111
        %s1115 = scalar_select %p1114, %s1113, 111
        %s1116 = smul.addr %s1115, 4
        %s1117 = scalar_lea.vmem %s3, %s1116
      $region44: #{stem_v4_res2.10} parent=39 // pred_fallthru
        _
    $region40: #{stem_v4_res2.10} parent=5 // pred_fallthru
      _
  $region6: #{stem_v4_res2.10} parent=0 // loop_footer
    %s13 = sadd.s32 1, %s9
  $region7: #{stem_v4_res2.10} parent=0 // loop_footer_branch
    %8 = sbr.rel target = $region3
  $region8: #{stem_v4_res2.10} parent=0 // loop_exit
    _

// kernel: stem_v4_res2.12
$region0: #{stem_v4_res2.12}
  #allocation0 [shape = 'u32[]', space=smem, size = 0x4, offset = 0x4, fixed_abs, tag = 'smem constant byte address 0x4 - core index']
  #allocation1 [shape = 'u32[144,128]{1,0:T(1,128)}', space=vmem, size = 0x12000, scoped, tag = 'internal scratch']
  %s0 = inlined_call_operand.vmem [shape: bf16[224,576], index: 0, kind: input, shape index: {}]
  %s1 = inlined_call_operand.vmem [shape: bf16[576,96], index: 1, kind: input, shape index: {}]
  %s2 = inlined_call_operand.vmem [shape: f32[1,96], index: 2, kind: input, shape index: {}]
  %s3 = inlined_call_operand.vmem [shape: bf16[224,160], index: 3, kind: output, shape index: {}]
  %s4 = sld [smem:[#allocation0]]
  $region45: #{stem_v4_res2.12} parent=0
    _
  %s6 = ssub.s32 1, %s4
  %s7 = scalar_select 0, %s6, %s4
  loop: start=0, step=1, limit=4
  $region2: #{stem_v4_res2.12} parent=0 // loop_pre_header
    _
  $region3: #{stem_v4_res2.12} parent=0 // loop_header
    %s9 = sphi 0, %s13
    %p10 = scmp.ge.s32.totalorder %s9, 4
    %s19 = sphi 0, %s21
    %s22 = sphi 0, %s19
    %s23 = sphi 0, %s22
    %s39 = sphi 0, %s23
    %s43 = sphi 0, %s43
    %s45 = sphi 0, %s43
    %s46 = sphi 0, %s45
    %s60 = sphi 0, %s46
    %s64 = sphi 0, %s64
    %s66 = sphi 0, %s64
    %s67 = sphi 0, %s66
    %s81 = sphi 0, %s67
    %s87 = sphi 0, %s89
    %s90 = sphi 0, %s87
    %s91 = sphi 0, %s90
    %s107 = sphi 0, %s91
  $region4: #{stem_v4_res2.12} parent=0 // loop_header_branch
    %12 = sbr.rel (%p10) target = $region8
  $region5: #{stem_v4_res2.12} parent=0 // loop_body
    %s14 = ssub.s32 %s9, 1
    %s15 = ssub.s32 %s9, 2
    %s16 = sadd.s32 %s9, 1
    %s17 = ssub.s32 %s9, %s16
    %p18 = scmp.eq.s32.totalorder %s17, 0
    %s20 = sadd.s32 %s19, 1
    %s21 = scalar_select %p18, %s19, %s20
    %p24 = pneg %p18
    %p25 = scmp.eq.s32.totalorder %s9, 1
    %p26 = por %p24, %p25
    %p27 = scmp.ne.s32.totalorder %s19, %s22
    %p28 = scmp.eq.s32.totalorder %s9, 0
    %p29 = por %p27, %p28
    %p30 = scmp.ne.s32.totalorder %s19, %s22
    %p31 = scmp.eq.s32.totalorder %s14, 1
    %p32 = por %p30, %p31
    %p33 = scmp.ne.s32.totalorder %s22, %s23
    %p34 = scmp.eq.s32.totalorder %s14, 0
    %p35 = por %p33, %p34
    %p36 = scmp.ne.s32.totalorder %s22, %s23
    %p37 = scmp.eq.s32.totalorder %s15, 1
    %p38 = por %p36, %p37
    %p40 = scmp.ne.s32.totalorder %s23, %s39
    %p41 = scmp.eq.s32.totalorder %s15, 0
    %p42 = por %p40, %p41
    %s44 = sadd.s32 %s43, 1
    %p47 = scmp.eq.s32.totalorder %s9, 1
    %p48 = scmp.ne.s32.totalorder %s43, %s45
    %p49 = scmp.eq.s32.totalorder %s9, 0
    %p50 = por %p48, %p49
    %p51 = scmp.ne.s32.totalorder %s43, %s45
    %p52 = scmp.eq.s32.totalorder %s14, 1
    %p53 = por %p51, %p52
    %p54 = scmp.ne.s32.totalorder %s45, %s46
    %p55 = scmp.eq.s32.totalorder %s14, 0
    %p56 = por %p54, %p55
    %p57 = scmp.ne.s32.totalorder %s45, %s46
    %p58 = scmp.eq.s32.totalorder %s15, 1
    %p59 = por %p57, %p58
    %p61 = scmp.ne.s32.totalorder %s46, %s60
    %p62 = scmp.eq.s32.totalorder %s15, 0
    %p63 = por %p61, %p62
    %s65 = sadd.s32 %s64, 1
    %p68 = scmp.eq.s32.totalorder %s9, 1
    %p69 = scmp.ne.s32.totalorder %s64, %s66
    %p70 = scmp.eq.s32.totalorder %s9, 0
    %p71 = por %p69, %p70
    %p72 = scmp.ne.s32.totalorder %s64, %s66
    %p73 = scmp.eq.s32.totalorder %s14, 1
    %p74 = por %p72, %p73
    %p75 = scmp.ne.s32.totalorder %s66, %s67
    %p76 = scmp.eq.s32.totalorder %s14, 0
    %p77 = por %p75, %p76
    %p78 = scmp.ne.s32.totalorder %s66, %s67
    %p79 = scmp.eq.s32.totalorder %s15, 1
    %p80 = por %p78, %p79
    %p82 = scmp.ne.s32.totalorder %s67, %s81
    %p83 = scmp.eq.s32.totalorder %s15, 0
    %p84 = por %p82, %p83
    %s85 = ssub.s32 %s9, %s16
    %p86 = scmp.eq.s32.totalorder %s85, 0
    %s88 = sadd.s32 %s87, 1
    %s89 = scalar_select %p86, %s87, %s88
    %p92 = pneg %p86
    %p93 = scmp.eq.s32.totalorder %s9, 1
    %p94 = por %p92, %p93
    %p95 = scmp.ne.s32.totalorder %s87, %s90
    %p96 = scmp.eq.s32.totalorder %s9, 0
    %p97 = por %p95, %p96
    %p98 = scmp.ne.s32.totalorder %s87, %s90
    %p99 = scmp.eq.s32.totalorder %s14, 1
    %p100 = por %p98, %p99
    %p101 = scmp.ne.s32.totalorder %s90, %s91
    %p102 = scmp.eq.s32.totalorder %s14, 0
    %p103 = por %p101, %p102
    %p104 = scmp.ne.s32.totalorder %s90, %s91
    %p105 = scmp.eq.s32.totalorder %s15, 1
    %p106 = por %p104, %p105
    %p108 = scmp.ne.s32.totalorder %s91, %s107
    %p109 = scmp.eq.s32.totalorder %s15, 0
    %p110 = por %p108, %p109
    %p111 = scmp.le.s32.totalorder 1, %s9
    %p112 = scmp.lt.s32.totalorder %s9, 3
    %p113 = pnand %p111, %p112
    %p114 = pneg %p113
    // Predicated region
    $region9: #{stem_v4_res2.12} parent=5 // pred_check
      _
    $region10: #{stem_v4_res2.12} parent=5 // pred_check_branch
      %116 = sbr.rel (%p113) target = $region12
    $region11: #{stem_v4_res2.12} parent=5 // pred_region
      %s117 = ssub.s32 %s9, 1
      // Predicated region
      $region13: #{stem_v4_res2.12} parent=11 // pred_check
        %p118 = pneg %p56
      $region14: #{stem_v4_res2.12} parent=11 // pred_check_branch
        %120 = sbr.rel (%p118) target = $region16
      $region15: #{stem_v4_res2.12} parent=11 // pred_region
        _
      $region16: #{stem_v4_res2.12} parent=11 // pred_fallthru
        _
      // Predicated region
      $region17: #{stem_v4_res2.12} parent=11 // pred_check
        %p121 = pneg %p77
      $region18: #{stem_v4_res2.12} parent=11 // pred_check_branch
        %123 = sbr.rel (%p121) target = $region20
      $region19: #{stem_v4_res2.12} parent=11 // pred_region
        _
      $region20: #{stem_v4_res2.12} parent=11 // pred_fallthru
        _
    $region12: #{stem_v4_res2.12} parent=5 // pred_fallthru
      _
    %p124 = scmp.lt.s32.totalorder %s9, 2
    // Predicated region
    $region21: #{stem_v4_res2.12} parent=5 // pred_check
      %p125 = pneg %p124
    $region22: #{stem_v4_res2.12} parent=5 // pred_check_branch
      %127 = sbr.rel (%p125) target = $region24
    $region23: #{stem_v4_res2.12} parent=5 // pred_region
      // Predicated region
      $region25: #{stem_v4_res2.12} parent=23 // pred_check
        %p128 = pneg %p29
      $region26: #{stem_v4_res2.12} parent=23 // pred_check_branch
        %130 = sbr.rel (%p128) target = $region28
      $region27: #{stem_v4_res2.12} parent=23 // pred_region
        %s131 = smul.u32 14, %s9
        %p132 = scmp.lt.s32.totalorder %s131, 27
        %s133 = scalar_select %p132, %s131, 27
        %s134 = smul.addr %s133, 5
        %s135 = smul.addr %s134, 4
        %s136 = scalar_lea.vmem %s0, %s135
        %s137 = smul.u32 14, %s9
      $region28: #{stem_v4_res2.12} parent=23 // pred_fallthru
        _
    $region24: #{stem_v4_res2.12} parent=5 // pred_fallthru
      _
    %p138 = scmp.le.s32.totalorder 1, %s9
    %p139 = scmp.lt.s32.totalorder %s9, 3
    %p140 = pnand %p138, %p139
    %p141 = pneg %p140
    // Predicated region
    $region29: #{stem_v4_res2.12} parent=5 // pred_check
      _
    $region30: #{stem_v4_res2.12} parent=5 // pred_check_branch
      %143 = sbr.rel (%p140) target = $region32
    $region31: #{stem_v4_res2.12} parent=5 // pred_region
      %s144 = ssub.s32 %s9, 1
      %s145 = smul.u32 14, %s14
      %p146 = scmp.lt.s32.totalorder %s145, 27
      %s147 = scalar_select %p146, %s145, 27
      %s148 = smul.addr %s147, 5
      %s149 = smul.addr %s148, 4
      %s150 = scalar_lea.vmem %s0, %s149
      %p151 = pneg %p35
      %p152 = pneg %p32
      %p153 = pneg %p56
      %p154 = pneg %p53
      %p155 = pneg %p77
      %p156 = pneg %p74
      %p157 = pneg %p103
      %p158 = pneg %p100
      %s159 = smul.u32 14, %s14
      %p160 = scmp.lt.s32.totalorder %s159, 27
      %s161 = scalar_select %p160, %s159, 27
      %s162 = smul.addr %s161, 2
      %s163 = smul.addr %s162, 4
      %s164 = scalar_lea.vmem %s3, %s163
      %s165 = smul.u32 14, %s14
      %p166 = scmp.lt.s32.totalorder %s165, 27
      %s167 = scalar_select %p166, %s165, 27
      %s168 = smul.addr %s167, 5
      %s169 = smul.addr %s168, 4
      %s170 = scalar_lea.vmem %s0, %s169
      %s171 = smul.u32 14, %s14
      %s172 = smul.u32 14, %s14
      %p173 = scmp.lt.s32.totalorder %s172, 27
      %s174 = scalar_select %p173, %s172, 27
      %s175 = smul.addr %s174, 2
      %s176 = smul.addr %s175, 4
      %s177 = scalar_lea.vmem %s3, %s176
      %s178 = smul.u32 14, %s14
      %v180 = vld [vmem:[%s170] sm:$0xff]
      %v181 = vld [vmem:[%s170 + $0x8] sm:$0xff]
      %v182 = vld [vmem:[%s170 + $0x10] sm:$0xf]
      %v183 = vld [vmem:[%s170 + $0x14] sm:$0xff]
      %v184 = vld [vmem:[%s170 + $0x1c] sm:$0xff]
      %v185 = vld [vmem:[%s170 + $0x24] sm:$0xf]
      %v186 = vld [vmem:[%s170 + $0x28] sm:$0xff]
      %v187 = vld [vmem:[%s170 + $0x30] sm:$0xff]
      %v188 = vld [vmem:[%s170 + $0x38] sm:$0xf]
      %v189 = vld [vmem:[%s170 + $0x3c] sm:$0xff]
      %v190 = vld [vmem:[%s170 + $0x44] sm:$0xff]
      %v191 = vld [vmem:[%s170 + $0x4c] sm:$0xf]
      %v192 = vld [vmem:[%s170 + $0x50] sm:$0xff]
      %v193 = vld [vmem:[%s170 + $0x58] sm:$0xff]
      %v194 = vld [vmem:[%s170 + $0x60] sm:$0xf]
      %v195 = vld [vmem:[%s170 + $0x64] sm:$0xff]
      %v196 = vld [vmem:[%s170 + $0x6c] sm:$0xff]
      %v197 = vld [vmem:[%s170 + $0x74] sm:$0xf]
      %v198 = vld [vmem:[%s170 + $0x78] sm:$0xff]
      %v199 = vld [vmem:[%s170 + $0x80] sm:$0xff]
      %v200 = vld [vmem:[%s170 + $0x88] sm:$0xf]
      %v201 = vld [vmem:[%s170 + $0x8c] sm:$0xff]
      %v202 = vld [vmem:[%s170 + $0x94] sm:$0xff]
      %v203 = vld [vmem:[%s170 + $0x9c] sm:$0xf]
      %v204 = vld [vmem:[%s170 + $0xa0] sm:$0xff]
      %v205 = vld [vmem:[%s170 + $0xa8] sm:$0xff]
      %v206 = vld [vmem:[%s170 + $0xb0] sm:$0xf]
      %v207 = vld [vmem:[%s170 + $0xb4] sm:$0xff]
      %v208 = vld [vmem:[%s170 + $0xbc] sm:$0xff]
      %v209 = vld [vmem:[%s170 + $0xc4] sm:$0xf]
      %v210 = vld [vmem:[%s170 + $0xc8] sm:$0xff]
      %v211 = vld [vmem:[%s170 + $0xd0] sm:$0xff]
      %v212 = vld [vmem:[%s170 + $0xd8] sm:$0xf]
      %v213 = vld [vmem:[%s170 + $0xdc] sm:$0xff]
      %v214 = vld [vmem:[%s170 + $0xe4] sm:$0xff]
      %v215 = vld [vmem:[%s170 + $0xec] sm:$0xf]
      %v216 = vld [vmem:[%s170 + $0xf0] sm:$0xff]
      %v217 = vld [vmem:[%s170 + $0xf8] sm:$0xff]
      %v218 = vld [vmem:[%s170 + $0x100] sm:$0xf]
      %v219 = vld [vmem:[%s170 + $0x104] sm:$0xff]
      %v220 = vld [vmem:[%s170 + $0x10c] sm:$0xff]
      %v221 = vld [vmem:[%s170 + $0x114] sm:$0xf]
      %v222 = vld [vmem:[%s1] sm:$0xf]
      %v223 = vld [vmem:[%s1 + $0x4] sm:$0xf]
      %v224 = vld [vmem:[%s1 + $0x8] sm:$0xf]
      %v225 = vld [vmem:[%s1 + $0xc] sm:$0xf]
      %v226 = vld [vmem:[%s1 + $0x10] sm:$0xf]
      %v227 = vld [vmem:[%s1 + $0x14] sm:$0xf]
      %v228 = vld [vmem:[%s1 + $0x18] sm:$0xf]
      %v229 = vld [vmem:[%s1 + $0x1c] sm:$0xf]
      %v230 = vld [vmem:[%s1 + $0x20] sm:$0xf]
      %v231 = vld [vmem:[%s1 + $0x24] sm:$0xf]
      %v232 = vld [vmem:[%s1 + $0x28] sm:$0xf]
      %v233 = vld [vmem:[%s1 + $0x2c] sm:$0xf]
      %v234 = vld [vmem:[%s1 + $0x30] sm:$0xf]
      %v235 = vld [vmem:[%s1 + $0x34] sm:$0xf]
      %v236 = vld [vmem:[%s1 + $0x38] sm:$0xf]
      %v237 = vld [vmem:[%s1 + $0x3c] sm:$0xf]
      %v238 = vld [vmem:[%s1 + $0x40] sm:$0xf]
      %v239 = vld [vmem:[%s1 + $0x44] sm:$0xf]
      %v240 = vld [vmem:[%s1 + $0x48] sm:$0xf]
      %v241 = vld [vmem:[%s1 + $0x4c] sm:$0xf]
      %v242 = vld [vmem:[%s1 + $0x50] sm:$0xf]
      %v243 = vld [vmem:[%s1 + $0x54] sm:$0xf]
      %v244 = vld [vmem:[%s1 + $0x58] sm:$0xf]
      %v245 = vld [vmem:[%s1 + $0x5c] sm:$0xf]
      %v246 = vld [vmem:[%s1 + $0x60] sm:$0xf]
      %v247 = vld [vmem:[%s1 + $0x64] sm:$0xf]
      %v248 = vld [vmem:[%s1 + $0x68] sm:$0xf]
      %v249 = vld [vmem:[%s1 + $0x6c] sm:$0xf]
      %v250 = vld [vmem:[%s1 + $0x70] sm:$0xf]
      %v251 = vld [vmem:[%s1 + $0x74] sm:$0xf]
      %v252 = vld [vmem:[%s1 + $0x78] sm:$0xf]
      %v253 = vld [vmem:[%s1 + $0x7c] sm:$0xf]
      %v254 = vld [vmem:[%s1 + $0x80] sm:$0xf]
      %v255 = vld [vmem:[%s1 + $0x84] sm:$0xf]
      %v256 = vld [vmem:[%s1 + $0x88] sm:$0xf]
      %v257 = vld [vmem:[%s1 + $0x8c] sm:$0xf]
      %v258 = vld [vmem:[%s1 + $0x90] sm:$0xf]
      %v259 = vld [vmem:[%s1 + $0x94] sm:$0xf]
      %v260 = vld [vmem:[%s1 + $0x98] sm:$0xf]
      %v261 = vld [vmem:[%s1 + $0x9c] sm:$0xf]
      %v262 = vld [vmem:[%s1 + $0xa0] sm:$0xf]
      %v263 = vld [vmem:[%s1 + $0xa4] sm:$0xf]
      %v264 = vld [vmem:[%s1 + $0xa8] sm:$0xf]
      %v265 = vld [vmem:[%s1 + $0xac] sm:$0xf]
      %v266 = vld [vmem:[%s1 + $0xb0] sm:$0xf]
      %v267 = vld [vmem:[%s1 + $0xb4] sm:$0xf]
      %v268 = vld [vmem:[%s1 + $0xb8] sm:$0xf]
      %v269 = vld [vmem:[%s1 + $0xbc] sm:$0xf]
      %v270 = vld [vmem:[%s1 + $0xc0] sm:$0xf]
      %v271 = vld [vmem:[%s1 + $0xc4] sm:$0xf]
      %v272 = vld [vmem:[%s1 + $0xc8] sm:$0xf]
      %v273 = vld [vmem:[%s1 + $0xcc] sm:$0xf]
      %v274 = vld [vmem:[%s1 + $0xd0] sm:$0xf]
      %v275 = vld [vmem:[%s1 + $0xd4] sm:$0xf]
      %v276 = vld [vmem:[%s1 + $0xd8] sm:$0xf]
      %v277 = vld [vmem:[%s1 + $0xdc] sm:$0xf]
      %v278 = vld [vmem:[%s1 + $0xe0] sm:$0xf]
      %v279 = vld [vmem:[%s1 + $0xe4] sm:$0xf]
      %v280 = vld [vmem:[%s1 + $0xe8] sm:$0xf]
      %v281 = vld [vmem:[%s1 + $0xec] sm:$0xf]
      %v282 = vld [vmem:[%s1 + $0xf0] sm:$0xf]
      %v283 = vld [vmem:[%s1 + $0xf4] sm:$0xf]
      %v284 = vld [vmem:[%s1 + $0xf8] sm:$0xf]
      %v285 = vld [vmem:[%s1 + $0xfc] sm:$0xf]
      %v286 = vld [vmem:[%s1 + $0x100] sm:$0xf]
      %v287 = vld [vmem:[%s1 + $0x104] sm:$0xf]
      %v288 = vld [vmem:[%s1 + $0x108] sm:$0xf]
      %v289 = vld [vmem:[%s1 + $0x10c] sm:$0xf]
      %v290 = vld [vmem:[%s1 + $0x110] sm:$0xf]
      %v291 = vld [vmem:[%s1 + $0x114] sm:$0xf]
      %v292 = vld [vmem:[%s1 + $0x118] sm:$0xf]
      %v293 = vld [vmem:[%s1 + $0x11c] sm:$0xf]
      %v294 = vld [vmem:[%s2] sm:$0x1]
      %v296 = vlaneseq
      %v297 = vshrl.u32 %v296, 7
      %v298 = vsub.s32 0, %v297
      %v299 = vrot.slane %v294, %v298
      %v343 = vunpack.c.l.b16 %v180
      %v344 = vunpack.c.h.b16 %v180
      %v345 = vunpack.c.l.b16 %v181
      %v346 = vunpack.c.h.b16 %v181
      %v347 = vunpack.c.l.b16 %v182
      %v348 = vunpack.c.l.b16 %v183
      %v349 = vunpack.c.h.b16 %v183
      %v350 = vunpack.c.l.b16 %v184
      %v351 = vunpack.c.h.b16 %v184
      %v352 = vunpack.c.l.b16 %v185
      %v353 = vunpack.c.l.b16 %v186
      %v354 = vunpack.c.h.b16 %v186
      %v355 = vunpack.c.l.b16 %v187
      %v356 = vunpack.c.h.b16 %v187
      %v357 = vunpack.c.l.b16 %v188
      %v358 = vunpack.c.l.b16 %v189
      %v359 = vunpack.c.h.b16 %v189
      %v360 = vunpack.c.l.b16 %v190
      %v361 = vunpack.c.h.b16 %v190
      %v362 = vunpack.c.l.b16 %v191
      %v363 = vunpack.c.l.b16 %v192
      %v364 = vunpack.c.h.b16 %v192
      %v365 = vunpack.c.l.b16 %v193
      %v366 = vunpack.c.h.b16 %v193
      %v367 = vunpack.c.l.b16 %v194
      %v368 = vunpack.c.l.b16 %v195
      %v369 = vunpack.c.h.b16 %v195
      %v370 = vunpack.c.l.b16 %v196
      %v371 = vunpack.c.h.b16 %v196
      %v372 = vunpack.c.l.b16 %v197
      %v373 = vunpack.c.l.b16 %v198
      %v374 = vunpack.c.h.b16 %v198
      %v375 = vunpack.c.l.b16 %v199
      %v376 = vunpack.c.h.b16 %v199
      %v377 = vunpack.c.l.b16 %v200
      %v378 = vunpack.c.l.b16 %v201
      %v379 = vunpack.c.h.b16 %v201
      %v380 = vunpack.c.l.b16 %v202
      %v381 = vunpack.c.h.b16 %v202
      %v382 = vunpack.c.l.b16 %v203
      %v383 = vunpack.c.l.b16 %v204
      %v384 = vunpack.c.h.b16 %v204
      %v385 = vunpack.c.l.b16 %v205
      %v386 = vunpack.c.h.b16 %v205
      %v387 = vunpack.c.l.b16 %v206
      %v388 = vunpack.c.l.b16 %v207
      %v389 = vunpack.c.h.b16 %v207
      %v390 = vunpack.c.l.b16 %v208
      %v391 = vunpack.c.h.b16 %v208
      %v392 = vunpack.c.l.b16 %v209
      %v393 = vunpack.c.l.b16 %v210
      %v394 = vunpack.c.h.b16 %v210
      %v395 = vunpack.c.l.b16 %v211
      %v396 = vunpack.c.h.b16 %v211
      %v397 = vunpack.c.l.b16 %v212
      %v398 = vunpack.c.l.b16 %v213
      %v399 = vunpack.c.h.b16 %v213
      %v400 = vunpack.c.l.b16 %v214
      %v401 = vunpack.c.h.b16 %v214
      %v402 = vunpack.c.l.b16 %v215
      %v403 = vunpack.c.l.b16 %v216
      %v404 = vunpack.c.h.b16 %v216
      %v405 = vunpack.c.l.b16 %v217
      %v406 = vunpack.c.h.b16 %v217
      %v407 = vunpack.c.l.b16 %v218
      %v408 = vunpack.c.l.b16 %v219
      %v409 = vunpack.c.h.b16 %v219
      %v410 = vunpack.c.l.b16 %v220
      %v411 = vunpack.c.h.b16 %v220
      %v412 = vunpack.c.l.b16 %v221
      %v413 = vpack.c.b16 %v348, %v343
      %v414 = vpack.c.b16 %v349, %v344
      %v415 = vpack.c.b16 %v350, %v345
      %v416 = vpack.c.b16 %v351, %v346
      %v417 = vpack.c.b16 %v352, %v347
      %v418 = vpack.c.b16 %v358, %v353
      %v419 = vpack.c.b16 %v359, %v354
      %v420 = vpack.c.b16 %v360, %v355
      %v421 = vpack.c.b16 %v361, %v356
      %v422 = vpack.c.b16 %v362, %v357
      %v423 = vpack.c.b16 %v368, %v363
      %v424 = vpack.c.b16 %v369, %v364
      %v425 = vpack.c.b16 %v370, %v365
      %v426 = vpack.c.b16 %v371, %v366
      %v427 = vpack.c.b16 %v372, %v367
      %v428 = vpack.c.b16 %v378, %v373
      %v429 = vpack.c.b16 %v379, %v374
      %v430 = vpack.c.b16 %v380, %v375
      %v431 = vpack.c.b16 %v381, %v376
      %v432 = vpack.c.b16 %v382, %v377
      %v433 = vpack.c.b16 %v388, %v383
      %v434 = vpack.c.b16 %v389, %v384
      %v435 = vpack.c.b16 %v390, %v385
      %v436 = vpack.c.b16 %v391, %v386
      %v437 = vpack.c.b16 %v392, %v387
      %v438 = vpack.c.b16 %v398, %v393
      %v439 = vpack.c.b16 %v399, %v394
      %v440 = vpack.c.b16 %v400, %v395
      %v441 = vpack.c.b16 %v401, %v396
      %v442 = vpack.c.b16 %v402, %v397
      %v443 = vpack.c.b16 %v408, %v403
      %v444 = vpack.c.b16 %v409, %v404
      %v445 = vpack.c.b16 %v410, %v405
      %v446 = vpack.c.b16 %v411, %v406
      %v447 = vpack.c.b16 %v412, %v407
      %v548 = vunpack.c.l.b16 %v222
      %v549 = vunpack.c.l.b16 %v223
      %v550 = vunpack.c.l.b16 %v224
      %v551 = vunpack.c.l.b16 %v225
      %v552 = vunpack.c.l.b16 %v226
      %v553 = vunpack.c.l.b16 %v227
      %v554 = vunpack.c.l.b16 %v228
      %v555 = vunpack.c.l.b16 %v229
      %v556 = vunpack.c.l.b16 %v230
      %v557 = vunpack.c.l.b16 %v231
      %v558 = vunpack.c.l.b16 %v232
      %v559 = vunpack.c.l.b16 %v233
      %v560 = vunpack.c.l.b16 %v234
      %v561 = vunpack.c.l.b16 %v235
      %v562 = vunpack.c.l.b16 %v236
      %v563 = vunpack.c.l.b16 %v237
      %v564 = vunpack.c.l.b16 %v238
      %v565 = vunpack.c.l.b16 %v239
      %v566 = vunpack.c.l.b16 %v240
      %v567 = vunpack.c.l.b16 %v241
      %v568 = vunpack.c.l.b16 %v242
      %v569 = vunpack.c.l.b16 %v243
      %v570 = vunpack.c.l.b16 %v244
      %v571 = vunpack.c.l.b16 %v245
      %v572 = vunpack.c.l.b16 %v246
      %v573 = vunpack.c.l.b16 %v247
      %v574 = vunpack.c.l.b16 %v248
      %v575 = vunpack.c.l.b16 %v249
      %v576 = vunpack.c.l.b16 %v250
      %v577 = vunpack.c.l.b16 %v251
      %v578 = vunpack.c.l.b16 %v252
      %v579 = vunpack.c.l.b16 %v253
      %v580 = vunpack.c.l.b16 %v254
      %v581 = vunpack.c.l.b16 %v255
      %v582 = vunpack.c.l.b16 %v256
      %v583 = vunpack.c.l.b16 %v257
      %v584 = vunpack.c.l.b16 %v258
      %v585 = vunpack.c.l.b16 %v259
      %v586 = vunpack.c.l.b16 %v260
      %v587 = vunpack.c.l.b16 %v261
      %v588 = vunpack.c.l.b16 %v262
      %v589 = vunpack.c.l.b16 %v263
      %v590 = vunpack.c.l.b16 %v264
      %v591 = vunpack.c.l.b16 %v265
      %v592 = vunpack.c.l.b16 %v266
      %v593 = vunpack.c.l.b16 %v267
      %v594 = vunpack.c.l.b16 %v268
      %v595 = vunpack.c.l.b16 %v269
      %v596 = vunpack.c.l.b16 %v270
      %v597 = vunpack.c.l.b16 %v271
      %v598 = vunpack.c.l.b16 %v272
      %v599 = vunpack.c.l.b16 %v273
      %v600 = vunpack.c.l.b16 %v274
      %v601 = vunpack.c.l.b16 %v275
      %v602 = vunpack.c.l.b16 %v276
      %v603 = vunpack.c.l.b16 %v277
      %v604 = vunpack.c.l.b16 %v278
      %v605 = vunpack.c.l.b16 %v279
      %v606 = vunpack.c.l.b16 %v280
      %v607 = vunpack.c.l.b16 %v281
      %v608 = vunpack.c.l.b16 %v282
      %v609 = vunpack.c.l.b16 %v283
      %v610 = vunpack.c.l.b16 %v284
      %v611 = vunpack.c.l.b16 %v285
      %v612 = vunpack.c.l.b16 %v286
      %v613 = vunpack.c.l.b16 %v287
      %v614 = vunpack.c.l.b16 %v288
      %v615 = vunpack.c.l.b16 %v289
      %v616 = vunpack.c.l.b16 %v290
      %v617 = vunpack.c.l.b16 %v291
      %v618 = vunpack.c.l.b16 %v292
      %v619 = vunpack.c.l.b16 %v293
      %v620 = vpack.c.b16 %v549, %v548
      %v621 = vpack.c.b16 %v551, %v550
      %v622 = vpack.c.b16 %v553, %v552
      %v623 = vpack.c.b16 %v555, %v554
      %v624 = vpack.c.b16 %v557, %v556
      %v625 = vpack.c.b16 %v559, %v558
      %v626 = vpack.c.b16 %v561, %v560
      %v627 = vpack.c.b16 %v563, %v562
      %v628 = vpack.c.b16 %v565, %v564
      %v629 = vpack.c.b16 %v567, %v566
      %v630 = vpack.c.b16 %v569, %v568
      %v631 = vpack.c.b16 %v571, %v570
      %v632 = vpack.c.b16 %v573, %v572
      %v633 = vpack.c.b16 %v575, %v574
      %v634 = vpack.c.b16 %v577, %v576
      %v635 = vpack.c.b16 %v579, %v578
      %v636 = vpack.c.b16 %v581, %v580
      %v637 = vpack.c.b16 %v583, %v582
      %v638 = vpack.c.b16 %v585, %v584
      %v639 = vpack.c.b16 %v587, %v586
      %v640 = vpack.c.b16 %v589, %v588
      %v641 = vpack.c.b16 %v591, %v590
      %v642 = vpack.c.b16 %v593, %v592
      %v643 = vpack.c.b16 %v595, %v594
      %v644 = vpack.c.b16 %v597, %v596
      %v645 = vpack.c.b16 %v599, %v598
      %v646 = vpack.c.b16 %v601, %v600
      %v647 = vpack.c.b16 %v603, %v602
      %v648 = vpack.c.b16 %v605, %v604
      %v649 = vpack.c.b16 %v607, %v606
      %v650 = vpack.c.b16 %v609, %v608
      %v651 = vpack.c.b16 %v611, %v610
      %v652 = vpack.c.b16 %v613, %v612
      %v653 = vpack.c.b16 %v615, %v614
      %v654 = vpack.c.b16 %v617, %v616
      %v655 = vpack.c.b16 %v619, %v618
      %vm692 = vcmask 523264
      %v694 = vsel %vm692, %v417, 0
      %v697 = vsel %vm692, %v422, 0
      %v700 = vsel %vm692, %v427, 0
      %v703 = vsel %vm692, %v432, 0
      %v706 = vsel %vm692, %v437, 0
      %v709 = vsel %vm692, %v442, 0
      %v712 = vsel %vm692, %v447, 0
      %714 = vmatprep.subr.bf16.mxu0 0
      %715 = vmatpush1.bf16.msra.mxu0 %v627
      %716 = vmatprep.subr.bf16.mxu0 0
      %717 = vmatpush1.bf16.msra.mxu0 %v626
      %718 = vmatprep.subr.bf16.mxu0 0
      %719 = vmatpush1.bf16.msra.mxu0 %v625
      %720 = vmatprep.subr.bf16.mxu0 0
      %721 = vmatpush1.bf16.msra.mxu0 %v624
      %722 = vmatprep.subr.bf16.mxu0 0
      %723 = vmatpush1.bf16.msra.mxu0 %v623
      %724 = vmatprep.subr.bf16.mxu0 0
      %725 = vmatpush1.bf16.msra.mxu0 %v622
      %726 = vmatprep.subr.bf16.mxu0 0
      %727 = vmatpush1.bf16.msra.mxu0 %v621
      %728 = vmatprep.subr.bf16.mxu0 0
      %729 = vmatpush1.bf16.msra.mxu0 %v620
      %730 = vmatprep.subr.bf16.mxu0 0
      %731 = vmatpush2.bf16.msra.mxu0 %v635
      %732 = vmatprep.subr.bf16.mxu0 0
      %733 = vmatpush2.bf16.msra.mxu0 %v634
      %734 = vmatprep.subr.bf16.mxu0 0
      %735 = vmatpush2.bf16.msra.mxu0 %v633
      %736 = vmatprep.subr.bf16.mxu0 0
      %737 = vmatpush2.bf16.msra.mxu0 %v632
      %738 = vmatprep.subr.bf16.mxu0 0
      %739 = vmatpush2.bf16.msra.mxu0 %v631
      %740 = vmatprep.subr.bf16.mxu0 0
      %741 = vmatpush2.bf16.msra.mxu0 %v630
      %742 = vmatprep.subr.bf16.mxu0 0
      %743 = vmatpush2.bf16.msra.mxu0 %v629
      %744 = vmatprep.subr.bf16.mxu0 0
      %745 = vmatpush2.bf16.msra.mxu0 %v628
      %746 = vmatprep.mubr.bf16.mxu0 %v414
      %747 = vmatmul.mubr.bf16.gmra.mxu0 %v413
      %v748 = vpop.f32.mrf.mxu0
      %v749 = vadd.f32 %v299, %v748
      %v750 = vpop.f32.mrf.mxu0
      %v751 = vpop.f32.mrf.mxu0
      %v752 = vadd.f32 %v299, %v751
      %v753 = vpop.f32.mrf.mxu0
      %754 = vmatprep.mubr.bf16.mxu0 %v419
      %755 = vmatmul.mubr.bf16.gmra.mxu0 %v418
      %v756 = vpop.f32.mrf.mxu0
      %v757 = vadd.f32 %v299, %v756
      %v758 = vpop.f32.mrf.mxu0
      %v759 = vpop.f32.mrf.mxu0
      %v760 = vadd.f32 %v299, %v759
      %v761 = vpop.f32.mrf.mxu0
      %762 = vmatprep.mubr.bf16.mxu0 %v424
      %763 = vmatmul.mubr.bf16.gmra.mxu0 %v423
      %v764 = vpop.f32.mrf.mxu0
      %v765 = vadd.f32 %v299, %v764
      %v766 = vpop.f32.mrf.mxu0
      %v767 = vpop.f32.mrf.mxu0
      %v768 = vadd.f32 %v299, %v767
      %v769 = vpop.f32.mrf.mxu0
      %770 = vmatprep.mubr.bf16.mxu0 %v429
      %771 = vmatmul.mubr.bf16.gmra.mxu0 %v428
      %v772 = vpop.f32.mrf.mxu0
      %v773 = vadd.f32 %v299, %v772
      %v774 = vpop.f32.mrf.mxu0
      %v775 = vpop.f32.mrf.mxu0
      %v776 = vadd.f32 %v299, %v775
      %v777 = vpop.f32.mrf.mxu0
      %778 = vmatprep.mubr.bf16.mxu0 %v434
      %779 = vmatmul.mubr.bf16.gmra.mxu0 %v433
      %v780 = vpop.f32.mrf.mxu0
      %v781 = vadd.f32 %v299, %v780
      %v782 = vpop.f32.mrf.mxu0
      %v783 = vpop.f32.mrf.mxu0
      %v784 = vadd.f32 %v299, %v783
      %v785 = vpop.f32.mrf.mxu0
      %786 = vmatprep.mubr.bf16.mxu0 %v439
      %787 = vmatmul.mubr.bf16.gmra.mxu0 %v438
      %v788 = vpop.f32.mrf.mxu0
      %v789 = vadd.f32 %v299, %v788
      %v790 = vpop.f32.mrf.mxu0
      %v791 = vpop.f32.mrf.mxu0
      %v792 = vadd.f32 %v299, %v791
      %v793 = vpop.f32.mrf.mxu0
      %794 = vmatprep.mubr.bf16.mxu0 %v444
      %795 = vmatmul.mubr.bf16.gmra.mxu0 %v443
      %v796 = vpop.f32.mrf.mxu0
      %v797 = vadd.f32 %v299, %v796
      %v798 = vpop.f32.mrf.mxu0
      %v799 = vpop.f32.mrf.mxu0
      %v800 = vadd.f32 %v299, %v799
      %v801 = vpop.f32.mrf.mxu0
      %802 = vdwg.mxu0
      %803 = vmatprep.subr.bf16.mxu0 0
      %804 = vmatpush1.bf16.msra.mxu0 %v643
      %805 = vmatprep.subr.bf16.mxu0 0
      %806 = vmatpush1.bf16.msra.mxu0 %v642
      %807 = vmatprep.subr.bf16.mxu0 0
      %808 = vmatpush1.bf16.msra.mxu0 %v641
      %809 = vmatprep.subr.bf16.mxu0 0
      %810 = vmatpush1.bf16.msra.mxu0 %v640
      %811 = vmatprep.subr.bf16.mxu0 0
      %812 = vmatpush1.bf16.msra.mxu0 %v639
      %813 = vmatprep.subr.bf16.mxu0 0
      %814 = vmatpush1.bf16.msra.mxu0 %v638
      %815 = vmatprep.subr.bf16.mxu0 0
      %816 = vmatpush1.bf16.msra.mxu0 %v637
      %817 = vmatprep.subr.bf16.mxu0 0
      %818 = vmatpush1.bf16.msra.mxu0 %v636
      %819 = vmatprep.subr.bf16.mxu0 0
      %820 = vmatpush2.bf16.msra.mxu0 %v651
      %821 = vmatprep.subr.bf16.mxu0 0
      %822 = vmatpush2.bf16.msra.mxu0 %v650
      %823 = vmatprep.subr.bf16.mxu0 0
      %824 = vmatpush2.bf16.msra.mxu0 %v649
      %825 = vmatprep.subr.bf16.mxu0 0
      %826 = vmatpush2.bf16.msra.mxu0 %v648
      %827 = vmatprep.subr.bf16.mxu0 0
      %828 = vmatpush2.bf16.msra.mxu0 %v647
      %829 = vmatprep.subr.bf16.mxu0 0
      %830 = vmatpush2.bf16.msra.mxu0 %v646
      %831 = vmatprep.subr.bf16.mxu0 0
      %832 = vmatpush2.bf16.msra.mxu0 %v645
      %833 = vmatprep.subr.bf16.mxu0 0
      %834 = vmatpush2.bf16.msra.mxu0 %v644
      %835 = vmatprep.mubr.bf16.mxu0 %v416
      %836 = vmatmul.mubr.bf16.gmra.mxu0 %v415
      %v837 = vpop.f32.mrf.mxu0
      %v838 = vadd.f32 %v749, %v837
      %v839 = vpop.f32.mrf.mxu0
      %v840 = vpop.f32.mrf.mxu0
      %v841 = vadd.f32 %v752, %v840
      %v842 = vpop.f32.mrf.mxu0
      %843 = vmatprep.mubr.bf16.mxu0 %v421
      %844 = vmatmul.mubr.bf16.gmra.mxu0 %v420
      %v845 = vpop.f32.mrf.mxu0
      %v846 = vadd.f32 %v757, %v845
      %v847 = vpop.f32.mrf.mxu0
      %v848 = vpop.f32.mrf.mxu0
      %v849 = vadd.f32 %v760, %v848
      %v850 = vpop.f32.mrf.mxu0
      %851 = vmatprep.mubr.bf16.mxu0 %v426
      %852 = vmatmul.mubr.bf16.gmra.mxu0 %v425
      %v853 = vpop.f32.mrf.mxu0
      %v854 = vadd.f32 %v765, %v853
      %v855 = vpop.f32.mrf.mxu0
      %v856 = vpop.f32.mrf.mxu0
      %v857 = vadd.f32 %v768, %v856
      %v858 = vpop.f32.mrf.mxu0
      %859 = vmatprep.mubr.bf16.mxu0 %v431
      %860 = vmatmul.mubr.bf16.gmra.mxu0 %v430
      %v861 = vpop.f32.mrf.mxu0
      %v862 = vadd.f32 %v773, %v861
      %v863 = vpop.f32.mrf.mxu0
      %v864 = vpop.f32.mrf.mxu0
      %v865 = vadd.f32 %v776, %v864
      %v866 = vpop.f32.mrf.mxu0
      %867 = vmatprep.mubr.bf16.mxu0 %v436
      %868 = vmatmul.mubr.bf16.gmra.mxu0 %v435
      %v869 = vpop.f32.mrf.mxu0
      %v870 = vadd.f32 %v781, %v869
      %v871 = vpop.f32.mrf.mxu0
      %v872 = vpop.f32.mrf.mxu0
      %v873 = vadd.f32 %v784, %v872
      %v874 = vpop.f32.mrf.mxu0
      %875 = vmatprep.mubr.bf16.mxu0 %v441
      %876 = vmatmul.mubr.bf16.gmra.mxu0 %v440
      %v877 = vpop.f32.mrf.mxu0
      %v878 = vadd.f32 %v789, %v877
      %v879 = vpop.f32.mrf.mxu0
      %v880 = vpop.f32.mrf.mxu0
      %v881 = vadd.f32 %v792, %v880
      %v882 = vpop.f32.mrf.mxu0
      %883 = vmatprep.mubr.bf16.mxu0 %v446
      %884 = vmatmul.mubr.bf16.gmra.mxu0 %v445
      %v885 = vpop.f32.mrf.mxu0
      %v886 = vadd.f32 %v797, %v885
      %v887 = vpop.f32.mrf.mxu0
      %v888 = vpop.f32.mrf.mxu0
      %v889 = vadd.f32 %v800, %v888
      %v890 = vpop.f32.mrf.mxu0
      %891 = vdwg.mxu0
      %892 = vmatprep.subr.bf16.mxu0 0
      %893 = vmatpush1.bf16.msra.mxu0 0
      %894 = vmatprep.subr.bf16.mxu0 0
      %895 = vmatpush1.bf16.msra.mxu0 0
      %896 = vmatprep.subr.bf16.mxu0 0
      %897 = vmatpush1.bf16.msra.mxu0 0
      %898 = vmatprep.subr.bf16.mxu0 0
      %899 = vmatpush1.bf16.msra.mxu0 0
      %900 = vmatprep.subr.bf16.mxu0 0
      %901 = vmatpush1.bf16.msra.mxu0 %v655
      %902 = vmatprep.subr.bf16.mxu0 0
      %903 = vmatpush1.bf16.msra.mxu0 %v654
      %904 = vmatprep.subr.bf16.mxu0 0
      %905 = vmatpush1.bf16.msra.mxu0 %v653
      %906 = vmatprep.subr.bf16.mxu0 0
      %907 = vmatpush1.bf16.msra.mxu0 %v652
      %908 = vmatprep.subr.bf16.mxu0 0
      %909 = vmatpush2.bf16.msra.mxu0 0
      %910 = vmatprep.subr.bf16.mxu0 0
      %911 = vmatpush2.bf16.msra.mxu0 0
      %912 = vmatprep.subr.bf16.mxu0 0
      %913 = vmatpush2.bf16.msra.mxu0 0
      %914 = vmatprep.subr.bf16.mxu0 0
      %915 = vmatpush2.bf16.msra.mxu0 0
      %916 = vmatprep.subr.bf16.mxu0 0
      %917 = vmatpush2.bf16.msra.mxu0 0
      %918 = vmatprep.subr.bf16.mxu0 0
      %919 = vmatpush2.bf16.msra.mxu0 0
      %920 = vmatprep.subr.bf16.mxu0 0
      %921 = vmatpush2.bf16.msra.mxu0 0
      %922 = vmatprep.subr.bf16.mxu0 0
      %923 = vmatpush2.bf16.msra.mxu0 0
      %924 = vmatprep.mubr.bf16.mxu0 0
      %925 = vmatmul.mubr.bf16.gmra.mxu0 %v694
      %v926 = vpop.f32.mrf.mxu0
      %v927 = vadd.f32 %v838, %v926
      %v928 = vpop.f32.mrf.mxu0
      %v929 = vpop.f32.mrf.mxu0
      %v930 = vadd.f32 %v841, %v929
      %v931 = vpop.f32.mrf.mxu0
      %932 = vmatprep.mubr.bf16.mxu0 0
      %933 = vmatmul.mubr.bf16.gmra.mxu0 %v697
      %v934 = vpop.f32.mrf.mxu0
      %v935 = vadd.f32 %v846, %v934
      %v936 = vpop.f32.mrf.mxu0
      %v937 = vpop.f32.mrf.mxu0
      %v938 = vadd.f32 %v849, %v937
      %v939 = vpop.f32.mrf.mxu0
      %940 = vmatprep.mubr.bf16.mxu0 0
      %941 = vmatmul.mubr.bf16.gmra.mxu0 %v700
      %v942 = vpop.f32.mrf.mxu0
      %v943 = vadd.f32 %v854, %v942
      %v944 = vpop.f32.mrf.mxu0
      %v945 = vpop.f32.mrf.mxu0
      %v946 = vadd.f32 %v857, %v945
      %v947 = vpop.f32.mrf.mxu0
      %948 = vmatprep.mubr.bf16.mxu0 0
      %949 = vmatmul.mubr.bf16.gmra.mxu0 %v703
      %v950 = vpop.f32.mrf.mxu0
      %v951 = vadd.f32 %v862, %v950
      %v952 = vpop.f32.mrf.mxu0
      %v953 = vpop.f32.mrf.mxu0
      %v954 = vadd.f32 %v865, %v953
      %v955 = vpop.f32.mrf.mxu0
      %956 = vmatprep.mubr.bf16.mxu0 0
      %957 = vmatmul.mubr.bf16.gmra.mxu0 %v706
      %v958 = vpop.f32.mrf.mxu0
      %v959 = vadd.f32 %v870, %v958
      %v960 = vpop.f32.mrf.mxu0
      %v961 = vpop.f32.mrf.mxu0
      %v962 = vadd.f32 %v873, %v961
      %v963 = vpop.f32.mrf.mxu0
      %964 = vmatprep.mubr.bf16.mxu0 0
      %965 = vmatmul.mubr.bf16.gmra.mxu0 %v709
      %v966 = vpop.f32.mrf.mxu0
      %v967 = vadd.f32 %v878, %v966
      %v968 = vpop.f32.mrf.mxu0
      %v969 = vpop.f32.mrf.mxu0
      %v970 = vadd.f32 %v881, %v969
      %v971 = vpop.f32.mrf.mxu0
      %972 = vmatprep.mubr.bf16.mxu0 0
      %973 = vmatmul.mubr.bf16.gmra.mxu0 %v712
      %v974 = vpop.f32.mrf.mxu0
      %v975 = vadd.f32 %v886, %v974
      %v976 = vpop.f32.mrf.mxu0
      %v977 = vpop.f32.mrf.mxu0
      %v978 = vadd.f32 %v889, %v977
      %v979 = vpop.f32.mrf.mxu0
      %980 = vdwg.mxu0
      %v981 = vmax.f32 %v927, 0.0
      %v982 = vmax.f32 %v930, 0.0
      %v983 = vmax.f32 %v935, 0.0
      %v984 = vmax.f32 %v938, 0.0
      %v985 = vmax.f32 %v943, 0.0
      %v986 = vmax.f32 %v946, 0.0
      %v987 = vmax.f32 %v951, 0.0
      %v988 = vmax.f32 %v954, 0.0
      %v989 = vmax.f32 %v959, 0.0
      %v990 = vmax.f32 %v962, 0.0
      %v991 = vmax.f32 %v967, 0.0
      %v992 = vmax.f32 %v970, 0.0
      %v993 = vmax.f32 %v975, 0.0
      %v994 = vmax.f32 %v978, 0.0
      %v995 = vunpack.c.l.bf16 %v180
      %v996 = vunpack.c.l.bf16 %v183
      %v997 = vunpack.c.l.bf16 %v186
      %v998 = vunpack.c.l.bf16 %v189
      %v999 = vunpack.c.l.bf16 %v192
      %v1000 = vunpack.c.l.bf16 %v195
      %v1001 = vunpack.c.l.bf16 %v198
      %v1002 = vunpack.c.l.bf16 %v201
      %v1003 = vunpack.c.l.bf16 %v204
      %v1004 = vunpack.c.l.bf16 %v207
      %v1005 = vunpack.c.l.bf16 %v210
      %v1006 = vunpack.c.l.bf16 %v213
      %v1007 = vunpack.c.l.bf16 %v216
      %v1008 = vunpack.c.l.bf16 %v219
      %1023 = vrot.lane.b32.xlu0 %v995, 64
      %v1024 = vpop.permute.xlu0 %1023
      %1025 = vrot.lane.b32.xlu0 %v996, 64
      %v1026 = vpop.permute.xlu0 %1025
      %1027 = vrot.lane.b32.xlu0 %v997, 64
      %v1028 = vpop.permute.xlu0 %1027
      %1029 = vrot.lane.b32.xlu0 %v998, 64
      %v1030 = vpop.permute.xlu0 %1029
      %1031 = vrot.lane.b32.xlu0 %v999, 64
      %v1032 = vpop.permute.xlu0 %1031
      %1033 = vrot.lane.b32.xlu0 %v1000, 64
      %v1034 = vpop.permute.xlu0 %1033
      %1035 = vrot.lane.b32.xlu0 %v1001, 64
      %v1036 = vpop.permute.xlu0 %1035
      %1037 = vrot.lane.b32.xlu0 %v1002, 64
      %v1038 = vpop.permute.xlu0 %1037
      %1039 = vrot.lane.b32.xlu0 %v1003, 64
      %v1040 = vpop.permute.xlu0 %1039
      %1041 = vrot.lane.b32.xlu0 %v1004, 64
      %v1042 = vpop.permute.xlu0 %1041
      %1043 = vrot.lane.b32.xlu0 %v1005, 64
      %v1044 = vpop.permute.xlu0 %1043
      %1045 = vrot.lane.b32.xlu0 %v1006, 64
      %v1046 = vpop.permute.xlu0 %1045
      %1047 = vrot.lane.b32.xlu0 %v1007, 64
      %v1048 = vpop.permute.xlu0 %1047
      %1049 = vrot.lane.b32.xlu0 %v1008, 64
      %v1050 = vpop.permute.xlu0 %1049
      %v1065 = vmax.f32 %v995, %v1024
      %v1066 = vmax.f32 %v996, %v1026
      %v1067 = vmax.f32 %v997, %v1028
      %v1068 = vmax.f32 %v998, %v1030
      %v1069 = vmax.f32 %v999, %v1032
      %v1070 = vmax.f32 %v1000, %v1034
      %v1071 = vmax.f32 %v1001, %v1036
      %v1072 = vmax.f32 %v1002, %v1038
      %v1073 = vmax.f32 %v1003, %v1040
      %v1074 = vmax.f32 %v1004, %v1042
      %v1075 = vmax.f32 %v1005, %v1044
      %v1076 = vmax.f32 %v1006, %v1046
      %v1077 = vmax.f32 %v1007, %v1048
      %v1078 = vmax.f32 %v1008, %v1050
      %v1079 = vrot.slane %v180, 4
      %v1080 = vrot.slane %v183, 4
      %v1081 = vrot.slane %v186, 4
      %v1082 = vrot.slane %v189, 4
      %v1083 = vrot.slane %v192, 4
      %v1084 = vrot.slane %v195, 4
      %v1085 = vrot.slane %v198, 4
      %v1086 = vrot.slane %v201, 4
      %v1087 = vrot.slane %v204, 4
      %v1088 = vrot.slane %v207, 4
      %v1089 = vrot.slane %v210, 4
      %v1090 = vrot.slane %v213, 4
      %v1091 = vrot.slane %v216, 4
      %v1092 = vrot.slane %v219, 4
      %v1107 = vunpack.c.l.bf16 %v1079
      %v1108 = vunpack.c.l.bf16 %v1080
      %v1109 = vunpack.c.l.bf16 %v1081
      %v1110 = vunpack.c.l.bf16 %v1082
      %v1111 = vunpack.c.l.bf16 %v1083
      %v1112 = vunpack.c.l.bf16 %v1084
      %v1113 = vunpack.c.l.bf16 %v1085
      %v1114 = vunpack.c.l.bf16 %v1086
      %v1115 = vunpack.c.l.bf16 %v1087
      %v1116 = vunpack.c.l.bf16 %v1088
      %v1117 = vunpack.c.l.bf16 %v1089
      %v1118 = vunpack.c.l.bf16 %v1090
      %v1119 = vunpack.c.l.bf16 %v1091
      %v1120 = vunpack.c.l.bf16 %v1092
      %v1121 = vmax.f32 %v1065, %v1107
      %v1122 = vmax.f32 %v1066, %v1108
      %v1123 = vmax.f32 %v1067, %v1109
      %v1124 = vmax.f32 %v1068, %v1110
      %v1125 = vmax.f32 %v1069, %v1111
      %v1126 = vmax.f32 %v1070, %v1112
      %v1127 = vmax.f32 %v1071, %v1113
      %v1128 = vmax.f32 %v1072, %v1114
      %v1129 = vmax.f32 %v1073, %v1115
      %v1130 = vmax.f32 %v1074, %v1116
      %v1131 = vmax.f32 %v1075, %v1117
      %v1132 = vmax.f32 %v1076, %v1118
      %v1133 = vmax.f32 %v1077, %v1119
      %v1134 = vmax.f32 %v1078, %v1120
      %1135 = vrot.lane.b32.xlu0 %v180, 64
      %v1136 = vpop.permute.xlu0 %1135
      %1137 = vrot.lane.b32.xlu0 %v183, 64
      %v1138 = vpop.permute.xlu0 %1137
      %1139 = vrot.lane.b32.xlu0 %v186, 64
      %v1140 = vpop.permute.xlu0 %1139
      %1141 = vrot.lane.b32.xlu0 %v189, 64
      %v1142 = vpop.permute.xlu0 %1141
      %1143 = vrot.lane.b32.xlu0 %v192, 64
      %v1144 = vpop.permute.xlu0 %1143
      %1145 = vrot.lane.b32.xlu0 %v195, 64
      %v1146 = vpop.permute.xlu0 %1145
      %1147 = vrot.lane.b32.xlu0 %v198, 64
      %v1148 = vpop.permute.xlu0 %1147
      %1149 = vrot.lane.b32.xlu0 %v201, 64
      %v1150 = vpop.permute.xlu0 %1149
      %1151 = vrot.lane.b32.xlu0 %v204, 64
      %v1152 = vpop.permute.xlu0 %1151
      %1153 = vrot.lane.b32.xlu0 %v207, 64
      %v1154 = vpop.permute.xlu0 %1153
      %1155 = vrot.lane.b32.xlu0 %v210, 64
      %v1156 = vpop.permute.xlu0 %1155
      %1157 = vrot.lane.b32.xlu0 %v213, 64
      %v1158 = vpop.permute.xlu0 %1157
      %1159 = vrot.lane.b32.xlu0 %v216, 64
      %v1160 = vpop.permute.xlu0 %1159
      %1161 = vrot.lane.b32.xlu0 %v219, 64
      %v1162 = vpop.permute.xlu0 %1161
      %v1163 = vrot.slane %v1136, 4
      %v1164 = vrot.slane %v1138, 4
      %v1165 = vrot.slane %v1140, 4
      %v1166 = vrot.slane %v1142, 4
      %v1167 = vrot.slane %v1144, 4
      %v1168 = vrot.slane %v1146, 4
      %v1169 = vrot.slane %v1148, 4
      %v1170 = vrot.slane %v1150, 4
      %v1171 = vrot.slane %v1152, 4
      %v1172 = vrot.slane %v1154, 4
      %v1173 = vrot.slane %v1156, 4
      %v1174 = vrot.slane %v1158, 4
      %v1175 = vrot.slane %v1160, 4
      %v1176 = vrot.slane %v1162, 4
      %v1191 = vunpack.c.l.bf16 %v1163
      %v1192 = vunpack.c.l.bf16 %v1164
      %v1193 = vunpack.c.l.bf16 %v1165
      %v1194 = vunpack.c.l.bf16 %v1166
      %v1195 = vunpack.c.l.bf16 %v1167
      %v1196 = vunpack.c.l.bf16 %v1168
      %v1197 = vunpack.c.l.bf16 %v1169
      %v1198 = vunpack.c.l.bf16 %v1170
      %v1199 = vunpack.c.l.bf16 %v1171
      %v1200 = vunpack.c.l.bf16 %v1172
      %v1201 = vunpack.c.l.bf16 %v1173
      %v1202 = vunpack.c.l.bf16 %v1174
      %v1203 = vunpack.c.l.bf16 %v1175
      %v1204 = vunpack.c.l.bf16 %v1176
      %v1205 = vmax.f32 %v1121, %v1191
      %v1206 = vmax.f32 %v1122, %v1192
      %v1207 = vmax.f32 %v1123, %v1193
      %v1208 = vmax.f32 %v1124, %v1194
      %v1209 = vmax.f32 %v1125, %v1195
      %v1210 = vmax.f32 %v1126, %v1196
      %v1211 = vmax.f32 %v1127, %v1197
      %v1212 = vmax.f32 %v1128, %v1198
      %v1213 = vmax.f32 %v1129, %v1199
      %v1214 = vmax.f32 %v1130, %v1200
      %v1215 = vmax.f32 %v1131, %v1201
      %v1216 = vmax.f32 %v1132, %v1202
      %v1217 = vmax.f32 %v1133, %v1203
      %v1218 = vmax.f32 %v1134, %v1204
      %v1219 = vunpack.c.l.bf16 %v181
      %v1220 = vunpack.c.l.bf16 %v184
      %v1221 = vunpack.c.l.bf16 %v187
      %v1222 = vunpack.c.l.bf16 %v190
      %v1223 = vunpack.c.l.bf16 %v193
      %v1224 = vunpack.c.l.bf16 %v196
      %v1225 = vunpack.c.l.bf16 %v199
      %v1226 = vunpack.c.l.bf16 %v202
      %v1227 = vunpack.c.l.bf16 %v205
      %v1228 = vunpack.c.l.bf16 %v208
      %v1229 = vunpack.c.l.bf16 %v211
      %v1230 = vunpack.c.l.bf16 %v214
      %v1231 = vunpack.c.l.bf16 %v217
      %v1232 = vunpack.c.l.bf16 %v220
      %v1233 = vmax.f32 %v1205, %v1219
      %v1234 = vmax.f32 %v1206, %v1220
      %v1235 = vmax.f32 %v1207, %v1221
      %v1236 = vmax.f32 %v1208, %v1222
      %v1237 = vmax.f32 %v1209, %v1223
      %v1238 = vmax.f32 %v1210, %v1224
      %v1239 = vmax.f32 %v1211, %v1225
      %v1240 = vmax.f32 %v1212, %v1226
      %v1241 = vmax.f32 %v1213, %v1227
      %v1242 = vmax.f32 %v1214, %v1228
      %v1243 = vmax.f32 %v1215, %v1229
      %v1244 = vmax.f32 %v1216, %v1230
      %v1245 = vmax.f32 %v1217, %v1231
      %v1246 = vmax.f32 %v1218, %v1232
      %1261 = vrot.lane.b32.xlu0 %v1219, 64
      %v1262 = vpop.permute.xlu0 %1261
      %1263 = vrot.lane.b32.xlu0 %v1220, 64
      %v1264 = vpop.permute.xlu0 %1263
      %1265 = vrot.lane.b32.xlu0 %v1221, 64
      %v1266 = vpop.permute.xlu0 %1265
      %1267 = vrot.lane.b32.xlu0 %v1222, 64
      %v1268 = vpop.permute.xlu0 %1267
      %1269 = vrot.lane.b32.xlu0 %v1223, 64
      %v1270 = vpop.permute.xlu0 %1269
      %1271 = vrot.lane.b32.xlu0 %v1224, 64
      %v1272 = vpop.permute.xlu0 %1271
      %1273 = vrot.lane.b32.xlu0 %v1225, 64
      %v1274 = vpop.permute.xlu0 %1273
      %1275 = vrot.lane.b32.xlu0 %v1226, 64
      %v1276 = vpop.permute.xlu0 %1275
      %1277 = vrot.lane.b32.xlu0 %v1227, 64
      %v1278 = vpop.permute.xlu0 %1277
      %1279 = vrot.lane.b32.xlu0 %v1228, 64
      %v1280 = vpop.permute.xlu0 %1279
      %1281 = vrot.lane.b32.xlu0 %v1229, 64
      %v1282 = vpop.permute.xlu0 %1281
      %1283 = vrot.lane.b32.xlu0 %v1230, 64
      %v1284 = vpop.permute.xlu0 %1283
      %1285 = vrot.lane.b32.xlu0 %v1231, 64
      %v1286 = vpop.permute.xlu0 %1285
      %1287 = vrot.lane.b32.xlu0 %v1232, 64
      %v1288 = vpop.permute.xlu0 %1287
      %v1303 = vmax.f32 %v1233, %v1262
      %v1304 = vmax.f32 %v1234, %v1264
      %v1305 = vmax.f32 %v1235, %v1266
      %v1306 = vmax.f32 %v1236, %v1268
      %v1307 = vmax.f32 %v1237, %v1270
      %v1308 = vmax.f32 %v1238, %v1272
      %v1309 = vmax.f32 %v1239, %v1274
      %v1310 = vmax.f32 %v1240, %v1276
      %v1311 = vmax.f32 %v1241, %v1278
      %v1312 = vmax.f32 %v1242, %v1280
      %v1313 = vmax.f32 %v1243, %v1282
      %v1314 = vmax.f32 %v1244, %v1284
      %v1315 = vmax.f32 %v1245, %v1286
      %v1316 = vmax.f32 %v1246, %v1288
      %v1317 = vrot.slane %v181, 4
      %v1318 = vrot.slane %v184, 4
      %v1319 = vrot.slane %v187, 4
      %v1320 = vrot.slane %v190, 4
      %v1321 = vrot.slane %v193, 4
      %v1322 = vrot.slane %v196, 4
      %v1323 = vrot.slane %v199, 4
      %v1324 = vrot.slane %v202, 4
      %v1325 = vrot.slane %v205, 4
      %v1326 = vrot.slane %v208, 4
      %v1327 = vrot.slane %v211, 4
      %v1328 = vrot.slane %v214, 4
      %v1329 = vrot.slane %v217, 4
      %v1330 = vrot.slane %v220, 4
      %v1345 = vunpack.c.l.bf16 %v1317
      %v1346 = vunpack.c.l.bf16 %v1318
      %v1347 = vunpack.c.l.bf16 %v1319
      %v1348 = vunpack.c.l.bf16 %v1320
      %v1349 = vunpack.c.l.bf16 %v1321
      %v1350 = vunpack.c.l.bf16 %v1322
      %v1351 = vunpack.c.l.bf16 %v1323
      %v1352 = vunpack.c.l.bf16 %v1324
      %v1353 = vunpack.c.l.bf16 %v1325
      %v1354 = vunpack.c.l.bf16 %v1326
      %v1355 = vunpack.c.l.bf16 %v1327
      %v1356 = vunpack.c.l.bf16 %v1328
      %v1357 = vunpack.c.l.bf16 %v1329
      %v1358 = vunpack.c.l.bf16 %v1330
      %v1359 = vmax.f32 %v1303, %v1345
      %v1360 = vmax.f32 %v1304, %v1346
      %v1361 = vmax.f32 %v1305, %v1347
      %v1362 = vmax.f32 %v1306, %v1348
      %v1363 = vmax.f32 %v1307, %v1349
      %v1364 = vmax.f32 %v1308, %v1350
      %v1365 = vmax.f32 %v1309, %v1351
      %v1366 = vmax.f32 %v1310, %v1352
      %v1367 = vmax.f32 %v1311, %v1353
      %v1368 = vmax.f32 %v1312, %v1354
      %v1369 = vmax.f32 %v1313, %v1355
      %v1370 = vmax.f32 %v1314, %v1356
      %v1371 = vmax.f32 %v1315, %v1357
      %v1372 = vmax.f32 %v1316, %v1358
      %1373 = vrot.lane.b32.xlu0 %v181, 64
      %v1374 = vpop.permute.xlu0 %1373
      %1375 = vrot.lane.b32.xlu0 %v184, 64
      %v1376 = vpop.permute.xlu0 %1375
      %1377 = vrot.lane.b32.xlu0 %v187, 64
      %v1378 = vpop.permute.xlu0 %1377
      %1379 = vrot.lane.b32.xlu0 %v190, 64
      %v1380 = vpop.permute.xlu0 %1379
      %1381 = vrot.lane.b32.xlu0 %v193, 64
      %v1382 = vpop.permute.xlu0 %1381
      %1383 = vrot.lane.b32.xlu0 %v196, 64
      %v1384 = vpop.permute.xlu0 %1383
      %1385 = vrot.lane.b32.xlu0 %v199, 64
      %v1386 = vpop.permute.xlu0 %1385
      %1387 = vrot.lane.b32.xlu0 %v202, 64
      %v1388 = vpop.permute.xlu0 %1387
      %1389 = vrot.lane.b32.xlu0 %v205, 64
      %v1390 = vpop.permute.xlu0 %1389
      %1391 = vrot.lane.b32.xlu0 %v208, 64
      %v1392 = vpop.permute.xlu0 %1391
      %1393 = vrot.lane.b32.xlu0 %v211, 64
      %v1394 = vpop.permute.xlu0 %1393
      %1395 = vrot.lane.b32.xlu0 %v214, 64
      %v1396 = vpop.permute.xlu0 %1395
      %1397 = vrot.lane.b32.xlu0 %v217, 64
      %v1398 = vpop.permute.xlu0 %1397
      %1399 = vrot.lane.b32.xlu0 %v220, 64
      %v1400 = vpop.permute.xlu0 %1399
      %v1401 = vrot.slane %v1374, 4
      %v1402 = vrot.slane %v1376, 4
      %v1403 = vrot.slane %v1378, 4
      %v1404 = vrot.slane %v1380, 4
      %v1405 = vrot.slane %v1382, 4
      %v1406 = vrot.slane %v1384, 4
      %v1407 = vrot.slane %v1386, 4
      %v1408 = vrot.slane %v1388, 4
      %v1409 = vrot.slane %v1390, 4
      %v1410 = vrot.slane %v1392, 4
      %v1411 = vrot.slane %v1394, 4
      %v1412 = vrot.slane %v1396, 4
      %v1413 = vrot.slane %v1398, 4
      %v1414 = vrot.slane %v1400, 4
      %v1429 = vunpack.c.l.bf16 %v1401
      %v1430 = vunpack.c.l.bf16 %v1402
      %v1431 = vunpack.c.l.bf16 %v1403
      %v1432 = vunpack.c.l.bf16 %v1404
      %v1433 = vunpack.c.l.bf16 %v1405
      %v1434 = vunpack.c.l.bf16 %v1406
      %v1435 = vunpack.c.l.bf16 %v1407
      %v1436 = vunpack.c.l.bf16 %v1408
      %v1437 = vunpack.c.l.bf16 %v1409
      %v1438 = vunpack.c.l.bf16 %v1410
      %v1439 = vunpack.c.l.bf16 %v1411
      %v1440 = vunpack.c.l.bf16 %v1412
      %v1441 = vunpack.c.l.bf16 %v1413
      %v1442 = vunpack.c.l.bf16 %v1414
      %v1443 = vmax.f32 %v1359, %v1429
      %v1444 = vmax.f32 %v1360, %v1430
      %v1445 = vmax.f32 %v1361, %v1431
      %v1446 = vmax.f32 %v1362, %v1432
      %v1447 = vmax.f32 %v1363, %v1433
      %v1448 = vmax.f32 %v1364, %v1434
      %v1449 = vmax.f32 %v1365, %v1435
      %v1450 = vmax.f32 %v1366, %v1436
      %v1451 = vmax.f32 %v1367, %v1437
      %v1452 = vmax.f32 %v1368, %v1438
      %v1453 = vmax.f32 %v1369, %v1439
      %v1454 = vmax.f32 %v1370, %v1440
      %v1455 = vmax.f32 %v1371, %v1441
      %v1456 = vmax.f32 %v1372, %v1442
      %v1457 = vunpack.c.l.bf16 %v182
      %v1458 = vunpack.c.l.bf16 %v185
      %v1459 = vunpack.c.l.bf16 %v188
      %v1460 = vunpack.c.l.bf16 %v191
      %v1461 = vunpack.c.l.bf16 %v194
      %v1462 = vunpack.c.l.bf16 %v197
      %v1463 = vunpack.c.l.bf16 %v200
      %v1464 = vunpack.c.l.bf16 %v203
      %v1465 = vunpack.c.l.bf16 %v206
      %v1466 = vunpack.c.l.bf16 %v209
      %v1467 = vunpack.c.l.bf16 %v212
      %v1468 = vunpack.c.l.bf16 %v215
      %v1469 = vunpack.c.l.bf16 %v218
      %v1470 = vunpack.c.l.bf16 %v221
      %v1471 = vmax.f32 %v1443, %v1457
      %v1472 = vmax.f32 %v1444, %v1458
      %v1473 = vmax.f32 %v1445, %v1459
      %v1474 = vmax.f32 %v1446, %v1460
      %v1475 = vmax.f32 %v1447, %v1461
      %v1476 = vmax.f32 %v1448, %v1462
      %v1477 = vmax.f32 %v1449, %v1463
      %v1478 = vmax.f32 %v1450, %v1464
      %v1479 = vmax.f32 %v1451, %v1465
      %v1480 = vmax.f32 %v1452, %v1466
      %v1481 = vmax.f32 %v1453, %v1467
      %v1482 = vmax.f32 %v1454, %v1468
      %v1483 = vmax.f32 %v1455, %v1469
      %v1484 = vmax.f32 %v1456, %v1470
      %v1485 = vpack.c.bf16 %v1472, %v1471
      %v1486 = vpack.c.bf16 %v1474, %v1473
      %v1487 = vpack.c.bf16 %v1476, %v1475
      %v1488 = vpack.c.bf16 %v1478, %v1477
      %v1489 = vpack.c.bf16 %v1480, %v1479
      %v1490 = vpack.c.bf16 %v1482, %v1481
      %v1491 = vpack.c.bf16 %v1484, %v1483
      %v1499 = vunpack.c.l.b16 %v1485
      %v1500 = vunpack.c.h.b16 %v1485
      %v1501 = vunpack.c.l.b16 %v1486
      %v1502 = vunpack.c.h.b16 %v1486
      %v1503 = vunpack.c.l.b16 %v1487
      %v1504 = vunpack.c.h.b16 %v1487
      %v1505 = vunpack.c.l.b16 %v1488
      %v1506 = vunpack.c.h.b16 %v1488
      %v1507 = vunpack.c.l.b16 %v1489
      %v1508 = vunpack.c.h.b16 %v1489
      %v1509 = vunpack.c.l.b16 %v1490
      %v1510 = vunpack.c.h.b16 %v1490
      %v1511 = vunpack.c.l.b16 %v1491
      %v1512 = vunpack.c.h.b16 %v1491
      %v1513 = vpack.c.b16 %v1499, %v1499
      %v1514 = vpack.c.b16 %v1500, %v1500
      %v1515 = vpack.c.b16 %v1501, %v1501
      %v1516 = vpack.c.b16 %v1502, %v1502
      %v1517 = vpack.c.b16 %v1503, %v1503
      %v1518 = vpack.c.b16 %v1504, %v1504
      %v1519 = vpack.c.b16 %v1505, %v1505
      %v1520 = vpack.c.b16 %v1506, %v1506
      %v1521 = vpack.c.b16 %v1507, %v1507
      %v1522 = vpack.c.b16 %v1508, %v1508
      %v1523 = vpack.c.b16 %v1509, %v1509
      %v1524 = vpack.c.b16 %v1510, %v1510
      %v1525 = vpack.c.b16 %v1511, %v1511
      %v1526 = vpack.c.b16 %v1512, %v1512
      %vm1541 = vcmask 519168
      %1542 = vst.msk [vmem:[%s177] sm:$0xf] %vm1541, %v1513
      %1543 = vst.msk [vmem:[%s177 + $0x8] sm:$0xf] %vm1541, %v1514
      %1544 = vst.msk [vmem:[%s177 + $0x10] sm:$0xf] %vm1541, %v1515
      %1545 = vst.msk [vmem:[%s177 + $0x18] sm:$0xf] %vm1541, %v1516
      %1546 = vst.msk [vmem:[%s177 + $0x20] sm:$0xf] %vm1541, %v1517
      %1547 = vst.msk [vmem:[%s177 + $0x28] sm:$0xf] %vm1541, %v1518
      %1548 = vst.msk [vmem:[%s177 + $0x30] sm:$0xf] %vm1541, %v1519
      %1549 = vst.msk [vmem:[%s177 + $0x38] sm:$0xf] %vm1541, %v1520
      %1550 = vst.msk [vmem:[%s177 + $0x40] sm:$0xf] %vm1541, %v1521
      %1551 = vst.msk [vmem:[%s177 + $0x48] sm:$0xf] %vm1541, %v1522
      %1552 = vst.msk [vmem:[%s177 + $0x50] sm:$0xf] %vm1541, %v1523
      %1553 = vst.msk [vmem:[%s177 + $0x58] sm:$0xf] %vm1541, %v1524
      %1554 = vst.msk [vmem:[%s177 + $0x60] sm:$0xf] %vm1541, %v1525
      %1555 = vst.msk [vmem:[%s177 + $0x68] sm:$0xf] %vm1541, %v1526
      %v1556 = vpack.c.bf16 %v982, %v981
      %v1557 = vpack.c.bf16 %v984, %v983
      %v1558 = vpack.c.bf16 %v986, %v985
      %v1559 = vpack.c.bf16 %v988, %v987
      %v1560 = vpack.c.bf16 %v990, %v989
      %v1561 = vpack.c.bf16 %v992, %v991
      %v1562 = vpack.c.bf16 %v994, %v993
      %v1570 = vunpack.c.l.b16 %v1556
      %v1571 = vunpack.c.h.b16 %v1556
      %v1572 = vunpack.c.l.b16 %v1557
      %v1573 = vunpack.c.h.b16 %v1557
      %v1574 = vunpack.c.l.b16 %v1558
      %v1575 = vunpack.c.h.b16 %v1558
      %v1576 = vunpack.c.l.b16 %v1559
      %v1577 = vunpack.c.h.b16 %v1559
      %v1578 = vunpack.c.l.b16 %v1560
      %v1579 = vunpack.c.h.b16 %v1560
      %v1580 = vunpack.c.l.b16 %v1561
      %v1581 = vunpack.c.h.b16 %v1561
      %v1582 = vunpack.c.l.b16 %v1562
      %v1583 = vunpack.c.h.b16 %v1562
      %v1584 = vpack.c.b16 %v1570, %v1570
      %v1585 = vpack.c.b16 %v1571, %v1571
      %v1586 = vpack.c.b16 %v1572, %v1572
      %v1587 = vpack.c.b16 %v1573, %v1573
      %v1588 = vpack.c.b16 %v1574, %v1574
      %v1589 = vpack.c.b16 %v1575, %v1575
      %v1590 = vpack.c.b16 %v1576, %v1576
      %v1591 = vpack.c.b16 %v1577, %v1577
      %v1592 = vpack.c.b16 %v1578, %v1578
      %v1593 = vpack.c.b16 %v1579, %v1579
      %v1594 = vpack.c.b16 %v1580, %v1580
      %v1595 = vpack.c.b16 %v1581, %v1581
      %v1596 = vpack.c.b16 %v1582, %v1582
      %v1597 = vpack.c.b16 %v1583, %v1583
      %1598 = vrot.lane.b32.xlu0 %v1584, 64
      %v1599 = vpop.permute.xlu0 %1598
      %1600 = vrot.lane.b32.xlu0 %v1585, 64
      %v1601 = vpop.permute.xlu0 %1600
      %1602 = vrot.lane.b32.xlu0 %v1586, 64
      %v1603 = vpop.permute.xlu0 %1602
      %1604 = vrot.lane.b32.xlu0 %v1587, 64
      %v1605 = vpop.permute.xlu0 %1604
      %1606 = vrot.lane.b32.xlu0 %v1588, 64
      %v1607 = vpop.permute.xlu0 %1606
      %1608 = vrot.lane.b32.xlu0 %v1589, 64
      %v1609 = vpop.permute.xlu0 %1608
      %1610 = vrot.lane.b32.xlu0 %v1590, 64
      %v1611 = vpop.permute.xlu0 %1610
      %1612 = vrot.lane.b32.xlu0 %v1591, 64
      %v1613 = vpop.permute.xlu0 %1612
      %1614 = vrot.lane.b32.xlu0 %v1592, 64
      %v1615 = vpop.permute.xlu0 %1614
      %1616 = vrot.lane.b32.xlu0 %v1593, 64
      %v1617 = vpop.permute.xlu0 %1616
      %1618 = vrot.lane.b32.xlu0 %v1594, 64
      %v1619 = vpop.permute.xlu0 %1618
      %1620 = vrot.lane.b32.xlu0 %v1595, 64
      %v1621 = vpop.permute.xlu0 %1620
      %1622 = vrot.lane.b32.xlu0 %v1596, 64
      %v1623 = vpop.permute.xlu0 %1622
      %1624 = vrot.lane.b32.xlu0 %v1597, 64
      %v1625 = vpop.permute.xlu0 %1624
      %v1626 = vrot.slane %v1599, 4
      %v1627 = vrot.slane %v1601, 4
      %v1628 = vrot.slane %v1603, 4
      %v1629 = vrot.slane %v1605, 4
      %v1630 = vrot.slane %v1607, 4
      %v1631 = vrot.slane %v1609, 4
      %v1632 = vrot.slane %v1611, 4
      %v1633 = vrot.slane %v1613, 4
      %v1634 = vrot.slane %v1615, 4
      %v1635 = vrot.slane %v1617, 4
      %v1636 = vrot.slane %v1619, 4
      %v1637 = vrot.slane %v1621, 4
      %v1638 = vrot.slane %v1623, 4
      %v1639 = vrot.slane %v1625, 4
      %vm1640 = vcmask 523264
      %v1641 = vsel %vm1640, %v1626, %v1599
      %v1642 = vsel %vm1640, %v1627, %v1601
      %v1643 = vsel %vm1640, %v1628, %v1603
      %v1644 = vsel %vm1640, %v1629, %v1605
      %v1645 = vsel %vm1640, %v1630, %v1607
      %v1646 = vsel %vm1640, %v1631, %v1609
      %v1647 = vsel %vm1640, %v1632, %v1611
      %v1648 = vsel %vm1640, %v1633, %v1613
      %v1649 = vsel %vm1640, %v1634, %v1615
      %v1650 = vsel %vm1640, %v1635, %v1617
      %v1651 = vsel %vm1640, %v1636, %v1619
      %v1652 = vsel %vm1640, %v1637, %v1621
      %v1653 = vsel %vm1640, %v1638, %v1623
      %v1654 = vsel %vm1640, %v1639, %v1625
      %vm1669 = vcmask 1043968
      %vm1670 = vcmask 261124
      %vm1671 = vmor %vm1670, %vm1669
      %1672 = vst.msk [vmem:[%s177] sm:$0xff] %vm1671, %v1641
      %1673 = vst.msk [vmem:[%s177 + $0x8] sm:$0xff] %vm1671, %v1642
      %1674 = vst.msk [vmem:[%s177 + $0x10] sm:$0xff] %vm1671, %v1643
      %1675 = vst.msk [vmem:[%s177 + $0x18] sm:$0xff] %vm1671, %v1644
      %1676 = vst.msk [vmem:[%s177 + $0x20] sm:$0xff] %vm1671, %v1645
      %1677 = vst.msk [vmem:[%s177 + $0x28] sm:$0xff] %vm1671, %v1646
      %1678 = vst.msk [vmem:[%s177 + $0x30] sm:$0xff] %vm1671, %v1647
      %1679 = vst.msk [vmem:[%s177 + $0x38] sm:$0xff] %vm1671, %v1648
      %1680 = vst.msk [vmem:[%s177 + $0x40] sm:$0xff] %vm1671, %v1649
      %1681 = vst.msk [vmem:[%s177 + $0x48] sm:$0xff] %vm1671, %v1650
      %1682 = vst.msk [vmem:[%s177 + $0x50] sm:$0xff] %vm1671, %v1651
      %1683 = vst.msk [vmem:[%s177 + $0x58] sm:$0xff] %vm1671, %v1652
      %1684 = vst.msk [vmem:[%s177 + $0x60] sm:$0xff] %vm1671, %v1653
      %1685 = vst.msk [vmem:[%s177 + $0x68] sm:$0xff] %vm1671, %v1654
      %s1686 = smul.u32 14, %s14
      %p1687 = scmp.lt.s32.totalorder %s1686, 27
      %s1688 = scalar_select %p1687, %s1686, 27
      %s1689 = smul.addr %s1688, 2
      %s1690 = smul.addr %s1689, 4
      %s1691 = scalar_lea.vmem %s3, %s1690
      // Predicated region
      $region33: #{stem_v4_res2.12} parent=31 // pred_check
        %p1692 = pneg %p100
      $region34: #{stem_v4_res2.12} parent=31 // pred_check_branch
        %1694 = sbr.rel (%p1692) target = $region36
      $region35: #{stem_v4_res2.12} parent=31 // pred_region
        %s1695 = smul.u32 14, %s14
      $region36: #{stem_v4_res2.12} parent=31 // pred_fallthru
        _
    $region32: #{stem_v4_res2.12} parent=5 // pred_fallthru
      _
    %p1696 = scmp.le.s32.totalorder 2, %s9
    // Predicated region
    $region37: #{stem_v4_res2.12} parent=5 // pred_check
      %p1697 = pneg %p1696
    $region38: #{stem_v4_res2.12} parent=5 // pred_check_branch
      %1699 = sbr.rel (%p1697) target = $region40
    $region39: #{stem_v4_res2.12} parent=5 // pred_region
      %s1700 = ssub.s32 %s9, 2
      // Predicated region
      $region41: #{stem_v4_res2.12} parent=39 // pred_check
        %p1701 = pneg %p106
      $region42: #{stem_v4_res2.12} parent=39 // pred_check_branch
        %1703 = sbr.rel (%p1701) target = $region44
      $region43: #{stem_v4_res2.12} parent=39 // pred_region
        %s1704 = smul.u32 14, %s15
        %p1705 = scmp.lt.s32.totalorder %s1704, 27
        %s1706 = scalar_select %p1705, %s1704, 27
        %s1707 = smul.addr %s1706, 2
        %s1708 = smul.addr %s1707, 4
        %s1709 = scalar_lea.vmem %s3, %s1708
      $region44: #{stem_v4_res2.12} parent=39 // pred_fallthru
        _
    $region40: #{stem_v4_res2.12} parent=5 // pred_fallthru
      _
  $region6: #{stem_v4_res2.12} parent=0 // loop_footer
    %s13 = sadd.s32 1, %s9
  $region7: #{stem_v4_res2.12} parent=0 // loop_footer_branch
    %8 = sbr.rel target = $region3
  $region8: #{stem_v4_res2.12} parent=0 // loop_exit
    _

// kernel: stem_v4_res2.13
$region0: #{stem_v4_res2.13}
  #allocation0 [shape = 'u32[]', space=smem, size = 0x4, offset = 0x4, fixed_abs, tag = 'smem constant byte address 0x4 - core index']
  #allocation1 [shape = 'u32[144,128]{1,0:T(1,128)}', space=vmem, size = 0x12000, scoped, tag = 'internal scratch']
  %s0 = inlined_call_operand.vmem [shape: bf16[224,160], index: 0, kind: input, shape index: {}]
  %s1 = inlined_call_operand.vmem [shape: bf16[160,128], index: 1, kind: input, shape index: {}]
  %s2 = inlined_call_operand.vmem [shape: f32[1,128], index: 2, kind: input, shape index: {}]
  %s3 = inlined_call_operand.vmem [shape: bf16[224,128], index: 3, kind: output, shape index: {}]
  %s4 = sld [smem:[#allocation0]]
  $region45: #{stem_v4_res2.13} parent=0
    _
  %s6 = ssub.s32 1, %s4
  %s7 = scalar_select 0, %s6, %s4
  loop: start=0, step=1, limit=4
  $region2: #{stem_v4_res2.13} parent=0 // loop_pre_header
    _
  $region3: #{stem_v4_res2.13} parent=0 // loop_header
    %s9 = sphi 0, %s13
    %p10 = scmp.ge.s32.totalorder %s9, 4
    %s19 = sphi 0, %s21
    %s22 = sphi 0, %s19
    %s23 = sphi 0, %s22
    %s39 = sphi 0, %s23
    %s43 = sphi 0, %s43
    %s45 = sphi 0, %s43
    %s46 = sphi 0, %s45
    %s60 = sphi 0, %s46
    %s64 = sphi 0, %s64
    %s66 = sphi 0, %s64
    %s67 = sphi 0, %s66
    %s81 = sphi 0, %s67
    %s87 = sphi 0, %s89
    %s90 = sphi 0, %s87
    %s91 = sphi 0, %s90
    %s107 = sphi 0, %s91
  $region4: #{stem_v4_res2.13} parent=0 // loop_header_branch
    %12 = sbr.rel (%p10) target = $region8
  $region5: #{stem_v4_res2.13} parent=0 // loop_body
    %s14 = ssub.s32 %s9, 1
    %s15 = ssub.s32 %s9, 2
    %s16 = sadd.s32 %s9, 1
    %s17 = ssub.s32 %s9, %s16
    %p18 = scmp.eq.s32.totalorder %s17, 0
    %s20 = sadd.s32 %s19, 1
    %s21 = scalar_select %p18, %s19, %s20
    %p24 = pneg %p18
    %p25 = scmp.eq.s32.totalorder %s9, 1
    %p26 = por %p24, %p25
    %p27 = scmp.ne.s32.totalorder %s19, %s22
    %p28 = scmp.eq.s32.totalorder %s9, 0
    %p29 = por %p27, %p28
    %p30 = scmp.ne.s32.totalorder %s19, %s22
    %p31 = scmp.eq.s32.totalorder %s14, 1
    %p32 = por %p30, %p31
    %p33 = scmp.ne.s32.totalorder %s22, %s23
    %p34 = scmp.eq.s32.totalorder %s14, 0
    %p35 = por %p33, %p34
    %p36 = scmp.ne.s32.totalorder %s22, %s23
    %p37 = scmp.eq.s32.totalorder %s15, 1
    %p38 = por %p36, %p37
    %p40 = scmp.ne.s32.totalorder %s23, %s39
    %p41 = scmp.eq.s32.totalorder %s15, 0
    %p42 = por %p40, %p41
    %s44 = sadd.s32 %s43, 1
    %p47 = scmp.eq.s32.totalorder %s9, 1
    %p48 = scmp.ne.s32.totalorder %s43, %s45
    %p49 = scmp.eq.s32.totalorder %s9, 0
    %p50 = por %p48, %p49
    %p51 = scmp.ne.s32.totalorder %s43, %s45
    %p52 = scmp.eq.s32.totalorder %s14, 1
    %p53 = por %p51, %p52
    %p54 = scmp.ne.s32.totalorder %s45, %s46
    %p55 = scmp.eq.s32.totalorder %s14, 0
    %p56 = por %p54, %p55
    %p57 = scmp.ne.s32.totalorder %s45, %s46
    %p58 = scmp.eq.s32.totalorder %s15, 1
    %p59 = por %p57, %p58
    %p61 = scmp.ne.s32.totalorder %s46, %s60
    %p62 = scmp.eq.s32.totalorder %s15, 0
    %p63 = por %p61, %p62
    %s65 = sadd.s32 %s64, 1
    %p68 = scmp.eq.s32.totalorder %s9, 1
    %p69 = scmp.ne.s32.totalorder %s64, %s66
    %p70 = scmp.eq.s32.totalorder %s9, 0
    %p71 = por %p69, %p70
    %p72 = scmp.ne.s32.totalorder %s64, %s66
    %p73 = scmp.eq.s32.totalorder %s14, 1
    %p74 = por %p72, %p73
    %p75 = scmp.ne.s32.totalorder %s66, %s67
    %p76 = scmp.eq.s32.totalorder %s14, 0
    %p77 = por %p75, %p76
    %p78 = scmp.ne.s32.totalorder %s66, %s67
    %p79 = scmp.eq.s32.totalorder %s15, 1
    %p80 = por %p78, %p79
    %p82 = scmp.ne.s32.totalorder %s67, %s81
    %p83 = scmp.eq.s32.totalorder %s15, 0
    %p84 = por %p82, %p83
    %s85 = ssub.s32 %s9, %s16
    %p86 = scmp.eq.s32.totalorder %s85, 0
    %s88 = sadd.s32 %s87, 1
    %s89 = scalar_select %p86, %s87, %s88
    %p92 = pneg %p86
    %p93 = scmp.eq.s32.totalorder %s9, 1
    %p94 = por %p92, %p93
    %p95 = scmp.ne.s32.totalorder %s87, %s90
    %p96 = scmp.eq.s32.totalorder %s9, 0
    %p97 = por %p95, %p96
    %p98 = scmp.ne.s32.totalorder %s87, %s90
    %p99 = scmp.eq.s32.totalorder %s14, 1
    %p100 = por %p98, %p99
    %p101 = scmp.ne.s32.totalorder %s90, %s91
    %p102 = scmp.eq.s32.totalorder %s14, 0
    %p103 = por %p101, %p102
    %p104 = scmp.ne.s32.totalorder %s90, %s91
    %p105 = scmp.eq.s32.totalorder %s15, 1
    %p106 = por %p104, %p105
    %p108 = scmp.ne.s32.totalorder %s91, %s107
    %p109 = scmp.eq.s32.totalorder %s15, 0
    %p110 = por %p108, %p109
    %p111 = scmp.le.s32.totalorder 1, %s9
    %p112 = scmp.lt.s32.totalorder %s9, 3
    %p113 = pnand %p111, %p112
    %p114 = pneg %p113
    // Predicated region
    $region9: #{stem_v4_res2.13} parent=5 // pred_check
      _
    $region10: #{stem_v4_res2.13} parent=5 // pred_check_branch
      %116 = sbr.rel (%p113) target = $region12
    $region11: #{stem_v4_res2.13} parent=5 // pred_region
      %s117 = ssub.s32 %s9, 1
      // Predicated region
      $region13: #{stem_v4_res2.13} parent=11 // pred_check
        %p118 = pneg %p56
      $region14: #{stem_v4_res2.13} parent=11 // pred_check_branch
        %120 = sbr.rel (%p118) target = $region16
      $region15: #{stem_v4_res2.13} parent=11 // pred_region
        _
      $region16: #{stem_v4_res2.13} parent=11 // pred_fallthru
        _
      // Predicated region
      $region17: #{stem_v4_res2.13} parent=11 // pred_check
        %p121 = pneg %p77
      $region18: #{stem_v4_res2.13} parent=11 // pred_check_branch
        %123 = sbr.rel (%p121) target = $region20
      $region19: #{stem_v4_res2.13} parent=11 // pred_region
        _
      $region20: #{stem_v4_res2.13} parent=11 // pred_fallthru
        _
    $region12: #{stem_v4_res2.13} parent=5 // pred_fallthru
      _
    %p124 = scmp.lt.s32.totalorder %s9, 2
    // Predicated region
    $region21: #{stem_v4_res2.13} parent=5 // pred_check
      %p125 = pneg %p124
    $region22: #{stem_v4_res2.13} parent=5 // pred_check_branch
      %127 = sbr.rel (%p125) target = $region24
    $region23: #{stem_v4_res2.13} parent=5 // pred_region
      // Predicated region
      $region25: #{stem_v4_res2.13} parent=23 // pred_check
        %p128 = pneg %p29
      $region26: #{stem_v4_res2.13} parent=23 // pred_check_branch
        %130 = sbr.rel (%p128) target = $region28
      $region27: #{stem_v4_res2.13} parent=23 // pred_region
        %s131 = smul.u32 14, %s9
        %p132 = scmp.lt.s32.totalorder %s131, 27
        %s133 = scalar_select %p132, %s131, 27
        %s134 = smul.addr %s133, 2
        %s135 = smul.addr %s134, 4
        %s136 = scalar_lea.vmem %s0, %s135
        %s137 = smul.u32 14, %s9
      $region28: #{stem_v4_res2.13} parent=23 // pred_fallthru
        _
    $region24: #{stem_v4_res2.13} parent=5 // pred_fallthru
      _
    %p138 = scmp.le.s32.totalorder 1, %s9
    %p139 = scmp.lt.s32.totalorder %s9, 3
    %p140 = pnand %p138, %p139
    %p141 = pneg %p140
    // Predicated region
    $region29: #{stem_v4_res2.13} parent=5 // pred_check
      _
    $region30: #{stem_v4_res2.13} parent=5 // pred_check_branch
      %143 = sbr.rel (%p140) target = $region32
    $region31: #{stem_v4_res2.13} parent=5 // pred_region
      %s144 = ssub.s32 %s9, 1
      %s145 = smul.u32 14, %s14
      %p146 = scmp.lt.s32.totalorder %s145, 27
      %s147 = scalar_select %p146, %s145, 27
      %s148 = smul.addr %s147, 2
      %s149 = smul.addr %s148, 4
      %s150 = scalar_lea.vmem %s0, %s149
      %p151 = pneg %p35
      %p152 = pneg %p32
      %p153 = pneg %p56
      %p154 = pneg %p53
      %p155 = pneg %p77
      %p156 = pneg %p74
      %p157 = pneg %p103
      %p158 = pneg %p100
      %s159 = smul.u32 14, %s14
      %p160 = scmp.lt.s32.totalorder %s159, 27
      %s161 = scalar_select %p160, %s159, 27
      %s162 = smul.addr %s161, 4
      %s163 = scalar_lea.vmem %s3, %s162
      %s164 = smul.u32 14, %s14
      %p165 = scmp.lt.s32.totalorder %s164, 27
      %s166 = scalar_select %p165, %s164, 27
      %s167 = smul.addr %s166, 2
      %s168 = smul.addr %s167, 4
      %s169 = scalar_lea.vmem %s0, %s168
      %s170 = smul.u32 14, %s14
      %s171 = smul.u32 14, %s14
      %p172 = scmp.lt.s32.totalorder %s171, 27
      %s173 = scalar_select %p172, %s171, 27
      %s174 = smul.addr %s173, 4
      %s175 = scalar_lea.vmem %s3, %s174
      %s176 = smul.u32 14, %s14
      %v178 = vld [vmem:[%s169] sm:$0xff]
      %v179 = vld [vmem:[%s169 + $0x8] sm:$0xff]
      %v180 = vld [vmem:[%s169 + $0x10] sm:$0xff]
      %v181 = vld [vmem:[%s169 + $0x18] sm:$0xff]
      %v182 = vld [vmem:[%s169 + $0x20] sm:$0xff]
      %v183 = vld [vmem:[%s169 + $0x28] sm:$0xff]
      %v184 = vld [vmem:[%s169 + $0x30] sm:$0xff]
      %v185 = vld [vmem:[%s169 + $0x38] sm:$0xff]
      %v186 = vld [vmem:[%s169 + $0x40] sm:$0xff]
      %v187 = vld [vmem:[%s169 + $0x48] sm:$0xff]
      %v188 = vld [vmem:[%s169 + $0x50] sm:$0xff]
      %v189 = vld [vmem:[%s169 + $0x58] sm:$0xff]
      %v190 = vld [vmem:[%s169 + $0x60] sm:$0xff]
      %v191 = vld [vmem:[%s169 + $0x68] sm:$0xff]
      %v192 = vld [vmem:[%s1] sm:$0xf]
      %v193 = vld [vmem:[%s1 + $0x4] sm:$0xf]
      %v194 = vld [vmem:[%s1 + $0x8] sm:$0xf]
      %v195 = vld [vmem:[%s1 + $0xc] sm:$0xf]
      %v196 = vld [vmem:[%s1 + $0x10] sm:$0xf]
      %v197 = vld [vmem:[%s1 + $0x14] sm:$0xf]
      %v198 = vld [vmem:[%s1 + $0x18] sm:$0xf]
      %v199 = vld [vmem:[%s1 + $0x1c] sm:$0xf]
      %v200 = vld [vmem:[%s1 + $0x20] sm:$0xf]
      %v201 = vld [vmem:[%s1 + $0x24] sm:$0xf]
      %v202 = vld [vmem:[%s1 + $0x28] sm:$0xf]
      %v203 = vld [vmem:[%s1 + $0x2c] sm:$0xf]
      %v204 = vld [vmem:[%s1 + $0x30] sm:$0xf]
      %v205 = vld [vmem:[%s1 + $0x34] sm:$0xf]
      %v206 = vld [vmem:[%s1 + $0x38] sm:$0xf]
      %v207 = vld [vmem:[%s1 + $0x3c] sm:$0xf]
      %v208 = vld [vmem:[%s1 + $0x40] sm:$0xf]
      %v209 = vld [vmem:[%s1 + $0x44] sm:$0xf]
      %v210 = vld [vmem:[%s1 + $0x48] sm:$0xf]
      %v211 = vld [vmem:[%s1 + $0x4c] sm:$0xf]
      %v212 = vld [vmem:[%s2] sm:$0x1]
      %v214 = vlaneseq
      %v215 = vshrl.u32 %v214, 7
      %v216 = vsub.s32 0, %v215
      %v217 = vrot.slane %v212, %v216
      %v233 = vunpack.c.l.b16 %v178
      %v234 = vunpack.c.h.b16 %v178
      %v235 = vunpack.c.l.b16 %v179
      %v236 = vunpack.c.h.b16 %v179
      %v237 = vunpack.c.l.b16 %v180
      %v238 = vunpack.c.h.b16 %v180
      %v239 = vunpack.c.l.b16 %v181
      %v240 = vunpack.c.h.b16 %v181
      %v241 = vunpack.c.l.b16 %v182
      %v242 = vunpack.c.h.b16 %v182
      %v243 = vunpack.c.l.b16 %v183
      %v244 = vunpack.c.h.b16 %v183
      %v245 = vunpack.c.l.b16 %v184
      %v246 = vunpack.c.h.b16 %v184
      %v247 = vunpack.c.l.b16 %v185
      %v248 = vunpack.c.h.b16 %v185
      %v249 = vunpack.c.l.b16 %v186
      %v250 = vunpack.c.h.b16 %v186
      %v251 = vunpack.c.l.b16 %v187
      %v252 = vunpack.c.h.b16 %v187
      %v253 = vunpack.c.l.b16 %v188
      %v254 = vunpack.c.h.b16 %v188
      %v255 = vunpack.c.l.b16 %v189
      %v256 = vunpack.c.h.b16 %v189
      %v257 = vunpack.c.l.b16 %v190
      %v258 = vunpack.c.h.b16 %v190
      %v259 = vunpack.c.l.b16 %v191
      %v260 = vunpack.c.h.b16 %v191
      %v261 = vpack.c.b16 %v235, %v233
      %v262 = vpack.c.b16 %v236, %v234
      %v263 = vpack.c.b16 %v239, %v237
      %v264 = vpack.c.b16 %v240, %v238
      %v265 = vpack.c.b16 %v243, %v241
      %v266 = vpack.c.b16 %v244, %v242
      %v267 = vpack.c.b16 %v247, %v245
      %v268 = vpack.c.b16 %v248, %v246
      %v269 = vpack.c.b16 %v251, %v249
      %v270 = vpack.c.b16 %v252, %v250
      %v271 = vpack.c.b16 %v255, %v253
      %v272 = vpack.c.b16 %v256, %v254
      %v273 = vpack.c.b16 %v259, %v257
      %v274 = vpack.c.b16 %v260, %v258
      %v302 = vunpack.c.l.b16 %v192
      %v303 = vunpack.c.l.b16 %v193
      %v304 = vunpack.c.l.b16 %v194
      %v305 = vunpack.c.l.b16 %v195
      %v306 = vunpack.c.l.b16 %v196
      %v307 = vunpack.c.l.b16 %v197
      %v308 = vunpack.c.l.b16 %v198
      %v309 = vunpack.c.l.b16 %v199
      %v310 = vunpack.c.l.b16 %v200
      %v311 = vunpack.c.l.b16 %v201
      %v312 = vunpack.c.l.b16 %v202
      %v313 = vunpack.c.l.b16 %v203
      %v314 = vunpack.c.l.b16 %v204
      %v315 = vunpack.c.l.b16 %v205
      %v316 = vunpack.c.l.b16 %v206
      %v317 = vunpack.c.l.b16 %v207
      %v318 = vunpack.c.l.b16 %v208
      %v319 = vunpack.c.l.b16 %v209
      %v320 = vunpack.c.l.b16 %v210
      %v321 = vunpack.c.l.b16 %v211
      %v322 = vpack.c.b16 %v303, %v302
      %v323 = vpack.c.b16 %v305, %v304
      %v324 = vpack.c.b16 %v307, %v306
      %v325 = vpack.c.b16 %v309, %v308
      %v326 = vpack.c.b16 %v311, %v310
      %v327 = vpack.c.b16 %v313, %v312
      %v328 = vpack.c.b16 %v315, %v314
      %v329 = vpack.c.b16 %v317, %v316
      %v330 = vpack.c.b16 %v319, %v318
      %v331 = vpack.c.b16 %v321, %v320
      %vm342 = vcmask 261120
      %v344 = vsel %vm342, %v262, 0
      %v347 = vsel %vm342, %v264, 0
      %v350 = vsel %vm342, %v266, 0
      %v353 = vsel %vm342, %v268, 0
      %v356 = vsel %vm342, %v270, 0
      %v359 = vsel %vm342, %v272, 0
      %v362 = vsel %vm342, %v274, 0
      %364 = vmatprep.subr.bf16.mxu0 0
      %365 = vmatpush1.bf16.msra.mxu0 %v329
      %366 = vmatprep.subr.bf16.mxu0 0
      %367 = vmatpush1.bf16.msra.mxu0 %v328
      %368 = vmatprep.subr.bf16.mxu0 0
      %369 = vmatpush1.bf16.msra.mxu0 %v327
      %370 = vmatprep.subr.bf16.mxu0 0
      %371 = vmatpush1.bf16.msra.mxu0 %v326
      %372 = vmatprep.subr.bf16.mxu0 0
      %373 = vmatpush1.bf16.msra.mxu0 %v325
      %374 = vmatprep.subr.bf16.mxu0 0
      %375 = vmatpush1.bf16.msra.mxu0 %v324
      %376 = vmatprep.subr.bf16.mxu0 0
      %377 = vmatpush1.bf16.msra.mxu0 %v323
      %378 = vmatprep.subr.bf16.mxu0 0
      %379 = vmatpush1.bf16.msra.mxu0 %v322
      %380 = vmatprep.subr.bf16.mxu0 0
      %381 = vmatpush2.bf16.msra.mxu0 0
      %382 = vmatprep.subr.bf16.mxu0 0
      %383 = vmatpush2.bf16.msra.mxu0 0
      %384 = vmatprep.subr.bf16.mxu0 0
      %385 = vmatpush2.bf16.msra.mxu0 0
      %386 = vmatprep.subr.bf16.mxu0 0
      %387 = vmatpush2.bf16.msra.mxu0 0
      %388 = vmatprep.subr.bf16.mxu0 0
      %389 = vmatpush2.bf16.msra.mxu0 0
      %390 = vmatprep.subr.bf16.mxu0 0
      %391 = vmatpush2.bf16.msra.mxu0 0
      %392 = vmatprep.subr.bf16.mxu0 0
      %393 = vmatpush2.bf16.msra.mxu0 %v331
      %394 = vmatprep.subr.bf16.mxu0 0
      %395 = vmatpush2.bf16.msra.mxu0 %v330
      %396 = vmatprep.mubr.bf16.mxu0 %v344
      %397 = vmatmul.mubr.bf16.gmra.mxu0 %v261
      %v398 = vpop.f32.mrf.mxu0
      %v399 = vadd.f32 %v217, %v398
      %v400 = vpop.f32.mrf.mxu0
      %v401 = vpop.f32.mrf.mxu0
      %v402 = vadd.f32 %v217, %v401
      %v403 = vpop.f32.mrf.mxu0
      %404 = vmatprep.mubr.bf16.mxu0 %v347
      %405 = vmatmul.mubr.bf16.gmra.mxu0 %v263
      %v406 = vpop.f32.mrf.mxu0
      %v407 = vadd.f32 %v217, %v406
      %v408 = vpop.f32.mrf.mxu0
      %v409 = vpop.f32.mrf.mxu0
      %v410 = vadd.f32 %v217, %v409
      %v411 = vpop.f32.mrf.mxu0
      %412 = vmatprep.mubr.bf16.mxu0 %v350
      %413 = vmatmul.mubr.bf16.gmra.mxu0 %v265
      %v414 = vpop.f32.mrf.mxu0
      %v415 = vadd.f32 %v217, %v414
      %v416 = vpop.f32.mrf.mxu0
      %v417 = vpop.f32.mrf.mxu0
      %v418 = vadd.f32 %v217, %v417
      %v419 = vpop.f32.mrf.mxu0
      %420 = vmatprep.mubr.bf16.mxu0 %v353
      %421 = vmatmul.mubr.bf16.gmra.mxu0 %v267
      %v422 = vpop.f32.mrf.mxu0
      %v423 = vadd.f32 %v217, %v422
      %v424 = vpop.f32.mrf.mxu0
      %v425 = vpop.f32.mrf.mxu0
      %v426 = vadd.f32 %v217, %v425
      %v427 = vpop.f32.mrf.mxu0
      %428 = vmatprep.mubr.bf16.mxu0 %v356
      %429 = vmatmul.mubr.bf16.gmra.mxu0 %v269
      %v430 = vpop.f32.mrf.mxu0
      %v431 = vadd.f32 %v217, %v430
      %v432 = vpop.f32.mrf.mxu0
      %v433 = vpop.f32.mrf.mxu0
      %v434 = vadd.f32 %v217, %v433
      %v435 = vpop.f32.mrf.mxu0
      %436 = vmatprep.mubr.bf16.mxu0 %v359
      %437 = vmatmul.mubr.bf16.gmra.mxu0 %v271
      %v438 = vpop.f32.mrf.mxu0
      %v439 = vadd.f32 %v217, %v438
      %v440 = vpop.f32.mrf.mxu0
      %v441 = vpop.f32.mrf.mxu0
      %v442 = vadd.f32 %v217, %v441
      %v443 = vpop.f32.mrf.mxu0
      %444 = vmatprep.mubr.bf16.mxu0 %v362
      %445 = vmatmul.mubr.bf16.gmra.mxu0 %v273
      %v446 = vpop.f32.mrf.mxu0
      %v447 = vadd.f32 %v217, %v446
      %v448 = vpop.f32.mrf.mxu0
      %v449 = vpop.f32.mrf.mxu0
      %v450 = vadd.f32 %v217, %v449
      %v451 = vpop.f32.mrf.mxu0
      %452 = vdwg.mxu0
      %v453 = vmax.f32 %v399, 0.0
      %v454 = vmax.f32 %v402, 0.0
      %v455 = vmax.f32 %v407, 0.0
      %v456 = vmax.f32 %v410, 0.0
      %v457 = vmax.f32 %v415, 0.0
      %v458 = vmax.f32 %v418, 0.0
      %v459 = vmax.f32 %v423, 0.0
      %v460 = vmax.f32 %v426, 0.0
      %v461 = vmax.f32 %v431, 0.0
      %v462 = vmax.f32 %v434, 0.0
      %v463 = vmax.f32 %v439, 0.0
      %v464 = vmax.f32 %v442, 0.0
      %v465 = vmax.f32 %v447, 0.0
      %v466 = vmax.f32 %v450, 0.0
      %v467 = vpack.c.bf16 %v454, %v453
      %v468 = vpack.c.bf16 %v456, %v455
      %v469 = vpack.c.bf16 %v458, %v457
      %v470 = vpack.c.bf16 %v460, %v459
      %v471 = vpack.c.bf16 %v462, %v461
      %v472 = vpack.c.bf16 %v464, %v463
      %v473 = vpack.c.bf16 %v466, %v465
      %v481 = vunpack.c.l.b16 %v467
      %v482 = vunpack.c.h.b16 %v467
      %v483 = vunpack.c.l.b16 %v468
      %v484 = vunpack.c.h.b16 %v468
      %v485 = vunpack.c.l.b16 %v469
      %v486 = vunpack.c.h.b16 %v469
      %v487 = vunpack.c.l.b16 %v470
      %v488 = vunpack.c.h.b16 %v470
      %v489 = vunpack.c.l.b16 %v471
      %v490 = vunpack.c.h.b16 %v471
      %v491 = vunpack.c.l.b16 %v472
      %v492 = vunpack.c.h.b16 %v472
      %v493 = vunpack.c.l.b16 %v473
      %v494 = vunpack.c.h.b16 %v473
      %v495 = vpack.c.b16 %v481, %v481
      %v496 = vpack.c.b16 %v482, %v482
      %v497 = vpack.c.b16 %v483, %v483
      %v498 = vpack.c.b16 %v484, %v484
      %v499 = vpack.c.b16 %v485, %v485
      %v500 = vpack.c.b16 %v486, %v486
      %v501 = vpack.c.b16 %v487, %v487
      %v502 = vpack.c.b16 %v488, %v488
      %v503 = vpack.c.b16 %v489, %v489
      %v504 = vpack.c.b16 %v490, %v490
      %v505 = vpack.c.b16 %v491, %v491
      %v506 = vpack.c.b16 %v492, %v492
      %v507 = vpack.c.b16 %v493, %v493
      %v508 = vpack.c.b16 %v494, %v494
      %523 = vst [vmem:[%s175] sm:$0xf] %v495
      %524 = vst [vmem:[%s175 + $0x4] sm:$0xf] %v496
      %525 = vst [vmem:[%s175 + $0x8] sm:$0xf] %v497
      %526 = vst [vmem:[%s175 + $0xc] sm:$0xf] %v498
      %527 = vst [vmem:[%s175 + $0x10] sm:$0xf] %v499
      %528 = vst [vmem:[%s175 + $0x14] sm:$0xf] %v500
      %529 = vst [vmem:[%s175 + $0x18] sm:$0xf] %v501
      %530 = vst [vmem:[%s175 + $0x1c] sm:$0xf] %v502
      %531 = vst [vmem:[%s175 + $0x20] sm:$0xf] %v503
      %532 = vst [vmem:[%s175 + $0x24] sm:$0xf] %v504
      %533 = vst [vmem:[%s175 + $0x28] sm:$0xf] %v505
      %534 = vst [vmem:[%s175 + $0x2c] sm:$0xf] %v506
      %535 = vst [vmem:[%s175 + $0x30] sm:$0xf] %v507
      %536 = vst [vmem:[%s175 + $0x34] sm:$0xf] %v508
      %s537 = smul.u32 14, %s14
      %p538 = scmp.lt.s32.totalorder %s537, 27
      %s539 = scalar_select %p538, %s537, 27
      %s540 = smul.addr %s539, 4
      %s541 = scalar_lea.vmem %s3, %s540
      // Predicated region
      $region33: #{stem_v4_res2.13} parent=31 // pred_check
        %p542 = pneg %p100
      $region34: #{stem_v4_res2.13} parent=31 // pred_check_branch
        %544 = sbr.rel (%p542) target = $region36
      $region35: #{stem_v4_res2.13} parent=31 // pred_region
        %s545 = smul.u32 14, %s14
      $region36: #{stem_v4_res2.13} parent=31 // pred_fallthru
        _
    $region32: #{stem_v4_res2.13} parent=5 // pred_fallthru
      _
    %p546 = scmp.le.s32.totalorder 2, %s9
    // Predicated region
    $region37: #{stem_v4_res2.13} parent=5 // pred_check
      %p547 = pneg %p546
    $region38: #{stem_v4_res2.13} parent=5 // pred_check_branch
      %549 = sbr.rel (%p547) target = $region40
    $region39: #{stem_v4_res2.13} parent=5 // pred_region
      %s550 = ssub.s32 %s9, 2
      // Predicated region
      $region41: #{stem_v4_res2.13} parent=39 // pred_check
        %p551 = pneg %p106
      $region42: #{stem_v4_res2.13} parent=39 // pred_check_branch
        %553 = sbr.rel (%p551) target = $region44
      $region43: #{stem_v4_res2.13} parent=39 // pred_region
        %s554 = smul.u32 14, %s15
        %p555 = scmp.lt.s32.totalorder %s554, 27
        %s556 = scalar_select %p555, %s554, 27
        %s557 = smul.addr %s556, 4
        %s558 = scalar_lea.vmem %s3, %s557
      $region44: #{stem_v4_res2.13} parent=39 // pred_fallthru
        _
    $region40: #{stem_v4_res2.13} parent=5 // pred_fallthru
      _
  $region6: #{stem_v4_res2.13} parent=0 // loop_footer
    %s13 = sadd.s32 1, %s9
  $region7: #{stem_v4_res2.13} parent=0 // loop_footer_branch
    %8 = sbr.rel target = $region3
  $region8: #{stem_v4_res2.13} parent=0 // loop_exit
    _

// kernel: stem_v4_res2.14
$region0: #{stem_v4_res2.14}
  #allocation0 [shape = 'u32[]', space=smem, size = 0x4, offset = 0x4, fixed_abs, tag = 'smem constant byte address 0x4 - core index']
  #allocation1 [shape = 'u32[144,128]{1,0:T(1,128)}', space=vmem, size = 0x12000, scoped, tag = 'internal scratch']
  %s0 = inlined_call_operand.vmem [shape: bf16[224,448], index: 0, kind: input, shape index: {}]
  %s1 = inlined_call_operand.vmem [shape: bf16[448,128], index: 1, kind: input, shape index: {}]
  %s2 = inlined_call_operand.vmem [shape: f32[1,128], index: 2, kind: input, shape index: {}]
  %s3 = inlined_call_operand.vmem [shape: bf16[224,128], index: 3, kind: output, shape index: {}]
  %s4 = sld [smem:[#allocation0]]
  $region45: #{stem_v4_res2.14} parent=0
    _
  %s6 = ssub.s32 1, %s4
  %s7 = scalar_select 0, %s6, %s4
  loop: start=0, step=1, limit=4
  $region2: #{stem_v4_res2.14} parent=0 // loop_pre_header
    _
  $region3: #{stem_v4_res2.14} parent=0 // loop_header
    %s9 = sphi 0, %s13
    %p10 = scmp.ge.s32.totalorder %s9, 4
    %s19 = sphi 0, %s21
    %s22 = sphi 0, %s19
    %s23 = sphi 0, %s22
    %s39 = sphi 0, %s23
    %s43 = sphi 0, %s43
    %s45 = sphi 0, %s43
    %s46 = sphi 0, %s45
    %s60 = sphi 0, %s46
    %s64 = sphi 0, %s64
    %s66 = sphi 0, %s64
    %s67 = sphi 0, %s66
    %s81 = sphi 0, %s67
    %s87 = sphi 0, %s89
    %s90 = sphi 0, %s87
    %s91 = sphi 0, %s90
    %s107 = sphi 0, %s91
  $region4: #{stem_v4_res2.14} parent=0 // loop_header_branch
    %12 = sbr.rel (%p10) target = $region8
  $region5: #{stem_v4_res2.14} parent=0 // loop_body
    %s14 = ssub.s32 %s9, 1
    %s15 = ssub.s32 %s9, 2
    %s16 = sadd.s32 %s9, 1
    %s17 = ssub.s32 %s9, %s16
    %p18 = scmp.eq.s32.totalorder %s17, 0
    %s20 = sadd.s32 %s19, 1
    %s21 = scalar_select %p18, %s19, %s20
    %p24 = pneg %p18
    %p25 = scmp.eq.s32.totalorder %s9, 1
    %p26 = por %p24, %p25
    %p27 = scmp.ne.s32.totalorder %s19, %s22
    %p28 = scmp.eq.s32.totalorder %s9, 0
    %p29 = por %p27, %p28
    %p30 = scmp.ne.s32.totalorder %s19, %s22
    %p31 = scmp.eq.s32.totalorder %s14, 1
    %p32 = por %p30, %p31
    %p33 = scmp.ne.s32.totalorder %s22, %s23
    %p34 = scmp.eq.s32.totalorder %s14, 0
    %p35 = por %p33, %p34
    %p36 = scmp.ne.s32.totalorder %s22, %s23
    %p37 = scmp.eq.s32.totalorder %s15, 1
    %p38 = por %p36, %p37
    %p40 = scmp.ne.s32.totalorder %s23, %s39
    %p41 = scmp.eq.s32.totalorder %s15, 0
    %p42 = por %p40, %p41
    %s44 = sadd.s32 %s43, 1
    %p47 = scmp.eq.s32.totalorder %s9, 1
    %p48 = scmp.ne.s32.totalorder %s43, %s45
    %p49 = scmp.eq.s32.totalorder %s9, 0
    %p50 = por %p48, %p49
    %p51 = scmp.ne.s32.totalorder %s43, %s45
    %p52 = scmp.eq.s32.totalorder %s14, 1
    %p53 = por %p51, %p52
    %p54 = scmp.ne.s32.totalorder %s45, %s46
    %p55 = scmp.eq.s32.totalorder %s14, 0
    %p56 = por %p54, %p55
    %p57 = scmp.ne.s32.totalorder %s45, %s46
    %p58 = scmp.eq.s32.totalorder %s15, 1
    %p59 = por %p57, %p58
    %p61 = scmp.ne.s32.totalorder %s46, %s60
    %p62 = scmp.eq.s32.totalorder %s15, 0
    %p63 = por %p61, %p62
    %s65 = sadd.s32 %s64, 1
    %p68 = scmp.eq.s32.totalorder %s9, 1
    %p69 = scmp.ne.s32.totalorder %s64, %s66
    %p70 = scmp.eq.s32.totalorder %s9, 0
    %p71 = por %p69, %p70
    %p72 = scmp.ne.s32.totalorder %s64, %s66
    %p73 = scmp.eq.s32.totalorder %s14, 1
    %p74 = por %p72, %p73
    %p75 = scmp.ne.s32.totalorder %s66, %s67
    %p76 = scmp.eq.s32.totalorder %s14, 0
    %p77 = por %p75, %p76
    %p78 = scmp.ne.s32.totalorder %s66, %s67
    %p79 = scmp.eq.s32.totalorder %s15, 1
    %p80 = por %p78, %p79
    %p82 = scmp.ne.s32.totalorder %s67, %s81
    %p83 = scmp.eq.s32.totalorder %s15, 0
    %p84 = por %p82, %p83
    %s85 = ssub.s32 %s9, %s16
    %p86 = scmp.eq.s32.totalorder %s85, 0
    %s88 = sadd.s32 %s87, 1
    %s89 = scalar_select %p86, %s87, %s88
    %p92 = pneg %p86
    %p93 = scmp.eq.s32.totalorder %s9, 1
    %p94 = por %p92, %p93
    %p95 = scmp.ne.s32.totalorder %s87, %s90
    %p96 = scmp.eq.s32.totalorder %s9, 0
    %p97 = por %p95, %p96
    %p98 = scmp.ne.s32.totalorder %s87, %s90
    %p99 = scmp.eq.s32.totalorder %s14, 1
    %p100 = por %p98, %p99
    %p101 = scmp.ne.s32.totalorder %s90, %s91
    %p102 = scmp.eq.s32.totalorder %s14, 0
    %p103 = por %p101, %p102
    %p104 = scmp.ne.s32.totalorder %s90, %s91
    %p105 = scmp.eq.s32.totalorder %s15, 1
    %p106 = por %p104, %p105
    %p108 = scmp.ne.s32.totalorder %s91, %s107
    %p109 = scmp.eq.s32.totalorder %s15, 0
    %p110 = por %p108, %p109
    %p111 = scmp.le.s32.totalorder 1, %s9
    %p112 = scmp.lt.s32.totalorder %s9, 3
    %p113 = pnand %p111, %p112
    %p114 = pneg %p113
    // Predicated region
    $region9: #{stem_v4_res2.14} parent=5 // pred_check
      _
    $region10: #{stem_v4_res2.14} parent=5 // pred_check_branch
      %116 = sbr.rel (%p113) target = $region12
    $region11: #{stem_v4_res2.14} parent=5 // pred_region
      %s117 = ssub.s32 %s9, 1
      // Predicated region
      $region13: #{stem_v4_res2.14} parent=11 // pred_check
        %p118 = pneg %p56
      $region14: #{stem_v4_res2.14} parent=11 // pred_check_branch
        %120 = sbr.rel (%p118) target = $region16
      $region15: #{stem_v4_res2.14} parent=11 // pred_region
        _
      $region16: #{stem_v4_res2.14} parent=11 // pred_fallthru
        _
      // Predicated region
      $region17: #{stem_v4_res2.14} parent=11 // pred_check
        %p121 = pneg %p77
      $region18: #{stem_v4_res2.14} parent=11 // pred_check_branch
        %123 = sbr.rel (%p121) target = $region20
      $region19: #{stem_v4_res2.14} parent=11 // pred_region
        _
      $region20: #{stem_v4_res2.14} parent=11 // pred_fallthru
        _
    $region12: #{stem_v4_res2.14} parent=5 // pred_fallthru
      _
    %p124 = scmp.lt.s32.totalorder %s9, 2
    // Predicated region
    $region21: #{stem_v4_res2.14} parent=5 // pred_check
      %p125 = pneg %p124
    $region22: #{stem_v4_res2.14} parent=5 // pred_check_branch
      %127 = sbr.rel (%p125) target = $region24
    $region23: #{stem_v4_res2.14} parent=5 // pred_region
      // Predicated region
      $region25: #{stem_v4_res2.14} parent=23 // pred_check
        %p128 = pneg %p29
      $region26: #{stem_v4_res2.14} parent=23 // pred_check_branch
        %130 = sbr.rel (%p128) target = $region28
      $region27: #{stem_v4_res2.14} parent=23 // pred_region
        %s131 = smul.u32 14, %s9
        %p132 = scmp.lt.s32.totalorder %s131, 27
        %s133 = scalar_select %p132, %s131, 27
        %s134 = smul.addr %s133, 4
        %s135 = smul.addr %s134, 4
        %s136 = scalar_lea.vmem %s0, %s135
        %s137 = smul.u32 14, %s9
      $region28: #{stem_v4_res2.14} parent=23 // pred_fallthru
        _
    $region24: #{stem_v4_res2.14} parent=5 // pred_fallthru
      _
    %p138 = scmp.le.s32.totalorder 1, %s9
    %p139 = scmp.lt.s32.totalorder %s9, 3
    %p140 = pnand %p138, %p139
    %p141 = pneg %p140
    // Predicated region
    $region29: #{stem_v4_res2.14} parent=5 // pred_check
      _
    $region30: #{stem_v4_res2.14} parent=5 // pred_check_branch
      %143 = sbr.rel (%p140) target = $region32
    $region31: #{stem_v4_res2.14} parent=5 // pred_region
      %s144 = ssub.s32 %s9, 1
      %s145 = smul.u32 14, %s14
      %p146 = scmp.lt.s32.totalorder %s145, 27
      %s147 = scalar_select %p146, %s145, 27
      %s148 = smul.addr %s147, 4
      %s149 = smul.addr %s148, 4
      %s150 = scalar_lea.vmem %s0, %s149
      %p151 = pneg %p35
      %p152 = pneg %p32
      %p153 = pneg %p56
      %p154 = pneg %p53
      %p155 = pneg %p77
      %p156 = pneg %p74
      %p157 = pneg %p103
      %p158 = pneg %p100
      %s159 = smul.u32 14, %s14
      %p160 = scmp.lt.s32.totalorder %s159, 27
      %s161 = scalar_select %p160, %s159, 27
      %s162 = smul.addr %s161, 4
      %s163 = scalar_lea.vmem %s3, %s162
      %s164 = smul.u32 14, %s14
      %p165 = scmp.lt.s32.totalorder %s164, 27
      %s166 = scalar_select %p165, %s164, 27
      %s167 = smul.addr %s166, 4
      %s168 = smul.addr %s167, 4
      %s169 = scalar_lea.vmem %s0, %s168
      %s170 = smul.u32 14, %s14
      %s171 = smul.u32 14, %s14
      %p172 = scmp.lt.s32.totalorder %s171, 27
      %s173 = scalar_select %p172, %s171, 27
      %s174 = smul.addr %s173, 4
      %s175 = scalar_lea.vmem %s3, %s174
      %s176 = smul.u32 14, %s14
      %v178 = vld [vmem:[%s169] sm:$0xff]
      %v179 = vld [vmem:[%s169 + $0x8] sm:$0xff]
      %v180 = vld [vmem:[%s169 + $0x10] sm:$0xff]
      %v181 = vld [vmem:[%s169 + $0x18] sm:$0xff]
      %v182 = vld [vmem:[%s169 + $0x20] sm:$0xff]
      %v183 = vld [vmem:[%s169 + $0x28] sm:$0xff]
      %v184 = vld [vmem:[%s169 + $0x30] sm:$0xff]
      %v185 = vld [vmem:[%s169 + $0x38] sm:$0xff]
      %v186 = vld [vmem:[%s169 + $0x40] sm:$0xff]
      %v187 = vld [vmem:[%s169 + $0x48] sm:$0xff]
      %v188 = vld [vmem:[%s169 + $0x50] sm:$0xff]
      %v189 = vld [vmem:[%s169 + $0x58] sm:$0xff]
      %v190 = vld [vmem:[%s169 + $0x60] sm:$0xff]
      %v191 = vld [vmem:[%s169 + $0x68] sm:$0xff]
      %v192 = vld [vmem:[%s169 + $0x70] sm:$0xff]
      %v193 = vld [vmem:[%s169 + $0x78] sm:$0xff]
      %v194 = vld [vmem:[%s169 + $0x80] sm:$0xff]
      %v195 = vld [vmem:[%s169 + $0x88] sm:$0xff]
      %v196 = vld [vmem:[%s169 + $0x90] sm:$0xff]
      %v197 = vld [vmem:[%s169 + $0x98] sm:$0xff]
      %v198 = vld [vmem:[%s169 + $0xa0] sm:$0xff]
      %v199 = vld [vmem:[%s169 + $0xa8] sm:$0xff]
      %v200 = vld [vmem:[%s169 + $0xb0] sm:$0xff]
      %v201 = vld [vmem:[%s169 + $0xb8] sm:$0xff]
      %v202 = vld [vmem:[%s169 + $0xc0] sm:$0xff]
      %v203 = vld [vmem:[%s169 + $0xc8] sm:$0xff]
      %v204 = vld [vmem:[%s169 + $0xd0] sm:$0xff]
      %v205 = vld [vmem:[%s169 + $0xd8] sm:$0xff]
      %v206 = vld [vmem:[%s1] sm:$0xf]
      %v207 = vld [vmem:[%s1 + $0x4] sm:$0xf]
      %v208 = vld [vmem:[%s1 + $0x8] sm:$0xf]
      %v209 = vld [vmem:[%s1 + $0xc] sm:$0xf]
      %v210 = vld [vmem:[%s1 + $0x10] sm:$0xf]
      %v211 = vld [vmem:[%s1 + $0x14] sm:$0xf]
      %v212 = vld [vmem:[%s1 + $0x18] sm:$0xf]
      %v213 = vld [vmem:[%s1 + $0x1c] sm:$0xf]
      %v214 = vld [vmem:[%s1 + $0x20] sm:$0xf]
      %v215 = vld [vmem:[%s1 + $0x24] sm:$0xf]
      %v216 = vld [vmem:[%s1 + $0x28] sm:$0xf]
      %v217 = vld [vmem:[%s1 + $0x2c] sm:$0xf]
      %v218 = vld [vmem:[%s1 + $0x30] sm:$0xf]
      %v219 = vld [vmem:[%s1 + $0x34] sm:$0xf]
      %v220 = vld [vmem:[%s1 + $0x38] sm:$0xf]
      %v221 = vld [vmem:[%s1 + $0x3c] sm:$0xf]
      %v222 = vld [vmem:[%s1 + $0x40] sm:$0xf]
      %v223 = vld [vmem:[%s1 + $0x44] sm:$0xf]
      %v224 = vld [vmem:[%s1 + $0x48] sm:$0xf]
      %v225 = vld [vmem:[%s1 + $0x4c] sm:$0xf]
      %v226 = vld [vmem:[%s1 + $0x50] sm:$0xf]
      %v227 = vld [vmem:[%s1 + $0x54] sm:$0xf]
      %v228 = vld [vmem:[%s1 + $0x58] sm:$0xf]
      %v229 = vld [vmem:[%s1 + $0x5c] sm:$0xf]
      %v230 = vld [vmem:[%s1 + $0x60] sm:$0xf]
      %v231 = vld [vmem:[%s1 + $0x64] sm:$0xf]
      %v232 = vld [vmem:[%s1 + $0x68] sm:$0xf]
      %v233 = vld [vmem:[%s1 + $0x6c] sm:$0xf]
      %v234 = vld [vmem:[%s1 + $0x70] sm:$0xf]
      %v235 = vld [vmem:[%s1 + $0x74] sm:$0xf]
      %v236 = vld [vmem:[%s1 + $0x78] sm:$0xf]
      %v237 = vld [vmem:[%s1 + $0x7c] sm:$0xf]
      %v238 = vld [vmem:[%s1 + $0x80] sm:$0xf]
      %v239 = vld [vmem:[%s1 + $0x84] sm:$0xf]
      %v240 = vld [vmem:[%s1 + $0x88] sm:$0xf]
      %v241 = vld [vmem:[%s1 + $0x8c] sm:$0xf]
      %v242 = vld [vmem:[%s1 + $0x90] sm:$0xf]
      %v243 = vld [vmem:[%s1 + $0x94] sm:$0xf]
      %v244 = vld [vmem:[%s1 + $0x98] sm:$0xf]
      %v245 = vld [vmem:[%s1 + $0x9c] sm:$0xf]
      %v246 = vld [vmem:[%s1 + $0xa0] sm:$0xf]
      %v247 = vld [vmem:[%s1 + $0xa4] sm:$0xf]
      %v248 = vld [vmem:[%s1 + $0xa8] sm:$0xf]
      %v249 = vld [vmem:[%s1 + $0xac] sm:$0xf]
      %v250 = vld [vmem:[%s1 + $0xb0] sm:$0xf]
      %v251 = vld [vmem:[%s1 + $0xb4] sm:$0xf]
      %v252 = vld [vmem:[%s1 + $0xb8] sm:$0xf]
      %v253 = vld [vmem:[%s1 + $0xbc] sm:$0xf]
      %v254 = vld [vmem:[%s1 + $0xc0] sm:$0xf]
      %v255 = vld [vmem:[%s1 + $0xc4] sm:$0xf]
      %v256 = vld [vmem:[%s1 + $0xc8] sm:$0xf]
      %v257 = vld [vmem:[%s1 + $0xcc] sm:$0xf]
      %v258 = vld [vmem:[%s1 + $0xd0] sm:$0xf]
      %v259 = vld [vmem:[%s1 + $0xd4] sm:$0xf]
      %v260 = vld [vmem:[%s1 + $0xd8] sm:$0xf]
      %v261 = vld [vmem:[%s1 + $0xdc] sm:$0xf]
      %v262 = vld [vmem:[%s2] sm:$0x1]
      %v264 = vlaneseq
      %v265 = vshrl.u32 %v264, 7
      %v266 = vsub.s32 0, %v265
      %v267 = vrot.slane %v262, %v266
      %v297 = vunpack.c.l.b16 %v178
      %v298 = vunpack.c.h.b16 %v178
      %v299 = vunpack.c.l.b16 %v179
      %v300 = vunpack.c.h.b16 %v179
      %v301 = vunpack.c.l.b16 %v180
      %v302 = vunpack.c.h.b16 %v180
      %v303 = vunpack.c.l.b16 %v181
      %v304 = vunpack.c.h.b16 %v181
      %v305 = vunpack.c.l.b16 %v182
      %v306 = vunpack.c.h.b16 %v182
      %v307 = vunpack.c.l.b16 %v183
      %v308 = vunpack.c.h.b16 %v183
      %v309 = vunpack.c.l.b16 %v184
      %v310 = vunpack.c.h.b16 %v184
      %v311 = vunpack.c.l.b16 %v185
      %v312 = vunpack.c.h.b16 %v185
      %v313 = vunpack.c.l.b16 %v186
      %v314 = vunpack.c.h.b16 %v186
      %v315 = vunpack.c.l.b16 %v187
      %v316 = vunpack.c.h.b16 %v187
      %v317 = vunpack.c.l.b16 %v188
      %v318 = vunpack.c.h.b16 %v188
      %v319 = vunpack.c.l.b16 %v189
      %v320 = vunpack.c.h.b16 %v189
      %v321 = vunpack.c.l.b16 %v190
      %v322 = vunpack.c.h.b16 %v190
      %v323 = vunpack.c.l.b16 %v191
      %v324 = vunpack.c.h.b16 %v191
      %v325 = vunpack.c.l.b16 %v192
      %v326 = vunpack.c.h.b16 %v192
      %v327 = vunpack.c.l.b16 %v193
      %v328 = vunpack.c.h.b16 %v193
      %v329 = vunpack.c.l.b16 %v194
      %v330 = vunpack.c.h.b16 %v194
      %v331 = vunpack.c.l.b16 %v195
      %v332 = vunpack.c.h.b16 %v195
      %v333 = vunpack.c.l.b16 %v196
      %v334 = vunpack.c.h.b16 %v196
      %v335 = vunpack.c.l.b16 %v197
      %v336 = vunpack.c.h.b16 %v197
      %v337 = vunpack.c.l.b16 %v198
      %v338 = vunpack.c.h.b16 %v198
      %v339 = vunpack.c.l.b16 %v199
      %v340 = vunpack.c.h.b16 %v199
      %v341 = vunpack.c.l.b16 %v200
      %v342 = vunpack.c.h.b16 %v200
      %v343 = vunpack.c.l.b16 %v201
      %v344 = vunpack.c.h.b16 %v201
      %v345 = vunpack.c.l.b16 %v202
      %v346 = vunpack.c.h.b16 %v202
      %v347 = vunpack.c.l.b16 %v203
      %v348 = vunpack.c.h.b16 %v203
      %v349 = vunpack.c.l.b16 %v204
      %v350 = vunpack.c.h.b16 %v204
      %v351 = vunpack.c.l.b16 %v205
      %v352 = vunpack.c.h.b16 %v205
      %v353 = vpack.c.b16 %v301, %v297
      %v354 = vpack.c.b16 %v302, %v298
      %v355 = vpack.c.b16 %v303, %v299
      %v356 = vpack.c.b16 %v304, %v300
      %v357 = vpack.c.b16 %v309, %v305
      %v358 = vpack.c.b16 %v310, %v306
      %v359 = vpack.c.b16 %v311, %v307
      %v360 = vpack.c.b16 %v312, %v308
      %v361 = vpack.c.b16 %v317, %v313
      %v362 = vpack.c.b16 %v318, %v314
      %v363 = vpack.c.b16 %v319, %v315
      %v364 = vpack.c.b16 %v320, %v316
      %v365 = vpack.c.b16 %v325, %v321
      %v366 = vpack.c.b16 %v326, %v322
      %v367 = vpack.c.b16 %v327, %v323
      %v368 = vpack.c.b16 %v328, %v324
      %v369 = vpack.c.b16 %v333, %v329
      %v370 = vpack.c.b16 %v334, %v330
      %v371 = vpack.c.b16 %v335, %v331
      %v372 = vpack.c.b16 %v336, %v332
      %v373 = vpack.c.b16 %v341, %v337
      %v374 = vpack.c.b16 %v342, %v338
      %v375 = vpack.c.b16 %v343, %v339
      %v376 = vpack.c.b16 %v344, %v340
      %v377 = vpack.c.b16 %v349, %v345
      %v378 = vpack.c.b16 %v350, %v346
      %v379 = vpack.c.b16 %v351, %v347
      %v380 = vpack.c.b16 %v352, %v348
      %v458 = vunpack.c.l.b16 %v206
      %v459 = vunpack.c.l.b16 %v207
      %v460 = vunpack.c.l.b16 %v208
      %v461 = vunpack.c.l.b16 %v209
      %v462 = vunpack.c.l.b16 %v210
      %v463 = vunpack.c.l.b16 %v211
      %v464 = vunpack.c.l.b16 %v212
      %v465 = vunpack.c.l.b16 %v213
      %v466 = vunpack.c.l.b16 %v214
      %v467 = vunpack.c.l.b16 %v215
      %v468 = vunpack.c.l.b16 %v216
      %v469 = vunpack.c.l.b16 %v217
      %v470 = vunpack.c.l.b16 %v218
      %v471 = vunpack.c.l.b16 %v219
      %v472 = vunpack.c.l.b16 %v220
      %v473 = vunpack.c.l.b16 %v221
      %v474 = vunpack.c.l.b16 %v222
      %v475 = vunpack.c.l.b16 %v223
      %v476 = vunpack.c.l.b16 %v224
      %v477 = vunpack.c.l.b16 %v225
      %v478 = vunpack.c.l.b16 %v226
      %v479 = vunpack.c.l.b16 %v227
      %v480 = vunpack.c.l.b16 %v228
      %v481 = vunpack.c.l.b16 %v229
      %v482 = vunpack.c.l.b16 %v230
      %v483 = vunpack.c.l.b16 %v231
      %v484 = vunpack.c.l.b16 %v232
      %v485 = vunpack.c.l.b16 %v233
      %v486 = vunpack.c.l.b16 %v234
      %v487 = vunpack.c.l.b16 %v235
      %v488 = vunpack.c.l.b16 %v236
      %v489 = vunpack.c.l.b16 %v237
      %v490 = vunpack.c.l.b16 %v238
      %v491 = vunpack.c.l.b16 %v239
      %v492 = vunpack.c.l.b16 %v240
      %v493 = vunpack.c.l.b16 %v241
      %v494 = vunpack.c.l.b16 %v242
      %v495 = vunpack.c.l.b16 %v243
      %v496 = vunpack.c.l.b16 %v244
      %v497 = vunpack.c.l.b16 %v245
      %v498 = vunpack.c.l.b16 %v246
      %v499 = vunpack.c.l.b16 %v247
      %v500 = vunpack.c.l.b16 %v248
      %v501 = vunpack.c.l.b16 %v249
      %v502 = vunpack.c.l.b16 %v250
      %v503 = vunpack.c.l.b16 %v251
      %v504 = vunpack.c.l.b16 %v252
      %v505 = vunpack.c.l.b16 %v253
      %v506 = vunpack.c.l.b16 %v254
      %v507 = vunpack.c.l.b16 %v255
      %v508 = vunpack.c.l.b16 %v256
      %v509 = vunpack.c.l.b16 %v257
      %v510 = vunpack.c.l.b16 %v258
      %v511 = vunpack.c.l.b16 %v259
      %v512 = vunpack.c.l.b16 %v260
      %v513 = vunpack.c.l.b16 %v261
      %v514 = vpack.c.b16 %v459, %v458
      %v515 = vpack.c.b16 %v461, %v460
      %v516 = vpack.c.b16 %v463, %v462
      %v517 = vpack.c.b16 %v465, %v464
      %v518 = vpack.c.b16 %v467, %v466
      %v519 = vpack.c.b16 %v469, %v468
      %v520 = vpack.c.b16 %v471, %v470
      %v521 = vpack.c.b16 %v473, %v472
      %v522 = vpack.c.b16 %v475, %v474
      %v523 = vpack.c.b16 %v477, %v476
      %v524 = vpack.c.b16 %v479, %v478
      %v525 = vpack.c.b16 %v481, %v480
      %v526 = vpack.c.b16 %v483, %v482
      %v527 = vpack.c.b16 %v485, %v484
      %v528 = vpack.c.b16 %v487, %v486
      %v529 = vpack.c.b16 %v489, %v488
      %v530 = vpack.c.b16 %v491, %v490
      %v531 = vpack.c.b16 %v493, %v492
      %v532 = vpack.c.b16 %v495, %v494
      %v533 = vpack.c.b16 %v497, %v496
      %v534 = vpack.c.b16 %v499, %v498
      %v535 = vpack.c.b16 %v501, %v500
      %v536 = vpack.c.b16 %v503, %v502
      %v537 = vpack.c.b16 %v505, %v504
      %v538 = vpack.c.b16 %v507, %v506
      %v539 = vpack.c.b16 %v509, %v508
      %v540 = vpack.c.b16 %v511, %v510
      %v541 = vpack.c.b16 %v513, %v512
      %vm570 = vcmask 523264
      %v572 = vsel %vm570, %v356, 0
      %v575 = vsel %vm570, %v360, 0
      %v578 = vsel %vm570, %v364, 0
      %v581 = vsel %vm570, %v368, 0
      %v584 = vsel %vm570, %v372, 0
      %v587 = vsel %vm570, %v376, 0
      %v590 = vsel %vm570, %v380, 0
      %592 = vmatprep.subr.bf16.mxu0 0
      %593 = vmatpush1.bf16.msra.mxu0 %v521
      %594 = vmatprep.subr.bf16.mxu0 0
      %595 = vmatpush1.bf16.msra.mxu0 %v520
      %596 = vmatprep.subr.bf16.mxu0 0
      %597 = vmatpush1.bf16.msra.mxu0 %v519
      %598 = vmatprep.subr.bf16.mxu0 0
      %599 = vmatpush1.bf16.msra.mxu0 %v518
      %600 = vmatprep.subr.bf16.mxu0 0
      %601 = vmatpush1.bf16.msra.mxu0 %v517
      %602 = vmatprep.subr.bf16.mxu0 0
      %603 = vmatpush1.bf16.msra.mxu0 %v516
      %604 = vmatprep.subr.bf16.mxu0 0
      %605 = vmatpush1.bf16.msra.mxu0 %v515
      %606 = vmatprep.subr.bf16.mxu0 0
      %607 = vmatpush1.bf16.msra.mxu0 %v514
      %608 = vmatprep.subr.bf16.mxu0 0
      %609 = vmatpush2.bf16.msra.mxu0 %v529
      %610 = vmatprep.subr.bf16.mxu0 0
      %611 = vmatpush2.bf16.msra.mxu0 %v528
      %612 = vmatprep.subr.bf16.mxu0 0
      %613 = vmatpush2.bf16.msra.mxu0 %v527
      %614 = vmatprep.subr.bf16.mxu0 0
      %615 = vmatpush2.bf16.msra.mxu0 %v526
      %616 = vmatprep.subr.bf16.mxu0 0
      %617 = vmatpush2.bf16.msra.mxu0 %v525
      %618 = vmatprep.subr.bf16.mxu0 0
      %619 = vmatpush2.bf16.msra.mxu0 %v524
      %620 = vmatprep.subr.bf16.mxu0 0
      %621 = vmatpush2.bf16.msra.mxu0 %v523
      %622 = vmatprep.subr.bf16.mxu0 0
      %623 = vmatpush2.bf16.msra.mxu0 %v522
      %624 = vmatprep.mubr.bf16.mxu0 %v354
      %625 = vmatmul.mubr.bf16.gmra.mxu0 %v353
      %v626 = vpop.f32.mrf.mxu0
      %v627 = vadd.f32 %v267, %v626
      %v628 = vpop.f32.mrf.mxu0
      %v629 = vpop.f32.mrf.mxu0
      %v630 = vadd.f32 %v267, %v629
      %v631 = vpop.f32.mrf.mxu0
      %632 = vmatprep.mubr.bf16.mxu0 %v358
      %633 = vmatmul.mubr.bf16.gmra.mxu0 %v357
      %v634 = vpop.f32.mrf.mxu0
      %v635 = vadd.f32 %v267, %v634
      %v636 = vpop.f32.mrf.mxu0
      %v637 = vpop.f32.mrf.mxu0
      %v638 = vadd.f32 %v267, %v637
      %v639 = vpop.f32.mrf.mxu0
      %640 = vmatprep.mubr.bf16.mxu0 %v362
      %641 = vmatmul.mubr.bf16.gmra.mxu0 %v361
      %v642 = vpop.f32.mrf.mxu0
      %v643 = vadd.f32 %v267, %v642
      %v644 = vpop.f32.mrf.mxu0
      %v645 = vpop.f32.mrf.mxu0
      %v646 = vadd.f32 %v267, %v645
      %v647 = vpop.f32.mrf.mxu0
      %648 = vmatprep.mubr.bf16.mxu0 %v366
      %649 = vmatmul.mubr.bf16.gmra.mxu0 %v365
      %v650 = vpop.f32.mrf.mxu0
      %v651 = vadd.f32 %v267, %v650
      %v652 = vpop.f32.mrf.mxu0
      %v653 = vpop.f32.mrf.mxu0
      %v654 = vadd.f32 %v267, %v653
      %v655 = vpop.f32.mrf.mxu0
      %656 = vmatprep.mubr.bf16.mxu0 %v370
      %657 = vmatmul.mubr.bf16.gmra.mxu0 %v369
      %v658 = vpop.f32.mrf.mxu0
      %v659 = vadd.f32 %v267, %v658
      %v660 = vpop.f32.mrf.mxu0
      %v661 = vpop.f32.mrf.mxu0
      %v662 = vadd.f32 %v267, %v661
      %v663 = vpop.f32.mrf.mxu0
      %664 = vmatprep.mubr.bf16.mxu0 %v374
      %665 = vmatmul.mubr.bf16.gmra.mxu0 %v373
      %v666 = vpop.f32.mrf.mxu0
      %v667 = vadd.f32 %v267, %v666
      %v668 = vpop.f32.mrf.mxu0
      %v669 = vpop.f32.mrf.mxu0
      %v670 = vadd.f32 %v267, %v669
      %v671 = vpop.f32.mrf.mxu0
      %672 = vmatprep.mubr.bf16.mxu0 %v378
      %673 = vmatmul.mubr.bf16.gmra.mxu0 %v377
      %v674 = vpop.f32.mrf.mxu0
      %v675 = vadd.f32 %v267, %v674
      %v676 = vpop.f32.mrf.mxu0
      %v677 = vpop.f32.mrf.mxu0
      %v678 = vadd.f32 %v267, %v677
      %v679 = vpop.f32.mrf.mxu0
      %680 = vdwg.mxu0
      %681 = vmatprep.subr.bf16.mxu0 0
      %682 = vmatpush1.bf16.msra.mxu0 %v537
      %683 = vmatprep.subr.bf16.mxu0 0
      %684 = vmatpush1.bf16.msra.mxu0 %v536
      %685 = vmatprep.subr.bf16.mxu0 0
      %686 = vmatpush1.bf16.msra.mxu0 %v535
      %687 = vmatprep.subr.bf16.mxu0 0
      %688 = vmatpush1.bf16.msra.mxu0 %v534
      %689 = vmatprep.subr.bf16.mxu0 0
      %690 = vmatpush1.bf16.msra.mxu0 %v533
      %691 = vmatprep.subr.bf16.mxu0 0
      %692 = vmatpush1.bf16.msra.mxu0 %v532
      %693 = vmatprep.subr.bf16.mxu0 0
      %694 = vmatpush1.bf16.msra.mxu0 %v531
      %695 = vmatprep.subr.bf16.mxu0 0
      %696 = vmatpush1.bf16.msra.mxu0 %v530
      %697 = vmatprep.subr.bf16.mxu0 0
      %698 = vmatpush2.bf16.msra.mxu0 0
      %699 = vmatprep.subr.bf16.mxu0 0
      %700 = vmatpush2.bf16.msra.mxu0 0
      %701 = vmatprep.subr.bf16.mxu0 0
      %702 = vmatpush2.bf16.msra.mxu0 0
      %703 = vmatprep.subr.bf16.mxu0 0
      %704 = vmatpush2.bf16.msra.mxu0 0
      %705 = vmatprep.subr.bf16.mxu0 0
      %706 = vmatpush2.bf16.msra.mxu0 %v541
      %707 = vmatprep.subr.bf16.mxu0 0
      %708 = vmatpush2.bf16.msra.mxu0 %v540
      %709 = vmatprep.subr.bf16.mxu0 0
      %710 = vmatpush2.bf16.msra.mxu0 %v539
      %711 = vmatprep.subr.bf16.mxu0 0
      %712 = vmatpush2.bf16.msra.mxu0 %v538
      %713 = vmatprep.mubr.bf16.mxu0 %v572
      %714 = vmatmul.mubr.bf16.gmra.mxu0 %v355
      %v715 = vpop.f32.mrf.mxu0
      %v716 = vadd.f32 %v627, %v715
      %v717 = vpop.f32.mrf.mxu0
      %v718 = vpop.f32.mrf.mxu0
      %v719 = vadd.f32 %v630, %v718
      %v720 = vpop.f32.mrf.mxu0
      %721 = vmatprep.mubr.bf16.mxu0 %v575
      %722 = vmatmul.mubr.bf16.gmra.mxu0 %v359
      %v723 = vpop.f32.mrf.mxu0
      %v724 = vadd.f32 %v635, %v723
      %v725 = vpop.f32.mrf.mxu0
      %v726 = vpop.f32.mrf.mxu0
      %v727 = vadd.f32 %v638, %v726
      %v728 = vpop.f32.mrf.mxu0
      %729 = vmatprep.mubr.bf16.mxu0 %v578
      %730 = vmatmul.mubr.bf16.gmra.mxu0 %v363
      %v731 = vpop.f32.mrf.mxu0
      %v732 = vadd.f32 %v643, %v731
      %v733 = vpop.f32.mrf.mxu0
      %v734 = vpop.f32.mrf.mxu0
      %v735 = vadd.f32 %v646, %v734
      %v736 = vpop.f32.mrf.mxu0
      %737 = vmatprep.mubr.bf16.mxu0 %v581
      %738 = vmatmul.mubr.bf16.gmra.mxu0 %v367
      %v739 = vpop.f32.mrf.mxu0
      %v740 = vadd.f32 %v651, %v739
      %v741 = vpop.f32.mrf.mxu0
      %v742 = vpop.f32.mrf.mxu0
      %v743 = vadd.f32 %v654, %v742
      %v744 = vpop.f32.mrf.mxu0
      %745 = vmatprep.mubr.bf16.mxu0 %v584
      %746 = vmatmul.mubr.bf16.gmra.mxu0 %v371
      %v747 = vpop.f32.mrf.mxu0
      %v748 = vadd.f32 %v659, %v747
      %v749 = vpop.f32.mrf.mxu0
      %v750 = vpop.f32.mrf.mxu0
      %v751 = vadd.f32 %v662, %v750
      %v752 = vpop.f32.mrf.mxu0
      %753 = vmatprep.mubr.bf16.mxu0 %v587
      %754 = vmatmul.mubr.bf16.gmra.mxu0 %v375
      %v755 = vpop.f32.mrf.mxu0
      %v756 = vadd.f32 %v667, %v755
      %v757 = vpop.f32.mrf.mxu0
      %v758 = vpop.f32.mrf.mxu0
      %v759 = vadd.f32 %v670, %v758
      %v760 = vpop.f32.mrf.mxu0
      %761 = vmatprep.mubr.bf16.mxu0 %v590
      %762 = vmatmul.mubr.bf16.gmra.mxu0 %v379
      %v763 = vpop.f32.mrf.mxu0
      %v764 = vadd.f32 %v675, %v763
      %v765 = vpop.f32.mrf.mxu0
      %v766 = vpop.f32.mrf.mxu0
      %v767 = vadd.f32 %v678, %v766
      %v768 = vpop.f32.mrf.mxu0
      %769 = vdwg.mxu0
      %v770 = vmax.f32 %v716, 0.0
      %v771 = vmax.f32 %v719, 0.0
      %v772 = vmax.f32 %v724, 0.0
      %v773 = vmax.f32 %v727, 0.0
      %v774 = vmax.f32 %v732, 0.0
      %v775 = vmax.f32 %v735, 0.0
      %v776 = vmax.f32 %v740, 0.0
      %v777 = vmax.f32 %v743, 0.0
      %v778 = vmax.f32 %v748, 0.0
      %v779 = vmax.f32 %v751, 0.0
      %v780 = vmax.f32 %v756, 0.0
      %v781 = vmax.f32 %v759, 0.0
      %v782 = vmax.f32 %v764, 0.0
      %v783 = vmax.f32 %v767, 0.0
      %v784 = vpack.c.bf16 %v771, %v770
      %v785 = vpack.c.bf16 %v773, %v772
      %v786 = vpack.c.bf16 %v775, %v774
      %v787 = vpack.c.bf16 %v777, %v776
      %v788 = vpack.c.bf16 %v779, %v778
      %v789 = vpack.c.bf16 %v781, %v780
      %v790 = vpack.c.bf16 %v783, %v782
      %v798 = vunpack.c.l.b16 %v784
      %v799 = vunpack.c.h.b16 %v784
      %v800 = vunpack.c.l.b16 %v785
      %v801 = vunpack.c.h.b16 %v785
      %v802 = vunpack.c.l.b16 %v786
      %v803 = vunpack.c.h.b16 %v786
      %v804 = vunpack.c.l.b16 %v787
      %v805 = vunpack.c.h.b16 %v787
      %v806 = vunpack.c.l.b16 %v788
      %v807 = vunpack.c.h.b16 %v788
      %v808 = vunpack.c.l.b16 %v789
      %v809 = vunpack.c.h.b16 %v789
      %v810 = vunpack.c.l.b16 %v790
      %v811 = vunpack.c.h.b16 %v790
      %v812 = vpack.c.b16 %v798, %v798
      %v813 = vpack.c.b16 %v799, %v799
      %v814 = vpack.c.b16 %v800, %v800
      %v815 = vpack.c.b16 %v801, %v801
      %v816 = vpack.c.b16 %v802, %v802
      %v817 = vpack.c.b16 %v803, %v803
      %v818 = vpack.c.b16 %v804, %v804
      %v819 = vpack.c.b16 %v805, %v805
      %v820 = vpack.c.b16 %v806, %v806
      %v821 = vpack.c.b16 %v807, %v807
      %v822 = vpack.c.b16 %v808, %v808
      %v823 = vpack.c.b16 %v809, %v809
      %v824 = vpack.c.b16 %v810, %v810
      %v825 = vpack.c.b16 %v811, %v811
      %840 = vst [vmem:[%s175] sm:$0xf] %v812
      %841 = vst [vmem:[%s175 + $0x4] sm:$0xf] %v813
      %842 = vst [vmem:[%s175 + $0x8] sm:$0xf] %v814
      %843 = vst [vmem:[%s175 + $0xc] sm:$0xf] %v815
      %844 = vst [vmem:[%s175 + $0x10] sm:$0xf] %v816
      %845 = vst [vmem:[%s175 + $0x14] sm:$0xf] %v817
      %846 = vst [vmem:[%s175 + $0x18] sm:$0xf] %v818
      %847 = vst [vmem:[%s175 + $0x1c] sm:$0xf] %v819
      %848 = vst [vmem:[%s175 + $0x20] sm:$0xf] %v820
      %849 = vst [vmem:[%s175 + $0x24] sm:$0xf] %v821
      %850 = vst [vmem:[%s175 + $0x28] sm:$0xf] %v822
      %851 = vst [vmem:[%s175 + $0x2c] sm:$0xf] %v823
      %852 = vst [vmem:[%s175 + $0x30] sm:$0xf] %v824
      %853 = vst [vmem:[%s175 + $0x34] sm:$0xf] %v825
      %s854 = smul.u32 14, %s14
      %p855 = scmp.lt.s32.totalorder %s854, 27
      %s856 = scalar_select %p855, %s854, 27
      %s857 = smul.addr %s856, 4
      %s858 = scalar_lea.vmem %s3, %s857
      // Predicated region
      $region33: #{stem_v4_res2.14} parent=31 // pred_check
        %p859 = pneg %p100
      $region34: #{stem_v4_res2.14} parent=31 // pred_check_branch
        %861 = sbr.rel (%p859) target = $region36
      $region35: #{stem_v4_res2.14} parent=31 // pred_region
        %s862 = smul.u32 14, %s14
      $region36: #{stem_v4_res2.14} parent=31 // pred_fallthru
        _
    $region32: #{stem_v4_res2.14} parent=5 // pred_fallthru
      _
    %p863 = scmp.le.s32.totalorder 2, %s9
    // Predicated region
    $region37: #{stem_v4_res2.14} parent=5 // pred_check
      %p864 = pneg %p863
    $region38: #{stem_v4_res2.14} parent=5 // pred_check_branch
      %866 = sbr.rel (%p864) target = $region40
    $region39: #{stem_v4_res2.14} parent=5 // pred_region
      %s867 = ssub.s32 %s9, 2
      // Predicated region
      $region41: #{stem_v4_res2.14} parent=39 // pred_check
        %p868 = pneg %p106
      $region42: #{stem_v4_res2.14} parent=39 // pred_check_branch
        %870 = sbr.rel (%p868) target = $region44
      $region43: #{stem_v4_res2.14} parent=39 // pred_region
        %s871 = smul.u32 14, %s15
        %p872 = scmp.lt.s32.totalorder %s871, 27
        %s873 = scalar_select %p872, %s871, 27
        %s874 = smul.addr %s873, 4
        %s875 = scalar_lea.vmem %s3, %s874
      $region44: #{stem_v4_res2.14} parent=39 // pred_fallthru
        _
    $region40: #{stem_v4_res2.14} parent=5 // pred_fallthru
      _
  $region6: #{stem_v4_res2.14} parent=0 // loop_footer
    %s13 = sadd.s32 1, %s9
  $region7: #{stem_v4_res2.14} parent=0 // loop_footer_branch
    %8 = sbr.rel target = $region3
  $region8: #{stem_v4_res2.14} parent=0 // loop_exit
    _

// kernel: stem_v4_res2.16
$region0: #{stem_v4_res2.16}
  #allocation0 [shape = 'u32[]', space=smem, size = 0x4, offset = 0x4, fixed_abs, tag = 'smem constant byte address 0x4 - core index']
  #allocation1 [shape = 'u32[144,128]{1,0:T(1,128)}', space=vmem, size = 0x12000, scoped, tag = 'internal scratch']
  %s0 = inlined_call_operand.vmem [shape: bf16[128,1152], index: 0, kind: input, shape index: {}]
  %s1 = inlined_call_operand.vmem [shape: bf16[1152,256], index: 1, kind: input, shape index: {}]
  %s2 = inlined_call_operand.vmem [shape: f32[1,256], index: 2, kind: input, shape index: {}]
  %s3 = inlined_call_operand.vmem [shape: bf16[128,256], index: 3, kind: output, shape index: {}]
  %s4 = sld [smem:[#allocation0]]
  $region45: #{stem_v4_res2.16} parent=0
    _
  %s6 = ssub.s32 1, %s4
  %s7 = scalar_select 0, %s6, %s4
  loop: start=0, step=1, limit=4
  $region2: #{stem_v4_res2.16} parent=0 // loop_pre_header
    _
  $region3: #{stem_v4_res2.16} parent=0 // loop_header
    %s9 = sphi 0, %s13
    %p10 = scmp.ge.s32.totalorder %s9, 4
    %s19 = sphi 0, %s21
    %s22 = sphi 0, %s19
    %s23 = sphi 0, %s22
    %s39 = sphi 0, %s23
    %s43 = sphi 0, %s43
    %s45 = sphi 0, %s43
    %s46 = sphi 0, %s45
    %s60 = sphi 0, %s46
    %s64 = sphi 0, %s64
    %s66 = sphi 0, %s64
    %s67 = sphi 0, %s66
    %s81 = sphi 0, %s67
    %s87 = sphi 0, %s89
    %s90 = sphi 0, %s87
    %s91 = sphi 0, %s90
    %s107 = sphi 0, %s91
  $region4: #{stem_v4_res2.16} parent=0 // loop_header_branch
    %12 = sbr.rel (%p10) target = $region8
  $region5: #{stem_v4_res2.16} parent=0 // loop_body
    %s14 = ssub.s32 %s9, 1
    %s15 = ssub.s32 %s9, 2
    %s16 = sadd.s32 %s9, 1
    %s17 = ssub.s32 %s9, %s16
    %p18 = scmp.eq.s32.totalorder %s17, 0
    %s20 = sadd.s32 %s19, 1
    %s21 = scalar_select %p18, %s19, %s20
    %p24 = pneg %p18
    %p25 = scmp.eq.s32.totalorder %s9, 1
    %p26 = por %p24, %p25
    %p27 = scmp.ne.s32.totalorder %s19, %s22
    %p28 = scmp.eq.s32.totalorder %s9, 0
    %p29 = por %p27, %p28
    %p30 = scmp.ne.s32.totalorder %s19, %s22
    %p31 = scmp.eq.s32.totalorder %s14, 1
    %p32 = por %p30, %p31
    %p33 = scmp.ne.s32.totalorder %s22, %s23
    %p34 = scmp.eq.s32.totalorder %s14, 0
    %p35 = por %p33, %p34
    %p36 = scmp.ne.s32.totalorder %s22, %s23
    %p37 = scmp.eq.s32.totalorder %s15, 1
    %p38 = por %p36, %p37
    %p40 = scmp.ne.s32.totalorder %s23, %s39
    %p41 = scmp.eq.s32.totalorder %s15, 0
    %p42 = por %p40, %p41
    %s44 = sadd.s32 %s43, 1
    %p47 = scmp.eq.s32.totalorder %s9, 1
    %p48 = scmp.ne.s32.totalorder %s43, %s45
    %p49 = scmp.eq.s32.totalorder %s9, 0
    %p50 = por %p48, %p49
    %p51 = scmp.ne.s32.totalorder %s43, %s45
    %p52 = scmp.eq.s32.totalorder %s14, 1
    %p53 = por %p51, %p52
    %p54 = scmp.ne.s32.totalorder %s45, %s46
    %p55 = scmp.eq.s32.totalorder %s14, 0
    %p56 = por %p54, %p55
    %p57 = scmp.ne.s32.totalorder %s45, %s46
    %p58 = scmp.eq.s32.totalorder %s15, 1
    %p59 = por %p57, %p58
    %p61 = scmp.ne.s32.totalorder %s46, %s60
    %p62 = scmp.eq.s32.totalorder %s15, 0
    %p63 = por %p61, %p62
    %s65 = sadd.s32 %s64, 1
    %p68 = scmp.eq.s32.totalorder %s9, 1
    %p69 = scmp.ne.s32.totalorder %s64, %s66
    %p70 = scmp.eq.s32.totalorder %s9, 0
    %p71 = por %p69, %p70
    %p72 = scmp.ne.s32.totalorder %s64, %s66
    %p73 = scmp.eq.s32.totalorder %s14, 1
    %p74 = por %p72, %p73
    %p75 = scmp.ne.s32.totalorder %s66, %s67
    %p76 = scmp.eq.s32.totalorder %s14, 0
    %p77 = por %p75, %p76
    %p78 = scmp.ne.s32.totalorder %s66, %s67
    %p79 = scmp.eq.s32.totalorder %s15, 1
    %p80 = por %p78, %p79
    %p82 = scmp.ne.s32.totalorder %s67, %s81
    %p83 = scmp.eq.s32.totalorder %s15, 0
    %p84 = por %p82, %p83
    %s85 = ssub.s32 %s9, %s16
    %p86 = scmp.eq.s32.totalorder %s85, 0
    %s88 = sadd.s32 %s87, 1
    %s89 = scalar_select %p86, %s87, %s88
    %p92 = pneg %p86
    %p93 = scmp.eq.s32.totalorder %s9, 1
    %p94 = por %p92, %p93
    %p95 = scmp.ne.s32.totalorder %s87, %s90
    %p96 = scmp.eq.s32.totalorder %s9, 0
    %p97 = por %p95, %p96
    %p98 = scmp.ne.s32.totalorder %s87, %s90
    %p99 = scmp.eq.s32.totalorder %s14, 1
    %p100 = por %p98, %p99
    %p101 = scmp.ne.s32.totalorder %s90, %s91
    %p102 = scmp.eq.s32.totalorder %s14, 0
    %p103 = por %p101, %p102
    %p104 = scmp.ne.s32.totalorder %s90, %s91
    %p105 = scmp.eq.s32.totalorder %s15, 1
    %p106 = por %p104, %p105
    %p108 = scmp.ne.s32.totalorder %s91, %s107
    %p109 = scmp.eq.s32.totalorder %s15, 0
    %p110 = por %p108, %p109
    %p111 = scmp.le.s32.totalorder 1, %s9
    %p112 = scmp.lt.s32.totalorder %s9, 3
    %p113 = pnand %p111, %p112
    %p114 = pneg %p113
    // Predicated region
    $region9: #{stem_v4_res2.16} parent=5 // pred_check
      _
    $region10: #{stem_v4_res2.16} parent=5 // pred_check_branch
      %116 = sbr.rel (%p113) target = $region12
    $region11: #{stem_v4_res2.16} parent=5 // pred_region
      %s117 = ssub.s32 %s9, 1
      // Predicated region
      $region13: #{stem_v4_res2.16} parent=11 // pred_check
        %p118 = pneg %p56
      $region14: #{stem_v4_res2.16} parent=11 // pred_check_branch
        %120 = sbr.rel (%p118) target = $region16
      $region15: #{stem_v4_res2.16} parent=11 // pred_region
        _
      $region16: #{stem_v4_res2.16} parent=11 // pred_fallthru
        _
      // Predicated region
      $region17: #{stem_v4_res2.16} parent=11 // pred_check
        %p121 = pneg %p77
      $region18: #{stem_v4_res2.16} parent=11 // pred_check_branch
        %123 = sbr.rel (%p121) target = $region20
      $region19: #{stem_v4_res2.16} parent=11 // pred_region
        _
      $region20: #{stem_v4_res2.16} parent=11 // pred_fallthru
        _
    $region12: #{stem_v4_res2.16} parent=5 // pred_fallthru
      _
    %p124 = scmp.lt.s32.totalorder %s9, 2
    // Predicated region
    $region21: #{stem_v4_res2.16} parent=5 // pred_check
      %p125 = pneg %p124
    $region22: #{stem_v4_res2.16} parent=5 // pred_check_branch
      %127 = sbr.rel (%p125) target = $region24
    $region23: #{stem_v4_res2.16} parent=5 // pred_region
      // Predicated region
      $region25: #{stem_v4_res2.16} parent=23 // pred_check
        %p128 = pneg %p29
      $region26: #{stem_v4_res2.16} parent=23 // pred_check_branch
        %130 = sbr.rel (%p128) target = $region28
      $region27: #{stem_v4_res2.16} parent=23 // pred_region
        %s131 = smul.u32 8, %s9
        %p132 = scmp.lt.s32.totalorder %s131, 15
        %s133 = scalar_select %p132, %s131, 15
        %s134 = smul.addr %s133, 9
        %s135 = smul.addr %s134, 4
        %s136 = scalar_lea.vmem %s0, %s135
        %s137 = smul.u32 8, %s9
      $region28: #{stem_v4_res2.16} parent=23 // pred_fallthru
        _
    $region24: #{stem_v4_res2.16} parent=5 // pred_fallthru
      _
    %p138 = scmp.le.s32.totalorder 1, %s9
    %p139 = scmp.lt.s32.totalorder %s9, 3
    %p140 = pnand %p138, %p139
    %p141 = pneg %p140
    // Predicated region
    $region29: #{stem_v4_res2.16} parent=5 // pred_check
      _
    $region30: #{stem_v4_res2.16} parent=5 // pred_check_branch
      %143 = sbr.rel (%p140) target = $region32
    $region31: #{stem_v4_res2.16} parent=5 // pred_region
      %s144 = ssub.s32 %s9, 1
      %s145 = smul.u32 8, %s14
      %p146 = scmp.lt.s32.totalorder %s145, 15
      %s147 = scalar_select %p146, %s145, 15
      %s148 = smul.addr %s147, 9
      %s149 = smul.addr %s148, 4
      %s150 = scalar_lea.vmem %s0, %s149
      %p151 = pneg %p35
      %p152 = pneg %p32
      %p153 = pneg %p56
      %p154 = pneg %p53
      %p155 = pneg %p77
      %p156 = pneg %p74
      %p157 = pneg %p103
      %p158 = pneg %p100
      %s159 = smul.u32 8, %s14
      %p160 = scmp.lt.s32.totalorder %s159, 15
      %s161 = scalar_select %p160, %s159, 15
      %s162 = smul.addr %s161, 2
      %s163 = smul.addr %s162, 4
      %s164 = scalar_lea.vmem %s3, %s163
      %s165 = smul.u32 8, %s14
      %p166 = scmp.lt.s32.totalorder %s165, 15
      %s167 = scalar_select %p166, %s165, 15
      %s168 = smul.addr %s167, 9
      %s169 = smul.addr %s168, 4
      %s170 = scalar_lea.vmem %s0, %s169
      %s171 = smul.u32 8, %s14
      %s172 = smul.u32 8, %s14
      %p173 = scmp.lt.s32.totalorder %s172, 15
      %s174 = scalar_select %p173, %s172, 15
      %s175 = smul.addr %s174, 2
      %s176 = smul.addr %s175, 4
      %s177 = scalar_lea.vmem %s3, %s176
      %s178 = smul.u32 8, %s14
      %v180 = vld [vmem:[%s170] sm:$0xff]
      %v181 = vld [vmem:[%s170 + $0x8] sm:$0xff]
      %v182 = vld [vmem:[%s170 + $0x10] sm:$0xff]
      %v183 = vld [vmem:[%s170 + $0x18] sm:$0xff]
      %v184 = vld [vmem:[%s170 + $0x20] sm:$0xf]
      %v185 = vld [vmem:[%s170 + $0x24] sm:$0xff]
      %v186 = vld [vmem:[%s170 + $0x2c] sm:$0xff]
      %v187 = vld [vmem:[%s170 + $0x34] sm:$0xff]
      %v188 = vld [vmem:[%s170 + $0x3c] sm:$0xff]
      %v189 = vld [vmem:[%s170 + $0x44] sm:$0xf]
      %v190 = vld [vmem:[%s170 + $0x48] sm:$0xff]
      %v191 = vld [vmem:[%s170 + $0x50] sm:$0xff]
      %v192 = vld [vmem:[%s170 + $0x58] sm:$0xff]
      %v193 = vld [vmem:[%s170 + $0x60] sm:$0xff]
      %v194 = vld [vmem:[%s170 + $0x68] sm:$0xf]
      %v195 = vld [vmem:[%s170 + $0x6c] sm:$0xff]
      %v196 = vld [vmem:[%s170 + $0x74] sm:$0xff]
      %v197 = vld [vmem:[%s170 + $0x7c] sm:$0xff]
      %v198 = vld [vmem:[%s170 + $0x84] sm:$0xff]
      %v199 = vld [vmem:[%s170 + $0x8c] sm:$0xf]
      %v200 = vld [vmem:[%s170 + $0x90] sm:$0xff]
      %v201 = vld [vmem:[%s170 + $0x98] sm:$0xff]
      %v202 = vld [vmem:[%s170 + $0xa0] sm:$0xff]
      %v203 = vld [vmem:[%s170 + $0xa8] sm:$0xff]
      %v204 = vld [vmem:[%s170 + $0xb0] sm:$0xf]
      %v205 = vld [vmem:[%s170 + $0xb4] sm:$0xff]
      %v206 = vld [vmem:[%s170 + $0xbc] sm:$0xff]
      %v207 = vld [vmem:[%s170 + $0xc4] sm:$0xff]
      %v208 = vld [vmem:[%s170 + $0xcc] sm:$0xff]
      %v209 = vld [vmem:[%s170 + $0xd4] sm:$0xf]
      %v210 = vld [vmem:[%s170 + $0xd8] sm:$0xff]
      %v211 = vld [vmem:[%s170 + $0xe0] sm:$0xff]
      %v212 = vld [vmem:[%s170 + $0xe8] sm:$0xff]
      %v213 = vld [vmem:[%s170 + $0xf0] sm:$0xff]
      %v214 = vld [vmem:[%s170 + $0xf8] sm:$0xf]
      %v215 = vld [vmem:[%s170 + $0xfc] sm:$0xff]
      %v216 = vld [vmem:[%s170 + $0x104] sm:$0xff]
      %v217 = vld [vmem:[%s170 + $0x10c] sm:$0xff]
      %v218 = vld [vmem:[%s170 + $0x114] sm:$0xff]
      %v219 = vld [vmem:[%s170 + $0x11c] sm:$0xf]
      %v220 = vld [vmem:[%s1] sm:$0xff]
      %v221 = vld [vmem:[%s1 + $0x8] sm:$0xff]
      %v222 = vld [vmem:[%s1 + $0x10] sm:$0xff]
      %v223 = vld [vmem:[%s1 + $0x18] sm:$0xff]
      %v224 = vld [vmem:[%s1 + $0x20] sm:$0xff]
      %v225 = vld [vmem:[%s1 + $0x28] sm:$0xff]
      %v226 = vld [vmem:[%s1 + $0x30] sm:$0xff]
      %v227 = vld [vmem:[%s1 + $0x38] sm:$0xff]
      %v228 = vld [vmem:[%s1 + $0x40] sm:$0xff]
      %v229 = vld [vmem:[%s1 + $0x48] sm:$0xff]
      %v230 = vld [vmem:[%s1 + $0x50] sm:$0xff]
      %v231 = vld [vmem:[%s1 + $0x58] sm:$0xff]
      %v232 = vld [vmem:[%s1 + $0x60] sm:$0xff]
      %v233 = vld [vmem:[%s1 + $0x68] sm:$0xff]
      %v234 = vld [vmem:[%s1 + $0x70] sm:$0xff]
      %v235 = vld [vmem:[%s1 + $0x78] sm:$0xff]
      %v236 = vld [vmem:[%s1 + $0x80] sm:$0xff]
      %v237 = vld [vmem:[%s1 + $0x88] sm:$0xff]
      %v238 = vld [vmem:[%s1 + $0x90] sm:$0xff]
      %v239 = vld [vmem:[%s1 + $0x98] sm:$0xff]
      %v240 = vld [vmem:[%s1 + $0xa0] sm:$0xff]
      %v241 = vld [vmem:[%s1 + $0xa8] sm:$0xff]
      %v242 = vld [vmem:[%s1 + $0xb0] sm:$0xff]
      %v243 = vld [vmem:[%s1 + $0xb8] sm:$0xff]
      %v244 = vld [vmem:[%s1 + $0xc0] sm:$0xff]
      %v245 = vld [vmem:[%s1 + $0xc8] sm:$0xff]
      %v246 = vld [vmem:[%s1 + $0xd0] sm:$0xff]
      %v247 = vld [vmem:[%s1 + $0xd8] sm:$0xff]
      %v248 = vld [vmem:[%s1 + $0xe0] sm:$0xff]
      %v249 = vld [vmem:[%s1 + $0xe8] sm:$0xff]
      %v250 = vld [vmem:[%s1 + $0xf0] sm:$0xff]
      %v251 = vld [vmem:[%s1 + $0xf8] sm:$0xff]
      %v252 = vld [vmem:[%s1 + $0x100] sm:$0xff]
      %v253 = vld [vmem:[%s1 + $0x108] sm:$0xff]
      %v254 = vld [vmem:[%s1 + $0x110] sm:$0xff]
      %v255 = vld [vmem:[%s1 + $0x118] sm:$0xff]
      %v256 = vld [vmem:[%s1 + $0x120] sm:$0xff]
      %v257 = vld [vmem:[%s1 + $0x128] sm:$0xff]
      %v258 = vld [vmem:[%s1 + $0x130] sm:$0xff]
      %v259 = vld [vmem:[%s1 + $0x138] sm:$0xff]
      %v260 = vld [vmem:[%s1 + $0x140] sm:$0xff]
      %v261 = vld [vmem:[%s1 + $0x148] sm:$0xff]
      %v262 = vld [vmem:[%s1 + $0x150] sm:$0xff]
      %v263 = vld [vmem:[%s1 + $0x158] sm:$0xff]
      %v264 = vld [vmem:[%s1 + $0x160] sm:$0xff]
      %v265 = vld [vmem:[%s1 + $0x168] sm:$0xff]
      %v266 = vld [vmem:[%s1 + $0x170] sm:$0xff]
      %v267 = vld [vmem:[%s1 + $0x178] sm:$0xff]
      %v268 = vld [vmem:[%s1 + $0x180] sm:$0xff]
      %v269 = vld [vmem:[%s1 + $0x188] sm:$0xff]
      %v270 = vld [vmem:[%s1 + $0x190] sm:$0xff]
      %v271 = vld [vmem:[%s1 + $0x198] sm:$0xff]
      %v272 = vld [vmem:[%s1 + $0x1a0] sm:$0xff]
      %v273 = vld [vmem:[%s1 + $0x1a8] sm:$0xff]
      %v274 = vld [vmem:[%s1 + $0x1b0] sm:$0xff]
      %v275 = vld [vmem:[%s1 + $0x1b8] sm:$0xff]
      %v276 = vld [vmem:[%s1 + $0x1c0] sm:$0xff]
      %v277 = vld [vmem:[%s1 + $0x1c8] sm:$0xff]
      %v278 = vld [vmem:[%s1 + $0x1d0] sm:$0xff]
      %v279 = vld [vmem:[%s1 + $0x1d8] sm:$0xff]
      %v280 = vld [vmem:[%s1 + $0x1e0] sm:$0xff]
      %v281 = vld [vmem:[%s1 + $0x1e8] sm:$0xff]
      %v282 = vld [vmem:[%s1 + $0x1f0] sm:$0xff]
      %v283 = vld [vmem:[%s1 + $0x1f8] sm:$0xff]
      %v284 = vld [vmem:[%s1 + $0x200] sm:$0xff]
      %v285 = vld [vmem:[%s1 + $0x208] sm:$0xff]
      %v286 = vld [vmem:[%s1 + $0x210] sm:$0xff]
      %v287 = vld [vmem:[%s1 + $0x218] sm:$0xff]
      %v288 = vld [vmem:[%s1 + $0x220] sm:$0xff]
      %v289 = vld [vmem:[%s1 + $0x228] sm:$0xff]
      %v290 = vld [vmem:[%s1 + $0x230] sm:$0xff]
      %v291 = vld [vmem:[%s1 + $0x238] sm:$0xff]
      %v292 = vld [vmem:[%s1 + $0x240] sm:$0xff]
      %v293 = vld [vmem:[%s1 + $0x248] sm:$0xff]
      %v294 = vld [vmem:[%s1 + $0x250] sm:$0xff]
      %v295 = vld [vmem:[%s1 + $0x258] sm:$0xff]
      %v296 = vld [vmem:[%s1 + $0x260] sm:$0xff]
      %v297 = vld [vmem:[%s1 + $0x268] sm:$0xff]
      %v298 = vld [vmem:[%s1 + $0x270] sm:$0xff]
      %v299 = vld [vmem:[%s1 + $0x278] sm:$0xff]
      %v300 = vld [vmem:[%s1 + $0x280] sm:$0xff]
      %v301 = vld [vmem:[%s1 + $0x288] sm:$0xff]
      %v302 = vld [vmem:[%s1 + $0x290] sm:$0xff]
      %v303 = vld [vmem:[%s1 + $0x298] sm:$0xff]
      %v304 = vld [vmem:[%s1 + $0x2a0] sm:$0xff]
      %v305 = vld [vmem:[%s1 + $0x2a8] sm:$0xff]
      %v306 = vld [vmem:[%s1 + $0x2b0] sm:$0xff]
      %v307 = vld [vmem:[%s1 + $0x2b8] sm:$0xff]
      %v308 = vld [vmem:[%s1 + $0x2c0] sm:$0xff]
      %v309 = vld [vmem:[%s1 + $0x2c8] sm:$0xff]
      %v310 = vld [vmem:[%s1 + $0x2d0] sm:$0xff]
      %v311 = vld [vmem:[%s1 + $0x2d8] sm:$0xff]
      %v312 = vld [vmem:[%s1 + $0x2e0] sm:$0xff]
      %v313 = vld [vmem:[%s1 + $0x2e8] sm:$0xff]
      %v314 = vld [vmem:[%s1 + $0x2f0] sm:$0xff]
      %v315 = vld [vmem:[%s1 + $0x2f8] sm:$0xff]
      %v316 = vld [vmem:[%s1 + $0x300] sm:$0xff]
      %v317 = vld [vmem:[%s1 + $0x308] sm:$0xff]
      %v318 = vld [vmem:[%s1 + $0x310] sm:$0xff]
      %v319 = vld [vmem:[%s1 + $0x318] sm:$0xff]
      %v320 = vld [vmem:[%s1 + $0x320] sm:$0xff]
      %v321 = vld [vmem:[%s1 + $0x328] sm:$0xff]
      %v322 = vld [vmem:[%s1 + $0x330] sm:$0xff]
      %v323 = vld [vmem:[%s1 + $0x338] sm:$0xff]
      %v324 = vld [vmem:[%s1 + $0x340] sm:$0xff]
      %v325 = vld [vmem:[%s1 + $0x348] sm:$0xff]
      %v326 = vld [vmem:[%s1 + $0x350] sm:$0xff]
      %v327 = vld [vmem:[%s1 + $0x358] sm:$0xff]
      %v328 = vld [vmem:[%s1 + $0x360] sm:$0xff]
      %v329 = vld [vmem:[%s1 + $0x368] sm:$0xff]
      %v330 = vld [vmem:[%s1 + $0x370] sm:$0xff]
      %v331 = vld [vmem:[%s1 + $0x378] sm:$0xff]
      %v332 = vld [vmem:[%s1 + $0x380] sm:$0xff]
      %v333 = vld [vmem:[%s1 + $0x388] sm:$0xff]
      %v334 = vld [vmem:[%s1 + $0x390] sm:$0xff]
      %v335 = vld [vmem:[%s1 + $0x398] sm:$0xff]
      %v336 = vld [vmem:[%s1 + $0x3a0] sm:$0xff]
      %v337 = vld [vmem:[%s1 + $0x3a8] sm:$0xff]
      %v338 = vld [vmem:[%s1 + $0x3b0] sm:$0xff]
      %v339 = vld [vmem:[%s1 + $0x3b8] sm:$0xff]
      %v340 = vld [vmem:[%s1 + $0x3c0] sm:$0xff]
      %v341 = vld [vmem:[%s1 + $0x3c8] sm:$0xff]
      %v342 = vld [vmem:[%s1 + $0x3d0] sm:$0xff]
      %v343 = vld [vmem:[%s1 + $0x3d8] sm:$0xff]
      %v344 = vld [vmem:[%s1 + $0x3e0] sm:$0xff]
      %v345 = vld [vmem:[%s1 + $0x3e8] sm:$0xff]
      %v346 = vld [vmem:[%s1 + $0x3f0] sm:$0xff]
      %v347 = vld [vmem:[%s1 + $0x3f8] sm:$0xff]
      %v348 = vld [vmem:[%s1 + $0x400] sm:$0xff]
      %v349 = vld [vmem:[%s1 + $0x408] sm:$0xff]
      %v350 = vld [vmem:[%s1 + $0x410] sm:$0xff]
      %v351 = vld [vmem:[%s1 + $0x418] sm:$0xff]
      %v352 = vld [vmem:[%s1 + $0x420] sm:$0xff]
      %v353 = vld [vmem:[%s1 + $0x428] sm:$0xff]
      %v354 = vld [vmem:[%s1 + $0x430] sm:$0xff]
      %v355 = vld [vmem:[%s1 + $0x438] sm:$0xff]
      %v356 = vld [vmem:[%s1 + $0x440] sm:$0xff]
      %v357 = vld [vmem:[%s1 + $0x448] sm:$0xff]
      %v358 = vld [vmem:[%s1 + $0x450] sm:$0xff]
      %v359 = vld [vmem:[%s1 + $0x458] sm:$0xff]
      %v360 = vld [vmem:[%s1 + $0x460] sm:$0xff]
      %v361 = vld [vmem:[%s1 + $0x468] sm:$0xff]
      %v362 = vld [vmem:[%s1 + $0x470] sm:$0xff]
      %v363 = vld [vmem:[%s1 + $0x478] sm:$0xff]
      %v364 = vld [vmem:[%s2] sm:$0x3]
      %v366 = vlaneseq
      %v367 = vshrl.u32 %v366, 7
      %v368 = vsub.s32 0, %v367
      %v369 = vrot.slane %v364, %v368
      %v370 = vlaneseq
      %v371 = vshrl.u32 %v370, 7
      %v372 = vsub.s32 1, %v371
      %v373 = vrot.slane %v364, %v372
      %v416 = vunpack.c.l.b16 %v180
      %v417 = vunpack.c.h.b16 %v180
      %v418 = vunpack.c.l.b16 %v181
      %v419 = vunpack.c.h.b16 %v181
      %v420 = vunpack.c.l.b16 %v182
      %v421 = vunpack.c.h.b16 %v182
      %v422 = vunpack.c.l.b16 %v183
      %v423 = vunpack.c.h.b16 %v183
      %v424 = vunpack.c.l.b16 %v184
      %v425 = vunpack.c.l.b16 %v185
      %v426 = vunpack.c.h.b16 %v185
      %v427 = vunpack.c.l.b16 %v186
      %v428 = vunpack.c.h.b16 %v186
      %v429 = vunpack.c.l.b16 %v187
      %v430 = vunpack.c.h.b16 %v187
      %v431 = vunpack.c.l.b16 %v188
      %v432 = vunpack.c.h.b16 %v188
      %v433 = vunpack.c.l.b16 %v189
      %v434 = vunpack.c.l.b16 %v190
      %v435 = vunpack.c.h.b16 %v190
      %v436 = vunpack.c.l.b16 %v191
      %v437 = vunpack.c.h.b16 %v191
      %v438 = vunpack.c.l.b16 %v192
      %v439 = vunpack.c.h.b16 %v192
      %v440 = vunpack.c.l.b16 %v193
      %v441 = vunpack.c.h.b16 %v193
      %v442 = vunpack.c.l.b16 %v194
      %v443 = vunpack.c.l.b16 %v195
      %v444 = vunpack.c.h.b16 %v195
      %v445 = vunpack.c.l.b16 %v196
      %v446 = vunpack.c.h.b16 %v196
      %v447 = vunpack.c.l.b16 %v197
      %v448 = vunpack.c.h.b16 %v197
      %v449 = vunpack.c.l.b16 %v198
      %v450 = vunpack.c.h.b16 %v198
      %v451 = vunpack.c.l.b16 %v199
      %v452 = vunpack.c.l.b16 %v200
      %v453 = vunpack.c.h.b16 %v200
      %v454 = vunpack.c.l.b16 %v201
      %v455 = vunpack.c.h.b16 %v201
      %v456 = vunpack.c.l.b16 %v202
      %v457 = vunpack.c.h.b16 %v202
      %v458 = vunpack.c.l.b16 %v203
      %v459 = vunpack.c.h.b16 %v203
      %v460 = vunpack.c.l.b16 %v204
      %v461 = vunpack.c.l.b16 %v205
      %v462 = vunpack.c.h.b16 %v205
      %v463 = vunpack.c.l.b16 %v206
      %v464 = vunpack.c.h.b16 %v206
      %v465 = vunpack.c.l.b16 %v207
      %v466 = vunpack.c.h.b16 %v207
      %v467 = vunpack.c.l.b16 %v208
      %v468 = vunpack.c.h.b16 %v208
      %v469 = vunpack.c.l.b16 %v209
      %v470 = vunpack.c.l.b16 %v210
      %v471 = vunpack.c.h.b16 %v210
      %v472 = vunpack.c.l.b16 %v211
      %v473 = vunpack.c.h.b16 %v211
      %v474 = vunpack.c.l.b16 %v212
      %v475 = vunpack.c.h.b16 %v212
      %v476 = vunpack.c.l.b16 %v213
      %v477 = vunpack.c.h.b16 %v213
      %v478 = vunpack.c.l.b16 %v214
      %v479 = vunpack.c.l.b16 %v215
      %v480 = vunpack.c.h.b16 %v215
      %v481 = vunpack.c.l.b16 %v216
      %v482 = vunpack.c.h.b16 %v216
      %v483 = vunpack.c.l.b16 %v217
      %v484 = vunpack.c.h.b16 %v217
      %v485 = vunpack.c.l.b16 %v218
      %v486 = vunpack.c.h.b16 %v218
      %v487 = vunpack.c.l.b16 %v219
      %v488 = vpack.c.b16 %v425, %v416
      %v489 = vpack.c.b16 %v426, %v417
      %v490 = vpack.c.b16 %v427, %v418
      %v491 = vpack.c.b16 %v428, %v419
      %v492 = vpack.c.b16 %v429, %v420
      %v493 = vpack.c.b16 %v430, %v421
      %v494 = vpack.c.b16 %v431, %v422
      %v495 = vpack.c.b16 %v432, %v423
      %v496 = vpack.c.b16 %v433, %v424
      %v497 = vpack.c.b16 %v443, %v434
      %v498 = vpack.c.b16 %v444, %v435
      %v499 = vpack.c.b16 %v445, %v436
      %v500 = vpack.c.b16 %v446, %v437
      %v501 = vpack.c.b16 %v447, %v438
      %v502 = vpack.c.b16 %v448, %v439
      %v503 = vpack.c.b16 %v449, %v440
      %v504 = vpack.c.b16 %v450, %v441
      %v505 = vpack.c.b16 %v451, %v442
      %v506 = vpack.c.b16 %v461, %v452
      %v507 = vpack.c.b16 %v462, %v453
      %v508 = vpack.c.b16 %v463, %v454
      %v509 = vpack.c.b16 %v464, %v455
      %v510 = vpack.c.b16 %v465, %v456
      %v511 = vpack.c.b16 %v466, %v457
      %v512 = vpack.c.b16 %v467, %v458
      %v513 = vpack.c.b16 %v468, %v459
      %v514 = vpack.c.b16 %v469, %v460
      %v515 = vpack.c.b16 %v479, %v470
      %v516 = vpack.c.b16 %v480, %v471
      %v517 = vpack.c.b16 %v481, %v472
      %v518 = vpack.c.b16 %v482, %v473
      %v519 = vpack.c.b16 %v483, %v474
      %v520 = vpack.c.b16 %v484, %v475
      %v521 = vpack.c.b16 %v485, %v476
      %v522 = vpack.c.b16 %v486, %v477
      %v523 = vpack.c.b16 %v487, %v478
      %v704 = vunpack.c.l.b16 %v220
      %v705 = vunpack.c.h.b16 %v220
      %v706 = vunpack.c.l.b16 %v221
      %v707 = vunpack.c.h.b16 %v221
      %v708 = vunpack.c.l.b16 %v222
      %v709 = vunpack.c.h.b16 %v222
      %v710 = vunpack.c.l.b16 %v223
      %v711 = vunpack.c.h.b16 %v223
      %v712 = vunpack.c.l.b16 %v224
      %v713 = vunpack.c.h.b16 %v224
      %v714 = vunpack.c.l.b16 %v225
      %v715 = vunpack.c.h.b16 %v225
      %v716 = vunpack.c.l.b16 %v226
      %v717 = vunpack.c.h.b16 %v226
      %v718 = vunpack.c.l.b16 %v227
      %v719 = vunpack.c.h.b16 %v227
      %v720 = vunpack.c.l.b16 %v228
      %v721 = vunpack.c.h.b16 %v228
      %v722 = vunpack.c.l.b16 %v229
      %v723 = vunpack.c.h.b16 %v229
      %v724 = vunpack.c.l.b16 %v230
      %v725 = vunpack.c.h.b16 %v230
      %v726 = vunpack.c.l.b16 %v231
      %v727 = vunpack.c.h.b16 %v231
      %v728 = vunpack.c.l.b16 %v232
      %v729 = vunpack.c.h.b16 %v232
      %v730 = vunpack.c.l.b16 %v233
      %v731 = vunpack.c.h.b16 %v233
      %v732 = vunpack.c.l.b16 %v234
      %v733 = vunpack.c.h.b16 %v234
      %v734 = vunpack.c.l.b16 %v235
      %v735 = vunpack.c.h.b16 %v235
      %v736 = vunpack.c.l.b16 %v236
      %v737 = vunpack.c.h.b16 %v236
      %v738 = vunpack.c.l.b16 %v237
      %v739 = vunpack.c.h.b16 %v237
      %v740 = vunpack.c.l.b16 %v238
      %v741 = vunpack.c.h.b16 %v238
      %v742 = vunpack.c.l.b16 %v239
      %v743 = vunpack.c.h.b16 %v239
      %v744 = vunpack.c.l.b16 %v240
      %v745 = vunpack.c.h.b16 %v240
      %v746 = vunpack.c.l.b16 %v241
      %v747 = vunpack.c.h.b16 %v241
      %v748 = vunpack.c.l.b16 %v242
      %v749 = vunpack.c.h.b16 %v242
      %v750 = vunpack.c.l.b16 %v243
      %v751 = vunpack.c.h.b16 %v243
      %v752 = vunpack.c.l.b16 %v244
      %v753 = vunpack.c.h.b16 %v244
      %v754 = vunpack.c.l.b16 %v245
      %v755 = vunpack.c.h.b16 %v245
      %v756 = vunpack.c.l.b16 %v246
      %v757 = vunpack.c.h.b16 %v246
      %v758 = vunpack.c.l.b16 %v247
      %v759 = vunpack.c.h.b16 %v247
      %v760 = vunpack.c.l.b16 %v248
      %v761 = vunpack.c.h.b16 %v248
      %v762 = vunpack.c.l.b16 %v249
      %v763 = vunpack.c.h.b16 %v249
      %v764 = vunpack.c.l.b16 %v250
      %v765 = vunpack.c.h.b16 %v250
      %v766 = vunpack.c.l.b16 %v251
      %v767 = vunpack.c.h.b16 %v251
      %v768 = vunpack.c.l.b16 %v252
      %v769 = vunpack.c.h.b16 %v252
      %v770 = vunpack.c.l.b16 %v253
      %v771 = vunpack.c.h.b16 %v253
      %v772 = vunpack.c.l.b16 %v254
      %v773 = vunpack.c.h.b16 %v254
      %v774 = vunpack.c.l.b16 %v255
      %v775 = vunpack.c.h.b16 %v255
      %v776 = vunpack.c.l.b16 %v256
      %v777 = vunpack.c.h.b16 %v256
      %v778 = vunpack.c.l.b16 %v257
      %v779 = vunpack.c.h.b16 %v257
      %v780 = vunpack.c.l.b16 %v258
      %v781 = vunpack.c.h.b16 %v258
      %v782 = vunpack.c.l.b16 %v259
      %v783 = vunpack.c.h.b16 %v259
      %v784 = vunpack.c.l.b16 %v260
      %v785 = vunpack.c.h.b16 %v260
      %v786 = vunpack.c.l.b16 %v261
      %v787 = vunpack.c.h.b16 %v261
      %v788 = vunpack.c.l.b16 %v262
      %v789 = vunpack.c.h.b16 %v262
      %v790 = vunpack.c.l.b16 %v263
      %v791 = vunpack.c.h.b16 %v263
      %v792 = vunpack.c.l.b16 %v264
      %v793 = vunpack.c.h.b16 %v264
      %v794 = vunpack.c.l.b16 %v265
      %v795 = vunpack.c.h.b16 %v265
      %v796 = vunpack.c.l.b16 %v266
      %v797 = vunpack.c.h.b16 %v266
      %v798 = vunpack.c.l.b16 %v267
      %v799 = vunpack.c.h.b16 %v267
      %v800 = vunpack.c.l.b16 %v268
      %v801 = vunpack.c.h.b16 %v268
      %v802 = vunpack.c.l.b16 %v269
      %v803 = vunpack.c.h.b16 %v269
      %v804 = vunpack.c.l.b16 %v270
      %v805 = vunpack.c.h.b16 %v270
      %v806 = vunpack.c.l.b16 %v271
      %v807 = vunpack.c.h.b16 %v271
      %v808 = vunpack.c.l.b16 %v272
      %v809 = vunpack.c.h.b16 %v272
      %v810 = vunpack.c.l.b16 %v273
      %v811 = vunpack.c.h.b16 %v273
      %v812 = vunpack.c.l.b16 %v274
      %v813 = vunpack.c.h.b16 %v274
      %v814 = vunpack.c.l.b16 %v275
      %v815 = vunpack.c.h.b16 %v275
      %v816 = vunpack.c.l.b16 %v276
      %v817 = vunpack.c.h.b16 %v276
      %v818 = vunpack.c.l.b16 %v277
      %v819 = vunpack.c.h.b16 %v277
      %v820 = vunpack.c.l.b16 %v278
      %v821 = vunpack.c.h.b16 %v278
      %v822 = vunpack.c.l.b16 %v279
      %v823 = vunpack.c.h.b16 %v279
      %v824 = vunpack.c.l.b16 %v280
      %v825 = vunpack.c.h.b16 %v280
      %v826 = vunpack.c.l.b16 %v281
      %v827 = vunpack.c.h.b16 %v281
      %v828 = vunpack.c.l.b16 %v282
      %v829 = vunpack.c.h.b16 %v282
      %v830 = vunpack.c.l.b16 %v283
      %v831 = vunpack.c.h.b16 %v283
      %v832 = vunpack.c.l.b16 %v284
      %v833 = vunpack.c.h.b16 %v284
      %v834 = vunpack.c.l.b16 %v285
      %v835 = vunpack.c.h.b16 %v285
      %v836 = vunpack.c.l.b16 %v286
      %v837 = vunpack.c.h.b16 %v286
      %v838 = vunpack.c.l.b16 %v287
      %v839 = vunpack.c.h.b16 %v287
      %v840 = vunpack.c.l.b16 %v288
      %v841 = vunpack.c.h.b16 %v288
      %v842 = vunpack.c.l.b16 %v289
      %v843 = vunpack.c.h.b16 %v289
      %v844 = vunpack.c.l.b16 %v290
      %v845 = vunpack.c.h.b16 %v290
      %v846 = vunpack.c.l.b16 %v291
      %v847 = vunpack.c.h.b16 %v291
      %v848 = vunpack.c.l.b16 %v292
      %v849 = vunpack.c.h.b16 %v292
      %v850 = vunpack.c.l.b16 %v293
      %v851 = vunpack.c.h.b16 %v293
      %v852 = vunpack.c.l.b16 %v294
      %v853 = vunpack.c.h.b16 %v294
      %v854 = vunpack.c.l.b16 %v295
      %v855 = vunpack.c.h.b16 %v295
      %v856 = vunpack.c.l.b16 %v296
      %v857 = vunpack.c.h.b16 %v296
      %v858 = vunpack.c.l.b16 %v297
      %v859 = vunpack.c.h.b16 %v297
      %v860 = vunpack.c.l.b16 %v298
      %v861 = vunpack.c.h.b16 %v298
      %v862 = vunpack.c.l.b16 %v299
      %v863 = vunpack.c.h.b16 %v299
      %v864 = vunpack.c.l.b16 %v300
      %v865 = vunpack.c.h.b16 %v300
      %v866 = vunpack.c.l.b16 %v301
      %v867 = vunpack.c.h.b16 %v301
      %v868 = vunpack.c.l.b16 %v302
      %v869 = vunpack.c.h.b16 %v302
      %v870 = vunpack.c.l.b16 %v303
      %v871 = vunpack.c.h.b16 %v303
      %v872 = vunpack.c.l.b16 %v304
      %v873 = vunpack.c.h.b16 %v304
      %v874 = vunpack.c.l.b16 %v305
      %v875 = vunpack.c.h.b16 %v305
      %v876 = vunpack.c.l.b16 %v306
      %v877 = vunpack.c.h.b16 %v306
      %v878 = vunpack.c.l.b16 %v307
      %v879 = vunpack.c.h.b16 %v307
      %v880 = vunpack.c.l.b16 %v308
      %v881 = vunpack.c.h.b16 %v308
      %v882 = vunpack.c.l.b16 %v309
      %v883 = vunpack.c.h.b16 %v309
      %v884 = vunpack.c.l.b16 %v310
      %v885 = vunpack.c.h.b16 %v310
      %v886 = vunpack.c.l.b16 %v311
      %v887 = vunpack.c.h.b16 %v311
      %v888 = vunpack.c.l.b16 %v312
      %v889 = vunpack.c.h.b16 %v312
      %v890 = vunpack.c.l.b16 %v313
      %v891 = vunpack.c.h.b16 %v313
      %v892 = vunpack.c.l.b16 %v314
      %v893 = vunpack.c.h.b16 %v314
      %v894 = vunpack.c.l.b16 %v315
      %v895 = vunpack.c.h.b16 %v315
      %v896 = vunpack.c.l.b16 %v316
      %v897 = vunpack.c.h.b16 %v316
      %v898 = vunpack.c.l.b16 %v317
      %v899 = vunpack.c.h.b16 %v317
      %v900 = vunpack.c.l.b16 %v318
      %v901 = vunpack.c.h.b16 %v318
      %v902 = vunpack.c.l.b16 %v319
      %v903 = vunpack.c.h.b16 %v319
      %v904 = vunpack.c.l.b16 %v320
      %v905 = vunpack.c.h.b16 %v320
      %v906 = vunpack.c.l.b16 %v321
      %v907 = vunpack.c.h.b16 %v321
      %v908 = vunpack.c.l.b16 %v322
      %v909 = vunpack.c.h.b16 %v322
      %v910 = vunpack.c.l.b16 %v323
      %v911 = vunpack.c.h.b16 %v323
      %v912 = vunpack.c.l.b16 %v324
      %v913 = vunpack.c.h.b16 %v324
      %v914 = vunpack.c.l.b16 %v325
      %v915 = vunpack.c.h.b16 %v325
      %v916 = vunpack.c.l.b16 %v326
      %v917 = vunpack.c.h.b16 %v326
      %v918 = vunpack.c.l.b16 %v327
      %v919 = vunpack.c.h.b16 %v327
      %v920 = vunpack.c.l.b16 %v328
      %v921 = vunpack.c.h.b16 %v328
      %v922 = vunpack.c.l.b16 %v329
      %v923 = vunpack.c.h.b16 %v329
      %v924 = vunpack.c.l.b16 %v330
      %v925 = vunpack.c.h.b16 %v330
      %v926 = vunpack.c.l.b16 %v331
      %v927 = vunpack.c.h.b16 %v331
      %v928 = vunpack.c.l.b16 %v332
      %v929 = vunpack.c.h.b16 %v332
      %v930 = vunpack.c.l.b16 %v333
      %v931 = vunpack.c.h.b16 %v333
      %v932 = vunpack.c.l.b16 %v334
      %v933 = vunpack.c.h.b16 %v334
      %v934 = vunpack.c.l.b16 %v335
      %v935 = vunpack.c.h.b16 %v335
      %v936 = vunpack.c.l.b16 %v336
      %v937 = vunpack.c.h.b16 %v336
      %v938 = vunpack.c.l.b16 %v337
      %v939 = vunpack.c.h.b16 %v337
      %v940 = vunpack.c.l.b16 %v338
      %v941 = vunpack.c.h.b16 %v338
      %v942 = vunpack.c.l.b16 %v339
      %v943 = vunpack.c.h.b16 %v339
      %v944 = vunpack.c.l.b16 %v340
      %v945 = vunpack.c.h.b16 %v340
      %v946 = vunpack.c.l.b16 %v341
      %v947 = vunpack.c.h.b16 %v341
      %v948 = vunpack.c.l.b16 %v342
      %v949 = vunpack.c.h.b16 %v342
      %v950 = vunpack.c.l.b16 %v343
      %v951 = vunpack.c.h.b16 %v343
      %v952 = vunpack.c.l.b16 %v344
      %v953 = vunpack.c.h.b16 %v344
      %v954 = vunpack.c.l.b16 %v345
      %v955 = vunpack.c.h.b16 %v345
      %v956 = vunpack.c.l.b16 %v346
      %v957 = vunpack.c.h.b16 %v346
      %v958 = vunpack.c.l.b16 %v347
      %v959 = vunpack.c.h.b16 %v347
      %v960 = vunpack.c.l.b16 %v348
      %v961 = vunpack.c.h.b16 %v348
      %v962 = vunpack.c.l.b16 %v349
      %v963 = vunpack.c.h.b16 %v349
      %v964 = vunpack.c.l.b16 %v350
      %v965 = vunpack.c.h.b16 %v350
      %v966 = vunpack.c.l.b16 %v351
      %v967 = vunpack.c.h.b16 %v351
      %v968 = vunpack.c.l.b16 %v352
      %v969 = vunpack.c.h.b16 %v352
      %v970 = vunpack.c.l.b16 %v353
      %v971 = vunpack.c.h.b16 %v353
      %v972 = vunpack.c.l.b16 %v354
      %v973 = vunpack.c.h.b16 %v354
      %v974 = vunpack.c.l.b16 %v355
      %v975 = vunpack.c.h.b16 %v355
      %v976 = vunpack.c.l.b16 %v356
      %v977 = vunpack.c.h.b16 %v356
      %v978 = vunpack.c.l.b16 %v357
      %v979 = vunpack.c.h.b16 %v357
      %v980 = vunpack.c.l.b16 %v358
      %v981 = vunpack.c.h.b16 %v358
      %v982 = vunpack.c.l.b16 %v359
      %v983 = vunpack.c.h.b16 %v359
      %v984 = vunpack.c.l.b16 %v360
      %v985 = vunpack.c.h.b16 %v360
      %v986 = vunpack.c.l.b16 %v361
      %v987 = vunpack.c.h.b16 %v361
      %v988 = vunpack.c.l.b16 %v362
      %v989 = vunpack.c.h.b16 %v362
      %v990 = vunpack.c.l.b16 %v363
      %v991 = vunpack.c.h.b16 %v363
      %v992 = vpack.c.b16 %v706, %v704
      %v993 = vpack.c.b16 %v707, %v705
      %v994 = vpack.c.b16 %v710, %v708
      %v995 = vpack.c.b16 %v711, %v709
      %v996 = vpack.c.b16 %v714, %v712
      %v997 = vpack.c.b16 %v715, %v713
      %v998 = vpack.c.b16 %v718, %v716
      %v999 = vpack.c.b16 %v719, %v717
      %v1000 = vpack.c.b16 %v722, %v720
      %v1001 = vpack.c.b16 %v723, %v721
      %v1002 = vpack.c.b16 %v726, %v724
      %v1003 = vpack.c.b16 %v727, %v725
      %v1004 = vpack.c.b16 %v730, %v728
      %v1005 = vpack.c.b16 %v731, %v729
      %v1006 = vpack.c.b16 %v734, %v732
      %v1007 = vpack.c.b16 %v735, %v733
      %v1008 = vpack.c.b16 %v738, %v736
      %v1009 = vpack.c.b16 %v739, %v737
      %v1010 = vpack.c.b16 %v742, %v740
      %v1011 = vpack.c.b16 %v743, %v741
      %v1012 = vpack.c.b16 %v746, %v744
      %v1013 = vpack.c.b16 %v747, %v745
      %v1014 = vpack.c.b16 %v750, %v748
      %v1015 = vpack.c.b16 %v751, %v749
      %v1016 = vpack.c.b16 %v754, %v752
      %v1017 = vpack.c.b16 %v755, %v753
      %v1018 = vpack.c.b16 %v758, %v756
      %v1019 = vpack.c.b16 %v759, %v757
      %v1020 = vpack.c.b16 %v762, %v760
      %v1021 = vpack.c.b16 %v763, %v761
      %v1022 = vpack.c.b16 %v766, %v764
      %v1023 = vpack.c.b16 %v767, %v765
      %v1024 = vpack.c.b16 %v770, %v768
      %v1025 = vpack.c.b16 %v771, %v769
      %v1026 = vpack.c.b16 %v774, %v772
      %v1027 = vpack.c.b16 %v775, %v773
      %v1028 = vpack.c.b16 %v778, %v776
      %v1029 = vpack.c.b16 %v779, %v777
      %v1030 = vpack.c.b16 %v782, %v780
      %v1031 = vpack.c.b16 %v783, %v781
      %v1032 = vpack.c.b16 %v786, %v784
      %v1033 = vpack.c.b16 %v787, %v785
      %v1034 = vpack.c.b16 %v790, %v788
      %v1035 = vpack.c.b16 %v791, %v789
      %v1036 = vpack.c.b16 %v794, %v792
      %v1037 = vpack.c.b16 %v795, %v793
      %v1038 = vpack.c.b16 %v798, %v796
      %v1039 = vpack.c.b16 %v799, %v797
      %v1040 = vpack.c.b16 %v802, %v800
      %v1041 = vpack.c.b16 %v803, %v801
      %v1042 = vpack.c.b16 %v806, %v804
      %v1043 = vpack.c.b16 %v807, %v805
      %v1044 = vpack.c.b16 %v810, %v808
      %v1045 = vpack.c.b16 %v811, %v809
      %v1046 = vpack.c.b16 %v814, %v812
      %v1047 = vpack.c.b16 %v815, %v813
      %v1048 = vpack.c.b16 %v818, %v816
      %v1049 = vpack.c.b16 %v819, %v817
      %v1050 = vpack.c.b16 %v822, %v820
      %v1051 = vpack.c.b16 %v823, %v821
      %v1052 = vpack.c.b16 %v826, %v824
      %v1053 = vpack.c.b16 %v827, %v825
      %v1054 = vpack.c.b16 %v830, %v828
      %v1055 = vpack.c.b16 %v831, %v829
      %v1056 = vpack.c.b16 %v834, %v832
      %v1057 = vpack.c.b16 %v835, %v833
      %v1058 = vpack.c.b16 %v838, %v836
      %v1059 = vpack.c.b16 %v839, %v837
      %v1060 = vpack.c.b16 %v842, %v840
      %v1061 = vpack.c.b16 %v843, %v841
      %v1062 = vpack.c.b16 %v846, %v844
      %v1063 = vpack.c.b16 %v847, %v845
      %v1064 = vpack.c.b16 %v850, %v848
      %v1065 = vpack.c.b16 %v851, %v849
      %v1066 = vpack.c.b16 %v854, %v852
      %v1067 = vpack.c.b16 %v855, %v853
      %v1068 = vpack.c.b16 %v858, %v856
      %v1069 = vpack.c.b16 %v859, %v857
      %v1070 = vpack.c.b16 %v862, %v860
      %v1071 = vpack.c.b16 %v863, %v861
      %v1072 = vpack.c.b16 %v866, %v864
      %v1073 = vpack.c.b16 %v867, %v865
      %v1074 = vpack.c.b16 %v870, %v868
      %v1075 = vpack.c.b16 %v871, %v869
      %v1076 = vpack.c.b16 %v874, %v872
      %v1077 = vpack.c.b16 %v875, %v873
      %v1078 = vpack.c.b16 %v878, %v876
      %v1079 = vpack.c.b16 %v879, %v877
      %v1080 = vpack.c.b16 %v882, %v880
      %v1081 = vpack.c.b16 %v883, %v881
      %v1082 = vpack.c.b16 %v886, %v884
      %v1083 = vpack.c.b16 %v887, %v885
      %v1084 = vpack.c.b16 %v890, %v888
      %v1085 = vpack.c.b16 %v891, %v889
      %v1086 = vpack.c.b16 %v894, %v892
      %v1087 = vpack.c.b16 %v895, %v893
      %v1088 = vpack.c.b16 %v898, %v896
      %v1089 = vpack.c.b16 %v899, %v897
      %v1090 = vpack.c.b16 %v902, %v900
      %v1091 = vpack.c.b16 %v903, %v901
      %v1092 = vpack.c.b16 %v906, %v904
      %v1093 = vpack.c.b16 %v907, %v905
      %v1094 = vpack.c.b16 %v910, %v908
      %v1095 = vpack.c.b16 %v911, %v909
      %v1096 = vpack.c.b16 %v914, %v912
      %v1097 = vpack.c.b16 %v915, %v913
      %v1098 = vpack.c.b16 %v918, %v916
      %v1099 = vpack.c.b16 %v919, %v917
      %v1100 = vpack.c.b16 %v922, %v920
      %v1101 = vpack.c.b16 %v923, %v921
      %v1102 = vpack.c.b16 %v926, %v924
      %v1103 = vpack.c.b16 %v927, %v925
      %v1104 = vpack.c.b16 %v930, %v928
      %v1105 = vpack.c.b16 %v931, %v929
      %v1106 = vpack.c.b16 %v934, %v932
      %v1107 = vpack.c.b16 %v935, %v933
      %v1108 = vpack.c.b16 %v938, %v936
      %v1109 = vpack.c.b16 %v939, %v937
      %v1110 = vpack.c.b16 %v942, %v940
      %v1111 = vpack.c.b16 %v943, %v941
      %v1112 = vpack.c.b16 %v946, %v944
      %v1113 = vpack.c.b16 %v947, %v945
      %v1114 = vpack.c.b16 %v950, %v948
      %v1115 = vpack.c.b16 %v951, %v949
      %v1116 = vpack.c.b16 %v954, %v952
      %v1117 = vpack.c.b16 %v955, %v953
      %v1118 = vpack.c.b16 %v958, %v956
      %v1119 = vpack.c.b16 %v959, %v957
      %v1120 = vpack.c.b16 %v962, %v960
      %v1121 = vpack.c.b16 %v963, %v961
      %v1122 = vpack.c.b16 %v966, %v964
      %v1123 = vpack.c.b16 %v967, %v965
      %v1124 = vpack.c.b16 %v970, %v968
      %v1125 = vpack.c.b16 %v971, %v969
      %v1126 = vpack.c.b16 %v974, %v972
      %v1127 = vpack.c.b16 %v975, %v973
      %v1128 = vpack.c.b16 %v978, %v976
      %v1129 = vpack.c.b16 %v979, %v977
      %v1130 = vpack.c.b16 %v982, %v980
      %v1131 = vpack.c.b16 %v983, %v981
      %v1132 = vpack.c.b16 %v986, %v984
      %v1133 = vpack.c.b16 %v987, %v985
      %v1134 = vpack.c.b16 %v990, %v988
      %v1135 = vpack.c.b16 %v991, %v989
      %1280 = vmatprep.subr.bf16.mxu0 %v1007
      %1281 = vmatpush1.bf16.msra.mxu0 %v1006
      %1282 = vmatprep.subr.bf16.mxu0 %v1005
      %1283 = vmatpush1.bf16.msra.mxu0 %v1004
      %1284 = vmatprep.subr.bf16.mxu0 %v1003
      %1285 = vmatpush1.bf16.msra.mxu0 %v1002
      %1286 = vmatprep.subr.bf16.mxu0 %v1001
      %1287 = vmatpush1.bf16.msra.mxu0 %v1000
      %1288 = vmatprep.subr.bf16.mxu0 %v999
      %1289 = vmatpush1.bf16.msra.mxu0 %v998
      %1290 = vmatprep.subr.bf16.mxu0 %v997
      %1291 = vmatpush1.bf16.msra.mxu0 %v996
      %1292 = vmatprep.subr.bf16.mxu0 %v995
      %1293 = vmatpush1.bf16.msra.mxu0 %v994
      %1294 = vmatprep.subr.bf16.mxu0 %v993
      %1295 = vmatpush1.bf16.msra.mxu0 %v992
      %1296 = vmatprep.subr.bf16.mxu0 %v1023
      %1297 = vmatpush2.bf16.msra.mxu0 %v1022
      %1298 = vmatprep.subr.bf16.mxu0 %v1021
      %1299 = vmatpush2.bf16.msra.mxu0 %v1020
      %1300 = vmatprep.subr.bf16.mxu0 %v1019
      %1301 = vmatpush2.bf16.msra.mxu0 %v1018
      %1302 = vmatprep.subr.bf16.mxu0 %v1017
      %1303 = vmatpush2.bf16.msra.mxu0 %v1016
      %1304 = vmatprep.subr.bf16.mxu0 %v1015
      %1305 = vmatpush2.bf16.msra.mxu0 %v1014
      %1306 = vmatprep.subr.bf16.mxu0 %v1013
      %1307 = vmatpush2.bf16.msra.mxu0 %v1012
      %1308 = vmatprep.subr.bf16.mxu0 %v1011
      %1309 = vmatpush2.bf16.msra.mxu0 %v1010
      %1310 = vmatprep.subr.bf16.mxu0 %v1009
      %1311 = vmatpush2.bf16.msra.mxu0 %v1008
      %1312 = vmatprep.mubr.bf16.mxu0 %v489
      %1313 = vmatmul.mubr.bf16.gmra.mxu0 %v488
      %v1314 = vpop.f32.mrf.mxu0
      %v1315 = vadd.f32 %v369, %v1314
      %v1316 = vpop.f32.mrf.mxu0
      %v1317 = vadd.f32 %v373, %v1316
      %v1318 = vpop.f32.mrf.mxu0
      %v1319 = vadd.f32 %v369, %v1318
      %v1320 = vpop.f32.mrf.mxu0
      %v1321 = vadd.f32 %v373, %v1320
      %1322 = vmatprep.mubr.bf16.mxu0 %v498
      %1323 = vmatmul.mubr.bf16.gmra.mxu0 %v497
      %v1324 = vpop.f32.mrf.mxu0
      %v1325 = vadd.f32 %v369, %v1324
      %v1326 = vpop.f32.mrf.mxu0
      %v1327 = vadd.f32 %v373, %v1326
      %v1328 = vpop.f32.mrf.mxu0
      %v1329 = vadd.f32 %v369, %v1328
      %v1330 = vpop.f32.mrf.mxu0
      %v1331 = vadd.f32 %v373, %v1330
      %1332 = vmatprep.mubr.bf16.mxu0 %v507
      %1333 = vmatmul.mubr.bf16.gmra.mxu0 %v506
      %v1334 = vpop.f32.mrf.mxu0
      %v1335 = vadd.f32 %v369, %v1334
      %v1336 = vpop.f32.mrf.mxu0
      %v1337 = vadd.f32 %v373, %v1336
      %v1338 = vpop.f32.mrf.mxu0
      %v1339 = vadd.f32 %v369, %v1338
      %v1340 = vpop.f32.mrf.mxu0
      %v1341 = vadd.f32 %v373, %v1340
      %1342 = vmatprep.mubr.bf16.mxu0 %v516
      %1343 = vmatmul.mubr.bf16.gmra.mxu0 %v515
      %v1344 = vpop.f32.mrf.mxu0
      %v1345 = vadd.f32 %v369, %v1344
      %v1346 = vpop.f32.mrf.mxu0
      %v1347 = vadd.f32 %v373, %v1346
      %v1348 = vpop.f32.mrf.mxu0
      %v1349 = vadd.f32 %v369, %v1348
      %v1350 = vpop.f32.mrf.mxu0
      %v1351 = vadd.f32 %v373, %v1350
      %1352 = vdwg.mxu0
      %1353 = vmatprep.subr.bf16.mxu0 %v1039
      %1354 = vmatpush1.bf16.msra.mxu0 %v1038
      %1355 = vmatprep.subr.bf16.mxu0 %v1037
      %1356 = vmatpush1.bf16.msra.mxu0 %v1036
      %1357 = vmatprep.subr.bf16.mxu0 %v1035
      %1358 = vmatpush1.bf16.msra.mxu0 %v1034
      %1359 = vmatprep.subr.bf16.mxu0 %v1033
      %1360 = vmatpush1.bf16.msra.mxu0 %v1032
      %1361 = vmatprep.subr.bf16.mxu0 %v1031
      %1362 = vmatpush1.bf16.msra.mxu0 %v1030
      %1363 = vmatprep.subr.bf16.mxu0 %v1029
      %1364 = vmatpush1.bf16.msra.mxu0 %v1028
      %1365 = vmatprep.subr.bf16.mxu0 %v1027
      %1366 = vmatpush1.bf16.msra.mxu0 %v1026
      %1367 = vmatprep.subr.bf16.mxu0 %v1025
      %1368 = vmatpush1.bf16.msra.mxu0 %v1024
      %1369 = vmatprep.subr.bf16.mxu0 %v1055
      %1370 = vmatpush2.bf16.msra.mxu0 %v1054
      %1371 = vmatprep.subr.bf16.mxu0 %v1053
      %1372 = vmatpush2.bf16.msra.mxu0 %v1052
      %1373 = vmatprep.subr.bf16.mxu0 %v1051
      %1374 = vmatpush2.bf16.msra.mxu0 %v1050
      %1375 = vmatprep.subr.bf16.mxu0 %v1049
      %1376 = vmatpush2.bf16.msra.mxu0 %v1048
      %1377 = vmatprep.subr.bf16.mxu0 %v1047
      %1378 = vmatpush2.bf16.msra.mxu0 %v1046
      %1379 = vmatprep.subr.bf16.mxu0 %v1045
      %1380 = vmatpush2.bf16.msra.mxu0 %v1044
      %1381 = vmatprep.subr.bf16.mxu0 %v1043
      %1382 = vmatpush2.bf16.msra.mxu0 %v1042
      %1383 = vmatprep.subr.bf16.mxu0 %v1041
      %1384 = vmatpush2.bf16.msra.mxu0 %v1040
      %1385 = vmatprep.mubr.bf16.mxu0 %v491
      %1386 = vmatmul.mubr.bf16.gmra.mxu0 %v490
      %v1387 = vpop.f32.mrf.mxu0
      %v1388 = vadd.f32 %v1315, %v1387
      %v1389 = vpop.f32.mrf.mxu0
      %v1390 = vadd.f32 %v1317, %v1389
      %v1391 = vpop.f32.mrf.mxu0
      %v1392 = vadd.f32 %v1319, %v1391
      %v1393 = vpop.f32.mrf.mxu0
      %v1394 = vadd.f32 %v1321, %v1393
      %1395 = vmatprep.mubr.bf16.mxu0 %v500
      %1396 = vmatmul.mubr.bf16.gmra.mxu0 %v499
      %v1397 = vpop.f32.mrf.mxu0
      %v1398 = vadd.f32 %v1325, %v1397
      %v1399 = vpop.f32.mrf.mxu0
      %v1400 = vadd.f32 %v1327, %v1399
      %v1401 = vpop.f32.mrf.mxu0
      %v1402 = vadd.f32 %v1329, %v1401
      %v1403 = vpop.f32.mrf.mxu0
      %v1404 = vadd.f32 %v1331, %v1403
      %1405 = vmatprep.mubr.bf16.mxu0 %v509
      %1406 = vmatmul.mubr.bf16.gmra.mxu0 %v508
      %v1407 = vpop.f32.mrf.mxu0
      %v1408 = vadd.f32 %v1335, %v1407
      %v1409 = vpop.f32.mrf.mxu0
      %v1410 = vadd.f32 %v1337, %v1409
      %v1411 = vpop.f32.mrf.mxu0
      %v1412 = vadd.f32 %v1339, %v1411
      %v1413 = vpop.f32.mrf.mxu0
      %v1414 = vadd.f32 %v1341, %v1413
      %1415 = vmatprep.mubr.bf16.mxu0 %v518
      %1416 = vmatmul.mubr.bf16.gmra.mxu0 %v517
      %v1417 = vpop.f32.mrf.mxu0
      %v1418 = vadd.f32 %v1345, %v1417
      %v1419 = vpop.f32.mrf.mxu0
      %v1420 = vadd.f32 %v1347, %v1419
      %v1421 = vpop.f32.mrf.mxu0
      %v1422 = vadd.f32 %v1349, %v1421
      %v1423 = vpop.f32.mrf.mxu0
      %v1424 = vadd.f32 %v1351, %v1423
      %1425 = vdwg.mxu0
      %1426 = vmatprep.subr.bf16.mxu0 %v1071
      %1427 = vmatpush1.bf16.msra.mxu0 %v1070
      %1428 = vmatprep.subr.bf16.mxu0 %v1069
      %1429 = vmatpush1.bf16.msra.mxu0 %v1068
      %1430 = vmatprep.subr.bf16.mxu0 %v1067
      %1431 = vmatpush1.bf16.msra.mxu0 %v1066
      %1432 = vmatprep.subr.bf16.mxu0 %v1065
      %1433 = vmatpush1.bf16.msra.mxu0 %v1064
      %1434 = vmatprep.subr.bf16.mxu0 %v1063
      %1435 = vmatpush1.bf16.msra.mxu0 %v1062
      %1436 = vmatprep.subr.bf16.mxu0 %v1061
      %1437 = vmatpush1.bf16.msra.mxu0 %v1060
      %1438 = vmatprep.subr.bf16.mxu0 %v1059
      %1439 = vmatpush1.bf16.msra.mxu0 %v1058
      %1440 = vmatprep.subr.bf16.mxu0 %v1057
      %1441 = vmatpush1.bf16.msra.mxu0 %v1056
      %1442 = vmatprep.subr.bf16.mxu0 %v1087
      %1443 = vmatpush2.bf16.msra.mxu0 %v1086
      %1444 = vmatprep.subr.bf16.mxu0 %v1085
      %1445 = vmatpush2.bf16.msra.mxu0 %v1084
      %1446 = vmatprep.subr.bf16.mxu0 %v1083
      %1447 = vmatpush2.bf16.msra.mxu0 %v1082
      %1448 = vmatprep.subr.bf16.mxu0 %v1081
      %1449 = vmatpush2.bf16.msra.mxu0 %v1080
      %1450 = vmatprep.subr.bf16.mxu0 %v1079
      %1451 = vmatpush2.bf16.msra.mxu0 %v1078
      %1452 = vmatprep.subr.bf16.mxu0 %v1077
      %1453 = vmatpush2.bf16.msra.mxu0 %v1076
      %1454 = vmatprep.subr.bf16.mxu0 %v1075
      %1455 = vmatpush2.bf16.msra.mxu0 %v1074
      %1456 = vmatprep.subr.bf16.mxu0 %v1073
      %1457 = vmatpush2.bf16.msra.mxu0 %v1072
      %1458 = vmatprep.mubr.bf16.mxu0 %v493
      %1459 = vmatmul.mubr.bf16.gmra.mxu0 %v492
      %v1460 = vpop.f32.mrf.mxu0
      %v1461 = vadd.f32 %v1388, %v1460
      %v1462 = vpop.f32.mrf.mxu0
      %v1463 = vadd.f32 %v1390, %v1462
      %v1464 = vpop.f32.mrf.mxu0
      %v1465 = vadd.f32 %v1392, %v1464
      %v1466 = vpop.f32.mrf.mxu0
      %v1467 = vadd.f32 %v1394, %v1466
      %1468 = vmatprep.mubr.bf16.mxu0 %v502
      %1469 = vmatmul.mubr.bf16.gmra.mxu0 %v501
      %v1470 = vpop.f32.mrf.mxu0
      %v1471 = vadd.f32 %v1398, %v1470
      %v1472 = vpop.f32.mrf.mxu0
      %v1473 = vadd.f32 %v1400, %v1472
      %v1474 = vpop.f32.mrf.mxu0
      %v1475 = vadd.f32 %v1402, %v1474
      %v1476 = vpop.f32.mrf.mxu0
      %v1477 = vadd.f32 %v1404, %v1476
      %1478 = vmatprep.mubr.bf16.mxu0 %v511
      %1479 = vmatmul.mubr.bf16.gmra.mxu0 %v510
      %v1480 = vpop.f32.mrf.mxu0
      %v1481 = vadd.f32 %v1408, %v1480
      %v1482 = vpop.f32.mrf.mxu0
      %v1483 = vadd.f32 %v1410, %v1482
      %v1484 = vpop.f32.mrf.mxu0
      %v1485 = vadd.f32 %v1412, %v1484
      %v1486 = vpop.f32.mrf.mxu0
      %v1487 = vadd.f32 %v1414, %v1486
      %1488 = vmatprep.mubr.bf16.mxu0 %v520
      %1489 = vmatmul.mubr.bf16.gmra.mxu0 %v519
      %v1490 = vpop.f32.mrf.mxu0
      %v1491 = vadd.f32 %v1418, %v1490
      %v1492 = vpop.f32.mrf.mxu0
      %v1493 = vadd.f32 %v1420, %v1492
      %v1494 = vpop.f32.mrf.mxu0
      %v1495 = vadd.f32 %v1422, %v1494
      %v1496 = vpop.f32.mrf.mxu0
      %v1497 = vadd.f32 %v1424, %v1496
      %1498 = vdwg.mxu0
      %1499 = vmatprep.subr.bf16.mxu0 %v1103
      %1500 = vmatpush1.bf16.msra.mxu0 %v1102
      %1501 = vmatprep.subr.bf16.mxu0 %v1101
      %1502 = vmatpush1.bf16.msra.mxu0 %v1100
      %1503 = vmatprep.subr.bf16.mxu0 %v1099
      %1504 = vmatpush1.bf16.msra.mxu0 %v1098
      %1505 = vmatprep.subr.bf16.mxu0 %v1097
      %1506 = vmatpush1.bf16.msra.mxu0 %v1096
      %1507 = vmatprep.subr.bf16.mxu0 %v1095
      %1508 = vmatpush1.bf16.msra.mxu0 %v1094
      %1509 = vmatprep.subr.bf16.mxu0 %v1093
      %1510 = vmatpush1.bf16.msra.mxu0 %v1092
      %1511 = vmatprep.subr.bf16.mxu0 %v1091
      %1512 = vmatpush1.bf16.msra.mxu0 %v1090
      %1513 = vmatprep.subr.bf16.mxu0 %v1089
      %1514 = vmatpush1.bf16.msra.mxu0 %v1088
      %1515 = vmatprep.subr.bf16.mxu0 %v1119
      %1516 = vmatpush2.bf16.msra.mxu0 %v1118
      %1517 = vmatprep.subr.bf16.mxu0 %v1117
      %1518 = vmatpush2.bf16.msra.mxu0 %v1116
      %1519 = vmatprep.subr.bf16.mxu0 %v1115
      %1520 = vmatpush2.bf16.msra.mxu0 %v1114
      %1521 = vmatprep.subr.bf16.mxu0 %v1113
      %1522 = vmatpush2.bf16.msra.mxu0 %v1112
      %1523 = vmatprep.subr.bf16.mxu0 %v1111
      %1524 = vmatpush2.bf16.msra.mxu0 %v1110
      %1525 = vmatprep.subr.bf16.mxu0 %v1109
      %1526 = vmatpush2.bf16.msra.mxu0 %v1108
      %1527 = vmatprep.subr.bf16.mxu0 %v1107
      %1528 = vmatpush2.bf16.msra.mxu0 %v1106
      %1529 = vmatprep.subr.bf16.mxu0 %v1105
      %1530 = vmatpush2.bf16.msra.mxu0 %v1104
      %1531 = vmatprep.mubr.bf16.mxu0 %v495
      %1532 = vmatmul.mubr.bf16.gmra.mxu0 %v494
      %v1533 = vpop.f32.mrf.mxu0
      %v1534 = vadd.f32 %v1461, %v1533
      %v1535 = vpop.f32.mrf.mxu0
      %v1536 = vadd.f32 %v1463, %v1535
      %v1537 = vpop.f32.mrf.mxu0
      %v1538 = vadd.f32 %v1465, %v1537
      %v1539 = vpop.f32.mrf.mxu0
      %v1540 = vadd.f32 %v1467, %v1539
      %1541 = vmatprep.mubr.bf16.mxu0 %v504
      %1542 = vmatmul.mubr.bf16.gmra.mxu0 %v503
      %v1543 = vpop.f32.mrf.mxu0
      %v1544 = vadd.f32 %v1471, %v1543
      %v1545 = vpop.f32.mrf.mxu0
      %v1546 = vadd.f32 %v1473, %v1545
      %v1547 = vpop.f32.mrf.mxu0
      %v1548 = vadd.f32 %v1475, %v1547
      %v1549 = vpop.f32.mrf.mxu0
      %v1550 = vadd.f32 %v1477, %v1549
      %1551 = vmatprep.mubr.bf16.mxu0 %v513
      %1552 = vmatmul.mubr.bf16.gmra.mxu0 %v512
      %v1553 = vpop.f32.mrf.mxu0
      %v1554 = vadd.f32 %v1481, %v1553
      %v1555 = vpop.f32.mrf.mxu0
      %v1556 = vadd.f32 %v1483, %v1555
      %v1557 = vpop.f32.mrf.mxu0
      %v1558 = vadd.f32 %v1485, %v1557
      %v1559 = vpop.f32.mrf.mxu0
      %v1560 = vadd.f32 %v1487, %v1559
      %1561 = vmatprep.mubr.bf16.mxu0 %v522
      %1562 = vmatmul.mubr.bf16.gmra.mxu0 %v521
      %v1563 = vpop.f32.mrf.mxu0
      %v1564 = vadd.f32 %v1491, %v1563
      %v1565 = vpop.f32.mrf.mxu0
      %v1566 = vadd.f32 %v1493, %v1565
      %v1567 = vpop.f32.mrf.mxu0
      %v1568 = vadd.f32 %v1495, %v1567
      %v1569 = vpop.f32.mrf.mxu0
      %v1570 = vadd.f32 %v1497, %v1569
      %1571 = vdwg.mxu0
      %1572 = vmatprep.subr.bf16.mxu0 %v1135
      %1573 = vmatpush1.bf16.msra.mxu0 %v1134
      %1574 = vmatprep.subr.bf16.mxu0 %v1133
      %1575 = vmatpush1.bf16.msra.mxu0 %v1132
      %1576 = vmatprep.subr.bf16.mxu0 %v1131
      %1577 = vmatpush1.bf16.msra.mxu0 %v1130
      %1578 = vmatprep.subr.bf16.mxu0 %v1129
      %1579 = vmatpush1.bf16.msra.mxu0 %v1128
      %1580 = vmatprep.subr.bf16.mxu0 %v1127
      %1581 = vmatpush1.bf16.msra.mxu0 %v1126
      %1582 = vmatprep.subr.bf16.mxu0 %v1125
      %1583 = vmatpush1.bf16.msra.mxu0 %v1124
      %1584 = vmatprep.subr.bf16.mxu0 %v1123
      %1585 = vmatpush1.bf16.msra.mxu0 %v1122
      %1586 = vmatprep.subr.bf16.mxu0 %v1121
      %1587 = vmatpush1.bf16.msra.mxu0 %v1120
      %1588 = vmatprep.subr.bf16.mxu0 0
      %1589 = vmatpush2.bf16.msra.mxu0 0
      %1590 = vmatprep.subr.bf16.mxu0 0
      %1591 = vmatpush2.bf16.msra.mxu0 0
      %1592 = vmatprep.subr.bf16.mxu0 0
      %1593 = vmatpush2.bf16.msra.mxu0 0
      %1594 = vmatprep.subr.bf16.mxu0 0
      %1595 = vmatpush2.bf16.msra.mxu0 0
      %1596 = vmatprep.subr.bf16.mxu0 0
      %1597 = vmatpush2.bf16.msra.mxu0 0
      %1598 = vmatprep.subr.bf16.mxu0 0
      %1599 = vmatpush2.bf16.msra.mxu0 0
      %1600 = vmatprep.subr.bf16.mxu0 0
      %1601 = vmatpush2.bf16.msra.mxu0 0
      %1602 = vmatprep.subr.bf16.mxu0 0
      %1603 = vmatpush2.bf16.msra.mxu0 0
      %1604 = vmatprep.mubr.bf16.mxu0 0
      %1605 = vmatmul.mubr.bf16.gmra.mxu0 %v496
      %v1606 = vpop.f32.mrf.mxu0
      %v1607 = vadd.f32 %v1534, %v1606
      %v1608 = vpop.f32.mrf.mxu0
      %v1609 = vadd.f32 %v1536, %v1608
      %v1610 = vpop.f32.mrf.mxu0
      %v1611 = vadd.f32 %v1538, %v1610
      %v1612 = vpop.f32.mrf.mxu0
      %v1613 = vadd.f32 %v1540, %v1612
      %1614 = vmatprep.mubr.bf16.mxu0 0
      %1615 = vmatmul.mubr.bf16.gmra.mxu0 %v505
      %v1616 = vpop.f32.mrf.mxu0
      %v1617 = vadd.f32 %v1544, %v1616
      %v1618 = vpop.f32.mrf.mxu0
      %v1619 = vadd.f32 %v1546, %v1618
      %v1620 = vpop.f32.mrf.mxu0
      %v1621 = vadd.f32 %v1548, %v1620
      %v1622 = vpop.f32.mrf.mxu0
      %v1623 = vadd.f32 %v1550, %v1622
      %1624 = vmatprep.mubr.bf16.mxu0 0
      %1625 = vmatmul.mubr.bf16.gmra.mxu0 %v514
      %v1626 = vpop.f32.mrf.mxu0
      %v1627 = vadd.f32 %v1554, %v1626
      %v1628 = vpop.f32.mrf.mxu0
      %v1629 = vadd.f32 %v1556, %v1628
      %v1630 = vpop.f32.mrf.mxu0
      %v1631 = vadd.f32 %v1558, %v1630
      %v1632 = vpop.f32.mrf.mxu0
      %v1633 = vadd.f32 %v1560, %v1632
      %1634 = vmatprep.mubr.bf16.mxu0 0
      %1635 = vmatmul.mubr.bf16.gmra.mxu0 %v523
      %v1636 = vpop.f32.mrf.mxu0
      %v1637 = vadd.f32 %v1564, %v1636
      %v1638 = vpop.f32.mrf.mxu0
      %v1639 = vadd.f32 %v1566, %v1638
      %v1640 = vpop.f32.mrf.mxu0
      %v1641 = vadd.f32 %v1568, %v1640
      %v1642 = vpop.f32.mrf.mxu0
      %v1643 = vadd.f32 %v1570, %v1642
      %1644 = vdwg.mxu0
      %v1645 = vmax.f32 %v1607, 0.0
      %v1646 = vmax.f32 %v1609, 0.0
      %v1647 = vmax.f32 %v1611, 0.0
      %v1648 = vmax.f32 %v1613, 0.0
      %v1649 = vmax.f32 %v1617, 0.0
      %v1650 = vmax.f32 %v1619, 0.0
      %v1651 = vmax.f32 %v1621, 0.0
      %v1652 = vmax.f32 %v1623, 0.0
      %v1653 = vmax.f32 %v1627, 0.0
      %v1654 = vmax.f32 %v1629, 0.0
      %v1655 = vmax.f32 %v1631, 0.0
      %v1656 = vmax.f32 %v1633, 0.0
      %v1657 = vmax.f32 %v1637, 0.0
      %v1658 = vmax.f32 %v1639, 0.0
      %v1659 = vmax.f32 %v1641, 0.0
      %v1660 = vmax.f32 %v1643, 0.0
      %v1661 = vpack.c.bf16 %v1647, %v1645
      %v1662 = vpack.c.bf16 %v1648, %v1646
      %v1663 = vpack.c.bf16 %v1651, %v1649
      %v1664 = vpack.c.bf16 %v1652, %v1650
      %v1665 = vpack.c.bf16 %v1655, %v1653
      %v1666 = vpack.c.bf16 %v1656, %v1654
      %v1667 = vpack.c.bf16 %v1659, %v1657
      %v1668 = vpack.c.bf16 %v1660, %v1658
      %v1677 = vunpack.c.l.b16 %v1661
      %v1678 = vunpack.c.l.b16 %v1662
      %v1679 = vunpack.c.h.b16 %v1661
      %v1680 = vunpack.c.h.b16 %v1662
      %v1681 = vunpack.c.l.b16 %v1663
      %v1682 = vunpack.c.l.b16 %v1664
      %v1683 = vunpack.c.h.b16 %v1663
      %v1684 = vunpack.c.h.b16 %v1664
      %v1685 = vunpack.c.l.b16 %v1665
      %v1686 = vunpack.c.l.b16 %v1666
      %v1687 = vunpack.c.h.b16 %v1665
      %v1688 = vunpack.c.h.b16 %v1666
      %v1689 = vunpack.c.l.b16 %v1667
      %v1690 = vunpack.c.l.b16 %v1668
      %v1691 = vunpack.c.h.b16 %v1667
      %v1692 = vunpack.c.h.b16 %v1668
      %v1693 = vpack.c.b16 %v1678, %v1677
      %v1694 = vpack.c.b16 %v1680, %v1679
      %v1695 = vpack.c.b16 %v1682, %v1681
      %v1696 = vpack.c.b16 %v1684, %v1683
      %v1697 = vpack.c.b16 %v1686, %v1685
      %v1698 = vpack.c.b16 %v1688, %v1687
      %v1699 = vpack.c.b16 %v1690, %v1689
      %v1700 = vpack.c.b16 %v1692, %v1691
      %1709 = vst [vmem:[%s177] sm:$0xff] %v1693
      %1710 = vst [vmem:[%s177 + $0x8] sm:$0xff] %v1694
      %1711 = vst [vmem:[%s177 + $0x10] sm:$0xff] %v1695
      %1712 = vst [vmem:[%s177 + $0x18] sm:$0xff] %v1696
      %1713 = vst [vmem:[%s177 + $0x20] sm:$0xff] %v1697
      %1714 = vst [vmem:[%s177 + $0x28] sm:$0xff] %v1698
      %1715 = vst [vmem:[%s177 + $0x30] sm:$0xff] %v1699
      %1716 = vst [vmem:[%s177 + $0x38] sm:$0xff] %v1700
      %s1717 = smul.u32 8, %s14
      %p1718 = scmp.lt.s32.totalorder %s1717, 15
      %s1719 = scalar_select %p1718, %s1717, 15
      %s1720 = smul.addr %s1719, 2
      %s1721 = smul.addr %s1720, 4
      %s1722 = scalar_lea.vmem %s3, %s1721
      // Predicated region
      $region33: #{stem_v4_res2.16} parent=31 // pred_check
        %p1723 = pneg %p100
      $region34: #{stem_v4_res2.16} parent=31 // pred_check_branch
        %1725 = sbr.rel (%p1723) target = $region36
      $region35: #{stem_v4_res2.16} parent=31 // pred_region
        %s1726 = smul.u32 8, %s14
      $region36: #{stem_v4_res2.16} parent=31 // pred_fallthru
        _
    $region32: #{stem_v4_res2.16} parent=5 // pred_fallthru
      _
    %p1727 = scmp.le.s32.totalorder 2, %s9
    // Predicated region
    $region37: #{stem_v4_res2.16} parent=5 // pred_check
      %p1728 = pneg %p1727
    $region38: #{stem_v4_res2.16} parent=5 // pred_check_branch
      %1730 = sbr.rel (%p1728) target = $region40
    $region39: #{stem_v4_res2.16} parent=5 // pred_region
      %s1731 = ssub.s32 %s9, 2
      // Predicated region
      $region41: #{stem_v4_res2.16} parent=39 // pred_check
        %p1732 = pneg %p106
      $region42: #{stem_v4_res2.16} parent=39 // pred_check_branch
        %1734 = sbr.rel (%p1732) target = $region44
      $region43: #{stem_v4_res2.16} parent=39 // pred_region
        %s1735 = smul.u32 8, %s15
        %p1736 = scmp.lt.s32.totalorder %s1735, 15
        %s1737 = scalar_select %p1736, %s1735, 15
        %s1738 = smul.addr %s1737, 2
        %s1739 = smul.addr %s1738, 4
        %s1740 = scalar_lea.vmem %s3, %s1739
      $region44: #{stem_v4_res2.16} parent=39 // pred_fallthru
        _
    $region40: #{stem_v4_res2.16} parent=5 // pred_fallthru
      _
  $region6: #{stem_v4_res2.16} parent=0 // loop_footer
    %s13 = sadd.s32 1, %s9
  $region7: #{stem_v4_res2.16} parent=0 // loop_footer_branch
    %8 = sbr.rel target = $region3
  $region8: #{stem_v4_res2.16} parent=0 // loop_exit
    _

// kernel: stem_v4_res2.17
$region0: #{stem_v4_res2.17}
  #allocation0 [shape = 'u32[]', space=smem, size = 0x4, offset = 0x4, fixed_abs, tag = 'smem constant byte address 0x4 - core index']
  #allocation1 [shape = 'u32[144,128]{1,0:T(1,128)}', space=vmem, size = 0x12000, scoped, tag = 'internal scratch']
  %s0 = inlined_call_operand.vmem [shape: bf16[32,1728], index: 0, kind: input, shape index: {}]
  %s1 = inlined_call_operand.vmem [shape: bf16[1728,192], index: 1, kind: input, shape index: {}]
  %s2 = inlined_call_operand.vmem [shape: f32[1,192], index: 2, kind: input, shape index: {}]
  %s3 = inlined_call_operand.vmem [shape: bf16[32,384], index: 3, kind: output, shape index: {}]
  %s4 = sld [smem:[#allocation0]]
  $region45: #{stem_v4_res2.17} parent=0
    _
  %s6 = ssub.s32 1, %s4
  %s7 = scalar_select 0, %s6, %s4
  loop: start=0, step=1, limit=4
  $region2: #{stem_v4_res2.17} parent=0 // loop_pre_header
    _
  $region3: #{stem_v4_res2.17} parent=0 // loop_header
    %s9 = sphi 0, %s13
    %p10 = scmp.ge.s32.totalorder %s9, 4
    %s19 = sphi 0, %s21
    %s22 = sphi 0, %s19
    %s23 = sphi 0, %s22
    %s39 = sphi 0, %s23
    %s43 = sphi 0, %s43
    %s45 = sphi 0, %s43
    %s46 = sphi 0, %s45
    %s60 = sphi 0, %s46
    %s64 = sphi 0, %s64
    %s66 = sphi 0, %s64
    %s67 = sphi 0, %s66
    %s81 = sphi 0, %s67
    %s87 = sphi 0, %s89
    %s90 = sphi 0, %s87
    %s91 = sphi 0, %s90
    %s107 = sphi 0, %s91
  $region4: #{stem_v4_res2.17} parent=0 // loop_header_branch
    %12 = sbr.rel (%p10) target = $region8
  $region5: #{stem_v4_res2.17} parent=0 // loop_body
    %s14 = ssub.s32 %s9, 1
    %s15 = ssub.s32 %s9, 2
    %s16 = sadd.s32 %s9, 1
    %s17 = ssub.s32 %s9, %s16
    %p18 = scmp.eq.s32.totalorder %s17, 0
    %s20 = sadd.s32 %s19, 1
    %s21 = scalar_select %p18, %s19, %s20
    %p24 = pneg %p18
    %p25 = scmp.eq.s32.totalorder %s9, 1
    %p26 = por %p24, %p25
    %p27 = scmp.ne.s32.totalorder %s19, %s22
    %p28 = scmp.eq.s32.totalorder %s9, 0
    %p29 = por %p27, %p28
    %p30 = scmp.ne.s32.totalorder %s19, %s22
    %p31 = scmp.eq.s32.totalorder %s14, 1
    %p32 = por %p30, %p31
    %p33 = scmp.ne.s32.totalorder %s22, %s23
    %p34 = scmp.eq.s32.totalorder %s14, 0
    %p35 = por %p33, %p34
    %p36 = scmp.ne.s32.totalorder %s22, %s23
    %p37 = scmp.eq.s32.totalorder %s15, 1
    %p38 = por %p36, %p37
    %p40 = scmp.ne.s32.totalorder %s23, %s39
    %p41 = scmp.eq.s32.totalorder %s15, 0
    %p42 = por %p40, %p41
    %s44 = sadd.s32 %s43, 1
    %p47 = scmp.eq.s32.totalorder %s9, 1
    %p48 = scmp.ne.s32.totalorder %s43, %s45
    %p49 = scmp.eq.s32.totalorder %s9, 0
    %p50 = por %p48, %p49
    %p51 = scmp.ne.s32.totalorder %s43, %s45
    %p52 = scmp.eq.s32.totalorder %s14, 1
    %p53 = por %p51, %p52
    %p54 = scmp.ne.s32.totalorder %s45, %s46
    %p55 = scmp.eq.s32.totalorder %s14, 0
    %p56 = por %p54, %p55
    %p57 = scmp.ne.s32.totalorder %s45, %s46
    %p58 = scmp.eq.s32.totalorder %s15, 1
    %p59 = por %p57, %p58
    %p61 = scmp.ne.s32.totalorder %s46, %s60
    %p62 = scmp.eq.s32.totalorder %s15, 0
    %p63 = por %p61, %p62
    %s65 = sadd.s32 %s64, 1
    %p68 = scmp.eq.s32.totalorder %s9, 1
    %p69 = scmp.ne.s32.totalorder %s64, %s66
    %p70 = scmp.eq.s32.totalorder %s9, 0
    %p71 = por %p69, %p70
    %p72 = scmp.ne.s32.totalorder %s64, %s66
    %p73 = scmp.eq.s32.totalorder %s14, 1
    %p74 = por %p72, %p73
    %p75 = scmp.ne.s32.totalorder %s66, %s67
    %p76 = scmp.eq.s32.totalorder %s14, 0
    %p77 = por %p75, %p76
    %p78 = scmp.ne.s32.totalorder %s66, %s67
    %p79 = scmp.eq.s32.totalorder %s15, 1
    %p80 = por %p78, %p79
    %p82 = scmp.ne.s32.totalorder %s67, %s81
    %p83 = scmp.eq.s32.totalorder %s15, 0
    %p84 = por %p82, %p83
    %s85 = ssub.s32 %s9, %s16
    %p86 = scmp.eq.s32.totalorder %s85, 0
    %s88 = sadd.s32 %s87, 1
    %s89 = scalar_select %p86, %s87, %s88
    %p92 = pneg %p86
    %p93 = scmp.eq.s32.totalorder %s9, 1
    %p94 = por %p92, %p93
    %p95 = scmp.ne.s32.totalorder %s87, %s90
    %p96 = scmp.eq.s32.totalorder %s9, 0
    %p97 = por %p95, %p96
    %p98 = scmp.ne.s32.totalorder %s87, %s90
    %p99 = scmp.eq.s32.totalorder %s14, 1
    %p100 = por %p98, %p99
    %p101 = scmp.ne.s32.totalorder %s90, %s91
    %p102 = scmp.eq.s32.totalorder %s14, 0
    %p103 = por %p101, %p102
    %p104 = scmp.ne.s32.totalorder %s90, %s91
    %p105 = scmp.eq.s32.totalorder %s15, 1
    %p106 = por %p104, %p105
    %p108 = scmp.ne.s32.totalorder %s91, %s107
    %p109 = scmp.eq.s32.totalorder %s15, 0
    %p110 = por %p108, %p109
    %p111 = scmp.le.s32.totalorder 1, %s9
    %p112 = scmp.lt.s32.totalorder %s9, 3
    %p113 = pnand %p111, %p112
    %p114 = pneg %p113
    // Predicated region
    $region9: #{stem_v4_res2.17} parent=5 // pred_check
      _
    $region10: #{stem_v4_res2.17} parent=5 // pred_check_branch
      %116 = sbr.rel (%p113) target = $region12
    $region11: #{stem_v4_res2.17} parent=5 // pred_region
      %s117 = ssub.s32 %s9, 1
      // Predicated region
      $region13: #{stem_v4_res2.17} parent=11 // pred_check
        %p118 = pneg %p56
      $region14: #{stem_v4_res2.17} parent=11 // pred_check_branch
        %120 = sbr.rel (%p118) target = $region16
      $region15: #{stem_v4_res2.17} parent=11 // pred_region
        _
      $region16: #{stem_v4_res2.17} parent=11 // pred_fallthru
        _
      // Predicated region
      $region17: #{stem_v4_res2.17} parent=11 // pred_check
        %p121 = pneg %p77
      $region18: #{stem_v4_res2.17} parent=11 // pred_check_branch
        %123 = sbr.rel (%p121) target = $region20
      $region19: #{stem_v4_res2.17} parent=11 // pred_region
        _
      $region20: #{stem_v4_res2.17} parent=11 // pred_fallthru
        _
    $region12: #{stem_v4_res2.17} parent=5 // pred_fallthru
      _
    %p124 = scmp.lt.s32.totalorder %s9, 2
    // Predicated region
    $region21: #{stem_v4_res2.17} parent=5 // pred_check
      %p125 = pneg %p124
    $region22: #{stem_v4_res2.17} parent=5 // pred_check_branch
      %127 = sbr.rel (%p125) target = $region24
    $region23: #{stem_v4_res2.17} parent=5 // pred_region
      // Predicated region
      $region25: #{stem_v4_res2.17} parent=23 // pred_check
        %p128 = pneg %p29
      $region26: #{stem_v4_res2.17} parent=23 // pred_check_branch
        %130 = sbr.rel (%p128) target = $region28
      $region27: #{stem_v4_res2.17} parent=23 // pred_region
        %s131 = smul.u32 2, %s9
        %p132 = scmp.lt.s32.totalorder %s131, 3
        %s133 = scalar_select %p132, %s131, 3
        %s134 = smul.addr %s133, 14
        %s135 = smul.addr %s134, 4
        %s136 = scalar_lea.vmem %s0, %s135
        %s137 = smul.u32 2, %s9
      $region28: #{stem_v4_res2.17} parent=23 // pred_fallthru
        _
    $region24: #{stem_v4_res2.17} parent=5 // pred_fallthru
      _
    %p138 = scmp.le.s32.totalorder 1, %s9
    %p139 = scmp.lt.s32.totalorder %s9, 3
    %p140 = pnand %p138, %p139
    %p141 = pneg %p140
    // Predicated region
    $region29: #{stem_v4_res2.17} parent=5 // pred_check
      _
    $region30: #{stem_v4_res2.17} parent=5 // pred_check_branch
      %143 = sbr.rel (%p140) target = $region32
    $region31: #{stem_v4_res2.17} parent=5 // pred_region
      %s144 = ssub.s32 %s9, 1
      %s145 = smul.u32 2, %s14
      %p146 = scmp.lt.s32.totalorder %s145, 3
      %s147 = scalar_select %p146, %s145, 3
      %s148 = smul.addr %s147, 14
      %s149 = smul.addr %s148, 4
      %s150 = scalar_lea.vmem %s0, %s149
      %p151 = pneg %p35
      %p152 = pneg %p32
      %p153 = pneg %p56
      %p154 = pneg %p53
      %p155 = pneg %p77
      %p156 = pneg %p74
      %p157 = pneg %p103
      %p158 = pneg %p100
      %s159 = smul.u32 2, %s14
      %p160 = scmp.lt.s32.totalorder %s159, 3
      %s161 = scalar_select %p160, %s159, 3
      %s162 = smul.addr %s161, 3
      %s163 = smul.addr %s162, 4
      %s164 = scalar_lea.vmem %s3, %s163
      %s165 = smul.u32 2, %s14
      %p166 = scmp.lt.s32.totalorder %s165, 3
      %s167 = scalar_select %p166, %s165, 3
      %s168 = smul.addr %s167, 14
      %s169 = smul.addr %s168, 4
      %s170 = scalar_lea.vmem %s0, %s169
      %s171 = smul.u32 2, %s14
      %s172 = smul.u32 2, %s14
      %p173 = scmp.lt.s32.totalorder %s172, 3
      %s174 = scalar_select %p173, %s172, 3
      %s175 = smul.addr %s174, 3
      %s176 = smul.addr %s175, 4
      %s177 = scalar_lea.vmem %s3, %s176
      %s178 = smul.u32 2, %s14
      %v180 = vld [vmem:[%s170] sm:$0xff]
      %v181 = vld [vmem:[%s170 + $0x8] sm:$0xff]
      %v182 = vld [vmem:[%s170 + $0x10] sm:$0xff]
      %v183 = vld [vmem:[%s170 + $0x18] sm:$0xff]
      %v184 = vld [vmem:[%s170 + $0x20] sm:$0xff]
      %v185 = vld [vmem:[%s170 + $0x28] sm:$0xff]
      %v186 = vld [vmem:[%s170 + $0x30] sm:$0xff]
      %v187 = vld [vmem:[%s170 + $0x38] sm:$0xff]
      %v188 = vld [vmem:[%s170 + $0x40] sm:$0xff]
      %v189 = vld [vmem:[%s170 + $0x48] sm:$0xff]
      %v190 = vld [vmem:[%s170 + $0x50] sm:$0xff]
      %v191 = vld [vmem:[%s170 + $0x58] sm:$0xff]
      %v192 = vld [vmem:[%s170 + $0x60] sm:$0xff]
      %v193 = vld [vmem:[%s170 + $0x68] sm:$0xff]
      %v194 = vld [vmem:[%s1] sm:$0xff]
      %v195 = vld [vmem:[%s1 + $0x8] sm:$0xff]
      %v196 = vld [vmem:[%s1 + $0x10] sm:$0xff]
      %v197 = vld [vmem:[%s1 + $0x18] sm:$0xff]
      %v198 = vld [vmem:[%s1 + $0x20] sm:$0xff]
      %v199 = vld [vmem:[%s1 + $0x28] sm:$0xff]
      %v200 = vld [vmem:[%s1 + $0x30] sm:$0xff]
      %v201 = vld [vmem:[%s1 + $0x38] sm:$0xff]
      %v202 = vld [vmem:[%s1 + $0x40] sm:$0xff]
      %v203 = vld [vmem:[%s1 + $0x48] sm:$0xff]
      %v204 = vld [vmem:[%s1 + $0x50] sm:$0xff]
      %v205 = vld [vmem:[%s1 + $0x58] sm:$0xff]
      %v206 = vld [vmem:[%s1 + $0x60] sm:$0xff]
      %v207 = vld [vmem:[%s1 + $0x68] sm:$0xff]
      %v208 = vld [vmem:[%s1 + $0x70] sm:$0xff]
      %v209 = vld [vmem:[%s1 + $0x78] sm:$0xff]
      %v210 = vld [vmem:[%s1 + $0x80] sm:$0xff]
      %v211 = vld [vmem:[%s1 + $0x88] sm:$0xff]
      %v212 = vld [vmem:[%s1 + $0x90] sm:$0xff]
      %v213 = vld [vmem:[%s1 + $0x98] sm:$0xff]
      %v214 = vld [vmem:[%s1 + $0xa0] sm:$0xff]
      %v215 = vld [vmem:[%s1 + $0xa8] sm:$0xff]
      %v216 = vld [vmem:[%s1 + $0xb0] sm:$0xff]
      %v217 = vld [vmem:[%s1 + $0xb8] sm:$0xff]
      %v218 = vld [vmem:[%s1 + $0xc0] sm:$0xff]
      %v219 = vld [vmem:[%s1 + $0xc8] sm:$0xff]
      %v220 = vld [vmem:[%s1 + $0xd0] sm:$0xff]
      %v221 = vld [vmem:[%s1 + $0xd8] sm:$0xff]
      %v222 = vld [vmem:[%s1 + $0xe0] sm:$0xff]
      %v223 = vld [vmem:[%s1 + $0xe8] sm:$0xff]
      %v224 = vld [vmem:[%s1 + $0xf0] sm:$0xff]
      %v225 = vld [vmem:[%s1 + $0xf8] sm:$0xff]
      %v226 = vld [vmem:[%s1 + $0x100] sm:$0xff]
      %v227 = vld [vmem:[%s1 + $0x108] sm:$0xff]
      %v228 = vld [vmem:[%s1 + $0x110] sm:$0xff]
      %v229 = vld [vmem:[%s1 + $0x118] sm:$0xff]
      %v230 = vld [vmem:[%s1 + $0x120] sm:$0xff]
      %v231 = vld [vmem:[%s1 + $0x128] sm:$0xff]
      %v232 = vld [vmem:[%s1 + $0x130] sm:$0xff]
      %v233 = vld [vmem:[%s1 + $0x138] sm:$0xff]
      %v234 = vld [vmem:[%s1 + $0x140] sm:$0xff]
      %v235 = vld [vmem:[%s1 + $0x148] sm:$0xff]
      %v236 = vld [vmem:[%s1 + $0x150] sm:$0xff]
      %v237 = vld [vmem:[%s1 + $0x158] sm:$0xff]
      %v238 = vld [vmem:[%s1 + $0x160] sm:$0xff]
      %v239 = vld [vmem:[%s1 + $0x168] sm:$0xff]
      %v240 = vld [vmem:[%s1 + $0x170] sm:$0xff]
      %v241 = vld [vmem:[%s1 + $0x178] sm:$0xff]
      %v242 = vld [vmem:[%s1 + $0x180] sm:$0xff]
      %v243 = vld [vmem:[%s1 + $0x188] sm:$0xff]
      %v244 = vld [vmem:[%s1 + $0x190] sm:$0xff]
      %v245 = vld [vmem:[%s1 + $0x198] sm:$0xff]
      %v246 = vld [vmem:[%s1 + $0x1a0] sm:$0xff]
      %v247 = vld [vmem:[%s1 + $0x1a8] sm:$0xff]
      %v248 = vld [vmem:[%s1 + $0x1b0] sm:$0xff]
      %v249 = vld [vmem:[%s1 + $0x1b8] sm:$0xff]
      %v250 = vld [vmem:[%s1 + $0x1c0] sm:$0xff]
      %v251 = vld [vmem:[%s1 + $0x1c8] sm:$0xff]
      %v252 = vld [vmem:[%s1 + $0x1d0] sm:$0xff]
      %v253 = vld [vmem:[%s1 + $0x1d8] sm:$0xff]
      %v254 = vld [vmem:[%s1 + $0x1e0] sm:$0xff]
      %v255 = vld [vmem:[%s1 + $0x1e8] sm:$0xff]
      %v256 = vld [vmem:[%s1 + $0x1f0] sm:$0xff]
      %v257 = vld [vmem:[%s1 + $0x1f8] sm:$0xff]
      %v258 = vld [vmem:[%s1 + $0x200] sm:$0xff]
      %v259 = vld [vmem:[%s1 + $0x208] sm:$0xff]
      %v260 = vld [vmem:[%s1 + $0x210] sm:$0xff]
      %v261 = vld [vmem:[%s1 + $0x218] sm:$0xff]
      %v262 = vld [vmem:[%s1 + $0x220] sm:$0xff]
      %v263 = vld [vmem:[%s1 + $0x228] sm:$0xff]
      %v264 = vld [vmem:[%s1 + $0x230] sm:$0xff]
      %v265 = vld [vmem:[%s1 + $0x238] sm:$0xff]
      %v266 = vld [vmem:[%s1 + $0x240] sm:$0xff]
      %v267 = vld [vmem:[%s1 + $0x248] sm:$0xff]
      %v268 = vld [vmem:[%s1 + $0x250] sm:$0xff]
      %v269 = vld [vmem:[%s1 + $0x258] sm:$0xff]
      %v270 = vld [vmem:[%s1 + $0x260] sm:$0xff]
      %v271 = vld [vmem:[%s1 + $0x268] sm:$0xff]
      %v272 = vld [vmem:[%s1 + $0x270] sm:$0xff]
      %v273 = vld [vmem:[%s1 + $0x278] sm:$0xff]
      %v274 = vld [vmem:[%s1 + $0x280] sm:$0xff]
      %v275 = vld [vmem:[%s1 + $0x288] sm:$0xff]
      %v276 = vld [vmem:[%s1 + $0x290] sm:$0xff]
      %v277 = vld [vmem:[%s1 + $0x298] sm:$0xff]
      %v278 = vld [vmem:[%s1 + $0x2a0] sm:$0xff]
      %v279 = vld [vmem:[%s1 + $0x2a8] sm:$0xff]
      %v280 = vld [vmem:[%s1 + $0x2b0] sm:$0xff]
      %v281 = vld [vmem:[%s1 + $0x2b8] sm:$0xff]
      %v282 = vld [vmem:[%s1 + $0x2c0] sm:$0xff]
      %v283 = vld [vmem:[%s1 + $0x2c8] sm:$0xff]
      %v284 = vld [vmem:[%s1 + $0x2d0] sm:$0xff]
      %v285 = vld [vmem:[%s1 + $0x2d8] sm:$0xff]
      %v286 = vld [vmem:[%s1 + $0x2e0] sm:$0xff]
      %v287 = vld [vmem:[%s1 + $0x2e8] sm:$0xff]
      %v288 = vld [vmem:[%s1 + $0x2f0] sm:$0xff]
      %v289 = vld [vmem:[%s1 + $0x2f8] sm:$0xff]
      %v290 = vld [vmem:[%s1 + $0x300] sm:$0xff]
      %v291 = vld [vmem:[%s1 + $0x308] sm:$0xff]
      %v292 = vld [vmem:[%s1 + $0x310] sm:$0xff]
      %v293 = vld [vmem:[%s1 + $0x318] sm:$0xff]
      %v294 = vld [vmem:[%s1 + $0x320] sm:$0xff]
      %v295 = vld [vmem:[%s1 + $0x328] sm:$0xff]
      %v296 = vld [vmem:[%s1 + $0x330] sm:$0xff]
      %v297 = vld [vmem:[%s1 + $0x338] sm:$0xff]
      %v298 = vld [vmem:[%s1 + $0x340] sm:$0xff]
      %v299 = vld [vmem:[%s1 + $0x348] sm:$0xff]
      %v300 = vld [vmem:[%s1 + $0x350] sm:$0xff]
      %v301 = vld [vmem:[%s1 + $0x358] sm:$0xff]
      %v302 = vld [vmem:[%s1 + $0x360] sm:$0xff]
      %v303 = vld [vmem:[%s1 + $0x368] sm:$0xff]
      %v304 = vld [vmem:[%s1 + $0x370] sm:$0xff]
      %v305 = vld [vmem:[%s1 + $0x378] sm:$0xff]
      %v306 = vld [vmem:[%s1 + $0x380] sm:$0xff]
      %v307 = vld [vmem:[%s1 + $0x388] sm:$0xff]
      %v308 = vld [vmem:[%s1 + $0x390] sm:$0xff]
      %v309 = vld [vmem:[%s1 + $0x398] sm:$0xff]
      %v310 = vld [vmem:[%s1 + $0x3a0] sm:$0xff]
      %v311 = vld [vmem:[%s1 + $0x3a8] sm:$0xff]
      %v312 = vld [vmem:[%s1 + $0x3b0] sm:$0xff]
      %v313 = vld [vmem:[%s1 + $0x3b8] sm:$0xff]
      %v314 = vld [vmem:[%s1 + $0x3c0] sm:$0xff]
      %v315 = vld [vmem:[%s1 + $0x3c8] sm:$0xff]
      %v316 = vld [vmem:[%s1 + $0x3d0] sm:$0xff]
      %v317 = vld [vmem:[%s1 + $0x3d8] sm:$0xff]
      %v318 = vld [vmem:[%s1 + $0x3e0] sm:$0xff]
      %v319 = vld [vmem:[%s1 + $0x3e8] sm:$0xff]
      %v320 = vld [vmem:[%s1 + $0x3f0] sm:$0xff]
      %v321 = vld [vmem:[%s1 + $0x3f8] sm:$0xff]
      %v322 = vld [vmem:[%s1 + $0x400] sm:$0xff]
      %v323 = vld [vmem:[%s1 + $0x408] sm:$0xff]
      %v324 = vld [vmem:[%s1 + $0x410] sm:$0xff]
      %v325 = vld [vmem:[%s1 + $0x418] sm:$0xff]
      %v326 = vld [vmem:[%s1 + $0x420] sm:$0xff]
      %v327 = vld [vmem:[%s1 + $0x428] sm:$0xff]
      %v328 = vld [vmem:[%s1 + $0x430] sm:$0xff]
      %v329 = vld [vmem:[%s1 + $0x438] sm:$0xff]
      %v330 = vld [vmem:[%s1 + $0x440] sm:$0xff]
      %v331 = vld [vmem:[%s1 + $0x448] sm:$0xff]
      %v332 = vld [vmem:[%s1 + $0x450] sm:$0xff]
      %v333 = vld [vmem:[%s1 + $0x458] sm:$0xff]
      %v334 = vld [vmem:[%s1 + $0x460] sm:$0xff]
      %v335 = vld [vmem:[%s1 + $0x468] sm:$0xff]
      %v336 = vld [vmem:[%s1 + $0x470] sm:$0xff]
      %v337 = vld [vmem:[%s1 + $0x478] sm:$0xff]
      %v338 = vld [vmem:[%s1 + $0x480] sm:$0xff]
      %v339 = vld [vmem:[%s1 + $0x488] sm:$0xff]
      %v340 = vld [vmem:[%s1 + $0x490] sm:$0xff]
      %v341 = vld [vmem:[%s1 + $0x498] sm:$0xff]
      %v342 = vld [vmem:[%s1 + $0x4a0] sm:$0xff]
      %v343 = vld [vmem:[%s1 + $0x4a8] sm:$0xff]
      %v344 = vld [vmem:[%s1 + $0x4b0] sm:$0xff]
      %v345 = vld [vmem:[%s1 + $0x4b8] sm:$0xff]
      %v346 = vld [vmem:[%s1 + $0x4c0] sm:$0xff]
      %v347 = vld [vmem:[%s1 + $0x4c8] sm:$0xff]
      %v348 = vld [vmem:[%s1 + $0x4d0] sm:$0xff]
      %v349 = vld [vmem:[%s1 + $0x4d8] sm:$0xff]
      %v350 = vld [vmem:[%s1 + $0x4e0] sm:$0xff]
      %v351 = vld [vmem:[%s1 + $0x4e8] sm:$0xff]
      %v352 = vld [vmem:[%s1 + $0x4f0] sm:$0xff]
      %v353 = vld [vmem:[%s1 + $0x4f8] sm:$0xff]
      %v354 = vld [vmem:[%s1 + $0x500] sm:$0xff]
      %v355 = vld [vmem:[%s1 + $0x508] sm:$0xff]
      %v356 = vld [vmem:[%s1 + $0x510] sm:$0xff]
      %v357 = vld [vmem:[%s1 + $0x518] sm:$0xff]
      %v358 = vld [vmem:[%s1 + $0x520] sm:$0xff]
      %v359 = vld [vmem:[%s1 + $0x528] sm:$0xff]
      %v360 = vld [vmem:[%s1 + $0x530] sm:$0xff]
      %v361 = vld [vmem:[%s1 + $0x538] sm:$0xff]
      %v362 = vld [vmem:[%s1 + $0x540] sm:$0xff]
      %v363 = vld [vmem:[%s1 + $0x548] sm:$0xff]
      %v364 = vld [vmem:[%s1 + $0x550] sm:$0xff]
      %v365 = vld [vmem:[%s1 + $0x558] sm:$0xff]
      %v366 = vld [vmem:[%s1 + $0x560] sm:$0xff]
      %v367 = vld [vmem:[%s1 + $0x568] sm:$0xff]
      %v368 = vld [vmem:[%s1 + $0x570] sm:$0xff]
      %v369 = vld [vmem:[%s1 + $0x578] sm:$0xff]
      %v370 = vld [vmem:[%s1 + $0x580] sm:$0xff]
      %v371 = vld [vmem:[%s1 + $0x588] sm:$0xff]
      %v372 = vld [vmem:[%s1 + $0x590] sm:$0xff]
      %v373 = vld [vmem:[%s1 + $0x598] sm:$0xff]
      %v374 = vld [vmem:[%s1 + $0x5a0] sm:$0xff]
      %v375 = vld [vmem:[%s1 + $0x5a8] sm:$0xff]
      %v376 = vld [vmem:[%s1 + $0x5b0] sm:$0xff]
      %v377 = vld [vmem:[%s1 + $0x5b8] sm:$0xff]
      %v378 = vld [vmem:[%s1 + $0x5c0] sm:$0xff]
      %v379 = vld [vmem:[%s1 + $0x5c8] sm:$0xff]
      %v380 = vld [vmem:[%s1 + $0x5d0] sm:$0xff]
      %v381 = vld [vmem:[%s1 + $0x5d8] sm:$0xff]
      %v382 = vld [vmem:[%s1 + $0x5e0] sm:$0xff]
      %v383 = vld [vmem:[%s1 + $0x5e8] sm:$0xff]
      %v384 = vld [vmem:[%s1 + $0x5f0] sm:$0xff]
      %v385 = vld [vmem:[%s1 + $0x5f8] sm:$0xff]
      %v386 = vld [vmem:[%s1 + $0x600] sm:$0xff]
      %v387 = vld [vmem:[%s1 + $0x608] sm:$0xff]
      %v388 = vld [vmem:[%s1 + $0x610] sm:$0xff]
      %v389 = vld [vmem:[%s1 + $0x618] sm:$0xff]
      %v390 = vld [vmem:[%s1 + $0x620] sm:$0xff]
      %v391 = vld [vmem:[%s1 + $0x628] sm:$0xff]
      %v392 = vld [vmem:[%s1 + $0x630] sm:$0xff]
      %v393 = vld [vmem:[%s1 + $0x638] sm:$0xff]
      %v394 = vld [vmem:[%s1 + $0x640] sm:$0xff]
      %v395 = vld [vmem:[%s1 + $0x648] sm:$0xff]
      %v396 = vld [vmem:[%s1 + $0x650] sm:$0xff]
      %v397 = vld [vmem:[%s1 + $0x658] sm:$0xff]
      %v398 = vld [vmem:[%s1 + $0x660] sm:$0xff]
      %v399 = vld [vmem:[%s1 + $0x668] sm:$0xff]
      %v400 = vld [vmem:[%s1 + $0x670] sm:$0xff]
      %v401 = vld [vmem:[%s1 + $0x678] sm:$0xff]
      %v402 = vld [vmem:[%s1 + $0x680] sm:$0xff]
      %v403 = vld [vmem:[%s1 + $0x688] sm:$0xff]
      %v404 = vld [vmem:[%s1 + $0x690] sm:$0xff]
      %v405 = vld [vmem:[%s1 + $0x698] sm:$0xff]
      %v406 = vld [vmem:[%s1 + $0x6a0] sm:$0xff]
      %v407 = vld [vmem:[%s1 + $0x6a8] sm:$0xff]
      %v408 = vld [vmem:[%s1 + $0x6b0] sm:$0xff]
      %v409 = vld [vmem:[%s1 + $0x6b8] sm:$0xff]
      %v410 = vld [vmem:[%s2] sm:$0x3]
      %v412 = vlaneseq
      %v413 = vshrl.u32 %v412, 7
      %v414 = vsub.s32 0, %v413
      %v415 = vrot.slane %v410, %v414
      %v416 = vlaneseq
      %v417 = vshrl.u32 %v416, 7
      %v418 = vsub.s32 1, %v417
      %v419 = vrot.slane %v410, %v418
      %v436 = vunpack.c.l.b16 %v180
      %v437 = vunpack.c.h.b16 %v180
      %v438 = vunpack.c.l.b16 %v181
      %v439 = vunpack.c.h.b16 %v181
      %v440 = vunpack.c.l.b16 %v182
      %v441 = vunpack.c.h.b16 %v182
      %v442 = vunpack.c.l.b16 %v183
      %v443 = vunpack.c.h.b16 %v183
      %v444 = vunpack.c.l.b16 %v184
      %v445 = vunpack.c.h.b16 %v184
      %v446 = vunpack.c.l.b16 %v185
      %v447 = vunpack.c.h.b16 %v185
      %v448 = vunpack.c.l.b16 %v186
      %v449 = vunpack.c.h.b16 %v186
      %v450 = vunpack.c.l.b16 %v187
      %v451 = vunpack.c.h.b16 %v187
      %v452 = vunpack.c.l.b16 %v188
      %v453 = vunpack.c.h.b16 %v188
      %v454 = vunpack.c.l.b16 %v189
      %v455 = vunpack.c.h.b16 %v189
      %v456 = vunpack.c.l.b16 %v190
      %v457 = vunpack.c.h.b16 %v190
      %v458 = vunpack.c.l.b16 %v191
      %v459 = vunpack.c.h.b16 %v191
      %v460 = vunpack.c.l.b16 %v192
      %v461 = vunpack.c.h.b16 %v192
      %v462 = vunpack.c.l.b16 %v193
      %v463 = vunpack.c.h.b16 %v193
      %v464 = vpack.c.b16 %v450, %v436
      %v465 = vpack.c.b16 %v451, %v437
      %v466 = vpack.c.b16 %v452, %v438
      %v467 = vpack.c.b16 %v453, %v439
      %v468 = vpack.c.b16 %v454, %v440
      %v469 = vpack.c.b16 %v455, %v441
      %v470 = vpack.c.b16 %v456, %v442
      %v471 = vpack.c.b16 %v457, %v443
      %v472 = vpack.c.b16 %v458, %v444
      %v473 = vpack.c.b16 %v459, %v445
      %v474 = vpack.c.b16 %v460, %v446
      %v475 = vpack.c.b16 %v461, %v447
      %v476 = vpack.c.b16 %v462, %v448
      %v477 = vpack.c.b16 %v463, %v449
      %v707 = vunpack.c.l.b16 %v194
      %v708 = vunpack.c.h.b16 %v194
      %v709 = vunpack.c.l.b16 %v195
      %v710 = vunpack.c.h.b16 %v195
      %v711 = vunpack.c.l.b16 %v196
      %v712 = vunpack.c.h.b16 %v196
      %v713 = vunpack.c.l.b16 %v197
      %v714 = vunpack.c.h.b16 %v197
      %v715 = vunpack.c.l.b16 %v198
      %v716 = vunpack.c.h.b16 %v198
      %v717 = vunpack.c.l.b16 %v199
      %v718 = vunpack.c.h.b16 %v199
      %v719 = vunpack.c.l.b16 %v200
      %v720 = vunpack.c.h.b16 %v200
      %v721 = vunpack.c.l.b16 %v201
      %v722 = vunpack.c.h.b16 %v201
      %v723 = vunpack.c.l.b16 %v202
      %v724 = vunpack.c.h.b16 %v202
      %v725 = vunpack.c.l.b16 %v203
      %v726 = vunpack.c.h.b16 %v203
      %v727 = vunpack.c.l.b16 %v204
      %v728 = vunpack.c.h.b16 %v204
      %v729 = vunpack.c.l.b16 %v205
      %v730 = vunpack.c.h.b16 %v205
      %v731 = vunpack.c.l.b16 %v206
      %v732 = vunpack.c.h.b16 %v206
      %v733 = vunpack.c.l.b16 %v207
      %v734 = vunpack.c.h.b16 %v207
      %v735 = vunpack.c.l.b16 %v208
      %v736 = vunpack.c.h.b16 %v208
      %v737 = vunpack.c.l.b16 %v209
      %v738 = vunpack.c.h.b16 %v209
      %v739 = vunpack.c.l.b16 %v210
      %v740 = vunpack.c.h.b16 %v210
      %v741 = vunpack.c.l.b16 %v211
      %v742 = vunpack.c.h.b16 %v211
      %v743 = vunpack.c.l.b16 %v212
      %v744 = vunpack.c.h.b16 %v212
      %v745 = vunpack.c.l.b16 %v213
      %v746 = vunpack.c.h.b16 %v213
      %v747 = vunpack.c.l.b16 %v214
      %v748 = vunpack.c.h.b16 %v214
      %v749 = vunpack.c.l.b16 %v215
      %v750 = vunpack.c.h.b16 %v215
      %v751 = vunpack.c.l.b16 %v216
      %v752 = vunpack.c.h.b16 %v216
      %v753 = vunpack.c.l.b16 %v217
      %v754 = vunpack.c.h.b16 %v217
      %v755 = vunpack.c.l.b16 %v218
      %v756 = vunpack.c.h.b16 %v218
      %v757 = vunpack.c.l.b16 %v219
      %v758 = vunpack.c.h.b16 %v219
      %v759 = vunpack.c.l.b16 %v220
      %v760 = vunpack.c.h.b16 %v220
      %v761 = vunpack.c.l.b16 %v221
      %v762 = vunpack.c.h.b16 %v221
      %v763 = vunpack.c.l.b16 %v222
      %v764 = vunpack.c.h.b16 %v222
      %v765 = vunpack.c.l.b16 %v223
      %v766 = vunpack.c.h.b16 %v223
      %v767 = vunpack.c.l.b16 %v224
      %v768 = vunpack.c.h.b16 %v224
      %v769 = vunpack.c.l.b16 %v225
      %v770 = vunpack.c.h.b16 %v225
      %v771 = vunpack.c.l.b16 %v226
      %v772 = vunpack.c.h.b16 %v226
      %v773 = vunpack.c.l.b16 %v227
      %v774 = vunpack.c.h.b16 %v227
      %v775 = vunpack.c.l.b16 %v228
      %v776 = vunpack.c.h.b16 %v228
      %v777 = vunpack.c.l.b16 %v229
      %v778 = vunpack.c.h.b16 %v229
      %v779 = vunpack.c.l.b16 %v230
      %v780 = vunpack.c.h.b16 %v230
      %v781 = vunpack.c.l.b16 %v231
      %v782 = vunpack.c.h.b16 %v231
      %v783 = vunpack.c.l.b16 %v232
      %v784 = vunpack.c.h.b16 %v232
      %v785 = vunpack.c.l.b16 %v233
      %v786 = vunpack.c.h.b16 %v233
      %v787 = vunpack.c.l.b16 %v234
      %v788 = vunpack.c.h.b16 %v234
      %v789 = vunpack.c.l.b16 %v235
      %v790 = vunpack.c.h.b16 %v235
      %v791 = vunpack.c.l.b16 %v236
      %v792 = vunpack.c.h.b16 %v236
      %v793 = vunpack.c.l.b16 %v237
      %v794 = vunpack.c.h.b16 %v237
      %v795 = vunpack.c.l.b16 %v238
      %v796 = vunpack.c.h.b16 %v238
      %v797 = vunpack.c.l.b16 %v239
      %v798 = vunpack.c.h.b16 %v239
      %v799 = vunpack.c.l.b16 %v240
      %v800 = vunpack.c.h.b16 %v240
      %v801 = vunpack.c.l.b16 %v241
      %v802 = vunpack.c.h.b16 %v241
      %v803 = vunpack.c.l.b16 %v242
      %v804 = vunpack.c.h.b16 %v242
      %v805 = vunpack.c.l.b16 %v243
      %v806 = vunpack.c.h.b16 %v243
      %v807 = vunpack.c.l.b16 %v244
      %v808 = vunpack.c.h.b16 %v244
      %v809 = vunpack.c.l.b16 %v245
      %v810 = vunpack.c.h.b16 %v245
      %v811 = vunpack.c.l.b16 %v246
      %v812 = vunpack.c.h.b16 %v246
      %v813 = vunpack.c.l.b16 %v247
      %v814 = vunpack.c.h.b16 %v247
      %v815 = vunpack.c.l.b16 %v248
      %v816 = vunpack.c.h.b16 %v248
      %v817 = vunpack.c.l.b16 %v249
      %v818 = vunpack.c.h.b16 %v249
      %v819 = vunpack.c.l.b16 %v250
      %v820 = vunpack.c.h.b16 %v250
      %v821 = vunpack.c.l.b16 %v251
      %v822 = vunpack.c.h.b16 %v251
      %v823 = vunpack.c.l.b16 %v252
      %v824 = vunpack.c.h.b16 %v252
      %v825 = vunpack.c.l.b16 %v253
      %v826 = vunpack.c.h.b16 %v253
      %v827 = vunpack.c.l.b16 %v254
      %v828 = vunpack.c.h.b16 %v254
      %v829 = vunpack.c.l.b16 %v255
      %v830 = vunpack.c.h.b16 %v255
      %v831 = vunpack.c.l.b16 %v256
      %v832 = vunpack.c.h.b16 %v256
      %v833 = vunpack.c.l.b16 %v257
      %v834 = vunpack.c.h.b16 %v257
      %v835 = vunpack.c.l.b16 %v258
      %v836 = vunpack.c.h.b16 %v258
      %v837 = vunpack.c.l.b16 %v259
      %v838 = vunpack.c.h.b16 %v259
      %v839 = vunpack.c.l.b16 %v260
      %v840 = vunpack.c.h.b16 %v260
      %v841 = vunpack.c.l.b16 %v261
      %v842 = vunpack.c.h.b16 %v261
      %v843 = vunpack.c.l.b16 %v262
      %v844 = vunpack.c.h.b16 %v262
      %v845 = vunpack.c.l.b16 %v263
      %v846 = vunpack.c.h.b16 %v263
      %v847 = vunpack.c.l.b16 %v264
      %v848 = vunpack.c.h.b16 %v264
      %v849 = vunpack.c.l.b16 %v265
      %v850 = vunpack.c.h.b16 %v265
      %v851 = vunpack.c.l.b16 %v266
      %v852 = vunpack.c.h.b16 %v266
      %v853 = vunpack.c.l.b16 %v267
      %v854 = vunpack.c.h.b16 %v267
      %v855 = vunpack.c.l.b16 %v268
      %v856 = vunpack.c.h.b16 %v268
      %v857 = vunpack.c.l.b16 %v269
      %v858 = vunpack.c.h.b16 %v269
      %v859 = vunpack.c.l.b16 %v270
      %v860 = vunpack.c.h.b16 %v270
      %v861 = vunpack.c.l.b16 %v271
      %v862 = vunpack.c.h.b16 %v271
      %v863 = vunpack.c.l.b16 %v272
      %v864 = vunpack.c.h.b16 %v272
      %v865 = vunpack.c.l.b16 %v273
      %v866 = vunpack.c.h.b16 %v273
      %v867 = vunpack.c.l.b16 %v274
      %v868 = vunpack.c.h.b16 %v274
      %v869 = vunpack.c.l.b16 %v275
      %v870 = vunpack.c.h.b16 %v275
      %v871 = vunpack.c.l.b16 %v276
      %v872 = vunpack.c.h.b16 %v276
      %v873 = vunpack.c.l.b16 %v277
      %v874 = vunpack.c.h.b16 %v277
      %v875 = vunpack.c.l.b16 %v278
      %v876 = vunpack.c.h.b16 %v278
      %v877 = vunpack.c.l.b16 %v279
      %v878 = vunpack.c.h.b16 %v279
      %v879 = vunpack.c.l.b16 %v280
      %v880 = vunpack.c.h.b16 %v280
      %v881 = vunpack.c.l.b16 %v281
      %v882 = vunpack.c.h.b16 %v281
      %v883 = vunpack.c.l.b16 %v282
      %v884 = vunpack.c.h.b16 %v282
      %v885 = vunpack.c.l.b16 %v283
      %v886 = vunpack.c.h.b16 %v283
      %v887 = vunpack.c.l.b16 %v284
      %v888 = vunpack.c.h.b16 %v284
      %v889 = vunpack.c.l.b16 %v285
      %v890 = vunpack.c.h.b16 %v285
      %v891 = vunpack.c.l.b16 %v286
      %v892 = vunpack.c.h.b16 %v286
      %v893 = vunpack.c.l.b16 %v287
      %v894 = vunpack.c.h.b16 %v287
      %v895 = vunpack.c.l.b16 %v288
      %v896 = vunpack.c.h.b16 %v288
      %v897 = vunpack.c.l.b16 %v289
      %v898 = vunpack.c.h.b16 %v289
      %v899 = vunpack.c.l.b16 %v290
      %v900 = vunpack.c.h.b16 %v290
      %v901 = vunpack.c.l.b16 %v291
      %v902 = vunpack.c.h.b16 %v291
      %v903 = vunpack.c.l.b16 %v292
      %v904 = vunpack.c.h.b16 %v292
      %v905 = vunpack.c.l.b16 %v293
      %v906 = vunpack.c.h.b16 %v293
      %v907 = vunpack.c.l.b16 %v294
      %v908 = vunpack.c.h.b16 %v294
      %v909 = vunpack.c.l.b16 %v295
      %v910 = vunpack.c.h.b16 %v295
      %v911 = vunpack.c.l.b16 %v296
      %v912 = vunpack.c.h.b16 %v296
      %v913 = vunpack.c.l.b16 %v297
      %v914 = vunpack.c.h.b16 %v297
      %v915 = vunpack.c.l.b16 %v298
      %v916 = vunpack.c.h.b16 %v298
      %v917 = vunpack.c.l.b16 %v299
      %v918 = vunpack.c.h.b16 %v299
      %v919 = vunpack.c.l.b16 %v300
      %v920 = vunpack.c.h.b16 %v300
      %v921 = vunpack.c.l.b16 %v301
      %v922 = vunpack.c.h.b16 %v301
      %v923 = vunpack.c.l.b16 %v302
      %v924 = vunpack.c.h.b16 %v302
      %v925 = vunpack.c.l.b16 %v303
      %v926 = vunpack.c.h.b16 %v303
      %v927 = vunpack.c.l.b16 %v304
      %v928 = vunpack.c.h.b16 %v304
      %v929 = vunpack.c.l.b16 %v305
      %v930 = vunpack.c.h.b16 %v305
      %v931 = vunpack.c.l.b16 %v306
      %v932 = vunpack.c.h.b16 %v306
      %v933 = vunpack.c.l.b16 %v307
      %v934 = vunpack.c.h.b16 %v307
      %v935 = vunpack.c.l.b16 %v308
      %v936 = vunpack.c.h.b16 %v308
      %v937 = vunpack.c.l.b16 %v309
      %v938 = vunpack.c.h.b16 %v309
      %v939 = vunpack.c.l.b16 %v310
      %v940 = vunpack.c.h.b16 %v310
      %v941 = vunpack.c.l.b16 %v311
      %v942 = vunpack.c.h.b16 %v311
      %v943 = vunpack.c.l.b16 %v312
      %v944 = vunpack.c.h.b16 %v312
      %v945 = vunpack.c.l.b16 %v313
      %v946 = vunpack.c.h.b16 %v313
      %v947 = vunpack.c.l.b16 %v314
      %v948 = vunpack.c.h.b16 %v314
      %v949 = vunpack.c.l.b16 %v315
      %v950 = vunpack.c.h.b16 %v315
      %v951 = vunpack.c.l.b16 %v316
      %v952 = vunpack.c.h.b16 %v316
      %v953 = vunpack.c.l.b16 %v317
      %v954 = vunpack.c.h.b16 %v317
      %v955 = vunpack.c.l.b16 %v318
      %v956 = vunpack.c.h.b16 %v318
      %v957 = vunpack.c.l.b16 %v319
      %v958 = vunpack.c.h.b16 %v319
      %v959 = vunpack.c.l.b16 %v320
      %v960 = vunpack.c.h.b16 %v320
      %v961 = vunpack.c.l.b16 %v321
      %v962 = vunpack.c.h.b16 %v321
      %v963 = vunpack.c.l.b16 %v322
      %v964 = vunpack.c.h.b16 %v322
      %v965 = vunpack.c.l.b16 %v323
      %v966 = vunpack.c.h.b16 %v323
      %v967 = vunpack.c.l.b16 %v324
      %v968 = vunpack.c.h.b16 %v324
      %v969 = vunpack.c.l.b16 %v325
      %v970 = vunpack.c.h.b16 %v325
      %v971 = vunpack.c.l.b16 %v326
      %v972 = vunpack.c.h.b16 %v326
      %v973 = vunpack.c.l.b16 %v327
      %v974 = vunpack.c.h.b16 %v327
      %v975 = vunpack.c.l.b16 %v328
      %v976 = vunpack.c.h.b16 %v328
      %v977 = vunpack.c.l.b16 %v329
      %v978 = vunpack.c.h.b16 %v329
      %v979 = vunpack.c.l.b16 %v330
      %v980 = vunpack.c.h.b16 %v330
      %v981 = vunpack.c.l.b16 %v331
      %v982 = vunpack.c.h.b16 %v331
      %v983 = vunpack.c.l.b16 %v332
      %v984 = vunpack.c.h.b16 %v332
      %v985 = vunpack.c.l.b16 %v333
      %v986 = vunpack.c.h.b16 %v333
      %v987 = vunpack.c.l.b16 %v334
      %v988 = vunpack.c.h.b16 %v334
      %v989 = vunpack.c.l.b16 %v335
      %v990 = vunpack.c.h.b16 %v335
      %v991 = vunpack.c.l.b16 %v336
      %v992 = vunpack.c.h.b16 %v336
      %v993 = vunpack.c.l.b16 %v337
      %v994 = vunpack.c.h.b16 %v337
      %v995 = vunpack.c.l.b16 %v338
      %v996 = vunpack.c.h.b16 %v338
      %v997 = vunpack.c.l.b16 %v339
      %v998 = vunpack.c.h.b16 %v339
      %v999 = vunpack.c.l.b16 %v340
      %v1000 = vunpack.c.h.b16 %v340
      %v1001 = vunpack.c.l.b16 %v341
      %v1002 = vunpack.c.h.b16 %v341
      %v1003 = vunpack.c.l.b16 %v342
      %v1004 = vunpack.c.h.b16 %v342
      %v1005 = vunpack.c.l.b16 %v343
      %v1006 = vunpack.c.h.b16 %v343
      %v1007 = vunpack.c.l.b16 %v344
      %v1008 = vunpack.c.h.b16 %v344
      %v1009 = vunpack.c.l.b16 %v345
      %v1010 = vunpack.c.h.b16 %v345
      %v1011 = vunpack.c.l.b16 %v346
      %v1012 = vunpack.c.h.b16 %v346
      %v1013 = vunpack.c.l.b16 %v347
      %v1014 = vunpack.c.h.b16 %v347
      %v1015 = vunpack.c.l.b16 %v348
      %v1016 = vunpack.c.h.b16 %v348
      %v1017 = vunpack.c.l.b16 %v349
      %v1018 = vunpack.c.h.b16 %v349
      %v1019 = vunpack.c.l.b16 %v350
      %v1020 = vunpack.c.h.b16 %v350
      %v1021 = vunpack.c.l.b16 %v351
      %v1022 = vunpack.c.h.b16 %v351
      %v1023 = vunpack.c.l.b16 %v352
      %v1024 = vunpack.c.h.b16 %v352
      %v1025 = vunpack.c.l.b16 %v353
      %v1026 = vunpack.c.h.b16 %v353
      %v1027 = vunpack.c.l.b16 %v354
      %v1028 = vunpack.c.h.b16 %v354
      %v1029 = vunpack.c.l.b16 %v355
      %v1030 = vunpack.c.h.b16 %v355
      %v1031 = vunpack.c.l.b16 %v356
      %v1032 = vunpack.c.h.b16 %v356
      %v1033 = vunpack.c.l.b16 %v357
      %v1034 = vunpack.c.h.b16 %v357
      %v1035 = vunpack.c.l.b16 %v358
      %v1036 = vunpack.c.h.b16 %v358
      %v1037 = vunpack.c.l.b16 %v359
      %v1038 = vunpack.c.h.b16 %v359
      %v1039 = vunpack.c.l.b16 %v360
      %v1040 = vunpack.c.h.b16 %v360
      %v1041 = vunpack.c.l.b16 %v361
      %v1042 = vunpack.c.h.b16 %v361
      %v1043 = vunpack.c.l.b16 %v362
      %v1044 = vunpack.c.h.b16 %v362
      %v1045 = vunpack.c.l.b16 %v363
      %v1046 = vunpack.c.h.b16 %v363
      %v1047 = vunpack.c.l.b16 %v364
      %v1048 = vunpack.c.h.b16 %v364
      %v1049 = vunpack.c.l.b16 %v365
      %v1050 = vunpack.c.h.b16 %v365
      %v1051 = vunpack.c.l.b16 %v366
      %v1052 = vunpack.c.h.b16 %v366
      %v1053 = vunpack.c.l.b16 %v367
      %v1054 = vunpack.c.h.b16 %v367
      %v1055 = vunpack.c.l.b16 %v368
      %v1056 = vunpack.c.h.b16 %v368
      %v1057 = vunpack.c.l.b16 %v369
      %v1058 = vunpack.c.h.b16 %v369
      %v1059 = vunpack.c.l.b16 %v370
      %v1060 = vunpack.c.h.b16 %v370
      %v1061 = vunpack.c.l.b16 %v371
      %v1062 = vunpack.c.h.b16 %v371
      %v1063 = vunpack.c.l.b16 %v372
      %v1064 = vunpack.c.h.b16 %v372
      %v1065 = vunpack.c.l.b16 %v373
      %v1066 = vunpack.c.h.b16 %v373
      %v1067 = vunpack.c.l.b16 %v374
      %v1068 = vunpack.c.h.b16 %v374
      %v1069 = vunpack.c.l.b16 %v375
      %v1070 = vunpack.c.h.b16 %v375
      %v1071 = vunpack.c.l.b16 %v376
      %v1072 = vunpack.c.h.b16 %v376
      %v1073 = vunpack.c.l.b16 %v377
      %v1074 = vunpack.c.h.b16 %v377
      %v1075 = vunpack.c.l.b16 %v378
      %v1076 = vunpack.c.h.b16 %v378
      %v1077 = vunpack.c.l.b16 %v379
      %v1078 = vunpack.c.h.b16 %v379
      %v1079 = vunpack.c.l.b16 %v380
      %v1080 = vunpack.c.h.b16 %v380
      %v1081 = vunpack.c.l.b16 %v381
      %v1082 = vunpack.c.h.b16 %v381
      %v1083 = vunpack.c.l.b16 %v382
      %v1084 = vunpack.c.h.b16 %v382
      %v1085 = vunpack.c.l.b16 %v383
      %v1086 = vunpack.c.h.b16 %v383
      %v1087 = vunpack.c.l.b16 %v384
      %v1088 = vunpack.c.h.b16 %v384
      %v1089 = vunpack.c.l.b16 %v385
      %v1090 = vunpack.c.h.b16 %v385
      %v1091 = vunpack.c.l.b16 %v386
      %v1092 = vunpack.c.h.b16 %v386
      %v1093 = vunpack.c.l.b16 %v387
      %v1094 = vunpack.c.h.b16 %v387
      %v1095 = vunpack.c.l.b16 %v388
      %v1096 = vunpack.c.h.b16 %v388
      %v1097 = vunpack.c.l.b16 %v389
      %v1098 = vunpack.c.h.b16 %v389
      %v1099 = vunpack.c.l.b16 %v390
      %v1100 = vunpack.c.h.b16 %v390
      %v1101 = vunpack.c.l.b16 %v391
      %v1102 = vunpack.c.h.b16 %v391
      %v1103 = vunpack.c.l.b16 %v392
      %v1104 = vunpack.c.h.b16 %v392
      %v1105 = vunpack.c.l.b16 %v393
      %v1106 = vunpack.c.h.b16 %v393
      %v1107 = vunpack.c.l.b16 %v394
      %v1108 = vunpack.c.h.b16 %v394
      %v1109 = vunpack.c.l.b16 %v395
      %v1110 = vunpack.c.h.b16 %v395
      %v1111 = vunpack.c.l.b16 %v396
      %v1112 = vunpack.c.h.b16 %v396
      %v1113 = vunpack.c.l.b16 %v397
      %v1114 = vunpack.c.h.b16 %v397
      %v1115 = vunpack.c.l.b16 %v398
      %v1116 = vunpack.c.h.b16 %v398
      %v1117 = vunpack.c.l.b16 %v399
      %v1118 = vunpack.c.h.b16 %v399
      %v1119 = vunpack.c.l.b16 %v400
      %v1120 = vunpack.c.h.b16 %v400
      %v1121 = vunpack.c.l.b16 %v401
      %v1122 = vunpack.c.h.b16 %v401
      %v1123 = vunpack.c.l.b16 %v402
      %v1124 = vunpack.c.h.b16 %v402
      %v1125 = vunpack.c.l.b16 %v403
      %v1126 = vunpack.c.h.b16 %v403
      %v1127 = vunpack.c.l.b16 %v404
      %v1128 = vunpack.c.h.b16 %v404
      %v1129 = vunpack.c.l.b16 %v405
      %v1130 = vunpack.c.h.b16 %v405
      %v1131 = vunpack.c.l.b16 %v406
      %v1132 = vunpack.c.h.b16 %v406
      %v1133 = vunpack.c.l.b16 %v407
      %v1134 = vunpack.c.h.b16 %v407
      %v1135 = vunpack.c.l.b16 %v408
      %v1136 = vunpack.c.h.b16 %v408
      %v1137 = vunpack.c.l.b16 %v409
      %v1138 = vunpack.c.h.b16 %v409
      %v1139 = vpack.c.b16 %v709, %v707
      %v1140 = vpack.c.b16 %v710, %v708
      %v1141 = vpack.c.b16 %v713, %v711
      %v1142 = vpack.c.b16 %v714, %v712
      %v1143 = vpack.c.b16 %v717, %v715
      %v1144 = vpack.c.b16 %v718, %v716
      %v1145 = vpack.c.b16 %v721, %v719
      %v1146 = vpack.c.b16 %v722, %v720
      %v1147 = vpack.c.b16 %v725, %v723
      %v1148 = vpack.c.b16 %v726, %v724
      %v1149 = vpack.c.b16 %v729, %v727
      %v1150 = vpack.c.b16 %v730, %v728
      %v1151 = vpack.c.b16 %v733, %v731
      %v1152 = vpack.c.b16 %v734, %v732
      %v1153 = vpack.c.b16 %v737, %v735
      %v1154 = vpack.c.b16 %v738, %v736
      %v1155 = vpack.c.b16 %v741, %v739
      %v1156 = vpack.c.b16 %v742, %v740
      %v1157 = vpack.c.b16 %v745, %v743
      %v1158 = vpack.c.b16 %v746, %v744
      %v1159 = vpack.c.b16 %v749, %v747
      %v1160 = vpack.c.b16 %v750, %v748
      %v1161 = vpack.c.b16 %v753, %v751
      %v1162 = vpack.c.b16 %v754, %v752
      %v1163 = vpack.c.b16 %v757, %v755
      %v1164 = vpack.c.b16 %v758, %v756
      %v1165 = vpack.c.b16 %v761, %v759
      %v1166 = vpack.c.b16 %v762, %v760
      %v1167 = vpack.c.b16 %v765, %v763
      %v1168 = vpack.c.b16 %v766, %v764
      %v1169 = vpack.c.b16 %v769, %v767
      %v1170 = vpack.c.b16 %v770, %v768
      %v1171 = vpack.c.b16 %v773, %v771
      %v1172 = vpack.c.b16 %v774, %v772
      %v1173 = vpack.c.b16 %v777, %v775
      %v1174 = vpack.c.b16 %v778, %v776
      %v1175 = vpack.c.b16 %v781, %v779
      %v1176 = vpack.c.b16 %v782, %v780
      %v1177 = vpack.c.b16 %v785, %v783
      %v1178 = vpack.c.b16 %v786, %v784
      %v1179 = vpack.c.b16 %v789, %v787
      %v1180 = vpack.c.b16 %v790, %v788
      %v1181 = vpack.c.b16 %v793, %v791
      %v1182 = vpack.c.b16 %v794, %v792
      %v1183 = vpack.c.b16 %v797, %v795
      %v1184 = vpack.c.b16 %v798, %v796
      %v1185 = vpack.c.b16 %v801, %v799
      %v1186 = vpack.c.b16 %v802, %v800
      %v1187 = vpack.c.b16 %v805, %v803
      %v1188 = vpack.c.b16 %v806, %v804
      %v1189 = vpack.c.b16 %v809, %v807
      %v1190 = vpack.c.b16 %v810, %v808
      %v1191 = vpack.c.b16 %v813, %v811
      %v1192 = vpack.c.b16 %v814, %v812
      %v1193 = vpack.c.b16 %v817, %v815
      %v1194 = vpack.c.b16 %v818, %v816
      %v1195 = vpack.c.b16 %v821, %v819
      %v1196 = vpack.c.b16 %v822, %v820
      %v1197 = vpack.c.b16 %v825, %v823
      %v1198 = vpack.c.b16 %v826, %v824
      %v1199 = vpack.c.b16 %v829, %v827
      %v1200 = vpack.c.b16 %v830, %v828
      %v1201 = vpack.c.b16 %v833, %v831
      %v1202 = vpack.c.b16 %v834, %v832
      %v1203 = vpack.c.b16 %v837, %v835
      %v1204 = vpack.c.b16 %v838, %v836
      %v1205 = vpack.c.b16 %v841, %v839
      %v1206 = vpack.c.b16 %v842, %v840
      %v1207 = vpack.c.b16 %v845, %v843
      %v1208 = vpack.c.b16 %v846, %v844
      %v1209 = vpack.c.b16 %v849, %v847
      %v1210 = vpack.c.b16 %v850, %v848
      %v1211 = vpack.c.b16 %v853, %v851
      %v1212 = vpack.c.b16 %v854, %v852
      %v1213 = vpack.c.b16 %v857, %v855
      %v1214 = vpack.c.b16 %v858, %v856
      %v1215 = vpack.c.b16 %v861, %v859
      %v1216 = vpack.c.b16 %v862, %v860
      %v1217 = vpack.c.b16 %v865, %v863
      %v1218 = vpack.c.b16 %v866, %v864
      %v1219 = vpack.c.b16 %v869, %v867
      %v1220 = vpack.c.b16 %v870, %v868
      %v1221 = vpack.c.b16 %v873, %v871
      %v1222 = vpack.c.b16 %v874, %v872
      %v1223 = vpack.c.b16 %v877, %v875
      %v1224 = vpack.c.b16 %v878, %v876
      %v1225 = vpack.c.b16 %v881, %v879
      %v1226 = vpack.c.b16 %v882, %v880
      %v1227 = vpack.c.b16 %v885, %v883
      %v1228 = vpack.c.b16 %v886, %v884
      %v1229 = vpack.c.b16 %v889, %v887
      %v1230 = vpack.c.b16 %v890, %v888
      %v1231 = vpack.c.b16 %v893, %v891
      %v1232 = vpack.c.b16 %v894, %v892
      %v1233 = vpack.c.b16 %v897, %v895
      %v1234 = vpack.c.b16 %v898, %v896
      %v1235 = vpack.c.b16 %v901, %v899
      %v1236 = vpack.c.b16 %v902, %v900
      %v1237 = vpack.c.b16 %v905, %v903
      %v1238 = vpack.c.b16 %v906, %v904
      %v1239 = vpack.c.b16 %v909, %v907
      %v1240 = vpack.c.b16 %v910, %v908
      %v1241 = vpack.c.b16 %v913, %v911
      %v1242 = vpack.c.b16 %v914, %v912
      %v1243 = vpack.c.b16 %v917, %v915
      %v1244 = vpack.c.b16 %v918, %v916
      %v1245 = vpack.c.b16 %v921, %v919
      %v1246 = vpack.c.b16 %v922, %v920
      %v1247 = vpack.c.b16 %v925, %v923
      %v1248 = vpack.c.b16 %v926, %v924
      %v1249 = vpack.c.b16 %v929, %v927
      %v1250 = vpack.c.b16 %v930, %v928
      %v1251 = vpack.c.b16 %v933, %v931
      %v1252 = vpack.c.b16 %v934, %v932
      %v1253 = vpack.c.b16 %v937, %v935
      %v1254 = vpack.c.b16 %v938, %v936
      %v1255 = vpack.c.b16 %v941, %v939
      %v1256 = vpack.c.b16 %v942, %v940
      %v1257 = vpack.c.b16 %v945, %v943
      %v1258 = vpack.c.b16 %v946, %v944
      %v1259 = vpack.c.b16 %v949, %v947
      %v1260 = vpack.c.b16 %v950, %v948
      %v1261 = vpack.c.b16 %v953, %v951
      %v1262 = vpack.c.b16 %v954, %v952
      %v1263 = vpack.c.b16 %v957, %v955
      %v1264 = vpack.c.b16 %v958, %v956
      %v1265 = vpack.c.b16 %v961, %v959
      %v1266 = vpack.c.b16 %v962, %v960
      %v1267 = vpack.c.b16 %v965, %v963
      %v1268 = vpack.c.b16 %v966, %v964
      %v1269 = vpack.c.b16 %v969, %v967
      %v1270 = vpack.c.b16 %v970, %v968
      %v1271 = vpack.c.b16 %v973, %v971
      %v1272 = vpack.c.b16 %v974, %v972
      %v1273 = vpack.c.b16 %v977, %v975
      %v1274 = vpack.c.b16 %v978, %v976
      %v1275 = vpack.c.b16 %v981, %v979
      %v1276 = vpack.c.b16 %v982, %v980
      %v1277 = vpack.c.b16 %v985, %v983
      %v1278 = vpack.c.b16 %v986, %v984
      %v1279 = vpack.c.b16 %v989, %v987
      %v1280 = vpack.c.b16 %v990, %v988
      %v1281 = vpack.c.b16 %v993, %v991
      %v1282 = vpack.c.b16 %v994, %v992
      %v1283 = vpack.c.b16 %v997, %v995
      %v1284 = vpack.c.b16 %v998, %v996
      %v1285 = vpack.c.b16 %v1001, %v999
      %v1286 = vpack.c.b16 %v1002, %v1000
      %v1287 = vpack.c.b16 %v1005, %v1003
      %v1288 = vpack.c.b16 %v1006, %v1004
      %v1289 = vpack.c.b16 %v1009, %v1007
      %v1290 = vpack.c.b16 %v1010, %v1008
      %v1291 = vpack.c.b16 %v1013, %v1011
      %v1292 = vpack.c.b16 %v1014, %v1012
      %v1293 = vpack.c.b16 %v1017, %v1015
      %v1294 = vpack.c.b16 %v1018, %v1016
      %v1295 = vpack.c.b16 %v1021, %v1019
      %v1296 = vpack.c.b16 %v1022, %v1020
      %v1297 = vpack.c.b16 %v1025, %v1023
      %v1298 = vpack.c.b16 %v1026, %v1024
      %v1299 = vpack.c.b16 %v1029, %v1027
      %v1300 = vpack.c.b16 %v1030, %v1028
      %v1301 = vpack.c.b16 %v1033, %v1031
      %v1302 = vpack.c.b16 %v1034, %v1032
      %v1303 = vpack.c.b16 %v1037, %v1035
      %v1304 = vpack.c.b16 %v1038, %v1036
      %v1305 = vpack.c.b16 %v1041, %v1039
      %v1306 = vpack.c.b16 %v1042, %v1040
      %v1307 = vpack.c.b16 %v1045, %v1043
      %v1308 = vpack.c.b16 %v1046, %v1044
      %v1309 = vpack.c.b16 %v1049, %v1047
      %v1310 = vpack.c.b16 %v1050, %v1048
      %v1311 = vpack.c.b16 %v1053, %v1051
      %v1312 = vpack.c.b16 %v1054, %v1052
      %v1313 = vpack.c.b16 %v1057, %v1055
      %v1314 = vpack.c.b16 %v1058, %v1056
      %v1315 = vpack.c.b16 %v1061, %v1059
      %v1316 = vpack.c.b16 %v1062, %v1060
      %v1317 = vpack.c.b16 %v1065, %v1063
      %v1318 = vpack.c.b16 %v1066, %v1064
      %v1319 = vpack.c.b16 %v1069, %v1067
      %v1320 = vpack.c.b16 %v1070, %v1068
      %v1321 = vpack.c.b16 %v1073, %v1071
      %v1322 = vpack.c.b16 %v1074, %v1072
      %v1323 = vpack.c.b16 %v1077, %v1075
      %v1324 = vpack.c.b16 %v1078, %v1076
      %v1325 = vpack.c.b16 %v1081, %v1079
      %v1326 = vpack.c.b16 %v1082, %v1080
      %v1327 = vpack.c.b16 %v1085, %v1083
      %v1328 = vpack.c.b16 %v1086, %v1084
      %v1329 = vpack.c.b16 %v1089, %v1087
      %v1330 = vpack.c.b16 %v1090, %v1088
      %v1331 = vpack.c.b16 %v1093, %v1091
      %v1332 = vpack.c.b16 %v1094, %v1092
      %v1333 = vpack.c.b16 %v1097, %v1095
      %v1334 = vpack.c.b16 %v1098, %v1096
      %v1335 = vpack.c.b16 %v1101, %v1099
      %v1336 = vpack.c.b16 %v1102, %v1100
      %v1337 = vpack.c.b16 %v1105, %v1103
      %v1338 = vpack.c.b16 %v1106, %v1104
      %v1339 = vpack.c.b16 %v1109, %v1107
      %v1340 = vpack.c.b16 %v1110, %v1108
      %v1341 = vpack.c.b16 %v1113, %v1111
      %v1342 = vpack.c.b16 %v1114, %v1112
      %v1343 = vpack.c.b16 %v1117, %v1115
      %v1344 = vpack.c.b16 %v1118, %v1116
      %v1345 = vpack.c.b16 %v1121, %v1119
      %v1346 = vpack.c.b16 %v1122, %v1120
      %v1347 = vpack.c.b16 %v1125, %v1123
      %v1348 = vpack.c.b16 %v1126, %v1124
      %v1349 = vpack.c.b16 %v1129, %v1127
      %v1350 = vpack.c.b16 %v1130, %v1128
      %v1351 = vpack.c.b16 %v1133, %v1131
      %v1352 = vpack.c.b16 %v1134, %v1132
      %v1353 = vpack.c.b16 %v1137, %v1135
      %v1354 = vpack.c.b16 %v1138, %v1136
      %vm1571 = vcmask 523264
      %v1573 = vsel %vm1571, %v477, 0
      %1575 = vmatprep.subr.bf16.mxu0 %v1154
      %1576 = vmatpush1.bf16.msra.mxu0 %v1153
      %1577 = vmatprep.subr.bf16.mxu0 %v1152
      %1578 = vmatpush1.bf16.msra.mxu0 %v1151
      %1579 = vmatprep.subr.bf16.mxu0 %v1150
      %1580 = vmatpush1.bf16.msra.mxu0 %v1149
      %1581 = vmatprep.subr.bf16.mxu0 %v1148
      %1582 = vmatpush1.bf16.msra.mxu0 %v1147
      %1583 = vmatprep.subr.bf16.mxu0 %v1146
      %1584 = vmatpush1.bf16.msra.mxu0 %v1145
      %1585 = vmatprep.subr.bf16.mxu0 %v1144
      %1586 = vmatpush1.bf16.msra.mxu0 %v1143
      %1587 = vmatprep.subr.bf16.mxu0 %v1142
      %1588 = vmatpush1.bf16.msra.mxu0 %v1141
      %1589 = vmatprep.subr.bf16.mxu0 %v1140
      %1590 = vmatpush1.bf16.msra.mxu0 %v1139
      %1591 = vmatprep.subr.bf16.mxu0 %v1170
      %1592 = vmatpush2.bf16.msra.mxu0 %v1169
      %1593 = vmatprep.subr.bf16.mxu0 %v1168
      %1594 = vmatpush2.bf16.msra.mxu0 %v1167
      %1595 = vmatprep.subr.bf16.mxu0 %v1166
      %1596 = vmatpush2.bf16.msra.mxu0 %v1165
      %1597 = vmatprep.subr.bf16.mxu0 %v1164
      %1598 = vmatpush2.bf16.msra.mxu0 %v1163
      %1599 = vmatprep.subr.bf16.mxu0 %v1162
      %1600 = vmatpush2.bf16.msra.mxu0 %v1161
      %1601 = vmatprep.subr.bf16.mxu0 %v1160
      %1602 = vmatpush2.bf16.msra.mxu0 %v1159
      %1603 = vmatprep.subr.bf16.mxu0 %v1158
      %1604 = vmatpush2.bf16.msra.mxu0 %v1157
      %1605 = vmatprep.subr.bf16.mxu0 %v1156
      %1606 = vmatpush2.bf16.msra.mxu0 %v1155
      %1607 = vmatprep.mubr.bf16.mxu0 %v465
      %1608 = vmatmul.mubr.bf16.gmra.mxu0 %v464
      %v1609 = vpop.f32.mrf.mxu0
      %v1610 = vadd.f32 %v415, %v1609
      %v1611 = vpop.f32.mrf.mxu0
      %v1612 = vadd.f32 %v419, %v1611
      %v1613 = vpop.f32.mrf.mxu0
      %v1614 = vadd.f32 %v415, %v1613
      %v1615 = vpop.f32.mrf.mxu0
      %v1616 = vadd.f32 %v419, %v1615
      %1617 = vdwg.mxu0
      %1618 = vmatprep.subr.bf16.mxu0 %v1186
      %1619 = vmatpush1.bf16.msra.mxu0 %v1185
      %1620 = vmatprep.subr.bf16.mxu0 %v1184
      %1621 = vmatpush1.bf16.msra.mxu0 %v1183
      %1622 = vmatprep.subr.bf16.mxu0 %v1182
      %1623 = vmatpush1.bf16.msra.mxu0 %v1181
      %1624 = vmatprep.subr.bf16.mxu0 %v1180
      %1625 = vmatpush1.bf16.msra.mxu0 %v1179
      %1626 = vmatprep.subr.bf16.mxu0 %v1178
      %1627 = vmatpush1.bf16.msra.mxu0 %v1177
      %1628 = vmatprep.subr.bf16.mxu0 %v1176
      %1629 = vmatpush1.bf16.msra.mxu0 %v1175
      %1630 = vmatprep.subr.bf16.mxu0 %v1174
      %1631 = vmatpush1.bf16.msra.mxu0 %v1173
      %1632 = vmatprep.subr.bf16.mxu0 %v1172
      %1633 = vmatpush1.bf16.msra.mxu0 %v1171
      %1634 = vmatprep.subr.bf16.mxu0 %v1202
      %1635 = vmatpush2.bf16.msra.mxu0 %v1201
      %1636 = vmatprep.subr.bf16.mxu0 %v1200
      %1637 = vmatpush2.bf16.msra.mxu0 %v1199
      %1638 = vmatprep.subr.bf16.mxu0 %v1198
      %1639 = vmatpush2.bf16.msra.mxu0 %v1197
      %1640 = vmatprep.subr.bf16.mxu0 %v1196
      %1641 = vmatpush2.bf16.msra.mxu0 %v1195
      %1642 = vmatprep.subr.bf16.mxu0 %v1194
      %1643 = vmatpush2.bf16.msra.mxu0 %v1193
      %1644 = vmatprep.subr.bf16.mxu0 %v1192
      %1645 = vmatpush2.bf16.msra.mxu0 %v1191
      %1646 = vmatprep.subr.bf16.mxu0 %v1190
      %1647 = vmatpush2.bf16.msra.mxu0 %v1189
      %1648 = vmatprep.subr.bf16.mxu0 %v1188
      %1649 = vmatpush2.bf16.msra.mxu0 %v1187
      %1650 = vmatprep.mubr.bf16.mxu0 %v467
      %1651 = vmatmul.mubr.bf16.gmra.mxu0 %v466
      %v1652 = vpop.f32.mrf.mxu0
      %v1653 = vadd.f32 %v1610, %v1652
      %v1654 = vpop.f32.mrf.mxu0
      %v1655 = vadd.f32 %v1612, %v1654
      %v1656 = vpop.f32.mrf.mxu0
      %v1657 = vadd.f32 %v1614, %v1656
      %v1658 = vpop.f32.mrf.mxu0
      %v1659 = vadd.f32 %v1616, %v1658
      %1660 = vdwg.mxu0
      %1661 = vmatprep.subr.bf16.mxu0 %v1218
      %1662 = vmatpush1.bf16.msra.mxu0 %v1217
      %1663 = vmatprep.subr.bf16.mxu0 %v1216
      %1664 = vmatpush1.bf16.msra.mxu0 %v1215
      %1665 = vmatprep.subr.bf16.mxu0 %v1214
      %1666 = vmatpush1.bf16.msra.mxu0 %v1213
      %1667 = vmatprep.subr.bf16.mxu0 %v1212
      %1668 = vmatpush1.bf16.msra.mxu0 %v1211
      %1669 = vmatprep.subr.bf16.mxu0 %v1210
      %1670 = vmatpush1.bf16.msra.mxu0 %v1209
      %1671 = vmatprep.subr.bf16.mxu0 %v1208
      %1672 = vmatpush1.bf16.msra.mxu0 %v1207
      %1673 = vmatprep.subr.bf16.mxu0 %v1206
      %1674 = vmatpush1.bf16.msra.mxu0 %v1205
      %1675 = vmatprep.subr.bf16.mxu0 %v1204
      %1676 = vmatpush1.bf16.msra.mxu0 %v1203
      %1677 = vmatprep.subr.bf16.mxu0 %v1234
      %1678 = vmatpush2.bf16.msra.mxu0 %v1233
      %1679 = vmatprep.subr.bf16.mxu0 %v1232
      %1680 = vmatpush2.bf16.msra.mxu0 %v1231
      %1681 = vmatprep.subr.bf16.mxu0 %v1230
      %1682 = vmatpush2.bf16.msra.mxu0 %v1229
      %1683 = vmatprep.subr.bf16.mxu0 %v1228
      %1684 = vmatpush2.bf16.msra.mxu0 %v1227
      %1685 = vmatprep.subr.bf16.mxu0 %v1226
      %1686 = vmatpush2.bf16.msra.mxu0 %v1225
      %1687 = vmatprep.subr.bf16.mxu0 %v1224
      %1688 = vmatpush2.bf16.msra.mxu0 %v1223
      %1689 = vmatprep.subr.bf16.mxu0 %v1222
      %1690 = vmatpush2.bf16.msra.mxu0 %v1221
      %1691 = vmatprep.subr.bf16.mxu0 %v1220
      %1692 = vmatpush2.bf16.msra.mxu0 %v1219
      %1693 = vmatprep.mubr.bf16.mxu0 %v469
      %1694 = vmatmul.mubr.bf16.gmra.mxu0 %v468
      %v1695 = vpop.f32.mrf.mxu0
      %v1696 = vadd.f32 %v1653, %v1695
      %v1697 = vpop.f32.mrf.mxu0
      %v1698 = vadd.f32 %v1655, %v1697
      %v1699 = vpop.f32.mrf.mxu0
      %v1700 = vadd.f32 %v1657, %v1699
      %v1701 = vpop.f32.mrf.mxu0
      %v1702 = vadd.f32 %v1659, %v1701
      %1703 = vdwg.mxu0
      %1704 = vmatprep.subr.bf16.mxu0 %v1250
      %1705 = vmatpush1.bf16.msra.mxu0 %v1249
      %1706 = vmatprep.subr.bf16.mxu0 %v1248
      %1707 = vmatpush1.bf16.msra.mxu0 %v1247
      %1708 = vmatprep.subr.bf16.mxu0 %v1246
      %1709 = vmatpush1.bf16.msra.mxu0 %v1245
      %1710 = vmatprep.subr.bf16.mxu0 %v1244
      %1711 = vmatpush1.bf16.msra.mxu0 %v1243
      %1712 = vmatprep.subr.bf16.mxu0 %v1242
      %1713 = vmatpush1.bf16.msra.mxu0 %v1241
      %1714 = vmatprep.subr.bf16.mxu0 %v1240
      %1715 = vmatpush1.bf16.msra.mxu0 %v1239
      %1716 = vmatprep.subr.bf16.mxu0 %v1238
      %1717 = vmatpush1.bf16.msra.mxu0 %v1237
      %1718 = vmatprep.subr.bf16.mxu0 %v1236
      %1719 = vmatpush1.bf16.msra.mxu0 %v1235
      %1720 = vmatprep.subr.bf16.mxu0 %v1266
      %1721 = vmatpush2.bf16.msra.mxu0 %v1265
      %1722 = vmatprep.subr.bf16.mxu0 %v1264
      %1723 = vmatpush2.bf16.msra.mxu0 %v1263
      %1724 = vmatprep.subr.bf16.mxu0 %v1262
      %1725 = vmatpush2.bf16.msra.mxu0 %v1261
      %1726 = vmatprep.subr.bf16.mxu0 %v1260
      %1727 = vmatpush2.bf16.msra.mxu0 %v1259
      %1728 = vmatprep.subr.bf16.mxu0 %v1258
      %1729 = vmatpush2.bf16.msra.mxu0 %v1257
      %1730 = vmatprep.subr.bf16.mxu0 %v1256
      %1731 = vmatpush2.bf16.msra.mxu0 %v1255
      %1732 = vmatprep.subr.bf16.mxu0 %v1254
      %1733 = vmatpush2.bf16.msra.mxu0 %v1253
      %1734 = vmatprep.subr.bf16.mxu0 %v1252
      %1735 = vmatpush2.bf16.msra.mxu0 %v1251
      %1736 = vmatprep.mubr.bf16.mxu0 %v471
      %1737 = vmatmul.mubr.bf16.gmra.mxu0 %v470
      %v1738 = vpop.f32.mrf.mxu0
      %v1739 = vadd.f32 %v1696, %v1738
      %v1740 = vpop.f32.mrf.mxu0
      %v1741 = vadd.f32 %v1698, %v1740
      %v1742 = vpop.f32.mrf.mxu0
      %v1743 = vadd.f32 %v1700, %v1742
      %v1744 = vpop.f32.mrf.mxu0
      %v1745 = vadd.f32 %v1702, %v1744
      %1746 = vdwg.mxu0
      %1747 = vmatprep.subr.bf16.mxu0 %v1282
      %1748 = vmatpush1.bf16.msra.mxu0 %v1281
      %1749 = vmatprep.subr.bf16.mxu0 %v1280
      %1750 = vmatpush1.bf16.msra.mxu0 %v1279
      %1751 = vmatprep.subr.bf16.mxu0 %v1278
      %1752 = vmatpush1.bf16.msra.mxu0 %v1277
      %1753 = vmatprep.subr.bf16.mxu0 %v1276
      %1754 = vmatpush1.bf16.msra.mxu0 %v1275
      %1755 = vmatprep.subr.bf16.mxu0 %v1274
      %1756 = vmatpush1.bf16.msra.mxu0 %v1273
      %1757 = vmatprep.subr.bf16.mxu0 %v1272
      %1758 = vmatpush1.bf16.msra.mxu0 %v1271
      %1759 = vmatprep.subr.bf16.mxu0 %v1270
      %1760 = vmatpush1.bf16.msra.mxu0 %v1269
      %1761 = vmatprep.subr.bf16.mxu0 %v1268
      %1762 = vmatpush1.bf16.msra.mxu0 %v1267
      %1763 = vmatprep.subr.bf16.mxu0 %v1298
      %1764 = vmatpush2.bf16.msra.mxu0 %v1297
      %1765 = vmatprep.subr.bf16.mxu0 %v1296
      %1766 = vmatpush2.bf16.msra.mxu0 %v1295
      %1767 = vmatprep.subr.bf16.mxu0 %v1294
      %1768 = vmatpush2.bf16.msra.mxu0 %v1293
      %1769 = vmatprep.subr.bf16.mxu0 %v1292
      %1770 = vmatpush2.bf16.msra.mxu0 %v1291
      %1771 = vmatprep.subr.bf16.mxu0 %v1290
      %1772 = vmatpush2.bf16.msra.mxu0 %v1289
      %1773 = vmatprep.subr.bf16.mxu0 %v1288
      %1774 = vmatpush2.bf16.msra.mxu0 %v1287
      %1775 = vmatprep.subr.bf16.mxu0 %v1286
      %1776 = vmatpush2.bf16.msra.mxu0 %v1285
      %1777 = vmatprep.subr.bf16.mxu0 %v1284
      %1778 = vmatpush2.bf16.msra.mxu0 %v1283
      %1779 = vmatprep.mubr.bf16.mxu0 %v473
      %1780 = vmatmul.mubr.bf16.gmra.mxu0 %v472
      %v1781 = vpop.f32.mrf.mxu0
      %v1782 = vadd.f32 %v1739, %v1781
      %v1783 = vpop.f32.mrf.mxu0
      %v1784 = vadd.f32 %v1741, %v1783
      %v1785 = vpop.f32.mrf.mxu0
      %v1786 = vadd.f32 %v1743, %v1785
      %v1787 = vpop.f32.mrf.mxu0
      %v1788 = vadd.f32 %v1745, %v1787
      %1789 = vdwg.mxu0
      %1790 = vmatprep.subr.bf16.mxu0 %v1314
      %1791 = vmatpush1.bf16.msra.mxu0 %v1313
      %1792 = vmatprep.subr.bf16.mxu0 %v1312
      %1793 = vmatpush1.bf16.msra.mxu0 %v1311
      %1794 = vmatprep.subr.bf16.mxu0 %v1310
      %1795 = vmatpush1.bf16.msra.mxu0 %v1309
      %1796 = vmatprep.subr.bf16.mxu0 %v1308
      %1797 = vmatpush1.bf16.msra.mxu0 %v1307
      %1798 = vmatprep.subr.bf16.mxu0 %v1306
      %1799 = vmatpush1.bf16.msra.mxu0 %v1305
      %1800 = vmatprep.subr.bf16.mxu0 %v1304
      %1801 = vmatpush1.bf16.msra.mxu0 %v1303
      %1802 = vmatprep.subr.bf16.mxu0 %v1302
      %1803 = vmatpush1.bf16.msra.mxu0 %v1301
      %1804 = vmatprep.subr.bf16.mxu0 %v1300
      %1805 = vmatpush1.bf16.msra.mxu0 %v1299
      %1806 = vmatprep.subr.bf16.mxu0 %v1330
      %1807 = vmatpush2.bf16.msra.mxu0 %v1329
      %1808 = vmatprep.subr.bf16.mxu0 %v1328
      %1809 = vmatpush2.bf16.msra.mxu0 %v1327
      %1810 = vmatprep.subr.bf16.mxu0 %v1326
      %1811 = vmatpush2.bf16.msra.mxu0 %v1325
      %1812 = vmatprep.subr.bf16.mxu0 %v1324
      %1813 = vmatpush2.bf16.msra.mxu0 %v1323
      %1814 = vmatprep.subr.bf16.mxu0 %v1322
      %1815 = vmatpush2.bf16.msra.mxu0 %v1321
      %1816 = vmatprep.subr.bf16.mxu0 %v1320
      %1817 = vmatpush2.bf16.msra.mxu0 %v1319
      %1818 = vmatprep.subr.bf16.mxu0 %v1318
      %1819 = vmatpush2.bf16.msra.mxu0 %v1317
      %1820 = vmatprep.subr.bf16.mxu0 %v1316
      %1821 = vmatpush2.bf16.msra.mxu0 %v1315
      %1822 = vmatprep.mubr.bf16.mxu0 %v475
      %1823 = vmatmul.mubr.bf16.gmra.mxu0 %v474
      %v1824 = vpop.f32.mrf.mxu0
      %v1825 = vadd.f32 %v1782, %v1824
      %v1826 = vpop.f32.mrf.mxu0
      %v1827 = vadd.f32 %v1784, %v1826
      %v1828 = vpop.f32.mrf.mxu0
      %v1829 = vadd.f32 %v1786, %v1828
      %v1830 = vpop.f32.mrf.mxu0
      %v1831 = vadd.f32 %v1788, %v1830
      %1832 = vdwg.mxu0
      %1833 = vmatprep.subr.bf16.mxu0 %v1346
      %1834 = vmatpush1.bf16.msra.mxu0 %v1345
      %1835 = vmatprep.subr.bf16.mxu0 %v1344
      %1836 = vmatpush1.bf16.msra.mxu0 %v1343
      %1837 = vmatprep.subr.bf16.mxu0 %v1342
      %1838 = vmatpush1.bf16.msra.mxu0 %v1341
      %1839 = vmatprep.subr.bf16.mxu0 %v1340
      %1840 = vmatpush1.bf16.msra.mxu0 %v1339
      %1841 = vmatprep.subr.bf16.mxu0 %v1338
      %1842 = vmatpush1.bf16.msra.mxu0 %v1337
      %1843 = vmatprep.subr.bf16.mxu0 %v1336
      %1844 = vmatpush1.bf16.msra.mxu0 %v1335
      %1845 = vmatprep.subr.bf16.mxu0 %v1334
      %1846 = vmatpush1.bf16.msra.mxu0 %v1333
      %1847 = vmatprep.subr.bf16.mxu0 %v1332
      %1848 = vmatpush1.bf16.msra.mxu0 %v1331
      %1849 = vmatprep.subr.bf16.mxu0 0
      %1850 = vmatpush2.bf16.msra.mxu0 0
      %1851 = vmatprep.subr.bf16.mxu0 0
      %1852 = vmatpush2.bf16.msra.mxu0 0
      %1853 = vmatprep.subr.bf16.mxu0 0
      %1854 = vmatpush2.bf16.msra.mxu0 0
      %1855 = vmatprep.subr.bf16.mxu0 0
      %1856 = vmatpush2.bf16.msra.mxu0 0
      %1857 = vmatprep.subr.bf16.mxu0 %v1354
      %1858 = vmatpush2.bf16.msra.mxu0 %v1353
      %1859 = vmatprep.subr.bf16.mxu0 %v1352
      %1860 = vmatpush2.bf16.msra.mxu0 %v1351
      %1861 = vmatprep.subr.bf16.mxu0 %v1350
      %1862 = vmatpush2.bf16.msra.mxu0 %v1349
      %1863 = vmatprep.subr.bf16.mxu0 %v1348
      %1864 = vmatpush2.bf16.msra.mxu0 %v1347
      %1865 = vmatprep.mubr.bf16.mxu0 %v1573
      %1866 = vmatmul.mubr.bf16.gmra.mxu0 %v476
      %v1867 = vpop.f32.mrf.mxu0
      %v1868 = vadd.f32 %v1825, %v1867
      %v1869 = vpop.f32.mrf.mxu0
      %v1870 = vadd.f32 %v1827, %v1869
      %v1871 = vpop.f32.mrf.mxu0
      %v1872 = vadd.f32 %v1829, %v1871
      %v1873 = vpop.f32.mrf.mxu0
      %v1874 = vadd.f32 %v1831, %v1873
      %1875 = vdwg.mxu0
      %v1876 = vmax.f32 %v1868, 0.0
      %v1877 = vmax.f32 %v1870, 0.0
      %v1878 = vmax.f32 %v1872, 0.0
      %v1879 = vmax.f32 %v1874, 0.0
      %v1880 = vunpack.c.l.bf16 %v180
      %v1881 = vunpack.c.h.bf16 %v180
      %v1882 = vunpack.c.l.bf16 %v187
      %v1883 = vunpack.c.h.bf16 %v187
      %1884 = vrot.lane.b32.xlu0 %v180, 64
      %v1885 = vpop.permute.xlu0 %1884
      %1886 = vrot.lane.b32.xlu0 %v181, 64
      %v1887 = vpop.permute.xlu0 %1886
      %1888 = vrot.lane.b32.xlu0 %v187, 64
      %v1889 = vpop.permute.xlu0 %1888
      %1890 = vrot.lane.b32.xlu0 %v188, 64
      %v1891 = vpop.permute.xlu0 %1890
      %v1892 = vrot.slane %v1885, 4
      %v1893 = vrot.slane %v1887, 4
      %v1894 = vrot.slane %v1889, 4
      %v1895 = vrot.slane %v1891, 4
      %vm1896 = vcmask 1043456
      %v1897 = vsel %vm1896, %v1892, %v1893
      %vm1898 = vcmask 523264
      %v1899 = vsel %vm1898, %v1897, %v1887
      %v1900 = vsel %vm1896, %v1894, %v1895
      %v1901 = vsel %vm1898, %v1900, %v1891
      %v1904 = vunpack.c.l.bf16 %v1899
      %v1905 = vunpack.c.h.bf16 %v1899
      %v1906 = vunpack.c.l.bf16 %v1901
      %v1907 = vunpack.c.h.bf16 %v1901
      %v1908 = vmax.f32 %v1880, %v1904
      %v1909 = vmax.f32 %v1881, %v1905
      %v1910 = vmax.f32 %v1882, %v1906
      %v1911 = vmax.f32 %v1883, %v1907
      %v1912 = vrot.slane %v181, 4
      %v1913 = vrot.slane %v182, 4
      %v1914 = vrot.slane %v188, 4
      %v1915 = vrot.slane %v189, 4
      %v1916 = vsel %vm1896, %v1912, %v1913
      %v1917 = vsel %vm1896, %v1914, %v1915
      %v1920 = vunpack.c.l.bf16 %v1916
      %v1921 = vunpack.c.h.bf16 %v1916
      %v1922 = vunpack.c.l.bf16 %v1917
      %v1923 = vunpack.c.h.bf16 %v1917
      %v1924 = vmax.f32 %v1908, %v1920
      %v1925 = vmax.f32 %v1909, %v1921
      %v1926 = vmax.f32 %v1910, %v1922
      %v1927 = vmax.f32 %v1911, %v1923
      %v1928 = vunpack.c.l.bf16 %v182
      %v1929 = vunpack.c.h.bf16 %v182
      %v1930 = vunpack.c.l.bf16 %v189
      %v1931 = vunpack.c.h.bf16 %v189
      %1936 = vrot.lane.b32.xlu0 %v1928, 64
      %v1937 = vpop.permute.xlu0 %1936
      %1938 = vrot.lane.b32.xlu0 %v1929, 64
      %v1939 = vpop.permute.xlu0 %1938
      %1940 = vrot.lane.b32.xlu0 %v1930, 64
      %v1941 = vpop.permute.xlu0 %1940
      %1942 = vrot.lane.b32.xlu0 %v1931, 64
      %v1943 = vpop.permute.xlu0 %1942
      %v1944 = vsel %vm1571, %v1937, %v1939
      %v1945 = vsel %vm1571, %v1941, %v1943
      %v1950 = vmax.f32 %v1924, %v1944
      %v1951 = vmax.f32 %v1925, %v1939
      %v1952 = vmax.f32 %v1926, %v1945
      %v1953 = vmax.f32 %v1927, %v1943
      %v1954 = vunpack.c.l.bf16 %v183
      %v1955 = vunpack.c.h.bf16 %v183
      %v1956 = vunpack.c.l.bf16 %v190
      %v1957 = vunpack.c.h.bf16 %v190
      %v1958 = vmax.f32 %v1950, %v1954
      %v1959 = vmax.f32 %v1951, %v1955
      %v1960 = vmax.f32 %v1952, %v1956
      %v1961 = vmax.f32 %v1953, %v1957
      %1962 = vrot.lane.b32.xlu0 %v183, 64
      %v1963 = vpop.permute.xlu0 %1962
      %1964 = vrot.lane.b32.xlu0 %v184, 64
      %v1965 = vpop.permute.xlu0 %1964
      %1966 = vrot.lane.b32.xlu0 %v190, 64
      %v1967 = vpop.permute.xlu0 %1966
      %1968 = vrot.lane.b32.xlu0 %v191, 64
      %v1969 = vpop.permute.xlu0 %1968
      %v1970 = vrot.slane %v1963, 4
      %v1971 = vrot.slane %v1965, 4
      %v1972 = vrot.slane %v1967, 4
      %v1973 = vrot.slane %v1969, 4
      %v1974 = vsel %vm1896, %v1970, %v1971
      %v1975 = vsel %vm1898, %v1974, %v1965
      %v1976 = vsel %vm1896, %v1972, %v1973
      %v1977 = vsel %vm1898, %v1976, %v1969
      %v1980 = vunpack.c.l.bf16 %v1975
      %v1981 = vunpack.c.h.bf16 %v1975
      %v1982 = vunpack.c.l.bf16 %v1977
      %v1983 = vunpack.c.h.bf16 %v1977
      %v1984 = vmax.f32 %v1958, %v1980
      %v1985 = vmax.f32 %v1959, %v1981
      %v1986 = vmax.f32 %v1960, %v1982
      %v1987 = vmax.f32 %v1961, %v1983
      %v1988 = vrot.slane %v184, 4
      %v1989 = vrot.slane %v185, 4
      %v1990 = vrot.slane %v191, 4
      %v1991 = vrot.slane %v192, 4
      %v1992 = vsel %vm1896, %v1988, %v1989
      %v1993 = vsel %vm1896, %v1990, %v1991
      %v1996 = vunpack.c.l.bf16 %v1992
      %v1997 = vunpack.c.h.bf16 %v1992
      %v1998 = vunpack.c.l.bf16 %v1993
      %v1999 = vunpack.c.h.bf16 %v1993
      %v2000 = vmax.f32 %v1984, %v1996
      %v2001 = vmax.f32 %v1985, %v1997
      %v2002 = vmax.f32 %v1986, %v1998
      %v2003 = vmax.f32 %v1987, %v1999
      %v2004 = vunpack.c.l.bf16 %v185
      %v2005 = vunpack.c.h.bf16 %v185
      %v2006 = vunpack.c.l.bf16 %v192
      %v2007 = vunpack.c.h.bf16 %v192
      %2012 = vrot.lane.b32.xlu0 %v2004, 64
      %v2013 = vpop.permute.xlu0 %2012
      %2014 = vrot.lane.b32.xlu0 %v2005, 64
      %v2015 = vpop.permute.xlu0 %2014
      %2016 = vrot.lane.b32.xlu0 %v2006, 64
      %v2017 = vpop.permute.xlu0 %2016
      %2018 = vrot.lane.b32.xlu0 %v2007, 64
      %v2019 = vpop.permute.xlu0 %2018
      %v2020 = vsel %vm1571, %v2013, %v2015
      %v2021 = vsel %vm1571, %v2017, %v2019
      %v2026 = vmax.f32 %v2000, %v2020
      %v2027 = vmax.f32 %v2001, %v2015
      %v2028 = vmax.f32 %v2002, %v2021
      %v2029 = vmax.f32 %v2003, %v2019
      %v2030 = vunpack.c.l.bf16 %v186
      %v2031 = vunpack.c.h.bf16 %v186
      %v2032 = vunpack.c.l.bf16 %v193
      %v2033 = vunpack.c.h.bf16 %v193
      %v2034 = vmax.f32 %v2026, %v2030
      %v2035 = vmax.f32 %v2027, %v2031
      %v2036 = vmax.f32 %v2028, %v2032
      %v2037 = vmax.f32 %v2029, %v2033
      %v2038 = vpack.c.bf16 %v2036, %v2034
      %v2039 = vpack.c.bf16 %v2037, %v2035
      %v2042 = vunpack.c.l.b16 %v2038
      %v2043 = vunpack.c.l.b16 %v2039
      %v2044 = vunpack.c.h.b16 %v2038
      %v2045 = vunpack.c.h.b16 %v2039
      %v2046 = vpack.c.b16 %v2043, %v2042
      %v2047 = vpack.c.b16 %v2045, %v2044
      %vm2050 = vcmask 1043456
      %vm2051 = vcmask 523268
      %vm2052 = vmor %vm2051, %vm2050
      %2053 = vst.msk [vmem:[%s177] sm:$0xff] %vm2052, %v2046
      %2054 = vst.msk [vmem:[%s177 + $0xc] sm:$0xff] %vm2052, %v2047
      %v2055 = vpack.c.bf16 %v1878, %v1876
      %v2056 = vpack.c.bf16 %v1879, %v1877
      %v2059 = vunpack.c.l.b16 %v2055
      %v2060 = vunpack.c.l.b16 %v2056
      %v2061 = vunpack.c.h.b16 %v2055
      %v2062 = vunpack.c.h.b16 %v2056
      %v2063 = vpack.c.b16 %v2060, %v2059
      %v2064 = vpack.c.b16 %v2062, %v2061
      %2065 = vrot.lane.b32.xlu0 %v2063, 64
      %v2066 = vpop.permute.xlu0 %2065
      %2067 = vrot.lane.b32.xlu0 %v2064, 64
      %v2068 = vpop.permute.xlu0 %2067
      %v2069 = vrot.slane %v2066, 4
      %v2070 = vrot.slane %v2068, 4
      %v2071 = vsel %vm1898, %v2069, %v2066
      %v2072 = vsel %vm1898, %v2070, %v2068
      %vm2075 = vcmask 1043968
      %vm2076 = vcmask 1047556
      %vm2077 = vmor %vm2076, %vm2075
      %2078 = vst.msk [vmem:[%s177 + $0x4] sm:$0xff] %vm2077, %v2071
      %2079 = vst.msk [vmem:[%s177 + $0x10] sm:$0xff] %vm2077, %v2072
      %s2080 = smul.u32 2, %s14
      %p2081 = scmp.lt.s32.totalorder %s2080, 3
      %s2082 = scalar_select %p2081, %s2080, 3
      %s2083 = smul.addr %s2082, 3
      %s2084 = smul.addr %s2083, 4
      %s2085 = scalar_lea.vmem %s3, %s2084
      // Predicated region
      $region33: #{stem_v4_res2.17} parent=31 // pred_check
        %p2086 = pneg %p100
      $region34: #{stem_v4_res2.17} parent=31 // pred_check_branch
        %2088 = sbr.rel (%p2086) target = $region36
      $region35: #{stem_v4_res2.17} parent=31 // pred_region
        %s2089 = smul.u32 2, %s14
      $region36: #{stem_v4_res2.17} parent=31 // pred_fallthru
        _
    $region32: #{stem_v4_res2.17} parent=5 // pred_fallthru
      _
    %p2090 = scmp.le.s32.totalorder 2, %s9
    // Predicated region
    $region37: #{stem_v4_res2.17} parent=5 // pred_check
      %p2091 = pneg %p2090
    $region38: #{stem_v4_res2.17} parent=5 // pred_check_branch
      %2093 = sbr.rel (%p2091) target = $region40
    $region39: #{stem_v4_res2.17} parent=5 // pred_region
      %s2094 = ssub.s32 %s9, 2
      // Predicated region
      $region41: #{stem_v4_res2.17} parent=39 // pred_check
        %p2095 = pneg %p106
      $region42: #{stem_v4_res2.17} parent=39 // pred_check_branch
        %2097 = sbr.rel (%p2095) target = $region44
      $region43: #{stem_v4_res2.17} parent=39 // pred_region
        %s2098 = smul.u32 2, %s15
        %p2099 = scmp.lt.s32.totalorder %s2098, 3
        %s2100 = scalar_select %p2099, %s2098, 3
        %s2101 = smul.addr %s2100, 3
        %s2102 = smul.addr %s2101, 4
        %s2103 = scalar_lea.vmem %s3, %s2102
      $region44: #{stem_v4_res2.17} parent=39 // pred_fallthru
        _
    $region40: #{stem_v4_res2.17} parent=5 // pred_fallthru
      _
  $region6: #{stem_v4_res2.17} parent=0 // loop_footer
    %s13 = sadd.s32 1, %s9
  $region7: #{stem_v4_res2.17} parent=0 // loop_footer_branch
    %8 = sbr.rel target = $region3
  $region8: #{stem_v4_res2.17} parent=0 // loop_exit
    _

</llo_original>
